<compile_context>
chip_gen: v7x
topology: tpu7x:2x2x1
jax: 0.10.0
libtpu: 0.0.40
codegen_flags: <defaults>
</compile_context>

<pallas_src>
import jax
import jax.numpy as jnp
from jax import lax
from jax.experimental import pallas as pl
from jax.experimental.pallas import tpu as pltpu


def _round_up(x, m):
    return (x + m - 1) // m * m


# ----------------------------------------------------------------------------
# VMEM budgeting (generation aware) and time-chunk selection.
# ----------------------------------------------------------------------------
def _vmem_budget_bytes():
    # ~75% of physical VMEM per TensorCore (v7x: 64 MiB -> 48 MiB,
    # v5e/v6e: 128 MiB -> 96 MiB), capped at 96 MiB.
    try:
        cap = int(pltpu.get_tpu_info().vmem_capacity_bytes)
    except Exception:
        cap = 64 * 1024 * 1024
    return min((cap * 3) // 4, 96 * 1024 * 1024)


def _select_time_chunk(T, Bp, Hp, budget_bytes, cap=32):
    """Largest Tc (capped to bound trace size) whose resident VMEM fits."""
    # Per-timestep resident bytes: double-buffered bf16 gates chunks (both
    # directions) + double-buffered f32 h-output chunks (both directions).
    per_t = 2 * (2 * Bp * 4 * Hp * 2) + 2 * (2 * Bp * Hp * 4)
    # Fixed residents: W_hh^T both directions (bf16, double-buffered),
    # four carries, c_n output block (double-buffered).
    fixed = 2 * (2 * Hp * 4 * Hp * 2) + 4 * Bp * Hp * 4 + 2 * (2 * Bp * Hp * 4)
    avail = max(budget_bytes - fixed, per_t)
    return int(max(1, min(cap, T, avail // per_t)))


# ----------------------------------------------------------------------------
# Fused bidirectional LSTM chunk kernel: one grid step processes Tc timesteps
# of BOTH directions (forward walks its chunk left->right, backward walks its
# chunk right->left).  All per-step indices are trace-time constants.
# ----------------------------------------------------------------------------
def _make_bilstm_kernel(tc, pad, nchunks):
    cap_fwd_s = tc - 1 - pad   # loop step where the forward dir hits time T-1
    cap_bwd_s = pad            # loop step where the backward dir hits time T-1

    def kernel(gxf_ref, gxb_ref, wf_ref, wb_ref,
               hf_ref, hb_ref, cn_ref,
               hf_c, cf_c, hb_c, cb_c):
        chunk = pl.program_id(0)
        hp = hf_c.shape[1]

        @pl.when(chunk == 0)
        def _():
            hf_c[...] = jnp.zeros_like(hf_c)
            cf_c[...] = jnp.zeros_like(cf_c)
            hb_c[...] = jnp.zeros_like(hb_c)
            cb_c[...] = jnp.zeros_like(cb_c)

        # Resident weights (constant index map -> fetched once).
        w_f = wf_ref[...]          # [Hp, 4Hp] bf16
        w_b = wb_ref[...]          # [Hp, 4Hp] bf16

        def cell(gx_bf16, h_prev, c_prev, w):
            gates = gx_bf16.astype(jnp.float32) + jnp.dot(
                h_prev.astype(jnp.bfloat16), w,
                preferred_element_type=jnp.float32)
            i_g = gates[:, 0 * hp:1 * hp]
            f_g = gates[:, 1 * hp:2 * hp]
            g_g = gates[:, 2 * hp:3 * hp]
            o_g = gates[:, 3 * hp:4 * hp]
            c_t = (jax.nn.sigmoid(f_g) * c_prev
                   + jax.nn.sigmoid(i_g) * jnp.tanh(g_g))
            h_t = jax.nn.sigmoid(o_g) * jnp.tanh(c_t)
            return h_t, c_t

        h_f = hf_c[...]
        c_f = cf_c[...]
        h_b = hb_c[...]
        c_b = cb_c[...]
        c_f_cap = c_f
        c_b_cap = c_b

        # Static, direction-specialized walk: forward uses local index s,
        # backward uses tc-1-s; both are Python ints -> static slices/stores,
        # no per-step selects or dynamic address math.
        for s in range(tc):
            h_f, c_f = cell(gxf_ref[s], h_f, c_f, w_f)
            hf_ref[s] = h_f
            if s == cap_fwd_s:
                c_f_cap = c_f

            lt = tc - 1 - s
            h_b, c_b = cell(gxb_ref[lt], h_b, c_b, w_b)
            hb_ref[lt] = h_b
            if s == cap_bwd_s:
                c_b_cap = c_b

        hf_c[...] = h_f
        cf_c[...] = c_f
        hb_c[...] = h_b
        cb_c[...] = c_b

        # c_n = cell state at global forward time T-1 for each direction
        # (forward reaches it in the last chunk, backward in the first).
        @pl.when(chunk == nchunks - 1)
        def _():
            cn_ref[0] = c_f_cap

        @pl.when(chunk == 0)
        def _():
            cn_ref[1] = c_b_cap

    return kernel


# ----------------------------------------------------------------------------
# Weight preparation: per-gate zero padding so each gate occupies a
# lane-aligned [*, Hp] block of the 4Hp gate axis.
# ----------------------------------------------------------------------------
def _pad_gate_rows(w, hp):
    h = w.shape[0] // 4
    pads = [(0, hp - h)] + [(0, 0)] * (w.ndim - 1)
    return jnp.concatenate(
        [jnp.pad(w[k * h:(k + 1) * h], pads) for k in range(4)], axis=0)


def _prep_direction(w_ih, w_hh, bias, hp):
    h = w_hh.shape[1]
    w_ih_p = _pad_gate_rows(jnp.asarray(w_ih, jnp.float32), hp)       # [4Hp, I]
    w_hh_p = _pad_gate_rows(jnp.asarray(w_hh, jnp.float32), hp)       # [4Hp, H]
    w_hh_p = jnp.pad(w_hh_p, ((0, 0), (0, hp - h)))                   # [4Hp, Hp]
    b_p = _pad_gate_rows(jnp.asarray(bias, jnp.float32).reshape(-1, 1), hp)[:, 0]
    # [I, 4Hp] f32,  [Hp, 4Hp] bf16 (MXU operands),  [4Hp] f32
    return w_ih_p.T, w_hh_p.T.astype(jnp.bfloat16), b_p


# ----------------------------------------------------------------------------
# LSTMlayer.forward equivalent (bidirectional, batch_norm=False).
# ----------------------------------------------------------------------------
@jax.jit
def lstm_layer_forward(sequence, params):
    """sequence: [T, B, I] -> (h [T,B,2H], (h_n [2,B,H], c_n [2,B,H]))."""
    T, B, I = sequence.shape
    H = params["weight_hh"].shape[1]
    Hp = _round_up(max(H, 1), 256 if H >= 256 else 128)
    Bp = _round_up(max(B, 1), 8)

    vmem_limit = _vmem_budget_bytes()
    Tc = _select_time_chunk(T, Bp, Hp, vmem_limit - 4 * 1024 * 1024)
    nchunks = -(-T // Tc)
    Tpad = nchunks * Tc
    pad = Tpad - T

    w_ih_f, w_hh_f, b_f = _prep_direction(
        params["weight_ih"], params["weight_hh"], params["bias"], Hp)
    w_ih_b, w_hh_b, b_b = _prep_direction(
        params["weight_ih_reverse"], params["weight_hh_reverse"],
        params["bias_reverse"], Hp)

    seq = jnp.asarray(sequence, jnp.float32)
    seq = jnp.pad(seq, ((0, 0), (0, Bp - B), (0, 0)))                 # [T, Bp, I]

    # Hoisted input projection: one large MXU matmul per direction, bias folded
    # into the einsum epilogue, streamed to the kernel as bf16 (halves the
    # dominant HBM stream).  Zero rows appended past T: zero gates with zero
    # state keep the LSTM state exactly zero, so the padded steps the backward
    # direction consumes first are no-ops, and the forward direction's trailing
    # padded rows are simply sliced off afterwards.
    def proj(w_ih, b):
        gx = jnp.einsum("tbi,if->tbf", seq, w_ih,
                        preferred_element_type=jnp.float32) + b[None, None, :]
        gx = gx.astype(jnp.bfloat16)
        return jnp.pad(gx, ((0, pad), (0, 0), (0, 0)))                # [Tpad,Bp,4Hp]

    gx_f = proj(w_ih_f, b_f)
    gx_b = proj(w_ih_b, b_b)

    kernel = _make_bilstm_kernel(Tc, pad, nchunks)

    grid_spec = pltpu.PrefetchScalarGridSpec(
        num_scalar_prefetch=0,
        grid=(nchunks,),
        in_specs=[
            pl.BlockSpec((Tc, Bp, 4 * Hp), lambda c: (c, 0, 0)),                # fwd gates chunk
            pl.BlockSpec((Tc, Bp, 4 * Hp), lambda c: (nchunks - 1 - c, 0, 0)),  # bwd gates chunk
            pl.BlockSpec((Hp, 4 * Hp), lambda c: (0, 0)),                       # W_hh^T fwd (resident)
            pl.BlockSpec((Hp, 4 * Hp), lambda c: (0, 0)),                       # W_hh^T bwd (resident)
        ],
        out_specs=(
            pl.BlockSpec((Tc, Bp, Hp), lambda c: (c, 0, 0)),                    # h fwd chunk
            pl.BlockSpec((Tc, Bp, Hp), lambda c: (nchunks - 1 - c, 0, 0)),      # h bwd chunk
            pl.BlockSpec((2, Bp, Hp), lambda c: (0, 0, 0)),                     # c at time T-1
        ),
        scratch_shapes=[
            pltpu.VMEM((Bp, Hp), jnp.float32),      # h fwd carry
            pltpu.VMEM((Bp, Hp), jnp.float32),      # c fwd carry
            pltpu.VMEM((Bp, Hp), jnp.float32),      # h bwd carry
            pltpu.VMEM((Bp, Hp), jnp.float32),      # c bwd carry
        ],
    )

    h_f, h_b, c_n_pad = pl.pallas_call(
        kernel,
        out_shape=(jax.ShapeDtypeStruct((Tpad, Bp, Hp), jnp.float32),
                   jax.ShapeDtypeStruct((Tpad, Bp, Hp), jnp.float32),
                   jax.ShapeDtypeStruct((2, Bp, Hp), jnp.float32)),
        grid_spec=grid_spec,
        compiler_params=pltpu.CompilerParams(
            dimension_semantics=("arbitrary",),
            vmem_limit_bytes=vmem_limit,
        ),
    )(gx_f, gx_b, w_hh_f, w_hh_b)

    h = jnp.concatenate([h_f[:T, :B, :H], h_b[:T, :B, :H]], axis=-1)            # [T,B,2H]
    c_last = jnp.concatenate([c_n_pad[0, :B, :H], c_n_pad[1, :B, :H]], axis=-1)  # [B,2H]
    # Mirror the module's `.view(n_directions, B, H)` on the contiguous [B, 2H] slice.
    h_n = h[-1].reshape(2, B, H)
    c_n = c_last.reshape(2, B, H)
    return h, (h_n, c_n)


# ----------------------------------------------------------------------------
# Deterministic parameter initialisation (mirrors LSTMlayer.__init__ shapes:
# weight_ih orthogonal per-gate block, weight_hh identity per-gate block,
# bias zeros).
# ----------------------------------------------------------------------------
def _orthogonal_block(key, rows, cols):
    a = jax.random.normal(key, (rows, cols), dtype=jnp.float32)
    transpose = rows < cols
    if transpose:
        a = a.T
    q, r = jnp.linalg.qr(a)
    q = q * jnp.sign(jnp.diagonal(r))
    if transpose:
        q = q.T
    return q[:rows, :cols]


def init_lstm_layer_params(key, input_size, hidden_size):
    keys = jax.random.split(key, 8)

    def make_weight_ih(ks):
        blocks = [_orthogonal_block(k, hidden_size, input_size) for k in ks]
        return jnp.concatenate(blocks, axis=0)                       # [4H, I]

    weight_ih = make_weight_ih(keys[0:4])
    weight_ih_rev = make_weight_ih(keys[4:8])
    eye_block = jnp.eye(hidden_size, hidden_size, dtype=jnp.float32)
    weight_hh = jnp.concatenate([eye_block] * 4, axis=0)             # [4H, H]
    weight_hh_rev = jnp.concatenate([eye_block] * 4, axis=0)
    bias = jnp.zeros((4 * hidden_size, 1), jnp.float32)
    bias_rev = jnp.zeros((4 * hidden_size, 1), jnp.float32)
    return {
        "weight_ih": weight_ih,
        "weight_hh": weight_hh,
        "bias": bias,
        "weight_ih_reverse": weight_ih_rev,
        "weight_hh_reverse": weight_hh_rev,
        "bias_reverse": bias_rev,
    }


# ----------------------------------------------------------------------------
# Pure-JAX reference (mirrors lstm_cell / sequence_pass) for a sanity check.
# ----------------------------------------------------------------------------
def _ref_direction(seq, w_ih, w_hh, bias):
    H = w_hh.shape[1]
    B = seq.shape[1]

    def step(carry, x_t):
        h, c = carry                                     # [H, B]
        ifgo = w_hh @ h + w_ih @ x_t.T + bias            # [4H, B]
        i, f, g, o = jnp.split(ifgo, 4, axis=0)
        c_t = jax.nn.sigmoid(f) * c + jax.nn.sigmoid(i) * jnp.tanh(g)
        h_t = jax.nn.sigmoid(o) * jnp.tanh(c_t)
        return (h_t, c_t), (h_t, c_t)

    h0 = jnp.zeros((H, B), jnp.float32)
    c0 = jnp.zeros((H, B), jnp.float32)
    _, (hs, cs) = lax.scan(step, (h0, c0), seq)
    return hs.transpose(0, 2, 1), cs.transpose(0, 2, 1)  # [T, B, H]


def _ref_forward(sequence, params):
    h_f, c_f = _ref_direction(sequence, params["weight_ih"],
                              params["weight_hh"], params["bias"])
    seq_rev = jnp.flip(sequence, axis=0)
    h_b, c_b = _ref_direction(seq_rev, params["weight_ih_reverse"],
                              params["weight_hh_reverse"], params["bias_reverse"])
    h_b = jnp.flip(h_b, axis=0)
    c_b = jnp.flip(c_b, axis=0)
    h = jnp.concatenate([h_f, h_b], axis=2)
    c = jnp.concatenate([c_f, c_b], axis=2)
    B = sequence.shape[1]
    H = params["weight_hh"].shape[1]
    return h, (h[-1].reshape(2, B, H), c[-1].reshape(2, B, H))


if __name__ == "__main__":
    T, B, I, H = 16, 2, 8, 32
    key = jax.random.PRNGKey(0)
    k_seq, k_params = jax.random.split(key)

    sequence = jax.random.normal(k_seq, (T, B, I), dtype=jnp.float32)
    params = init_lstm_layer_params(k_params, I, H)

    h, (h_n, c_n) = lstm_layer_forward(sequence, params)
    jax.block_until_ready((h, h_n, c_n))

    # sanity check against the pure-JAX reference of the PyTorch semantics
    h_ref, (h_n_ref, c_n_ref) = _ref_forward(sequence, params)
    assert h.shape == (T, B, 2 * H)
    assert h_n.shape == (2, B, H) and c_n.shape == (2, B, H)
    assert jnp.allclose(h, h_ref, atol=5e-2, rtol=5e-2)
    assert jnp.allclose(h_n, h_n_ref, atol=5e-2, rtol=5e-2)
    assert jnp.allclose(c_n, c_n_ref, atol=5e-2, rtol=5e-2)

    print("KERNEL_OK")
</pallas_src>

<mosaic_0001>
module attributes {stable_mosaic.version = 11 : i64} {
  func.func @kernel(%arg0: i32, %arg1: memref<16x8x512xbf16, #tpu.memory_space<vmem>>, %arg2: memref<16x8x512xbf16, #tpu.memory_space<vmem>>, %arg3: memref<128x512xbf16, #tpu.memory_space<vmem>>, %arg4: memref<128x512xbf16, #tpu.memory_space<vmem>>, %arg5: memref<16x8x128xf32, #tpu.memory_space<vmem>>, %arg6: memref<16x8x128xf32, #tpu.memory_space<vmem>>, %arg7: memref<2x8x128xf32, #tpu.memory_space<vmem>>, %arg8: memref<8x128xf32, #tpu.memory_space<vmem>>, %arg9: memref<8x128xf32, #tpu.memory_space<vmem>>, %arg10: memref<8x128xf32, #tpu.memory_space<vmem>>, %arg11: memref<8x128xf32, #tpu.memory_space<vmem>>) attributes {dimension_semantics = [#tpu.dimension_semantics<arbitrary>], iteration_bounds = array<i64: 1>, scalar_prefetch = 0 : i64, scratch_operands = 4 : i64, tpu.core_type = #tpu.core_type<tc>, window_params = [{transform_indices = @transform_0, window_bounds = array<i64: 16, 8, 512>}, {transform_indices = @transform_1, window_bounds = array<i64: 16, 8, 512>}, {pipeline_mode = #tpu.pipeline_mode<synchronous>, transform_indices = @transform_2, window_bounds = array<i64: 128, 512>}, {pipeline_mode = #tpu.pipeline_mode<synchronous>, transform_indices = @transform_3, window_bounds = array<i64: 128, 512>}, {transform_indices = @transform_4, window_bounds = array<i64: 16, 8, 128>}, {transform_indices = @transform_5, window_bounds = array<i64: 16, 8, 128>}, {pipeline_mode = #tpu.pipeline_mode<synchronous>, transform_indices = @transform_6, window_bounds = array<i64: 2, 8, 128>}]} {
    %c0_i32 = arith.constant 0 : i32
    %0 = arith.cmpi eq, %arg0, %c0_i32 : i32
    %1 = arith.extui %0 : i1 to i32
    %c0_i32_0 = arith.constant 0 : i32
    %2 = arith.cmpi ne, %1, %c0_i32_0 : i32
    scf.if %2 {
      %cst_328 = arith.constant 0.000000e+00 : f32
      %1107 = vector.broadcast %cst_328 : f32 to vector<8x128xf32>
      %c0_329 = arith.constant 0 : index
      %c0_330 = arith.constant 0 : index
      %1108 = vector.load %arg8[%c0_329, %c0_330] : memref<8x128xf32, #tpu.memory_space<vmem>>, vector<8x128xf32>
      tpu.vector_store %arg8[%c0_329, %c0_330], %1107 {strides = array<i32>} : memref<8x128xf32, #tpu.memory_space<vmem>>, vector<8x128xf32>,
      %cst_331 = arith.constant 0.000000e+00 : f32
      %1109 = vector.broadcast %cst_331 : f32 to vector<8x128xf32>
      %c0_332 = arith.constant 0 : index
      %c0_333 = arith.constant 0 : index
      %1110 = vector.load %arg9[%c0_332, %c0_333] : memref<8x128xf32, #tpu.memory_space<vmem>>, vector<8x128xf32>
      tpu.vector_store %arg9[%c0_332, %c0_333], %1109 {strides = array<i32>} : memref<8x128xf32, #tpu.memory_space<vmem>>, vector<8x128xf32>,
      %cst_334 = arith.constant 0.000000e+00 : f32
      %1111 = vector.broadcast %cst_334 : f32 to vector<8x128xf32>
      %c0_335 = arith.constant 0 : index
      %c0_336 = arith.constant 0 : index
      %1112 = vector.load %arg10[%c0_335, %c0_336] : memref<8x128xf32, #tpu.memory_space<vmem>>, vector<8x128xf32>
      tpu.vector_store %arg10[%c0_335, %c0_336], %1111 {strides = array<i32>} : memref<8x128xf32, #tpu.memory_space<vmem>>, vector<8x128xf32>,
      %cst_337 = arith.constant 0.000000e+00 : f32
      %1113 = vector.broadcast %cst_337 : f32 to vector<8x128xf32>
      %c0_338 = arith.constant 0 : index
      %c0_339 = arith.constant 0 : index
      %1114 = vector.load %arg11[%c0_338, %c0_339] : memref<8x128xf32, #tpu.memory_space<vmem>>, vector<8x128xf32>
      tpu.vector_store %arg11[%c0_338, %c0_339], %1113 {strides = array<i32>} : memref<8x128xf32, #tpu.memory_space<vmem>>, vector<8x128xf32>,
    } else {
    }
    %c0 = arith.constant 0 : index
    %c0_1 = arith.constant 0 : index
    %3 = vector.load %arg3[%c0, %c0_1] : memref<128x512xbf16, #tpu.memory_space<vmem>>, vector<128x512xbf16>
    %c0_2 = arith.constant 0 : index
    %c0_3 = arith.constant 0 : index
    %4 = vector.load %arg4[%c0_2, %c0_3] : memref<128x512xbf16, #tpu.memory_space<vmem>>, vector<128x512xbf16>
    %c0_4 = arith.constant 0 : index
    %c0_5 = arith.constant 0 : index
    %5 = vector.load %arg8[%c0_4, %c0_5] : memref<8x128xf32, #tpu.memory_space<vmem>>, vector<8x128xf32>
    %c0_6 = arith.constant 0 : index
    %c0_7 = arith.constant 0 : index
    %6 = vector.load %arg9[%c0_6, %c0_7] : memref<8x128xf32, #tpu.memory_space<vmem>>, vector<8x128xf32>
    %c0_8 = arith.constant 0 : index
    %c0_9 = arith.constant 0 : index
    %7 = vector.load %arg10[%c0_8, %c0_9] : memref<8x128xf32, #tpu.memory_space<vmem>>, vector<8x128xf32>
    %c0_10 = arith.constant 0 : index
    %c0_11 = arith.constant 0 : index
    %8 = vector.load %arg11[%c0_10, %c0_11] : memref<8x128xf32, #tpu.memory_space<vmem>>, vector<8x128xf32>
    %c0_12 = arith.constant 0 : index
    %c0_13 = arith.constant 0 : index
    %c0_14 = arith.constant 0 : index
    %9 = vector.load %arg1[%c0_12, %c0_13, %c0_14] : memref<16x8x512xbf16, #tpu.memory_space<vmem>>, vector<1x8x512xbf16>
    %10 = vector.shape_cast %9 : vector<1x8x512xbf16> to vector<8x512xbf16>
    %11 = arith.extf %10 : vector<8x512xbf16> to vector<8x512xf32>
    %12 = arith.truncf %5 : vector<8x128xf32> to vector<8x128xbf16>
    %cst = arith.constant dense<0.000000e+00> : vector<8x512xf32>
    %13 = tpu.matmul %12, %3, %cst {dimension_numbers = #tpu.dot_dimension_numbers<[1], [0], [0], [1], [0, 0, 1, 1], [], []>} : vector<8x128xbf16>, vector<128x512xbf16>, vector<8x512xf32> -> vector<8x512xf32>
    %14 = arith.addf %11, %13 : vector<8x512xf32>
    %15 = vector.extract_strided_slice %14 {offsets = [0, 0], sizes = [8, 128], strides = [1, 1]} : vector<8x512xf32> to vector<8x128xf32>
    %16 = vector.extract_strided_slice %14 {offsets = [0, 128], sizes = [8, 128], strides = [1, 1]} : vector<8x512xf32> to vector<8x128xf32>
    %17 = vector.extract_strided_slice %14 {offsets = [0, 256], sizes = [8, 128], strides = [1, 1]} : vector<8x512xf32> to vector<8x128xf32>
    %18 = vector.extract_strided_slice %14 {offsets = [0, 384], sizes = [8, 128], strides = [1, 1]} : vector<8x512xf32> to vector<8x128xf32>
    %19 = arith.negf %16 : vector<8x128xf32>
    %20 = math.exp %19 : vector<8x128xf32>
    %cst_15 = arith.constant 1.000000e+00 : f32
    %21 = vector.broadcast %cst_15 : f32 to vector<8x128xf32>
    %22 = arith.addf %21, %20 : vector<8x128xf32>
    %23 = arith.divf %21, %22 : vector<8x128xf32>
    %24 = arith.mulf %23, %6 : vector<8x128xf32>
    %25 = arith.negf %15 : vector<8x128xf32>
    %26 = math.exp %25 : vector<8x128xf32>
    %cst_16 = arith.constant 1.000000e+00 : f32
    %27 = vector.broadcast %cst_16 : f32 to vector<8x128xf32>
    %28 = arith.addf %27, %26 : vector<8x128xf32>
    %29 = arith.divf %27, %28 : vector<8x128xf32>
    %30 = math.tanh %17 : vector<8x128xf32>
    %31 = arith.mulf %29, %30 : vector<8x128xf32>
    %32 = arith.addf %24, %31 : vector<8x128xf32>
    %33 = arith.negf %18 : vector<8x128xf32>
    %34 = math.exp %33 : vector<8x128xf32>
    %cst_17 = arith.constant 1.000000e+00 : f32
    %35 = vector.broadcast %cst_17 : f32 to vector<8x128xf32>
    %36 = arith.addf %35, %34 : vector<8x128xf32>
    %37 = arith.divf %35, %36 : vector<8x128xf32>
    %38 = math.tanh %32 : vector<8x128xf32>
    %39 = arith.mulf %37, %38 : vector<8x128xf32>
    %c0_18 = arith.constant 0 : index
    %c0_19 = arith.constant 0 : index
    %c0_20 = arith.constant 0 : index
    %40 = vector.load %arg5[%c0_18, %c0_19, %c0_20] : memref<16x8x128xf32, #tpu.memory_space<vmem>>, vector<1x8x128xf32>
    %41 = vector.shape_cast %40 : vector<1x8x128xf32> to vector<8x128xf32>
    %42 = vector.shape_cast %39 : vector<8x128xf32> to vector<1x8x128xf32>
    tpu.vector_store %arg5[%c0_18, %c0_19, %c0_20], %42 {strides = array<i32>} : memref<16x8x128xf32, #tpu.memory_space<vmem>>, vector<1x8x128xf32>,
    %c15 = arith.constant 15 : index
    %c0_21 = arith.constant 0 : index
    %c0_22 = arith.constant 0 : index
    %43 = vector.load %arg2[%c15, %c0_21, %c0_22] : memref<16x8x512xbf16, #tpu.memory_space<vmem>>, vector<1x8x512xbf16>
    %44 = vector.shape_cast %43 : vector<1x8x512xbf16> to vector<8x512xbf16>
    %45 = arith.extf %44 : vector<8x512xbf16> to vector<8x512xf32>
    %46 = arith.truncf %7 : vector<8x128xf32> to vector<8x128xbf16>
    %cst_23 = arith.constant dense<0.000000e+00> : vector<8x512xf32>
    %47 = tpu.matmul %46, %4, %cst_23 {dimension_numbers = #tpu.dot_dimension_numbers<[1], [0], [0], [1], [0, 0, 1, 1], [], []>} : vector<8x128xbf16>, vector<128x512xbf16>, vector<8x512xf32> -> vector<8x512xf32>
    %48 = arith.addf %45, %47 : vector<8x512xf32>
    %49 = vector.extract_strided_slice %48 {offsets = [0, 0], sizes = [8, 128], strides = [1, 1]} : vector<8x512xf32> to vector<8x128xf32>
    %50 = vector.extract_strided_slice %48 {offsets = [0, 128], sizes = [8, 128], strides = [1, 1]} : vector<8x512xf32> to vector<8x128xf32>
    %51 = vector.extract_strided_slice %48 {offsets = [0, 256], sizes = [8, 128], strides = [1, 1]} : vector<8x512xf32> to vector<8x128xf32>
    %52 = vector.extract_strided_slice %48 {offsets = [0, 384], sizes = [8, 128], strides = [1, 1]} : vector<8x512xf32> to vector<8x128xf32>
    %53 = arith.negf %50 : vector<8x128xf32>
    %54 = math.exp %53 : vector<8x128xf32>
    %cst_24 = arith.constant 1.000000e+00 : f32
    %55 = vector.broadcast %cst_24 : f32 to vector<8x128xf32>
    %56 = arith.addf %55, %54 : vector<8x128xf32>
    %57 = arith.divf %55, %56 : vector<8x128xf32>
    %58 = arith.mulf %57, %8 : vector<8x128xf32>
    %59 = arith.negf %49 : vector<8x128xf32>
    %60 = math.exp %59 : vector<8x128xf32>
    %cst_25 = arith.constant 1.000000e+00 : f32
    %61 = vector.broadcast %cst_25 : f32 to vector<8x128xf32>
    %62 = arith.addf %61, %60 : vector<8x128xf32>
    %63 = arith.divf %61, %62 : vector<8x128xf32>
    %64 = math.tanh %51 : vector<8x128xf32>
    %65 = arith.mulf %63, %64 : vector<8x128xf32>
    %66 = arith.addf %58, %65 : vector<8x128xf32>
    %67 = arith.negf %52 : vector<8x128xf32>
    %68 = math.exp %67 : vector<8x128xf32>
    %cst_26 = arith.constant 1.000000e+00 : f32
    %69 = vector.broadcast %cst_26 : f32 to vector<8x128xf32>
    %70 = arith.addf %69, %68 : vector<8x128xf32>
    %71 = arith.divf %69, %70 : vector<8x128xf32>
    %72 = math.tanh %66 : vector<8x128xf32>
    %73 = arith.mulf %71, %72 : vector<8x128xf32>
    %c15_27 = arith.constant 15 : index
    %c0_28 = arith.constant 0 : index
    %c0_29 = arith.constant 0 : index
    %74 = vector.load %arg6[%c15_27, %c0_28, %c0_29] : memref<16x8x128xf32, #tpu.memory_space<vmem>>, vector<1x8x128xf32>
    %75 = vector.shape_cast %74 : vector<1x8x128xf32> to vector<8x128xf32>
    %76 = vector.shape_cast %73 : vector<8x128xf32> to vector<1x8x128xf32>
    tpu.vector_store %arg6[%c15_27, %c0_28, %c0_29], %76 {strides = array<i32>} : memref<16x8x128xf32, #tpu.memory_space<vmem>>, vector<1x8x128xf32>,
    %c1 = arith.constant 1 : index
    %c0_30 = arith.constant 0 : index
    %c0_31 = arith.constant 0 : index
    %77 = vector.load %arg1[%c1, %c0_30, %c0_31] : memref<16x8x512xbf16, #tpu.memory_space<vmem>>, vector<1x8x512xbf16>
    %78 = vector.shape_cast %77 : vector<1x8x512xbf16> to vector<8x512xbf16>
    %79 = arith.extf %78 : vector<8x512xbf16> to vector<8x512xf32>
    %80 = arith.truncf %39 : vector<8x128xf32> to vector<8x128xbf16>
    %cst_32 = arith.constant dense<0.000000e+00> : vector<8x512xf32>
    %81 = tpu.matmul %80, %3, %cst_32 {dimension_numbers = #tpu.dot_dimension_numbers<[1], [0], [0], [1], [0, 0, 1, 1], [], []>} : vector<8x128xbf16>, vector<128x512xbf16>, vector<8x512xf32> -> vector<8x512xf32>
    %82 = arith.addf %79, %81 : vector<8x512xf32>
    %83 = vector.extract_strided_slice %82 {offsets = [0, 0], sizes = [8, 128], strides = [1, 1]} : vector<8x512xf32> to vector<8x128xf32>
    %84 = vector.extract_strided_slice %82 {offsets = [0, 128], sizes = [8, 128], strides = [1, 1]} : vector<8x512xf32> to vector<8x128xf32>
    %85 = vector.extract_strided_slice %82 {offsets = [0, 256], sizes = [8, 128], strides = [1, 1]} : vector<8x512xf32> to vector<8x128xf32>
    %86 = vector.extract_strided_slice %82 {offsets = [0, 384], sizes = [8, 128], strides = [1, 1]} : vector<8x512xf32> to vector<8x128xf32>
    %87 = arith.negf %84 : vector<8x128xf32>
    %88 = math.exp %87 : vector<8x128xf32>
    %cst_33 = arith.constant 1.000000e+00 : f32
    %89 = vector.broadcast %cst_33 : f32 to vector<8x128xf32>
    %90 = arith.addf %89, %88 : vector<8x128xf32>
    %91 = arith.divf %89, %90 : vector<8x128xf32>
    %92 = arith.mulf %91, %32 : vector<8x128xf32>
    %93 = arith.negf %83 : vector<8x128xf32>
    %94 = math.exp %93 : vector<8x128xf32>
    %cst_34 = arith.constant 1.000000e+00 : f32
    %95 = vector.broadcast %cst_34 : f32 to vector<8x128xf32>
    %96 = arith.addf %95, %94 : vector<8x128xf32>
    %97 = arith.divf %95, %96 : vector<8x128xf32>
    %98 = math.tanh %85 : vector<8x128xf32>
    %99 = arith.mulf %97, %98 : vector<8x128xf32>
    %100 = arith.addf %92, %99 : vector<8x128xf32>
    %101 = arith.negf %86 : vector<8x128xf32>
    %102 = math.exp %101 : vector<8x128xf32>
    %cst_35 = arith.constant 1.000000e+00 : f32
    %103 = vector.broadcast %cst_35 : f32 to vector<8x128xf32>
    %104 = arith.addf %103, %102 : vector<8x128xf32>
    %105 = arith.divf %103, %104 : vector<8x128xf32>
    %106 = math.tanh %100 : vector<8x128xf32>
    %107 = arith.mulf %105, %106 : vector<8x128xf32>
    %c1_36 = arith.constant 1 : index
    %c0_37 = arith.constant 0 : index
    %c0_38 = arith.constant 0 : index
    %108 = vector.load %arg5[%c1_36, %c0_37, %c0_38] : memref<16x8x128xf32, #tpu.memory_space<vmem>>, vector<1x8x128xf32>
    %109 = vector.shape_cast %108 : vector<1x8x128xf32> to vector<8x128xf32>
    %110 = vector.shape_cast %107 : vector<8x128xf32> to vector<1x8x128xf32>
    tpu.vector_store %arg5[%c1_36, %c0_37, %c0_38], %110 {strides = array<i32>} : memref<16x8x128xf32, #tpu.memory_space<vmem>>, vector<1x8x128xf32>,
    %c14 = arith.constant 14 : index
    %c0_39 = arith.constant 0 : index
    %c0_40 = arith.constant 0 : index
    %111 = vector.load %arg2[%c14, %c0_39, %c0_40] : memref<16x8x512xbf16, #tpu.memory_space<vmem>>, vector<1x8x512xbf16>
    %112 = vector.shape_cast %111 : vector<1x8x512xbf16> to vector<8x512xbf16>
    %113 = arith.extf %112 : vector<8x512xbf16> to vector<8x512xf32>
    %114 = arith.truncf %73 : vector<8x128xf32> to vector<8x128xbf16>
    %cst_41 = arith.constant dense<0.000000e+00> : vector<8x512xf32>
    %115 = tpu.matmul %114, %4, %cst_41 {dimension_numbers = #tpu.dot_dimension_numbers<[1], [0], [0], [1], [0, 0, 1, 1], [], []>} : vector<8x128xbf16>, vector<128x512xbf16>, vector<8x512xf32> -> vector<8x512xf32>
    %116 = arith.addf %113, %115 : vector<8x512xf32>
    %117 = vector.extract_strided_slice %116 {offsets = [0, 0], sizes = [8, 128], strides = [1, 1]} : vector<8x512xf32> to vector<8x128xf32>
    %118 = vector.extract_strided_slice %116 {offsets = [0, 128], sizes = [8, 128], strides = [1, 1]} : vector<8x512xf32> to vector<8x128xf32>
    %119 = vector.extract_strided_slice %116 {offsets = [0, 256], sizes = [8, 128], strides = [1, 1]} : vector<8x512xf32> to vector<8x128xf32>
    %120 = vector.extract_strided_slice %116 {offsets = [0, 384], sizes = [8, 128], strides = [1, 1]} : vector<8x512xf32> to vector<8x128xf32>
    %121 = arith.negf %118 : vector<8x128xf32>
    %122 = math.exp %121 : vector<8x128xf32>
    %cst_42 = arith.constant 1.000000e+00 : f32
    %123 = vector.broadcast %cst_42 : f32 to vector<8x128xf32>
    %124 = arith.addf %123, %122 : vector<8x128xf32>
    %125 = arith.divf %123, %124 : vector<8x128xf32>
    %126 = arith.mulf %125, %66 : vector<8x128xf32>
    %127 = arith.negf %117 : vector<8x128xf32>
    %128 = math.exp %127 : vector<8x128xf32>
    %cst_43 = arith.constant 1.000000e+00 : f32
    %129 = vector.broadcast %cst_43 : f32 to vector<8x128xf32>
    %130 = arith.addf %129, %128 : vector<8x128xf32>
    %131 = arith.divf %129, %130 : vector<8x128xf32>
    %132 = math.tanh %119 : vector<8x128xf32>
    %133 = arith.mulf %131, %132 : vector<8x128xf32>
    %134 = arith.addf %126, %133 : vector<8x128xf32>
    %135 = arith.negf %120 : vector<8x128xf32>
    %136 = math.exp %135 : vector<8x128xf32>
    %cst_44 = arith.constant 1.000000e+00 : f32
    %137 = vector.broadcast %cst_44 : f32 to vector<8x128xf32>
    %138 = arith.addf %137, %136 : vector<8x128xf32>
    %139 = arith.divf %137, %138 : vector<8x128xf32>
    %140 = math.tanh %134 : vector<8x128xf32>
    %141 = arith.mulf %139, %140 : vector<8x128xf32>
    %c14_45 = arith.constant 14 : index
    %c0_46 = arith.constant 0 : index
    %c0_47 = arith.constant 0 : index
    %142 = vector.load %arg6[%c14_45, %c0_46, %c0_47] : memref<16x8x128xf32, #tpu.memory_space<vmem>>, vector<1x8x128xf32>
    %143 = vector.shape_cast %142 : vector<1x8x128xf32> to vector<8x128xf32>
    %144 = vector.shape_cast %141 : vector<8x128xf32> to vector<1x8x128xf32>
    tpu.vector_store %arg6[%c14_45, %c0_46, %c0_47], %144 {strides = array<i32>} : memref<16x8x128xf32, #tpu.memory_space<vmem>>, vector<1x8x128xf32>,
    %c2 = arith.constant 2 : index
    %c0_48 = arith.constant 0 : index
    %c0_49 = arith.constant 0 : index
    %145 = vector.load %arg1[%c2, %c0_48, %c0_49] : memref<16x8x512xbf16, #tpu.memory_space<vmem>>, vector<1x8x512xbf16>
    %146 = vector.shape_cast %145 : vector<1x8x512xbf16> to vector<8x512xbf16>
    %147 = arith.extf %146 : vector<8x512xbf16> to vector<8x512xf32>
    %148 = arith.truncf %107 : vector<8x128xf32> to vector<8x128xbf16>
    %cst_50 = arith.constant dense<0.000000e+00> : vector<8x512xf32>
    %149 = tpu.matmul %148, %3, %cst_50 {dimension_numbers = #tpu.dot_dimension_numbers<[1], [0], [0], [1], [0, 0, 1, 1], [], []>} : vector<8x128xbf16>, vector<128x512xbf16>, vector<8x512xf32> -> vector<8x512xf32>
    %150 = arith.addf %147, %149 : vector<8x512xf32>
    %151 = vector.extract_strided_slice %150 {offsets = [0, 0], sizes = [8, 128], strides = [1, 1]} : vector<8x512xf32> to vector<8x128xf32>
    %152 = vector.extract_strided_slice %150 {offsets = [0, 128], sizes = [8, 128], strides = [1, 1]} : vector<8x512xf32> to vector<8x128xf32>
    %153 = vector.extract_strided_slice %150 {offsets = [0, 256], sizes = [8, 128], strides = [1, 1]} : vector<8x512xf32> to vector<8x128xf32>
    %154 = vector.extract_strided_slice %150 {offsets = [0, 384], sizes = [8, 128], strides = [1, 1]} : vector<8x512xf32> to vector<8x128xf32>
    %155 = arith.negf %152 : vector<8x128xf32>
    %156 = math.exp %155 : vector<8x128xf32>
    %cst_51 = arith.constant 1.000000e+00 : f32
    %157 = vector.broadcast %cst_51 : f32 to vector<8x128xf32>
    %158 = arith.addf %157, %156 : vector<8x128xf32>
    %159 = arith.divf %157, %158 : vector<8x128xf32>
    %160 = arith.mulf %159, %100 : vector<8x128xf32>
    %161 = arith.negf %151 : vector<8x128xf32>
    %162 = math.exp %161 : vector<8x128xf32>
    %cst_52 = arith.constant 1.000000e+00 : f32
    %163 = vector.broadcast %cst_52 : f32 to vector<8x128xf32>
    %164 = arith.addf %163, %162 : vector<8x128xf32>
    %165 = arith.divf %163, %164 : vector<8x128xf32>
    %166 = math.tanh %153 : vector<8x128xf32>
    %167 = arith.mulf %165, %166 : vector<8x128xf32>
    %168 = arith.addf %160, %167 : vector<8x128xf32>
    %169 = arith.negf %154 : vector<8x128xf32>
    %170 = math.exp %169 : vector<8x128xf32>
    %cst_53 = arith.constant 1.000000e+00 : f32
    %171 = vector.broadcast %cst_53 : f32 to vector<8x128xf32>
    %172 = arith.addf %171, %170 : vector<8x128xf32>
    %173 = arith.divf %171, %172 : vector<8x128xf32>
    %174 = math.tanh %168 : vector<8x128xf32>
    %175 = arith.mulf %173, %174 : vector<8x128xf32>
    %c2_54 = arith.constant 2 : index
    %c0_55 = arith.constant 0 : index
    %c0_56 = arith.constant 0 : index
    %176 = vector.load %arg5[%c2_54, %c0_55, %c0_56] : memref<16x8x128xf32, #tpu.memory_space<vmem>>, vector<1x8x128xf32>
    %177 = vector.shape_cast %176 : vector<1x8x128xf32> to vector<8x128xf32>
    %178 = vector.shape_cast %175 : vector<8x128xf32> to vector<1x8x128xf32>
    tpu.vector_store %arg5[%c2_54, %c0_55, %c0_56], %178 {strides = array<i32>} : memref<16x8x128xf32, #tpu.memory_space<vmem>>, vector<1x8x128xf32>,
    %c13 = arith.constant 13 : index
    %c0_57 = arith.constant 0 : index
    %c0_58 = arith.constant 0 : index
    %179 = vector.load %arg2[%c13, %c0_57, %c0_58] : memref<16x8x512xbf16, #tpu.memory_space<vmem>>, vector<1x8x512xbf16>
    %180 = vector.shape_cast %179 : vector<1x8x512xbf16> to vector<8x512xbf16>
    %181 = arith.extf %180 : vector<8x512xbf16> to vector<8x512xf32>
    %182 = arith.truncf %141 : vector<8x128xf32> to vector<8x128xbf16>
    %cst_59 = arith.constant dense<0.000000e+00> : vector<8x512xf32>
    %183 = tpu.matmul %182, %4, %cst_59 {dimension_numbers = #tpu.dot_dimension_numbers<[1], [0], [0], [1], [0, 0, 1, 1], [], []>} : vector<8x128xbf16>, vector<128x512xbf16>, vector<8x512xf32> -> vector<8x512xf32>
    %184 = arith.addf %181, %183 : vector<8x512xf32>
    %185 = vector.extract_strided_slice %184 {offsets = [0, 0], sizes = [8, 128], strides = [1, 1]} : vector<8x512xf32> to vector<8x128xf32>
    %186 = vector.extract_strided_slice %184 {offsets = [0, 128], sizes = [8, 128], strides = [1, 1]} : vector<8x512xf32> to vector<8x128xf32>
    %187 = vector.extract_strided_slice %184 {offsets = [0, 256], sizes = [8, 128], strides = [1, 1]} : vector<8x512xf32> to vector<8x128xf32>
    %188 = vector.extract_strided_slice %184 {offsets = [0, 384], sizes = [8, 128], strides = [1, 1]} : vector<8x512xf32> to vector<8x128xf32>
    %189 = arith.negf %186 : vector<8x128xf32>
    %190 = math.exp %189 : vector<8x128xf32>
    %cst_60 = arith.constant 1.000000e+00 : f32
    %191 = vector.broadcast %cst_60 : f32 to vector<8x128xf32>
    %192 = arith.addf %191, %190 : vector<8x128xf32>
    %193 = arith.divf %191, %192 : vector<8x128xf32>
    %194 = arith.mulf %193, %134 : vector<8x128xf32>
    %195 = arith.negf %185 : vector<8x128xf32>
    %196 = math.exp %195 : vector<8x128xf32>
    %cst_61 = arith.constant 1.000000e+00 : f32
    %197 = vector.broadcast %cst_61 : f32 to vector<8x128xf32>
    %198 = arith.addf %197, %196 : vector<8x128xf32>
    %199 = arith.divf %197, %198 : vector<8x128xf32>
    %200 = math.tanh %187 : vector<8x128xf32>
    %201 = arith.mulf %199, %200 : vector<8x128xf32>
    %202 = arith.addf %194, %201 : vector<8x128xf32>
    %203 = arith.negf %188 : vector<8x128xf32>
    %204 = math.exp %203 : vector<8x128xf32>
    %cst_62 = arith.constant 1.000000e+00 : f32
    %205 = vector.broadcast %cst_62 : f32 to vector<8x128xf32>
    %206 = arith.addf %205, %204 : vector<8x128xf32>
    %207 = arith.divf %205, %206 : vector<8x128xf32>
    %208 = math.tanh %202 : vector<8x128xf32>
    %209 = arith.mulf %207, %208 : vector<8x128xf32>
    %c13_63 = arith.constant 13 : index
    %c0_64 = arith.constant 0 : index
    %c0_65 = arith.constant 0 : index
    %210 = vector.load %arg6[%c13_63, %c0_64, %c0_65] : memref<16x8x128xf32, #tpu.memory_space<vmem>>, vector<1x8x128xf32>
    %211 = vector.shape_cast %210 : vector<1x8x128xf32> to vector<8x128xf32>
    %212 = vector.shape_cast %209 : vector<8x128xf32> to vector<1x8x128xf32>
    tpu.vector_store %arg6[%c13_63, %c0_64, %c0_65], %212 {strides = array<i32>} : memref<16x8x128xf32, #tpu.memory_space<vmem>>, vector<1x8x128xf32>,
    %c3 = arith.constant 3 : index
    %c0_66 = arith.constant 0 : index
    %c0_67 = arith.constant 0 : index
    %213 = vector.load %arg1[%c3, %c0_66, %c0_67] : memref<16x8x512xbf16, #tpu.memory_space<vmem>>, vector<1x8x512xbf16>
    %214 = vector.shape_cast %213 : vector<1x8x512xbf16> to vector<8x512xbf16>
    %215 = arith.extf %214 : vector<8x512xbf16> to vector<8x512xf32>
    %216 = arith.truncf %175 : vector<8x128xf32> to vector<8x128xbf16>
    %cst_68 = arith.constant dense<0.000000e+00> : vector<8x512xf32>
    %217 = tpu.matmul %216, %3, %cst_68 {dimension_numbers = #tpu.dot_dimension_numbers<[1], [0], [0], [1], [0, 0, 1, 1], [], []>} : vector<8x128xbf16>, vector<128x512xbf16>, vector<8x512xf32> -> vector<8x512xf32>
    %218 = arith.addf %215, %217 : vector<8x512xf32>
    %219 = vector.extract_strided_slice %218 {offsets = [0, 0], sizes = [8, 128], strides = [1, 1]} : vector<8x512xf32> to vector<8x128xf32>
    %220 = vector.extract_strided_slice %218 {offsets = [0, 128], sizes = [8, 128], strides = [1, 1]} : vector<8x512xf32> to vector<8x128xf32>
    %221 = vector.extract_strided_slice %218 {offsets = [0, 256], sizes = [8, 128], strides = [1, 1]} : vector<8x512xf32> to vector<8x128xf32>
    %222 = vector.extract_strided_slice %218 {offsets = [0, 384], sizes = [8, 128], strides = [1, 1]} : vector<8x512xf32> to vector<8x128xf32>
    %223 = arith.negf %220 : vector<8x128xf32>
    %224 = math.exp %223 : vector<8x128xf32>
    %cst_69 = arith.constant 1.000000e+00 : f32
    %225 = vector.broadcast %cst_69 : f32 to vector<8x128xf32>
    %226 = arith.addf %225, %224 : vector<8x128xf32>
    %227 = arith.divf %225, %226 : vector<8x128xf32>
    %228 = arith.mulf %227, %168 : vector<8x128xf32>
    %229 = arith.negf %219 : vector<8x128xf32>
    %230 = math.exp %229 : vector<8x128xf32>
    %cst_70 = arith.constant 1.000000e+00 : f32
    %231 = vector.broadcast %cst_70 : f32 to vector<8x128xf32>
    %232 = arith.addf %231, %230 : vector<8x128xf32>
    %233 = arith.divf %231, %232 : vector<8x128xf32>
    %234 = math.tanh %221 : vector<8x128xf32>
    %235 = arith.mulf %233, %234 : vector<8x128xf32>
    %236 = arith.addf %228, %235 : vector<8x128xf32>
    %237 = arith.negf %222 : vector<8x128xf32>
    %238 = math.exp %237 : vector<8x128xf32>
    %cst_71 = arith.constant 1.000000e+00 : f32
    %239 = vector.broadcast %cst_71 : f32 to vector<8x128xf32>
    %240 = arith.addf %239, %238 : vector<8x128xf32>
    %241 = arith.divf %239, %240 : vector<8x128xf32>
    %242 = math.tanh %236 : vector<8x128xf32>
    %243 = arith.mulf %241, %242 : vector<8x128xf32>
    %c3_72 = arith.constant 3 : index
    %c0_73 = arith.constant 0 : index
    %c0_74 = arith.constant 0 : index
    %244 = vector.load %arg5[%c3_72, %c0_73, %c0_74] : memref<16x8x128xf32, #tpu.memory_space<vmem>>, vector<1x8x128xf32>
    %245 = vector.shape_cast %244 : vector<1x8x128xf32> to vector<8x128xf32>
    %246 = vector.shape_cast %243 : vector<8x128xf32> to vector<1x8x128xf32>
    tpu.vector_store %arg5[%c3_72, %c0_73, %c0_74], %246 {strides = array<i32>} : memref<16x8x128xf32, #tpu.memory_space<vmem>>, vector<1x8x128xf32>,
    %c12 = arith.constant 12 : index
    %c0_75 = arith.constant 0 : index
    %c0_76 = arith.constant 0 : index
    %247 = vector.load %arg2[%c12, %c0_75, %c0_76] : memref<16x8x512xbf16, #tpu.memory_space<vmem>>, vector<1x8x512xbf16>
    %248 = vector.shape_cast %247 : vector<1x8x512xbf16> to vector<8x512xbf16>
    %249 = arith.extf %248 : vector<8x512xbf16> to vector<8x512xf32>
    %250 = arith.truncf %209 : vector<8x128xf32> to vector<8x128xbf16>
    %cst_77 = arith.constant dense<0.000000e+00> : vector<8x512xf32>
    %251 = tpu.matmul %250, %4, %cst_77 {dimension_numbers = #tpu.dot_dimension_numbers<[1], [0], [0], [1], [0, 0, 1, 1], [], []>} : vector<8x128xbf16>, vector<128x512xbf16>, vector<8x512xf32> -> vector<8x512xf32>
    %252 = arith.addf %249, %251 : vector<8x512xf32>
    %253 = vector.extract_strided_slice %252 {offsets = [0, 0], sizes = [8, 128], strides = [1, 1]} : vector<8x512xf32> to vector<8x128xf32>
    %254 = vector.extract_strided_slice %252 {offsets = [0, 128], sizes = [8, 128], strides = [1, 1]} : vector<8x512xf32> to vector<8x128xf32>
    %255 = vector.extract_strided_slice %252 {offsets = [0, 256], sizes = [8, 128], strides = [1, 1]} : vector<8x512xf32> to vector<8x128xf32>
    %256 = vector.extract_strided_slice %252 {offsets = [0, 384], sizes = [8, 128], strides = [1, 1]} : vector<8x512xf32> to vector<8x128xf32>
    %257 = arith.negf %254 : vector<8x128xf32>
    %258 = math.exp %257 : vector<8x128xf32>
    %cst_78 = arith.constant 1.000000e+00 : f32
    %259 = vector.broadcast %cst_78 : f32 to vector<8x128xf32>
    %260 = arith.addf %259, %258 : vector<8x128xf32>
    %261 = arith.divf %259, %260 : vector<8x128xf32>
    %262 = arith.mulf %261, %202 : vector<8x128xf32>
    %263 = arith.negf %253 : vector<8x128xf32>
    %264 = math.exp %263 : vector<8x128xf32>
    %cst_79 = arith.constant 1.000000e+00 : f32
    %265 = vector.broadcast %cst_79 : f32 to vector<8x128xf32>
    %266 = arith.addf %265, %264 : vector<8x128xf32>
    %267 = arith.divf %265, %266 : vector<8x128xf32>
    %268 = math.tanh %255 : vector<8x128xf32>
    %269 = arith.mulf %267, %268 : vector<8x128xf32>
    %270 = arith.addf %262, %269 : vector<8x128xf32>
    %271 = arith.negf %256 : vector<8x128xf32>
    %272 = math.exp %271 : vector<8x128xf32>
    %cst_80 = arith.constant 1.000000e+00 : f32
    %273 = vector.broadcast %cst_80 : f32 to vector<8x128xf32>
    %274 = arith.addf %273, %272 : vector<8x128xf32>
    %275 = arith.divf %273, %274 : vector<8x128xf32>
    %276 = math.tanh %270 : vector<8x128xf32>
    %277 = arith.mulf %275, %276 : vector<8x128xf32>
    %c12_81 = arith.constant 12 : index
    %c0_82 = arith.constant 0 : index
    %c0_83 = arith.constant 0 : index
    %278 = vector.load %arg6[%c12_81, %c0_82, %c0_83] : memref<16x8x128xf32, #tpu.memory_space<vmem>>, vector<1x8x128xf32>
    %279 = vector.shape_cast %278 : vector<1x8x128xf32> to vector<8x128xf32>
    %280 = vector.shape_cast %277 : vector<8x128xf32> to vector<1x8x128xf32>
    tpu.vector_store %arg6[%c12_81, %c0_82, %c0_83], %280 {strides = array<i32>} : memref<16x8x128xf32, #tpu.memory_space<vmem>>, vector<1x8x128xf32>,
    %c4 = arith.constant 4 : index
    %c0_84 = arith.constant 0 : index
    %c0_85 = arith.constant 0 : index
    %281 = vector.load %arg1[%c4, %c0_84, %c0_85] : memref<16x8x512xbf16, #tpu.memory_space<vmem>>, vector<1x8x512xbf16>
    %282 = vector.shape_cast %281 : vector<1x8x512xbf16> to vector<8x512xbf16>
    %283 = arith.extf %282 : vector<8x512xbf16> to vector<8x512xf32>
    %284 = arith.truncf %243 : vector<8x128xf32> to vector<8x128xbf16>
    %cst_86 = arith.constant dense<0.000000e+00> : vector<8x512xf32>
    %285 = tpu.matmul %284, %3, %cst_86 {dimension_numbers = #tpu.dot_dimension_numbers<[1], [0], [0], [1], [0, 0, 1, 1], [], []>} : vector<8x128xbf16>, vector<128x512xbf16>, vector<8x512xf32> -> vector<8x512xf32>
    %286 = arith.addf %283, %285 : vector<8x512xf32>
    %287 = vector.extract_strided_slice %286 {offsets = [0, 0], sizes = [8, 128], strides = [1, 1]} : vector<8x512xf32> to vector<8x128xf32>
    %288 = vector.extract_strided_slice %286 {offsets = [0, 128], sizes = [8, 128], strides = [1, 1]} : vector<8x512xf32> to vector<8x128xf32>
    %289 = vector.extract_strided_slice %286 {offsets = [0, 256], sizes = [8, 128], strides = [1, 1]} : vector<8x512xf32> to vector<8x128xf32>
    %290 = vector.extract_strided_slice %286 {offsets = [0, 384], sizes = [8, 128], strides = [1, 1]} : vector<8x512xf32> to vector<8x128xf32>
    %291 = arith.negf %288 : vector<8x128xf32>
    %292 = math.exp %291 : vector<8x128xf32>
    %cst_87 = arith.constant 1.000000e+00 : f32
    %293 = vector.broadcast %cst_87 : f32 to vector<8x128xf32>
    %294 = arith.addf %293, %292 : vector<8x128xf32>
    %295 = arith.divf %293, %294 : vector<8x128xf32>
    %296 = arith.mulf %295, %236 : vector<8x128xf32>
    %297 = arith.negf %287 : vector<8x128xf32>
    %298 = math.exp %297 : vector<8x128xf32>
    %cst_88 = arith.constant 1.000000e+00 : f32
    %299 = vector.broadcast %cst_88 : f32 to vector<8x128xf32>
    %300 = arith.addf %299, %298 : vector<8x128xf32>
    %301 = arith.divf %299, %300 : vector<8x128xf32>
    %302 = math.tanh %289 : vector<8x128xf32>
    %303 = arith.mulf %301, %302 : vector<8x128xf32>
    %304 = arith.addf %296, %303 : vector<8x128xf32>
    %305 = arith.negf %290 : vector<8x128xf32>
    %306 = math.exp %305 : vector<8x128xf32>
    %cst_89 = arith.constant 1.000000e+00 : f32
    %307 = vector.broadcast %cst_89 : f32 to vector<8x128xf32>
    %308 = arith.addf %307, %306 : vector<8x128xf32>
    %309 = arith.divf %307, %308 : vector<8x128xf32>
    %310 = math.tanh %304 : vector<8x128xf32>
    %311 = arith.mulf %309, %310 : vector<8x128xf32>
    %c4_90 = arith.constant 4 : index
    %c0_91 = arith.constant 0 : index
    %c0_92 = arith.constant 0 : index
    %312 = vector.load %arg5[%c4_90, %c0_91, %c0_92] : memref<16x8x128xf32, #tpu.memory_space<vmem>>, vector<1x8x128xf32>
    %313 = vector.shape_cast %312 : vector<1x8x128xf32> to vector<8x128xf32>
    %314 = vector.shape_cast %311 : vector<8x128xf32> to vector<1x8x128xf32>
    tpu.vector_store %arg5[%c4_90, %c0_91, %c0_92], %314 {strides = array<i32>} : memref<16x8x128xf32, #tpu.memory_space<vmem>>, vector<1x8x128xf32>,
    %c11 = arith.constant 11 : index
    %c0_93 = arith.constant 0 : index
    %c0_94 = arith.constant 0 : index
    %315 = vector.load %arg2[%c11, %c0_93, %c0_94] : memref<16x8x512xbf16, #tpu.memory_space<vmem>>, vector<1x8x512xbf16>
    %316 = vector.shape_cast %315 : vector<1x8x512xbf16> to vector<8x512xbf16>
    %317 = arith.extf %316 : vector<8x512xbf16> to vector<8x512xf32>
    %318 = arith.truncf %277 : vector<8x128xf32> to vector<8x128xbf16>
    %cst_95 = arith.constant dense<0.000000e+00> : vector<8x512xf32>
    %319 = tpu.matmul %318, %4, %cst_95 {dimension_numbers = #tpu.dot_dimension_numbers<[1], [0], [0], [1], [0, 0, 1, 1], [], []>} : vector<8x128xbf16>, vector<128x512xbf16>, vector<8x512xf32> -> vector<8x512xf32>
    %320 = arith.addf %317, %319 : vector<8x512xf32>
    %321 = vector.extract_strided_slice %320 {offsets = [0, 0], sizes = [8, 128], strides = [1, 1]} : vector<8x512xf32> to vector<8x128xf32>
    %322 = vector.extract_strided_slice %320 {offsets = [0, 128], sizes = [8, 128], strides = [1, 1]} : vector<8x512xf32> to vector<8x128xf32>
    %323 = vector.extract_strided_slice %320 {offsets = [0, 256], sizes = [8, 128], strides = [1, 1]} : vector<8x512xf32> to vector<8x128xf32>
    %324 = vector.extract_strided_slice %320 {offsets = [0, 384], sizes = [8, 128], strides = [1, 1]} : vector<8x512xf32> to vector<8x128xf32>
    %325 = arith.negf %322 : vector<8x128xf32>
    %326 = math.exp %325 : vector<8x128xf32>
    %cst_96 = arith.constant 1.000000e+00 : f32
    %327 = vector.broadcast %cst_96 : f32 to vector<8x128xf32>
    %328 = arith.addf %327, %326 : vector<8x128xf32>
    %329 = arith.divf %327, %328 : vector<8x128xf32>
    %330 = arith.mulf %329, %270 : vector<8x128xf32>
    %331 = arith.negf %321 : vector<8x128xf32>
    %332 = math.exp %331 : vector<8x128xf32>
    %cst_97 = arith.constant 1.000000e+00 : f32
    %333 = vector.broadcast %cst_97 : f32 to vector<8x128xf32>
    %334 = arith.addf %333, %332 : vector<8x128xf32>
    %335 = arith.divf %333, %334 : vector<8x128xf32>
    %336 = math.tanh %323 : vector<8x128xf32>
    %337 = arith.mulf %335, %336 : vector<8x128xf32>
    %338 = arith.addf %330, %337 : vector<8x128xf32>
    %339 = arith.negf %324 : vector<8x128xf32>
    %340 = math.exp %339 : vector<8x128xf32>
    %cst_98 = arith.constant 1.000000e+00 : f32
    %341 = vector.broadcast %cst_98 : f32 to vector<8x128xf32>
    %342 = arith.addf %341, %340 : vector<8x128xf32>
    %343 = arith.divf %341, %342 : vector<8x128xf32>
    %344 = math.tanh %338 : vector<8x128xf32>
    %345 = arith.mulf %343, %344 : vector<8x128xf32>
    %c11_99 = arith.constant 11 : index
    %c0_100 = arith.constant 0 : index
    %c0_101 = arith.constant 0 : index
    %346 = vector.load %arg6[%c11_99, %c0_100, %c0_101] : memref<16x8x128xf32, #tpu.memory_space<vmem>>, vector<1x8x128xf32>
    %347 = vector.shape_cast %346 : vector<1x8x128xf32> to vector<8x128xf32>
    %348 = vector.shape_cast %345 : vector<8x128xf32> to vector<1x8x128xf32>
    tpu.vector_store %arg6[%c11_99, %c0_100, %c0_101], %348 {strides = array<i32>} : memref<16x8x128xf32, #tpu.memory_space<vmem>>, vector<1x8x128xf32>,
    %c5 = arith.constant 5 : index
    %c0_102 = arith.constant 0 : index
    %c0_103 = arith.constant 0 : index
    %349 = vector.load %arg1[%c5, %c0_102, %c0_103] : memref<16x8x512xbf16, #tpu.memory_space<vmem>>, vector<1x8x512xbf16>
    %350 = vector.shape_cast %349 : vector<1x8x512xbf16> to vector<8x512xbf16>
    %351 = arith.extf %350 : vector<8x512xbf16> to vector<8x512xf32>
    %352 = arith.truncf %311 : vector<8x128xf32> to vector<8x128xbf16>
    %cst_104 = arith.constant dense<0.000000e+00> : vector<8x512xf32>
    %353 = tpu.matmul %352, %3, %cst_104 {dimension_numbers = #tpu.dot_dimension_numbers<[1], [0], [0], [1], [0, 0, 1, 1], [], []>} : vector<8x128xbf16>, vector<128x512xbf16>, vector<8x512xf32> -> vector<8x512xf32>
    %354 = arith.addf %351, %353 : vector<8x512xf32>
    %355 = vector.extract_strided_slice %354 {offsets = [0, 0], sizes = [8, 128], strides = [1, 1]} : vector<8x512xf32> to vector<8x128xf32>
    %356 = vector.extract_strided_slice %354 {offsets = [0, 128], sizes = [8, 128], strides = [1, 1]} : vector<8x512xf32> to vector<8x128xf32>
    %357 = vector.extract_strided_slice %354 {offsets = [0, 256], sizes = [8, 128], strides = [1, 1]} : vector<8x512xf32> to vector<8x128xf32>
    %358 = vector.extract_strided_slice %354 {offsets = [0, 384], sizes = [8, 128], strides = [1, 1]} : vector<8x512xf32> to vector<8x128xf32>
    %359 = arith.negf %356 : vector<8x128xf32>
    %360 = math.exp %359 : vector<8x128xf32>
    %cst_105 = arith.constant 1.000000e+00 : f32
    %361 = vector.broadcast %cst_105 : f32 to vector<8x128xf32>
    %362 = arith.addf %361, %360 : vector<8x128xf32>
    %363 = arith.divf %361, %362 : vector<8x128xf32>
    %364 = arith.mulf %363, %304 : vector<8x128xf32>
    %365 = arith.negf %355 : vector<8x128xf32>
    %366 = math.exp %365 : vector<8x128xf32>
    %cst_106 = arith.constant 1.000000e+00 : f32
    %367 = vector.broadcast %cst_106 : f32 to vector<8x128xf32>
    %368 = arith.addf %367, %366 : vector<8x128xf32>
    %369 = arith.divf %367, %368 : vector<8x128xf32>
    %370 = math.tanh %357 : vector<8x128xf32>
    %371 = arith.mulf %369, %370 : vector<8x128xf32>
    %372 = arith.addf %364, %371 : vector<8x128xf32>
    %373 = arith.negf %358 : vector<8x128xf32>
    %374 = math.exp %373 : vector<8x128xf32>
    %cst_107 = arith.constant 1.000000e+00 : f32
    %375 = vector.broadcast %cst_107 : f32 to vector<8x128xf32>
    %376 = arith.addf %375, %374 : vector<8x128xf32>
    %377 = arith.divf %375, %376 : vector<8x128xf32>
    %378 = math.tanh %372 : vector<8x128xf32>
    %379 = arith.mulf %377, %378 : vector<8x128xf32>
    %c5_108 = arith.constant 5 : index
    %c0_109 = arith.constant 0 : index
    %c0_110 = arith.constant 0 : index
    %380 = vector.load %arg5[%c5_108, %c0_109, %c0_110] : memref<16x8x128xf32, #tpu.memory_space<vmem>>, vector<1x8x128xf32>
    %381 = vector.shape_cast %380 : vector<1x8x128xf32> to vector<8x128xf32>
    %382 = vector.shape_cast %379 : vector<8x128xf32> to vector<1x8x128xf32>
    tpu.vector_store %arg5[%c5_108, %c0_109, %c0_110], %382 {strides = array<i32>} : memref<16x8x128xf32, #tpu.memory_space<vmem>>, vector<1x8x128xf32>,
    %c10 = arith.constant 10 : index
    %c0_111 = arith.constant 0 : index
    %c0_112 = arith.constant 0 : index
    %383 = vector.load %arg2[%c10, %c0_111, %c0_112] : memref<16x8x512xbf16, #tpu.memory_space<vmem>>, vector<1x8x512xbf16>
    %384 = vector.shape_cast %383 : vector<1x8x512xbf16> to vector<8x512xbf16>
    %385 = arith.extf %384 : vector<8x512xbf16> to vector<8x512xf32>
    %386 = arith.truncf %345 : vector<8x128xf32> to vector<8x128xbf16>
    %cst_113 = arith.constant dense<0.000000e+00> : vector<8x512xf32>
    %387 = tpu.matmul %386, %4, %cst_113 {dimension_numbers = #tpu.dot_dimension_numbers<[1], [0], [0], [1], [0, 0, 1, 1], [], []>} : vector<8x128xbf16>, vector<128x512xbf16>, vector<8x512xf32> -> vector<8x512xf32>
    %388 = arith.addf %385, %387 : vector<8x512xf32>
    %389 = vector.extract_strided_slice %388 {offsets = [0, 0], sizes = [8, 128], strides = [1, 1]} : vector<8x512xf32> to vector<8x128xf32>
    %390 = vector.extract_strided_slice %388 {offsets = [0, 128], sizes = [8, 128], strides = [1, 1]} : vector<8x512xf32> to vector<8x128xf32>
    %391 = vector.extract_strided_slice %388 {offsets = [0, 256], sizes = [8, 128], strides = [1, 1]} : vector<8x512xf32> to vector<8x128xf32>
    %392 = vector.extract_strided_slice %388 {offsets = [0, 384], sizes = [8, 128], strides = [1, 1]} : vector<8x512xf32> to vector<8x128xf32>
    %393 = arith.negf %390 : vector<8x128xf32>
    %394 = math.exp %393 : vector<8x128xf32>
    %cst_114 = arith.constant 1.000000e+00 : f32
    %395 = vector.broadcast %cst_114 : f32 to vector<8x128xf32>
    %396 = arith.addf %395, %394 : vector<8x128xf32>
    %397 = arith.divf %395, %396 : vector<8x128xf32>
    %398 = arith.mulf %397, %338 : vector<8x128xf32>
    %399 = arith.negf %389 : vector<8x128xf32>
    %400 = math.exp %399 : vector<8x128xf32>
    %cst_115 = arith.constant 1.000000e+00 : f32
    %401 = vector.broadcast %cst_115 : f32 to vector<8x128xf32>
    %402 = arith.addf %401, %400 : vector<8x128xf32>
    %403 = arith.divf %401, %402 : vector<8x128xf32>
    %404 = math.tanh %391 : vector<8x128xf32>
    %405 = arith.mulf %403, %404 : vector<8x128xf32>
    %406 = arith.addf %398, %405 : vector<8x128xf32>
    %407 = arith.negf %392 : vector<8x128xf32>
    %408 = math.exp %407 : vector<8x128xf32>
    %cst_116 = arith.constant 1.000000e+00 : f32
    %409 = vector.broadcast %cst_116 : f32 to vector<8x128xf32>
    %410 = arith.addf %409, %408 : vector<8x128xf32>
    %411 = arith.divf %409, %410 : vector<8x128xf32>
    %412 = math.tanh %406 : vector<8x128xf32>
    %413 = arith.mulf %411, %412 : vector<8x128xf32>
    %c10_117 = arith.constant 10 : index
    %c0_118 = arith.constant 0 : index
    %c0_119 = arith.constant 0 : index
    %414 = vector.load %arg6[%c10_117, %c0_118, %c0_119] : memref<16x8x128xf32, #tpu.memory_space<vmem>>, vector<1x8x128xf32>
    %415 = vector.shape_cast %414 : vector<1x8x128xf32> to vector<8x128xf32>
    %416 = vector.shape_cast %413 : vector<8x128xf32> to vector<1x8x128xf32>
    tpu.vector_store %arg6[%c10_117, %c0_118, %c0_119], %416 {strides = array<i32>} : memref<16x8x128xf32, #tpu.memory_space<vmem>>, vector<1x8x128xf32>,
    %c6 = arith.constant 6 : index
    %c0_120 = arith.constant 0 : index
    %c0_121 = arith.constant 0 : index
    %417 = vector.load %arg1[%c6, %c0_120, %c0_121] : memref<16x8x512xbf16, #tpu.memory_space<vmem>>, vector<1x8x512xbf16>
    %418 = vector.shape_cast %417 : vector<1x8x512xbf16> to vector<8x512xbf16>
    %419 = arith.extf %418 : vector<8x512xbf16> to vector<8x512xf32>
    %420 = arith.truncf %379 : vector<8x128xf32> to vector<8x128xbf16>
    %cst_122 = arith.constant dense<0.000000e+00> : vector<8x512xf32>
    %421 = tpu.matmul %420, %3, %cst_122 {dimension_numbers = #tpu.dot_dimension_numbers<[1], [0], [0], [1], [0, 0, 1, 1], [], []>} : vector<8x128xbf16>, vector<128x512xbf16>, vector<8x512xf32> -> vector<8x512xf32>
    %422 = arith.addf %419, %421 : vector<8x512xf32>
    %423 = vector.extract_strided_slice %422 {offsets = [0, 0], sizes = [8, 128], strides = [1, 1]} : vector<8x512xf32> to vector<8x128xf32>
    %424 = vector.extract_strided_slice %422 {offsets = [0, 128], sizes = [8, 128], strides = [1, 1]} : vector<8x512xf32> to vector<8x128xf32>
    %425 = vector.extract_strided_slice %422 {offsets = [0, 256], sizes = [8, 128], strides = [1, 1]} : vector<8x512xf32> to vector<8x128xf32>
    %426 = vector.extract_strided_slice %422 {offsets = [0, 384], sizes = [8, 128], strides = [1, 1]} : vector<8x512xf32> to vector<8x128xf32>
    %427 = arith.negf %424 : vector<8x128xf32>
    %428 = math.exp %427 : vector<8x128xf32>
    %cst_123 = arith.constant 1.000000e+00 : f32
    %429 = vector.broadcast %cst_123 : f32 to vector<8x128xf32>
    %430 = arith.addf %429, %428 : vector<8x128xf32>
    %431 = arith.divf %429, %430 : vector<8x128xf32>
    %432 = arith.mulf %431, %372 : vector<8x128xf32>
    %433 = arith.negf %423 : vector<8x128xf32>
    %434 = math.exp %433 : vector<8x128xf32>
    %cst_124 = arith.constant 1.000000e+00 : f32
    %435 = vector.broadcast %cst_124 : f32 to vector<8x128xf32>
    %436 = arith.addf %435, %434 : vector<8x128xf32>
    %437 = arith.divf %435, %436 : vector<8x128xf32>
    %438 = math.tanh %425 : vector<8x128xf32>
    %439 = arith.mulf %437, %438 : vector<8x128xf32>
    %440 = arith.addf %432, %439 : vector<8x128xf32>
    %441 = arith.negf %426 : vector<8x128xf32>
    %442 = math.exp %441 : vector<8x128xf32>
    %cst_125 = arith.constant 1.000000e+00 : f32
    %443 = vector.broadcast %cst_125 : f32 to vector<8x128xf32>
    %444 = arith.addf %443, %442 : vector<8x128xf32>
    %445 = arith.divf %443, %444 : vector<8x128xf32>
    %446 = math.tanh %440 : vector<8x128xf32>
    %447 = arith.mulf %445, %446 : vector<8x128xf32>
    %c6_126 = arith.constant 6 : index
    %c0_127 = arith.constant 0 : index
    %c0_128 = arith.constant 0 : index
    %448 = vector.load %arg5[%c6_126, %c0_127, %c0_128] : memref<16x8x128xf32, #tpu.memory_space<vmem>>, vector<1x8x128xf32>
    %449 = vector.shape_cast %448 : vector<1x8x128xf32> to vector<8x128xf32>
    %450 = vector.shape_cast %447 : vector<8x128xf32> to vector<1x8x128xf32>
    tpu.vector_store %arg5[%c6_126, %c0_127, %c0_128], %450 {strides = array<i32>} : memref<16x8x128xf32, #tpu.memory_space<vmem>>, vector<1x8x128xf32>,
    %c9 = arith.constant 9 : index
    %c0_129 = arith.constant 0 : index
    %c0_130 = arith.constant 0 : index
    %451 = vector.load %arg2[%c9, %c0_129, %c0_130] : memref<16x8x512xbf16, #tpu.memory_space<vmem>>, vector<1x8x512xbf16>
    %452 = vector.shape_cast %451 : vector<1x8x512xbf16> to vector<8x512xbf16>
    %453 = arith.extf %452 : vector<8x512xbf16> to vector<8x512xf32>
    %454 = arith.truncf %413 : vector<8x128xf32> to vector<8x128xbf16>
    %cst_131 = arith.constant dense<0.000000e+00> : vector<8x512xf32>
    %455 = tpu.matmul %454, %4, %cst_131 {dimension_numbers = #tpu.dot_dimension_numbers<[1], [0], [0], [1], [0, 0, 1, 1], [], []>} : vector<8x128xbf16>, vector<128x512xbf16>, vector<8x512xf32> -> vector<8x512xf32>
    %456 = arith.addf %453, %455 : vector<8x512xf32>
    %457 = vector.extract_strided_slice %456 {offsets = [0, 0], sizes = [8, 128], strides = [1, 1]} : vector<8x512xf32> to vector<8x128xf32>
    %458 = vector.extract_strided_slice %456 {offsets = [0, 128], sizes = [8, 128], strides = [1, 1]} : vector<8x512xf32> to vector<8x128xf32>
    %459 = vector.extract_strided_slice %456 {offsets = [0, 256], sizes = [8, 128], strides = [1, 1]} : vector<8x512xf32> to vector<8x128xf32>
    %460 = vector.extract_strided_slice %456 {offsets = [0, 384], sizes = [8, 128], strides = [1, 1]} : vector<8x512xf32> to vector<8x128xf32>
    %461 = arith.negf %458 : vector<8x128xf32>
    %462 = math.exp %461 : vector<8x128xf32>
    %cst_132 = arith.constant 1.000000e+00 : f32
    %463 = vector.broadcast %cst_132 : f32 to vector<8x128xf32>
    %464 = arith.addf %463, %462 : vector<8x128xf32>
    %465 = arith.divf %463, %464 : vector<8x128xf32>
    %466 = arith.mulf %465, %406 : vector<8x128xf32>
    %467 = arith.negf %457 : vector<8x128xf32>
    %468 = math.exp %467 : vector<8x128xf32>
    %cst_133 = arith.constant 1.000000e+00 : f32
    %469 = vector.broadcast %cst_133 : f32 to vector<8x128xf32>
    %470 = arith.addf %469, %468 : vector<8x128xf32>
    %471 = arith.divf %469, %470 : vector<8x128xf32>
    %472 = math.tanh %459 : vector<8x128xf32>
    %473 = arith.mulf %471, %472 : vector<8x128xf32>
    %474 = arith.addf %466, %473 : vector<8x128xf32>
    %475 = arith.negf %460 : vector<8x128xf32>
    %476 = math.exp %475 : vector<8x128xf32>
    %cst_134 = arith.constant 1.000000e+00 : f32
    %477 = vector.broadcast %cst_134 : f32 to vector<8x128xf32>
    %478 = arith.addf %477, %476 : vector<8x128xf32>
    %479 = arith.divf %477, %478 : vector<8x128xf32>
    %480 = math.tanh %474 : vector<8x128xf32>
    %481 = arith.mulf %479, %480 : vector<8x128xf32>
    %c9_135 = arith.constant 9 : index
    %c0_136 = arith.constant 0 : index
    %c0_137 = arith.constant 0 : index
    %482 = vector.load %arg6[%c9_135, %c0_136, %c0_137] : memref<16x8x128xf32, #tpu.memory_space<vmem>>, vector<1x8x128xf32>
    %483 = vector.shape_cast %482 : vector<1x8x128xf32> to vector<8x128xf32>
    %484 = vector.shape_cast %481 : vector<8x128xf32> to vector<1x8x128xf32>
    tpu.vector_store %arg6[%c9_135, %c0_136, %c0_137], %484 {strides = array<i32>} : memref<16x8x128xf32, #tpu.memory_space<vmem>>, vector<1x8x128xf32>,
    %c7 = arith.constant 7 : index
    %c0_138 = arith.constant 0 : index
    %c0_139 = arith.constant 0 : index
    %485 = vector.load %arg1[%c7, %c0_138, %c0_139] : memref<16x8x512xbf16, #tpu.memory_space<vmem>>, vector<1x8x512xbf16>
    %486 = vector.shape_cast %485 : vector<1x8x512xbf16> to vector<8x512xbf16>
    %487 = arith.extf %486 : vector<8x512xbf16> to vector<8x512xf32>
    %488 = arith.truncf %447 : vector<8x128xf32> to vector<8x128xbf16>
    %cst_140 = arith.constant dense<0.000000e+00> : vector<8x512xf32>
    %489 = tpu.matmul %488, %3, %cst_140 {dimension_numbers = #tpu.dot_dimension_numbers<[1], [0], [0], [1], [0, 0, 1, 1], [], []>} : vector<8x128xbf16>, vector<128x512xbf16>, vector<8x512xf32> -> vector<8x512xf32>
    %490 = arith.addf %487, %489 : vector<8x512xf32>
    %491 = vector.extract_strided_slice %490 {offsets = [0, 0], sizes = [8, 128], strides = [1, 1]} : vector<8x512xf32> to vector<8x128xf32>
    %492 = vector.extract_strided_slice %490 {offsets = [0, 128], sizes = [8, 128], strides = [1, 1]} : vector<8x512xf32> to vector<8x128xf32>
    %493 = vector.extract_strided_slice %490 {offsets = [0, 256], sizes = [8, 128], strides = [1, 1]} : vector<8x512xf32> to vector<8x128xf32>
    %494 = vector.extract_strided_slice %490 {offsets = [0, 384], sizes = [8, 128], strides = [1, 1]} : vector<8x512xf32> to vector<8x128xf32>
    %495 = arith.negf %492 : vector<8x128xf32>
    %496 = math.exp %495 : vector<8x128xf32>
    %cst_141 = arith.constant 1.000000e+00 : f32
    %497 = vector.broadcast %cst_141 : f32 to vector<8x128xf32>
    %498 = arith.addf %497, %496 : vector<8x128xf32>
    %499 = arith.divf %497, %498 : vector<8x128xf32>
    %500 = arith.mulf %499, %440 : vector<8x128xf32>
    %501 = arith.negf %491 : vector<8x128xf32>
    %502 = math.exp %501 : vector<8x128xf32>
    %cst_142 = arith.constant 1.000000e+00 : f32
    %503 = vector.broadcast %cst_142 : f32 to vector<8x128xf32>
    %504 = arith.addf %503, %502 : vector<8x128xf32>
    %505 = arith.divf %503, %504 : vector<8x128xf32>
    %506 = math.tanh %493 : vector<8x128xf32>
    %507 = arith.mulf %505, %506 : vector<8x128xf32>
    %508 = arith.addf %500, %507 : vector<8x128xf32>
    %509 = arith.negf %494 : vector<8x128xf32>
    %510 = math.exp %509 : vector<8x128xf32>
    %cst_143 = arith.constant 1.000000e+00 : f32
    %511 = vector.broadcast %cst_143 : f32 to vector<8x128xf32>
    %512 = arith.addf %511, %510 : vector<8x128xf32>
    %513 = arith.divf %511, %512 : vector<8x128xf32>
    %514 = math.tanh %508 : vector<8x128xf32>
    %515 = arith.mulf %513, %514 : vector<8x128xf32>
    %c7_144 = arith.constant 7 : index
    %c0_145 = arith.constant 0 : index
    %c0_146 = arith.constant 0 : index
    %516 = vector.load %arg5[%c7_144, %c0_145, %c0_146] : memref<16x8x128xf32, #tpu.memory_space<vmem>>, vector<1x8x128xf32>
    %517 = vector.shape_cast %516 : vector<1x8x128xf32> to vector<8x128xf32>
    %518 = vector.shape_cast %515 : vector<8x128xf32> to vector<1x8x128xf32>
    tpu.vector_store %arg5[%c7_144, %c0_145, %c0_146], %518 {strides = array<i32>} : memref<16x8x128xf32, #tpu.memory_space<vmem>>, vector<1x8x128xf32>,
    %c8 = arith.constant 8 : index
    %c0_147 = arith.constant 0 : index
    %c0_148 = arith.constant 0 : index
    %519 = vector.load %arg2[%c8, %c0_147, %c0_148] : memref<16x8x512xbf16, #tpu.memory_space<vmem>>, vector<1x8x512xbf16>
    %520 = vector.shape_cast %519 : vector<1x8x512xbf16> to vector<8x512xbf16>
    %521 = arith.extf %520 : vector<8x512xbf16> to vector<8x512xf32>
    %522 = arith.truncf %481 : vector<8x128xf32> to vector<8x128xbf16>
    %cst_149 = arith.constant dense<0.000000e+00> : vector<8x512xf32>
    %523 = tpu.matmul %522, %4, %cst_149 {dimension_numbers = #tpu.dot_dimension_numbers<[1], [0], [0], [1], [0, 0, 1, 1], [], []>} : vector<8x128xbf16>, vector<128x512xbf16>, vector<8x512xf32> -> vector<8x512xf32>
    %524 = arith.addf %521, %523 : vector<8x512xf32>
    %525 = vector.extract_strided_slice %524 {offsets = [0, 0], sizes = [8, 128], strides = [1, 1]} : vector<8x512xf32> to vector<8x128xf32>
    %526 = vector.extract_strided_slice %524 {offsets = [0, 128], sizes = [8, 128], strides = [1, 1]} : vector<8x512xf32> to vector<8x128xf32>
    %527 = vector.extract_strided_slice %524 {offsets = [0, 256], sizes = [8, 128], strides = [1, 1]} : vector<8x512xf32> to vector<8x128xf32>
    %528 = vector.extract_strided_slice %524 {offsets = [0, 384], sizes = [8, 128], strides = [1, 1]} : vector<8x512xf32> to vector<8x128xf32>
    %529 = arith.negf %526 : vector<8x128xf32>
    %530 = math.exp %529 : vector<8x128xf32>
    %cst_150 = arith.constant 1.000000e+00 : f32
    %531 = vector.broadcast %cst_150 : f32 to vector<8x128xf32>
    %532 = arith.addf %531, %530 : vector<8x128xf32>
    %533 = arith.divf %531, %532 : vector<8x128xf32>
    %534 = arith.mulf %533, %474 : vector<8x128xf32>
    %535 = arith.negf %525 : vector<8x128xf32>
    %536 = math.exp %535 : vector<8x128xf32>
    %cst_151 = arith.constant 1.000000e+00 : f32
    %537 = vector.broadcast %cst_151 : f32 to vector<8x128xf32>
    %538 = arith.addf %537, %536 : vector<8x128xf32>
    %539 = arith.divf %537, %538 : vector<8x128xf32>
    %540 = math.tanh %527 : vector<8x128xf32>
    %541 = arith.mulf %539, %540 : vector<8x128xf32>
    %542 = arith.addf %534, %541 : vector<8x128xf32>
    %543 = arith.negf %528 : vector<8x128xf32>
    %544 = math.exp %543 : vector<8x128xf32>
    %cst_152 = arith.constant 1.000000e+00 : f32
    %545 = vector.broadcast %cst_152 : f32 to vector<8x128xf32>
    %546 = arith.addf %545, %544 : vector<8x128xf32>
    %547 = arith.divf %545, %546 : vector<8x128xf32>
    %548 = math.tanh %542 : vector<8x128xf32>
    %549 = arith.mulf %547, %548 : vector<8x128xf32>
    %c8_153 = arith.constant 8 : index
    %c0_154 = arith.constant 0 : index
    %c0_155 = arith.constant 0 : index
    %550 = vector.load %arg6[%c8_153, %c0_154, %c0_155] : memref<16x8x128xf32, #tpu.memory_space<vmem>>, vector<1x8x128xf32>
    %551 = vector.shape_cast %550 : vector<1x8x128xf32> to vector<8x128xf32>
    %552 = vector.shape_cast %549 : vector<8x128xf32> to vector<1x8x128xf32>
    tpu.vector_store %arg6[%c8_153, %c0_154, %c0_155], %552 {strides = array<i32>} : memref<16x8x128xf32, #tpu.memory_space<vmem>>, vector<1x8x128xf32>,
    %c8_156 = arith.constant 8 : index
    %c0_157 = arith.constant 0 : index
    %c0_158 = arith.constant 0 : index
    %553 = vector.load %arg1[%c8_156, %c0_157, %c0_158] : memref<16x8x512xbf16, #tpu.memory_space<vmem>>, vector<1x8x512xbf16>
    %554 = vector.shape_cast %553 : vector<1x8x512xbf16> to vector<8x512xbf16>
    %555 = arith.extf %554 : vector<8x512xbf16> to vector<8x512xf32>
    %556 = arith.truncf %515 : vector<8x128xf32> to vector<8x128xbf16>
    %cst_159 = arith.constant dense<0.000000e+00> : vector<8x512xf32>
    %557 = tpu.matmul %556, %3, %cst_159 {dimension_numbers = #tpu.dot_dimension_numbers<[1], [0], [0], [1], [0, 0, 1, 1], [], []>} : vector<8x128xbf16>, vector<128x512xbf16>, vector<8x512xf32> -> vector<8x512xf32>
    %558 = arith.addf %555, %557 : vector<8x512xf32>
    %559 = vector.extract_strided_slice %558 {offsets = [0, 0], sizes = [8, 128], strides = [1, 1]} : vector<8x512xf32> to vector<8x128xf32>
    %560 = vector.extract_strided_slice %558 {offsets = [0, 128], sizes = [8, 128], strides = [1, 1]} : vector<8x512xf32> to vector<8x128xf32>
    %561 = vector.extract_strided_slice %558 {offsets = [0, 256], sizes = [8, 128], strides = [1, 1]} : vector<8x512xf32> to vector<8x128xf32>
    %562 = vector.extract_strided_slice %558 {offsets = [0, 384], sizes = [8, 128], strides = [1, 1]} : vector<8x512xf32> to vector<8x128xf32>
    %563 = arith.negf %560 : vector<8x128xf32>
    %564 = math.exp %563 : vector<8x128xf32>
    %cst_160 = arith.constant 1.000000e+00 : f32
    %565 = vector.broadcast %cst_160 : f32 to vector<8x128xf32>
    %566 = arith.addf %565, %564 : vector<8x128xf32>
    %567 = arith.divf %565, %566 : vector<8x128xf32>
    %568 = arith.mulf %567, %508 : vector<8x128xf32>
    %569 = arith.negf %559 : vector<8x128xf32>
    %570 = math.exp %569 : vector<8x128xf32>
    %cst_161 = arith.constant 1.000000e+00 : f32
    %571 = vector.broadcast %cst_161 : f32 to vector<8x128xf32>
    %572 = arith.addf %571, %570 : vector<8x128xf32>
    %573 = arith.divf %571, %572 : vector<8x128xf32>
    %574 = math.tanh %561 : vector<8x128xf32>
    %575 = arith.mulf %573, %574 : vector<8x128xf32>
    %576 = arith.addf %568, %575 : vector<8x128xf32>
    %577 = arith.negf %562 : vector<8x128xf32>
    %578 = math.exp %577 : vector<8x128xf32>
    %cst_162 = arith.constant 1.000000e+00 : f32
    %579 = vector.broadcast %cst_162 : f32 to vector<8x128xf32>
    %580 = arith.addf %579, %578 : vector<8x128xf32>
    %581 = arith.divf %579, %580 : vector<8x128xf32>
    %582 = math.tanh %576 : vector<8x128xf32>
    %583 = arith.mulf %581, %582 : vector<8x128xf32>
    %c8_163 = arith.constant 8 : index
    %c0_164 = arith.constant 0 : index
    %c0_165 = arith.constant 0 : index
    %584 = vector.load %arg5[%c8_163, %c0_164, %c0_165] : memref<16x8x128xf32, #tpu.memory_space<vmem>>, vector<1x8x128xf32>
    %585 = vector.shape_cast %584 : vector<1x8x128xf32> to vector<8x128xf32>
    %586 = vector.shape_cast %583 : vector<8x128xf32> to vector<1x8x128xf32>
    tpu.vector_store %arg5[%c8_163, %c0_164, %c0_165], %586 {strides = array<i32>} : memref<16x8x128xf32, #tpu.memory_space<vmem>>, vector<1x8x128xf32>,
    %c7_166 = arith.constant 7 : index
    %c0_167 = arith.constant 0 : index
    %c0_168 = arith.constant 0 : index
    %587 = vector.load %arg2[%c7_166, %c0_167, %c0_168] : memref<16x8x512xbf16, #tpu.memory_space<vmem>>, vector<1x8x512xbf16>
    %588 = vector.shape_cast %587 : vector<1x8x512xbf16> to vector<8x512xbf16>
    %589 = arith.extf %588 : vector<8x512xbf16> to vector<8x512xf32>
    %590 = arith.truncf %549 : vector<8x128xf32> to vector<8x128xbf16>
    %cst_169 = arith.constant dense<0.000000e+00> : vector<8x512xf32>
    %591 = tpu.matmul %590, %4, %cst_169 {dimension_numbers = #tpu.dot_dimension_numbers<[1], [0], [0], [1], [0, 0, 1, 1], [], []>} : vector<8x128xbf16>, vector<128x512xbf16>, vector<8x512xf32> -> vector<8x512xf32>
    %592 = arith.addf %589, %591 : vector<8x512xf32>
    %593 = vector.extract_strided_slice %592 {offsets = [0, 0], sizes = [8, 128], strides = [1, 1]} : vector<8x512xf32> to vector<8x128xf32>
    %594 = vector.extract_strided_slice %592 {offsets = [0, 128], sizes = [8, 128], strides = [1, 1]} : vector<8x512xf32> to vector<8x128xf32>
    %595 = vector.extract_strided_slice %592 {offsets = [0, 256], sizes = [8, 128], strides = [1, 1]} : vector<8x512xf32> to vector<8x128xf32>
    %596 = vector.extract_strided_slice %592 {offsets = [0, 384], sizes = [8, 128], strides = [1, 1]} : vector<8x512xf32> to vector<8x128xf32>
    %597 = arith.negf %594 : vector<8x128xf32>
    %598 = math.exp %597 : vector<8x128xf32>
    %cst_170 = arith.constant 1.000000e+00 : f32
    %599 = vector.broadcast %cst_170 : f32 to vector<8x128xf32>
    %600 = arith.addf %599, %598 : vector<8x128xf32>
    %601 = arith.divf %599, %600 : vector<8x128xf32>
    %602 = arith.mulf %601, %542 : vector<8x128xf32>
    %603 = arith.negf %593 : vector<8x128xf32>
    %604 = math.exp %603 : vector<8x128xf32>
    %cst_171 = arith.constant 1.000000e+00 : f32
    %605 = vector.broadcast %cst_171 : f32 to vector<8x128xf32>
    %606 = arith.addf %605, %604 : vector<8x128xf32>
    %607 = arith.divf %605, %606 : vector<8x128xf32>
    %608 = math.tanh %595 : vector<8x128xf32>
    %609 = arith.mulf %607, %608 : vector<8x128xf32>
    %610 = arith.addf %602, %609 : vector<8x128xf32>
    %611 = arith.negf %596 : vector<8x128xf32>
    %612 = math.exp %611 : vector<8x128xf32>
    %cst_172 = arith.constant 1.000000e+00 : f32
    %613 = vector.broadcast %cst_172 : f32 to vector<8x128xf32>
    %614 = arith.addf %613, %612 : vector<8x128xf32>
    %615 = arith.divf %613, %614 : vector<8x128xf32>
    %616 = math.tanh %610 : vector<8x128xf32>
    %617 = arith.mulf %615, %616 : vector<8x128xf32>
    %c7_173 = arith.constant 7 : index
    %c0_174 = arith.constant 0 : index
    %c0_175 = arith.constant 0 : index
    %618 = vector.load %arg6[%c7_173, %c0_174, %c0_175] : memref<16x8x128xf32, #tpu.memory_space<vmem>>, vector<1x8x128xf32>
    %619 = vector.shape_cast %618 : vector<1x8x128xf32> to vector<8x128xf32>
    %620 = vector.shape_cast %617 : vector<8x128xf32> to vector<1x8x128xf32>
    tpu.vector_store %arg6[%c7_173, %c0_174, %c0_175], %620 {strides = array<i32>} : memref<16x8x128xf32, #tpu.memory_space<vmem>>, vector<1x8x128xf32>,
    %c9_176 = arith.constant 9 : index
    %c0_177 = arith.constant 0 : index
    %c0_178 = arith.constant 0 : index
    %621 = vector.load %arg1[%c9_176, %c0_177, %c0_178] : memref<16x8x512xbf16, #tpu.memory_space<vmem>>, vector<1x8x512xbf16>
    %622 = vector.shape_cast %621 : vector<1x8x512xbf16> to vector<8x512xbf16>
    %623 = arith.extf %622 : vector<8x512xbf16> to vector<8x512xf32>
    %624 = arith.truncf %583 : vector<8x128xf32> to vector<8x128xbf16>
    %cst_179 = arith.constant dense<0.000000e+00> : vector<8x512xf32>
    %625 = tpu.matmul %624, %3, %cst_179 {dimension_numbers = #tpu.dot_dimension_numbers<[1], [0], [0], [1], [0, 0, 1, 1], [], []>} : vector<8x128xbf16>, vector<128x512xbf16>, vector<8x512xf32> -> vector<8x512xf32>
    %626 = arith.addf %623, %625 : vector<8x512xf32>
    %627 = vector.extract_strided_slice %626 {offsets = [0, 0], sizes = [8, 128], strides = [1, 1]} : vector<8x512xf32> to vector<8x128xf32>
    %628 = vector.extract_strided_slice %626 {offsets = [0, 128], sizes = [8, 128], strides = [1, 1]} : vector<8x512xf32> to vector<8x128xf32>
    %629 = vector.extract_strided_slice %626 {offsets = [0, 256], sizes = [8, 128], strides = [1, 1]} : vector<8x512xf32> to vector<8x128xf32>
    %630 = vector.extract_strided_slice %626 {offsets = [0, 384], sizes = [8, 128], strides = [1, 1]} : vector<8x512xf32> to vector<8x128xf32>
    %631 = arith.negf %628 : vector<8x128xf32>
    %632 = math.exp %631 : vector<8x128xf32>
    %cst_180 = arith.constant 1.000000e+00 : f32
    %633 = vector.broadcast %cst_180 : f32 to vector<8x128xf32>
    %634 = arith.addf %633, %632 : vector<8x128xf32>
    %635 = arith.divf %633, %634 : vector<8x128xf32>
    %636 = arith.mulf %635, %576 : vector<8x128xf32>
    %637 = arith.negf %627 : vector<8x128xf32>
    %638 = math.exp %637 : vector<8x128xf32>
    %cst_181 = arith.constant 1.000000e+00 : f32
    %639 = vector.broadcast %cst_181 : f32 to vector<8x128xf32>
    %640 = arith.addf %639, %638 : vector<8x128xf32>
    %641 = arith.divf %639, %640 : vector<8x128xf32>
    %642 = math.tanh %629 : vector<8x128xf32>
    %643 = arith.mulf %641, %642 : vector<8x128xf32>
    %644 = arith.addf %636, %643 : vector<8x128xf32>
    %645 = arith.negf %630 : vector<8x128xf32>
    %646 = math.exp %645 : vector<8x128xf32>
    %cst_182 = arith.constant 1.000000e+00 : f32
    %647 = vector.broadcast %cst_182 : f32 to vector<8x128xf32>
    %648 = arith.addf %647, %646 : vector<8x128xf32>
    %649 = arith.divf %647, %648 : vector<8x128xf32>
    %650 = math.tanh %644 : vector<8x128xf32>
    %651 = arith.mulf %649, %650 : vector<8x128xf32>
    %c9_183 = arith.constant 9 : index
    %c0_184 = arith.constant 0 : index
    %c0_185 = arith.constant 0 : index
    %652 = vector.load %arg5[%c9_183, %c0_184, %c0_185] : memref<16x8x128xf32, #tpu.memory_space<vmem>>, vector<1x8x128xf32>
    %653 = vector.shape_cast %652 : vector<1x8x128xf32> to vector<8x128xf32>
    %654 = vector.shape_cast %651 : vector<8x128xf32> to vector<1x8x128xf32>
    tpu.vector_store %arg5[%c9_183, %c0_184, %c0_185], %654 {strides = array<i32>} : memref<16x8x128xf32, #tpu.memory_space<vmem>>, vector<1x8x128xf32>,
    %c6_186 = arith.constant 6 : index
    %c0_187 = arith.constant 0 : index
    %c0_188 = arith.constant 0 : index
    %655 = vector.load %arg2[%c6_186, %c0_187, %c0_188] : memref<16x8x512xbf16, #tpu.memory_space<vmem>>, vector<1x8x512xbf16>
    %656 = vector.shape_cast %655 : vector<1x8x512xbf16> to vector<8x512xbf16>
    %657 = arith.extf %656 : vector<8x512xbf16> to vector<8x512xf32>
    %658 = arith.truncf %617 : vector<8x128xf32> to vector<8x128xbf16>
    %cst_189 = arith.constant dense<0.000000e+00> : vector<8x512xf32>
    %659 = tpu.matmul %658, %4, %cst_189 {dimension_numbers = #tpu.dot_dimension_numbers<[1], [0], [0], [1], [0, 0, 1, 1], [], []>} : vector<8x128xbf16>, vector<128x512xbf16>, vector<8x512xf32> -> vector<8x512xf32>
    %660 = arith.addf %657, %659 : vector<8x512xf32>
    %661 = vector.extract_strided_slice %660 {offsets = [0, 0], sizes = [8, 128], strides = [1, 1]} : vector<8x512xf32> to vector<8x128xf32>
    %662 = vector.extract_strided_slice %660 {offsets = [0, 128], sizes = [8, 128], strides = [1, 1]} : vector<8x512xf32> to vector<8x128xf32>
    %663 = vector.extract_strided_slice %660 {offsets = [0, 256], sizes = [8, 128], strides = [1, 1]} : vector<8x512xf32> to vector<8x128xf32>
    %664 = vector.extract_strided_slice %660 {offsets = [0, 384], sizes = [8, 128], strides = [1, 1]} : vector<8x512xf32> to vector<8x128xf32>
    %665 = arith.negf %662 : vector<8x128xf32>
    %666 = math.exp %665 : vector<8x128xf32>
    %cst_190 = arith.constant 1.000000e+00 : f32
    %667 = vector.broadcast %cst_190 : f32 to vector<8x128xf32>
    %668 = arith.addf %667, %666 : vector<8x128xf32>
    %669 = arith.divf %667, %668 : vector<8x128xf32>
    %670 = arith.mulf %669, %610 : vector<8x128xf32>
    %671 = arith.negf %661 : vector<8x128xf32>
    %672 = math.exp %671 : vector<8x128xf32>
    %cst_191 = arith.constant 1.000000e+00 : f32
    %673 = vector.broadcast %cst_191 : f32 to vector<8x128xf32>
    %674 = arith.addf %673, %672 : vector<8x128xf32>
    %675 = arith.divf %673, %674 : vector<8x128xf32>
    %676 = math.tanh %663 : vector<8x128xf32>
    %677 = arith.mulf %675, %676 : vector<8x128xf32>
    %678 = arith.addf %670, %677 : vector<8x128xf32>
    %679 = arith.negf %664 : vector<8x128xf32>
    %680 = math.exp %679 : vector<8x128xf32>
    %cst_192 = arith.constant 1.000000e+00 : f32
    %681 = vector.broadcast %cst_192 : f32 to vector<8x128xf32>
    %682 = arith.addf %681, %680 : vector<8x128xf32>
    %683 = arith.divf %681, %682 : vector<8x128xf32>
    %684 = math.tanh %678 : vector<8x128xf32>
    %685 = arith.mulf %683, %684 : vector<8x128xf32>
    %c6_193 = arith.constant 6 : index
    %c0_194 = arith.constant 0 : index
    %c0_195 = arith.constant 0 : index
    %686 = vector.load %arg6[%c6_193, %c0_194, %c0_195] : memref<16x8x128xf32, #tpu.memory_space<vmem>>, vector<1x8x128xf32>
    %687 = vector.shape_cast %686 : vector<1x8x128xf32> to vector<8x128xf32>
    %688 = vector.shape_cast %685 : vector<8x128xf32> to vector<1x8x128xf32>
    tpu.vector_store %arg6[%c6_193, %c0_194, %c0_195], %688 {strides = array<i32>} : memref<16x8x128xf32, #tpu.memory_space<vmem>>, vector<1x8x128xf32>,
    %c10_196 = arith.constant 10 : index
    %c0_197 = arith.constant 0 : index
    %c0_198 = arith.constant 0 : index
    %689 = vector.load %arg1[%c10_196, %c0_197, %c0_198] : memref<16x8x512xbf16, #tpu.memory_space<vmem>>, vector<1x8x512xbf16>
    %690 = vector.shape_cast %689 : vector<1x8x512xbf16> to vector<8x512xbf16>
    %691 = arith.extf %690 : vector<8x512xbf16> to vector<8x512xf32>
    %692 = arith.truncf %651 : vector<8x128xf32> to vector<8x128xbf16>
    %cst_199 = arith.constant dense<0.000000e+00> : vector<8x512xf32>
    %693 = tpu.matmul %692, %3, %cst_199 {dimension_numbers = #tpu.dot_dimension_numbers<[1], [0], [0], [1], [0, 0, 1, 1], [], []>} : vector<8x128xbf16>, vector<128x512xbf16>, vector<8x512xf32> -> vector<8x512xf32>
    %694 = arith.addf %691, %693 : vector<8x512xf32>
    %695 = vector.extract_strided_slice %694 {offsets = [0, 0], sizes = [8, 128], strides = [1, 1]} : vector<8x512xf32> to vector<8x128xf32>
    %696 = vector.extract_strided_slice %694 {offsets = [0, 128], sizes = [8, 128], strides = [1, 1]} : vector<8x512xf32> to vector<8x128xf32>
    %697 = vector.extract_strided_slice %694 {offsets = [0, 256], sizes = [8, 128], strides = [1, 1]} : vector<8x512xf32> to vector<8x128xf32>
    %698 = vector.extract_strided_slice %694 {offsets = [0, 384], sizes = [8, 128], strides = [1, 1]} : vector<8x512xf32> to vector<8x128xf32>
    %699 = arith.negf %696 : vector<8x128xf32>
    %700 = math.exp %699 : vector<8x128xf32>
    %cst_200 = arith.constant 1.000000e+00 : f32
    %701 = vector.broadcast %cst_200 : f32 to vector<8x128xf32>
    %702 = arith.addf %701, %700 : vector<8x128xf32>
    %703 = arith.divf %701, %702 : vector<8x128xf32>
    %704 = arith.mulf %703, %644 : vector<8x128xf32>
    %705 = arith.negf %695 : vector<8x128xf32>
    %706 = math.exp %705 : vector<8x128xf32>
    %cst_201 = arith.constant 1.000000e+00 : f32
    %707 = vector.broadcast %cst_201 : f32 to vector<8x128xf32>
    %708 = arith.addf %707, %706 : vector<8x128xf32>
    %709 = arith.divf %707, %708 : vector<8x128xf32>
    %710 = math.tanh %697 : vector<8x128xf32>
    %711 = arith.mulf %709, %710 : vector<8x128xf32>
    %712 = arith.addf %704, %711 : vector<8x128xf32>
    %713 = arith.negf %698 : vector<8x128xf32>
    %714 = math.exp %713 : vector<8x128xf32>
    %cst_202 = arith.constant 1.000000e+00 : f32
    %715 = vector.broadcast %cst_202 : f32 to vector<8x128xf32>
    %716 = arith.addf %715, %714 : vector<8x128xf32>
    %717 = arith.divf %715, %716 : vector<8x128xf32>
    %718 = math.tanh %712 : vector<8x128xf32>
    %719 = arith.mulf %717, %718 : vector<8x128xf32>
    %c10_203 = arith.constant 10 : index
    %c0_204 = arith.constant 0 : index
    %c0_205 = arith.constant 0 : index
    %720 = vector.load %arg5[%c10_203, %c0_204, %c0_205] : memref<16x8x128xf32, #tpu.memory_space<vmem>>, vector<1x8x128xf32>
    %721 = vector.shape_cast %720 : vector<1x8x128xf32> to vector<8x128xf32>
    %722 = vector.shape_cast %719 : vector<8x128xf32> to vector<1x8x128xf32>
    tpu.vector_store %arg5[%c10_203, %c0_204, %c0_205], %722 {strides = array<i32>} : memref<16x8x128xf32, #tpu.memory_space<vmem>>, vector<1x8x128xf32>,
    %c5_206 = arith.constant 5 : index
    %c0_207 = arith.constant 0 : index
    %c0_208 = arith.constant 0 : index
    %723 = vector.load %arg2[%c5_206, %c0_207, %c0_208] : memref<16x8x512xbf16, #tpu.memory_space<vmem>>, vector<1x8x512xbf16>
    %724 = vector.shape_cast %723 : vector<1x8x512xbf16> to vector<8x512xbf16>
    %725 = arith.extf %724 : vector<8x512xbf16> to vector<8x512xf32>
    %726 = arith.truncf %685 : vector<8x128xf32> to vector<8x128xbf16>
    %cst_209 = arith.constant dense<0.000000e+00> : vector<8x512xf32>
    %727 = tpu.matmul %726, %4, %cst_209 {dimension_numbers = #tpu.dot_dimension_numbers<[1], [0], [0], [1], [0, 0, 1, 1], [], []>} : vector<8x128xbf16>, vector<128x512xbf16>, vector<8x512xf32> -> vector<8x512xf32>
    %728 = arith.addf %725, %727 : vector<8x512xf32>
    %729 = vector.extract_strided_slice %728 {offsets = [0, 0], sizes = [8, 128], strides = [1, 1]} : vector<8x512xf32> to vector<8x128xf32>
    %730 = vector.extract_strided_slice %728 {offsets = [0, 128], sizes = [8, 128], strides = [1, 1]} : vector<8x512xf32> to vector<8x128xf32>
    %731 = vector.extract_strided_slice %728 {offsets = [0, 256], sizes = [8, 128], strides = [1, 1]} : vector<8x512xf32> to vector<8x128xf32>
    %732 = vector.extract_strided_slice %728 {offsets = [0, 384], sizes = [8, 128], strides = [1, 1]} : vector<8x512xf32> to vector<8x128xf32>
    %733 = arith.negf %730 : vector<8x128xf32>
    %734 = math.exp %733 : vector<8x128xf32>
    %cst_210 = arith.constant 1.000000e+00 : f32
    %735 = vector.broadcast %cst_210 : f32 to vector<8x128xf32>
    %736 = arith.addf %735, %734 : vector<8x128xf32>
    %737 = arith.divf %735, %736 : vector<8x128xf32>
    %738 = arith.mulf %737, %678 : vector<8x128xf32>
    %739 = arith.negf %729 : vector<8x128xf32>
    %740 = math.exp %739 : vector<8x128xf32>
    %cst_211 = arith.constant 1.000000e+00 : f32
    %741 = vector.broadcast %cst_211 : f32 to vector<8x128xf32>
    %742 = arith.addf %741, %740 : vector<8x128xf32>
    %743 = arith.divf %741, %742 : vector<8x128xf32>
    %744 = math.tanh %731 : vector<8x128xf32>
    %745 = arith.mulf %743, %744 : vector<8x128xf32>
    %746 = arith.addf %738, %745 : vector<8x128xf32>
    %747 = arith.negf %732 : vector<8x128xf32>
    %748 = math.exp %747 : vector<8x128xf32>
    %cst_212 = arith.constant 1.000000e+00 : f32
    %749 = vector.broadcast %cst_212 : f32 to vector<8x128xf32>
    %750 = arith.addf %749, %748 : vector<8x128xf32>
    %751 = arith.divf %749, %750 : vector<8x128xf32>
    %752 = math.tanh %746 : vector<8x128xf32>
    %753 = arith.mulf %751, %752 : vector<8x128xf32>
    %c5_213 = arith.constant 5 : index
    %c0_214 = arith.constant 0 : index
    %c0_215 = arith.constant 0 : index
    %754 = vector.load %arg6[%c5_213, %c0_214, %c0_215] : memref<16x8x128xf32, #tpu.memory_space<vmem>>, vector<1x8x128xf32>
    %755 = vector.shape_cast %754 : vector<1x8x128xf32> to vector<8x128xf32>
    %756 = vector.shape_cast %753 : vector<8x128xf32> to vector<1x8x128xf32>
    tpu.vector_store %arg6[%c5_213, %c0_214, %c0_215], %756 {strides = array<i32>} : memref<16x8x128xf32, #tpu.memory_space<vmem>>, vector<1x8x128xf32>,
    %c11_216 = arith.constant 11 : index
    %c0_217 = arith.constant 0 : index
    %c0_218 = arith.constant 0 : index
    %757 = vector.load %arg1[%c11_216, %c0_217, %c0_218] : memref<16x8x512xbf16, #tpu.memory_space<vmem>>, vector<1x8x512xbf16>
    %758 = vector.shape_cast %757 : vector<1x8x512xbf16> to vector<8x512xbf16>
    %759 = arith.extf %758 : vector<8x512xbf16> to vector<8x512xf32>
    %760 = arith.truncf %719 : vector<8x128xf32> to vector<8x128xbf16>
    %cst_219 = arith.constant dense<0.000000e+00> : vector<8x512xf32>
    %761 = tpu.matmul %760, %3, %cst_219 {dimension_numbers = #tpu.dot_dimension_numbers<[1], [0], [0], [1], [0, 0, 1, 1], [], []>} : vector<8x128xbf16>, vector<128x512xbf16>, vector<8x512xf32> -> vector<8x512xf32>
    %762 = arith.addf %759, %761 : vector<8x512xf32>
    %763 = vector.extract_strided_slice %762 {offsets = [0, 0], sizes = [8, 128], strides = [1, 1]} : vector<8x512xf32> to vector<8x128xf32>
    %764 = vector.extract_strided_slice %762 {offsets = [0, 128], sizes = [8, 128], strides = [1, 1]} : vector<8x512xf32> to vector<8x128xf32>
    %765 = vector.extract_strided_slice %762 {offsets = [0, 256], sizes = [8, 128], strides = [1, 1]} : vector<8x512xf32> to vector<8x128xf32>
    %766 = vector.extract_strided_slice %762 {offsets = [0, 384], sizes = [8, 128], strides = [1, 1]} : vector<8x512xf32> to vector<8x128xf32>
    %767 = arith.negf %764 : vector<8x128xf32>
    %768 = math.exp %767 : vector<8x128xf32>
    %cst_220 = arith.constant 1.000000e+00 : f32
    %769 = vector.broadcast %cst_220 : f32 to vector<8x128xf32>
    %770 = arith.addf %769, %768 : vector<8x128xf32>
    %771 = arith.divf %769, %770 : vector<8x128xf32>
    %772 = arith.mulf %771, %712 : vector<8x128xf32>
    %773 = arith.negf %763 : vector<8x128xf32>
    %774 = math.exp %773 : vector<8x128xf32>
    %cst_221 = arith.constant 1.000000e+00 : f32
    %775 = vector.broadcast %cst_221 : f32 to vector<8x128xf32>
    %776 = arith.addf %775, %774 : vector<8x128xf32>
    %777 = arith.divf %775, %776 : vector<8x128xf32>
    %778 = math.tanh %765 : vector<8x128xf32>
    %779 = arith.mulf %777, %778 : vector<8x128xf32>
    %780 = arith.addf %772, %779 : vector<8x128xf32>
    %781 = arith.negf %766 : vector<8x128xf32>
    %782 = math.exp %781 : vector<8x128xf32>
    %cst_222 = arith.constant 1.000000e+00 : f32
    %783 = vector.broadcast %cst_222 : f32 to vector<8x128xf32>
    %784 = arith.addf %783, %782 : vector<8x128xf32>
    %785 = arith.divf %783, %784 : vector<8x128xf32>
    %786 = math.tanh %780 : vector<8x128xf32>
    %787 = arith.mulf %785, %786 : vector<8x128xf32>
    %c11_223 = arith.constant 11 : index
    %c0_224 = arith.constant 0 : index
    %c0_225 = arith.constant 0 : index
    %788 = vector.load %arg5[%c11_223, %c0_224, %c0_225] : memref<16x8x128xf32, #tpu.memory_space<vmem>>, vector<1x8x128xf32>
    %789 = vector.shape_cast %788 : vector<1x8x128xf32> to vector<8x128xf32>
    %790 = vector.shape_cast %787 : vector<8x128xf32> to vector<1x8x128xf32>
    tpu.vector_store %arg5[%c11_223, %c0_224, %c0_225], %790 {strides = array<i32>} : memref<16x8x128xf32, #tpu.memory_space<vmem>>, vector<1x8x128xf32>,
    %c4_226 = arith.constant 4 : index
    %c0_227 = arith.constant 0 : index
    %c0_228 = arith.constant 0 : index
    %791 = vector.load %arg2[%c4_226, %c0_227, %c0_228] : memref<16x8x512xbf16, #tpu.memory_space<vmem>>, vector<1x8x512xbf16>
    %792 = vector.shape_cast %791 : vector<1x8x512xbf16> to vector<8x512xbf16>
    %793 = arith.extf %792 : vector<8x512xbf16> to vector<8x512xf32>
    %794 = arith.truncf %753 : vector<8x128xf32> to vector<8x128xbf16>
    %cst_229 = arith.constant dense<0.000000e+00> : vector<8x512xf32>
    %795 = tpu.matmul %794, %4, %cst_229 {dimension_numbers = #tpu.dot_dimension_numbers<[1], [0], [0], [1], [0, 0, 1, 1], [], []>} : vector<8x128xbf16>, vector<128x512xbf16>, vector<8x512xf32> -> vector<8x512xf32>
    %796 = arith.addf %793, %795 : vector<8x512xf32>
    %797 = vector.extract_strided_slice %796 {offsets = [0, 0], sizes = [8, 128], strides = [1, 1]} : vector<8x512xf32> to vector<8x128xf32>
    %798 = vector.extract_strided_slice %796 {offsets = [0, 128], sizes = [8, 128], strides = [1, 1]} : vector<8x512xf32> to vector<8x128xf32>
    %799 = vector.extract_strided_slice %796 {offsets = [0, 256], sizes = [8, 128], strides = [1, 1]} : vector<8x512xf32> to vector<8x128xf32>
    %800 = vector.extract_strided_slice %796 {offsets = [0, 384], sizes = [8, 128], strides = [1, 1]} : vector<8x512xf32> to vector<8x128xf32>
    %801 = arith.negf %798 : vector<8x128xf32>
    %802 = math.exp %801 : vector<8x128xf32>
    %cst_230 = arith.constant 1.000000e+00 : f32
    %803 = vector.broadcast %cst_230 : f32 to vector<8x128xf32>
    %804 = arith.addf %803, %802 : vector<8x128xf32>
    %805 = arith.divf %803, %804 : vector<8x128xf32>
    %806 = arith.mulf %805, %746 : vector<8x128xf32>
    %807 = arith.negf %797 : vector<8x128xf32>
    %808 = math.exp %807 : vector<8x128xf32>
    %cst_231 = arith.constant 1.000000e+00 : f32
    %809 = vector.broadcast %cst_231 : f32 to vector<8x128xf32>
    %810 = arith.addf %809, %808 : vector<8x128xf32>
    %811 = arith.divf %809, %810 : vector<8x128xf32>
    %812 = math.tanh %799 : vector<8x128xf32>
    %813 = arith.mulf %811, %812 : vector<8x128xf32>
    %814 = arith.addf %806, %813 : vector<8x128xf32>
    %815 = arith.negf %800 : vector<8x128xf32>
    %816 = math.exp %815 : vector<8x128xf32>
    %cst_232 = arith.constant 1.000000e+00 : f32
    %817 = vector.broadcast %cst_232 : f32 to vector<8x128xf32>
    %818 = arith.addf %817, %816 : vector<8x128xf32>
    %819 = arith.divf %817, %818 : vector<8x128xf32>
    %820 = math.tanh %814 : vector<8x128xf32>
    %821 = arith.mulf %819, %820 : vector<8x128xf32>
    %c4_233 = arith.constant 4 : index
    %c0_234 = arith.constant 0 : index
    %c0_235 = arith.constant 0 : index
    %822 = vector.load %arg6[%c4_233, %c0_234, %c0_235] : memref<16x8x128xf32, #tpu.memory_space<vmem>>, vector<1x8x128xf32>
    %823 = vector.shape_cast %822 : vector<1x8x128xf32> to vector<8x128xf32>
    %824 = vector.shape_cast %821 : vector<8x128xf32> to vector<1x8x128xf32>
    tpu.vector_store %arg6[%c4_233, %c0_234, %c0_235], %824 {strides = array<i32>} : memref<16x8x128xf32, #tpu.memory_space<vmem>>, vector<1x8x128xf32>,
    %c12_236 = arith.constant 12 : index
    %c0_237 = arith.constant 0 : index
    %c0_238 = arith.constant 0 : index
    %825 = vector.load %arg1[%c12_236, %c0_237, %c0_238] : memref<16x8x512xbf16, #tpu.memory_space<vmem>>, vector<1x8x512xbf16>
    %826 = vector.shape_cast %825 : vector<1x8x512xbf16> to vector<8x512xbf16>
    %827 = arith.extf %826 : vector<8x512xbf16> to vector<8x512xf32>
    %828 = arith.truncf %787 : vector<8x128xf32> to vector<8x128xbf16>
    %cst_239 = arith.constant dense<0.000000e+00> : vector<8x512xf32>
    %829 = tpu.matmul %828, %3, %cst_239 {dimension_numbers = #tpu.dot_dimension_numbers<[1], [0], [0], [1], [0, 0, 1, 1], [], []>} : vector<8x128xbf16>, vector<128x512xbf16>, vector<8x512xf32> -> vector<8x512xf32>
    %830 = arith.addf %827, %829 : vector<8x512xf32>
    %831 = vector.extract_strided_slice %830 {offsets = [0, 0], sizes = [8, 128], strides = [1, 1]} : vector<8x512xf32> to vector<8x128xf32>
    %832 = vector.extract_strided_slice %830 {offsets = [0, 128], sizes = [8, 128], strides = [1, 1]} : vector<8x512xf32> to vector<8x128xf32>
    %833 = vector.extract_strided_slice %830 {offsets = [0, 256], sizes = [8, 128], strides = [1, 1]} : vector<8x512xf32> to vector<8x128xf32>
    %834 = vector.extract_strided_slice %830 {offsets = [0, 384], sizes = [8, 128], strides = [1, 1]} : vector<8x512xf32> to vector<8x128xf32>
    %835 = arith.negf %832 : vector<8x128xf32>
    %836 = math.exp %835 : vector<8x128xf32>
    %cst_240 = arith.constant 1.000000e+00 : f32
    %837 = vector.broadcast %cst_240 : f32 to vector<8x128xf32>
    %838 = arith.addf %837, %836 : vector<8x128xf32>
    %839 = arith.divf %837, %838 : vector<8x128xf32>
    %840 = arith.mulf %839, %780 : vector<8x128xf32>
    %841 = arith.negf %831 : vector<8x128xf32>
    %842 = math.exp %841 : vector<8x128xf32>
    %cst_241 = arith.constant 1.000000e+00 : f32
    %843 = vector.broadcast %cst_241 : f32 to vector<8x128xf32>
    %844 = arith.addf %843, %842 : vector<8x128xf32>
    %845 = arith.divf %843, %844 : vector<8x128xf32>
    %846 = math.tanh %833 : vector<8x128xf32>
    %847 = arith.mulf %845, %846 : vector<8x128xf32>
    %848 = arith.addf %840, %847 : vector<8x128xf32>
    %849 = arith.negf %834 : vector<8x128xf32>
    %850 = math.exp %849 : vector<8x128xf32>
    %cst_242 = arith.constant 1.000000e+00 : f32
    %851 = vector.broadcast %cst_242 : f32 to vector<8x128xf32>
    %852 = arith.addf %851, %850 : vector<8x128xf32>
    %853 = arith.divf %851, %852 : vector<8x128xf32>
    %854 = math.tanh %848 : vector<8x128xf32>
    %855 = arith.mulf %853, %854 : vector<8x128xf32>
    %c12_243 = arith.constant 12 : index
    %c0_244 = arith.constant 0 : index
    %c0_245 = arith.constant 0 : index
    %856 = vector.load %arg5[%c12_243, %c0_244, %c0_245] : memref<16x8x128xf32, #tpu.memory_space<vmem>>, vector<1x8x128xf32>
    %857 = vector.shape_cast %856 : vector<1x8x128xf32> to vector<8x128xf32>
    %858 = vector.shape_cast %855 : vector<8x128xf32> to vector<1x8x128xf32>
    tpu.vector_store %arg5[%c12_243, %c0_244, %c0_245], %858 {strides = array<i32>} : memref<16x8x128xf32, #tpu.memory_space<vmem>>, vector<1x8x128xf32>,
    %c3_246 = arith.constant 3 : index
    %c0_247 = arith.constant 0 : index
    %c0_248 = arith.constant 0 : index
    %859 = vector.load %arg2[%c3_246, %c0_247, %c0_248] : memref<16x8x512xbf16, #tpu.memory_space<vmem>>, vector<1x8x512xbf16>
    %860 = vector.shape_cast %859 : vector<1x8x512xbf16> to vector<8x512xbf16>
    %861 = arith.extf %860 : vector<8x512xbf16> to vector<8x512xf32>
    %862 = arith.truncf %821 : vector<8x128xf32> to vector<8x128xbf16>
    %cst_249 = arith.constant dense<0.000000e+00> : vector<8x512xf32>
    %863 = tpu.matmul %862, %4, %cst_249 {dimension_numbers = #tpu.dot_dimension_numbers<[1], [0], [0], [1], [0, 0, 1, 1], [], []>} : vector<8x128xbf16>, vector<128x512xbf16>, vector<8x512xf32> -> vector<8x512xf32>
    %864 = arith.addf %861, %863 : vector<8x512xf32>
    %865 = vector.extract_strided_slice %864 {offsets = [0, 0], sizes = [8, 128], strides = [1, 1]} : vector<8x512xf32> to vector<8x128xf32>
    %866 = vector.extract_strided_slice %864 {offsets = [0, 128], sizes = [8, 128], strides = [1, 1]} : vector<8x512xf32> to vector<8x128xf32>
    %867 = vector.extract_strided_slice %864 {offsets = [0, 256], sizes = [8, 128], strides = [1, 1]} : vector<8x512xf32> to vector<8x128xf32>
    %868 = vector.extract_strided_slice %864 {offsets = [0, 384], sizes = [8, 128], strides = [1, 1]} : vector<8x512xf32> to vector<8x128xf32>
    %869 = arith.negf %866 : vector<8x128xf32>
    %870 = math.exp %869 : vector<8x128xf32>
    %cst_250 = arith.constant 1.000000e+00 : f32
    %871 = vector.broadcast %cst_250 : f32 to vector<8x128xf32>
    %872 = arith.addf %871, %870 : vector<8x128xf32>
    %873 = arith.divf %871, %872 : vector<8x128xf32>
    %874 = arith.mulf %873, %814 : vector<8x128xf32>
    %875 = arith.negf %865 : vector<8x128xf32>
    %876 = math.exp %875 : vector<8x128xf32>
    %cst_251 = arith.constant 1.000000e+00 : f32
    %877 = vector.broadcast %cst_251 : f32 to vector<8x128xf32>
    %878 = arith.addf %877, %876 : vector<8x128xf32>
    %879 = arith.divf %877, %878 : vector<8x128xf32>
    %880 = math.tanh %867 : vector<8x128xf32>
    %881 = arith.mulf %879, %880 : vector<8x128xf32>
    %882 = arith.addf %874, %881 : vector<8x128xf32>
    %883 = arith.negf %868 : vector<8x128xf32>
    %884 = math.exp %883 : vector<8x128xf32>
    %cst_252 = arith.constant 1.000000e+00 : f32
    %885 = vector.broadcast %cst_252 : f32 to vector<8x128xf32>
    %886 = arith.addf %885, %884 : vector<8x128xf32>
    %887 = arith.divf %885, %886 : vector<8x128xf32>
    %888 = math.tanh %882 : vector<8x128xf32>
    %889 = arith.mulf %887, %888 : vector<8x128xf32>
    %c3_253 = arith.constant 3 : index
    %c0_254 = arith.constant 0 : index
    %c0_255 = arith.constant 0 : index
    %890 = vector.load %arg6[%c3_253, %c0_254, %c0_255] : memref<16x8x128xf32, #tpu.memory_space<vmem>>, vector<1x8x128xf32>
    %891 = vector.shape_cast %890 : vector<1x8x128xf32> to vector<8x128xf32>
    %892 = vector.shape_cast %889 : vector<8x128xf32> to vector<1x8x128xf32>
    tpu.vector_store %arg6[%c3_253, %c0_254, %c0_255], %892 {strides = array<i32>} : memref<16x8x128xf32, #tpu.memory_space<vmem>>, vector<1x8x128xf32>,
    %c13_256 = arith.constant 13 : index
    %c0_257 = arith.constant 0 : index
    %c0_258 = arith.constant 0 : index
    %893 = vector.load %arg1[%c13_256, %c0_257, %c0_258] : memref<16x8x512xbf16, #tpu.memory_space<vmem>>, vector<1x8x512xbf16>
    %894 = vector.shape_cast %893 : vector<1x8x512xbf16> to vector<8x512xbf16>
    %895 = arith.extf %894 : vector<8x512xbf16> to vector<8x512xf32>
    %896 = arith.truncf %855 : vector<8x128xf32> to vector<8x128xbf16>
    %cst_259 = arith.constant dense<0.000000e+00> : vector<8x512xf32>
    %897 = tpu.matmul %896, %3, %cst_259 {dimension_numbers = #tpu.dot_dimension_numbers<[1], [0], [0], [1], [0, 0, 1, 1], [], []>} : vector<8x128xbf16>, vector<128x512xbf16>, vector<8x512xf32> -> vector<8x512xf32>
    %898 = arith.addf %895, %897 : vector<8x512xf32>
    %899 = vector.extract_strided_slice %898 {offsets = [0, 0], sizes = [8, 128], strides = [1, 1]} : vector<8x512xf32> to vector<8x128xf32>
    %900 = vector.extract_strided_slice %898 {offsets = [0, 128], sizes = [8, 128], strides = [1, 1]} : vector<8x512xf32> to vector<8x128xf32>
    %901 = vector.extract_strided_slice %898 {offsets = [0, 256], sizes = [8, 128], strides = [1, 1]} : vector<8x512xf32> to vector<8x128xf32>
    %902 = vector.extract_strided_slice %898 {offsets = [0, 384], sizes = [8, 128], strides = [1, 1]} : vector<8x512xf32> to vector<8x128xf32>
    %903 = arith.negf %900 : vector<8x128xf32>
    %904 = math.exp %903 : vector<8x128xf32>
    %cst_260 = arith.constant 1.000000e+00 : f32
    %905 = vector.broadcast %cst_260 : f32 to vector<8x128xf32>
    %906 = arith.addf %905, %904 : vector<8x128xf32>
    %907 = arith.divf %905, %906 : vector<8x128xf32>
    %908 = arith.mulf %907, %848 : vector<8x128xf32>
    %909 = arith.negf %899 : vector<8x128xf32>
    %910 = math.exp %909 : vector<8x128xf32>
    %cst_261 = arith.constant 1.000000e+00 : f32
    %911 = vector.broadcast %cst_261 : f32 to vector<8x128xf32>
    %912 = arith.addf %911, %910 : vector<8x128xf32>
    %913 = arith.divf %911, %912 : vector<8x128xf32>
    %914 = math.tanh %901 : vector<8x128xf32>
    %915 = arith.mulf %913, %914 : vector<8x128xf32>
    %916 = arith.addf %908, %915 : vector<8x128xf32>
    %917 = arith.negf %902 : vector<8x128xf32>
    %918 = math.exp %917 : vector<8x128xf32>
    %cst_262 = arith.constant 1.000000e+00 : f32
    %919 = vector.broadcast %cst_262 : f32 to vector<8x128xf32>
    %920 = arith.addf %919, %918 : vector<8x128xf32>
    %921 = arith.divf %919, %920 : vector<8x128xf32>
    %922 = math.tanh %916 : vector<8x128xf32>
    %923 = arith.mulf %921, %922 : vector<8x128xf32>
    %c13_263 = arith.constant 13 : index
    %c0_264 = arith.constant 0 : index
    %c0_265 = arith.constant 0 : index
    %924 = vector.load %arg5[%c13_263, %c0_264, %c0_265] : memref<16x8x128xf32, #tpu.memory_space<vmem>>, vector<1x8x128xf32>
    %925 = vector.shape_cast %924 : vector<1x8x128xf32> to vector<8x128xf32>
    %926 = vector.shape_cast %923 : vector<8x128xf32> to vector<1x8x128xf32>
    tpu.vector_store %arg5[%c13_263, %c0_264, %c0_265], %926 {strides = array<i32>} : memref<16x8x128xf32, #tpu.memory_space<vmem>>, vector<1x8x128xf32>,
    %c2_266 = arith.constant 2 : index
    %c0_267 = arith.constant 0 : index
    %c0_268 = arith.constant 0 : index
    %927 = vector.load %arg2[%c2_266, %c0_267, %c0_268] : memref<16x8x512xbf16, #tpu.memory_space<vmem>>, vector<1x8x512xbf16>
    %928 = vector.shape_cast %927 : vector<1x8x512xbf16> to vector<8x512xbf16>
    %929 = arith.extf %928 : vector<8x512xbf16> to vector<8x512xf32>
    %930 = arith.truncf %889 : vector<8x128xf32> to vector<8x128xbf16>
    %cst_269 = arith.constant dense<0.000000e+00> : vector<8x512xf32>
    %931 = tpu.matmul %930, %4, %cst_269 {dimension_numbers = #tpu.dot_dimension_numbers<[1], [0], [0], [1], [0, 0, 1, 1], [], []>} : vector<8x128xbf16>, vector<128x512xbf16>, vector<8x512xf32> -> vector<8x512xf32>
    %932 = arith.addf %929, %931 : vector<8x512xf32>
    %933 = vector.extract_strided_slice %932 {offsets = [0, 0], sizes = [8, 128], strides = [1, 1]} : vector<8x512xf32> to vector<8x128xf32>
    %934 = vector.extract_strided_slice %932 {offsets = [0, 128], sizes = [8, 128], strides = [1, 1]} : vector<8x512xf32> to vector<8x128xf32>
    %935 = vector.extract_strided_slice %932 {offsets = [0, 256], sizes = [8, 128], strides = [1, 1]} : vector<8x512xf32> to vector<8x128xf32>
    %936 = vector.extract_strided_slice %932 {offsets = [0, 384], sizes = [8, 128], strides = [1, 1]} : vector<8x512xf32> to vector<8x128xf32>
    %937 = arith.negf %934 : vector<8x128xf32>
    %938 = math.exp %937 : vector<8x128xf32>
    %cst_270 = arith.constant 1.000000e+00 : f32
    %939 = vector.broadcast %cst_270 : f32 to vector<8x128xf32>
    %940 = arith.addf %939, %938 : vector<8x128xf32>
    %941 = arith.divf %939, %940 : vector<8x128xf32>
    %942 = arith.mulf %941, %882 : vector<8x128xf32>
    %943 = arith.negf %933 : vector<8x128xf32>
    %944 = math.exp %943 : vector<8x128xf32>
    %cst_271 = arith.constant 1.000000e+00 : f32
    %945 = vector.broadcast %cst_271 : f32 to vector<8x128xf32>
    %946 = arith.addf %945, %944 : vector<8x128xf32>
    %947 = arith.divf %945, %946 : vector<8x128xf32>
    %948 = math.tanh %935 : vector<8x128xf32>
    %949 = arith.mulf %947, %948 : vector<8x128xf32>
    %950 = arith.addf %942, %949 : vector<8x128xf32>
    %951 = arith.negf %936 : vector<8x128xf32>
    %952 = math.exp %951 : vector<8x128xf32>
    %cst_272 = arith.constant 1.000000e+00 : f32
    %953 = vector.broadcast %cst_272 : f32 to vector<8x128xf32>
    %954 = arith.addf %953, %952 : vector<8x128xf32>
    %955 = arith.divf %953, %954 : vector<8x128xf32>
    %956 = math.tanh %950 : vector<8x128xf32>
    %957 = arith.mulf %955, %956 : vector<8x128xf32>
    %c2_273 = arith.constant 2 : index
    %c0_274 = arith.constant 0 : index
    %c0_275 = arith.constant 0 : index
    %958 = vector.load %arg6[%c2_273, %c0_274, %c0_275] : memref<16x8x128xf32, #tpu.memory_space<vmem>>, vector<1x8x128xf32>
    %959 = vector.shape_cast %958 : vector<1x8x128xf32> to vector<8x128xf32>
    %960 = vector.shape_cast %957 : vector<8x128xf32> to vector<1x8x128xf32>
    tpu.vector_store %arg6[%c2_273, %c0_274, %c0_275], %960 {strides = array<i32>} : memref<16x8x128xf32, #tpu.memory_space<vmem>>, vector<1x8x128xf32>,
    %c14_276 = arith.constant 14 : index
    %c0_277 = arith.constant 0 : index
    %c0_278 = arith.constant 0 : index
    %961 = vector.load %arg1[%c14_276, %c0_277, %c0_278] : memref<16x8x512xbf16, #tpu.memory_space<vmem>>, vector<1x8x512xbf16>
    %962 = vector.shape_cast %961 : vector<1x8x512xbf16> to vector<8x512xbf16>
    %963 = arith.extf %962 : vector<8x512xbf16> to vector<8x512xf32>
    %964 = arith.truncf %923 : vector<8x128xf32> to vector<8x128xbf16>
    %cst_279 = arith.constant dense<0.000000e+00> : vector<8x512xf32>
    %965 = tpu.matmul %964, %3, %cst_279 {dimension_numbers = #tpu.dot_dimension_numbers<[1], [0], [0], [1], [0, 0, 1, 1], [], []>} : vector<8x128xbf16>, vector<128x512xbf16>, vector<8x512xf32> -> vector<8x512xf32>
    %966 = arith.addf %963, %965 : vector<8x512xf32>
    %967 = vector.extract_strided_slice %966 {offsets = [0, 0], sizes = [8, 128], strides = [1, 1]} : vector<8x512xf32> to vector<8x128xf32>
    %968 = vector.extract_strided_slice %966 {offsets = [0, 128], sizes = [8, 128], strides = [1, 1]} : vector<8x512xf32> to vector<8x128xf32>
    %969 = vector.extract_strided_slice %966 {offsets = [0, 256], sizes = [8, 128], strides = [1, 1]} : vector<8x512xf32> to vector<8x128xf32>
    %970 = vector.extract_strided_slice %966 {offsets = [0, 384], sizes = [8, 128], strides = [1, 1]} : vector<8x512xf32> to vector<8x128xf32>
    %971 = arith.negf %968 : vector<8x128xf32>
    %972 = math.exp %971 : vector<8x128xf32>
    %cst_280 = arith.constant 1.000000e+00 : f32
    %973 = vector.broadcast %cst_280 : f32 to vector<8x128xf32>
    %974 = arith.addf %973, %972 : vector<8x128xf32>
    %975 = arith.divf %973, %974 : vector<8x128xf32>
    %976 = arith.mulf %975, %916 : vector<8x128xf32>
    %977 = arith.negf %967 : vector<8x128xf32>
    %978 = math.exp %977 : vector<8x128xf32>
    %cst_281 = arith.constant 1.000000e+00 : f32
    %979 = vector.broadcast %cst_281 : f32 to vector<8x128xf32>
    %980 = arith.addf %979, %978 : vector<8x128xf32>
    %981 = arith.divf %979, %980 : vector<8x128xf32>
    %982 = math.tanh %969 : vector<8x128xf32>
    %983 = arith.mulf %981, %982 : vector<8x128xf32>
    %984 = arith.addf %976, %983 : vector<8x128xf32>
    %985 = arith.negf %970 : vector<8x128xf32>
    %986 = math.exp %985 : vector<8x128xf32>
    %cst_282 = arith.constant 1.000000e+00 : f32
    %987 = vector.broadcast %cst_282 : f32 to vector<8x128xf32>
    %988 = arith.addf %987, %986 : vector<8x128xf32>
    %989 = arith.divf %987, %988 : vector<8x128xf32>
    %990 = math.tanh %984 : vector<8x128xf32>
    %991 = arith.mulf %989, %990 : vector<8x128xf32>
    %c14_283 = arith.constant 14 : index
    %c0_284 = arith.constant 0 : index
    %c0_285 = arith.constant 0 : index
    %992 = vector.load %arg5[%c14_283, %c0_284, %c0_285] : memref<16x8x128xf32, #tpu.memory_space<vmem>>, vector<1x8x128xf32>
    %993 = vector.shape_cast %992 : vector<1x8x128xf32> to vector<8x128xf32>
    %994 = vector.shape_cast %991 : vector<8x128xf32> to vector<1x8x128xf32>
    tpu.vector_store %arg5[%c14_283, %c0_284, %c0_285], %994 {strides = array<i32>} : memref<16x8x128xf32, #tpu.memory_space<vmem>>, vector<1x8x128xf32>,
    %c1_286 = arith.constant 1 : index
    %c0_287 = arith.constant 0 : index
    %c0_288 = arith.constant 0 : index
    %995 = vector.load %arg2[%c1_286, %c0_287, %c0_288] : memref<16x8x512xbf16, #tpu.memory_space<vmem>>, vector<1x8x512xbf16>
    %996 = vector.shape_cast %995 : vector<1x8x512xbf16> to vector<8x512xbf16>
    %997 = arith.extf %996 : vector<8x512xbf16> to vector<8x512xf32>
    %998 = arith.truncf %957 : vector<8x128xf32> to vector<8x128xbf16>
    %cst_289 = arith.constant dense<0.000000e+00> : vector<8x512xf32>
    %999 = tpu.matmul %998, %4, %cst_289 {dimension_numbers = #tpu.dot_dimension_numbers<[1], [0], [0], [1], [0, 0, 1, 1], [], []>} : vector<8x128xbf16>, vector<128x512xbf16>, vector<8x512xf32> -> vector<8x512xf32>
    %1000 = arith.addf %997, %999 : vector<8x512xf32>
    %1001 = vector.extract_strided_slice %1000 {offsets = [0, 0], sizes = [8, 128], strides = [1, 1]} : vector<8x512xf32> to vector<8x128xf32>
    %1002 = vector.extract_strided_slice %1000 {offsets = [0, 128], sizes = [8, 128], strides = [1, 1]} : vector<8x512xf32> to vector<8x128xf32>
    %1003 = vector.extract_strided_slice %1000 {offsets = [0, 256], sizes = [8, 128], strides = [1, 1]} : vector<8x512xf32> to vector<8x128xf32>
    %1004 = vector.extract_strided_slice %1000 {offsets = [0, 384], sizes = [8, 128], strides = [1, 1]} : vector<8x512xf32> to vector<8x128xf32>
    %1005 = arith.negf %1002 : vector<8x128xf32>
    %1006 = math.exp %1005 : vector<8x128xf32>
    %cst_290 = arith.constant 1.000000e+00 : f32
    %1007 = vector.broadcast %cst_290 : f32 to vector<8x128xf32>
    %1008 = arith.addf %1007, %1006 : vector<8x128xf32>
    %1009 = arith.divf %1007, %1008 : vector<8x128xf32>
    %1010 = arith.mulf %1009, %950 : vector<8x128xf32>
    %1011 = arith.negf %1001 : vector<8x128xf32>
    %1012 = math.exp %1011 : vector<8x128xf32>
    %cst_291 = arith.constant 1.000000e+00 : f32
    %1013 = vector.broadcast %cst_291 : f32 to vector<8x128xf32>
    %1014 = arith.addf %1013, %1012 : vector<8x128xf32>
    %1015 = arith.divf %1013, %1014 : vector<8x128xf32>
    %1016 = math.tanh %1003 : vector<8x128xf32>
    %1017 = arith.mulf %1015, %1016 : vector<8x128xf32>
    %1018 = arith.addf %1010, %1017 : vector<8x128xf32>
    %1019 = arith.negf %1004 : vector<8x128xf32>
    %1020 = math.exp %1019 : vector<8x128xf32>
    %cst_292 = arith.constant 1.000000e+00 : f32
    %1021 = vector.broadcast %cst_292 : f32 to vector<8x128xf32>
    %1022 = arith.addf %1021, %1020 : vector<8x128xf32>
    %1023 = arith.divf %1021, %1022 : vector<8x128xf32>
    %1024 = math.tanh %1018 : vector<8x128xf32>
    %1025 = arith.mulf %1023, %1024 : vector<8x128xf32>
    %c1_293 = arith.constant 1 : index
    %c0_294 = arith.constant 0 : index
    %c0_295 = arith.constant 0 : index
    %1026 = vector.load %arg6[%c1_293, %c0_294, %c0_295] : memref<16x8x128xf32, #tpu.memory_space<vmem>>, vector<1x8x128xf32>
    %1027 = vector.shape_cast %1026 : vector<1x8x128xf32> to vector<8x128xf32>
    %1028 = vector.shape_cast %1025 : vector<8x128xf32> to vector<1x8x128xf32>
    tpu.vector_store %arg6[%c1_293, %c0_294, %c0_295], %1028 {strides = array<i32>} : memref<16x8x128xf32, #tpu.memory_space<vmem>>, vector<1x8x128xf32>,
    %c15_296 = arith.constant 15 : index
    %c0_297 = arith.constant 0 : index
    %c0_298 = arith.constant 0 : index
    %1029 = vector.load %arg1[%c15_296, %c0_297, %c0_298] : memref<16x8x512xbf16, #tpu.memory_space<vmem>>, vector<1x8x512xbf16>
    %1030 = vector.shape_cast %1029 : vector<1x8x512xbf16> to vector<8x512xbf16>
    %1031 = arith.extf %1030 : vector<8x512xbf16> to vector<8x512xf32>
    %1032 = arith.truncf %991 : vector<8x128xf32> to vector<8x128xbf16>
    %cst_299 = arith.constant dense<0.000000e+00> : vector<8x512xf32>
    %1033 = tpu.matmul %1032, %3, %cst_299 {dimension_numbers = #tpu.dot_dimension_numbers<[1], [0], [0], [1], [0, 0, 1, 1], [], []>} : vector<8x128xbf16>, vector<128x512xbf16>, vector<8x512xf32> -> vector<8x512xf32>
    %1034 = arith.addf %1031, %1033 : vector<8x512xf32>
    %1035 = vector.extract_strided_slice %1034 {offsets = [0, 0], sizes = [8, 128], strides = [1, 1]} : vector<8x512xf32> to vector<8x128xf32>
    %1036 = vector.extract_strided_slice %1034 {offsets = [0, 128], sizes = [8, 128], strides = [1, 1]} : vector<8x512xf32> to vector<8x128xf32>
    %1037 = vector.extract_strided_slice %1034 {offsets = [0, 256], sizes = [8, 128], strides = [1, 1]} : vector<8x512xf32> to vector<8x128xf32>
    %1038 = vector.extract_strided_slice %1034 {offsets = [0, 384], sizes = [8, 128], strides = [1, 1]} : vector<8x512xf32> to vector<8x128xf32>
    %1039 = arith.negf %1036 : vector<8x128xf32>
    %1040 = math.exp %1039 : vector<8x128xf32>
    %cst_300 = arith.constant 1.000000e+00 : f32
    %1041 = vector.broadcast %cst_300 : f32 to vector<8x128xf32>
    %1042 = arith.addf %1041, %1040 : vector<8x128xf32>
    %1043 = arith.divf %1041, %1042 : vector<8x128xf32>
    %1044 = arith.mulf %1043, %984 : vector<8x128xf32>
    %1045 = arith.negf %1035 : vector<8x128xf32>
    %1046 = math.exp %1045 : vector<8x128xf32>
    %cst_301 = arith.constant 1.000000e+00 : f32
    %1047 = vector.broadcast %cst_301 : f32 to vector<8x128xf32>
    %1048 = arith.addf %1047, %1046 : vector<8x128xf32>
    %1049 = arith.divf %1047, %1048 : vector<8x128xf32>
    %1050 = math.tanh %1037 : vector<8x128xf32>
    %1051 = arith.mulf %1049, %1050 : vector<8x128xf32>
    %1052 = arith.addf %1044, %1051 : vector<8x128xf32>
    %1053 = arith.negf %1038 : vector<8x128xf32>
    %1054 = math.exp %1053 : vector<8x128xf32>
    %cst_302 = arith.constant 1.000000e+00 : f32
    %1055 = vector.broadcast %cst_302 : f32 to vector<8x128xf32>
    %1056 = arith.addf %1055, %1054 : vector<8x128xf32>
    %1057 = arith.divf %1055, %1056 : vector<8x128xf32>
    %1058 = math.tanh %1052 : vector<8x128xf32>
    %1059 = arith.mulf %1057, %1058 : vector<8x128xf32>
    %c15_303 = arith.constant 15 : index
    %c0_304 = arith.constant 0 : index
    %c0_305 = arith.constant 0 : index
    %1060 = vector.load %arg5[%c15_303, %c0_304, %c0_305] : memref<16x8x128xf32, #tpu.memory_space<vmem>>, vector<1x8x128xf32>
    %1061 = vector.shape_cast %1060 : vector<1x8x128xf32> to vector<8x128xf32>
    %1062 = vector.shape_cast %1059 : vector<8x128xf32> to vector<1x8x128xf32>
    tpu.vector_store %arg5[%c15_303, %c0_304, %c0_305], %1062 {strides = array<i32>} : memref<16x8x128xf32, #tpu.memory_space<vmem>>, vector<1x8x128xf32>,
    %c0_306 = arith.constant 0 : index
    %c0_307 = arith.constant 0 : index
    %c0_308 = arith.constant 0 : index
    %1063 = vector.load %arg2[%c0_306, %c0_307, %c0_308] : memref<16x8x512xbf16, #tpu.memory_space<vmem>>, vector<1x8x512xbf16>
    %1064 = vector.shape_cast %1063 : vector<1x8x512xbf16> to vector<8x512xbf16>
    %1065 = arith.extf %1064 : vector<8x512xbf16> to vector<8x512xf32>
    %1066 = arith.truncf %1025 : vector<8x128xf32> to vector<8x128xbf16>
    %cst_309 = arith.constant dense<0.000000e+00> : vector<8x512xf32>
    %1067 = tpu.matmul %1066, %4, %cst_309 {dimension_numbers = #tpu.dot_dimension_numbers<[1], [0], [0], [1], [0, 0, 1, 1], [], []>} : vector<8x128xbf16>, vector<128x512xbf16>, vector<8x512xf32> -> vector<8x512xf32>
    %1068 = arith.addf %1065, %1067 : vector<8x512xf32>
    %1069 = vector.extract_strided_slice %1068 {offsets = [0, 0], sizes = [8, 128], strides = [1, 1]} : vector<8x512xf32> to vector<8x128xf32>
    %1070 = vector.extract_strided_slice %1068 {offsets = [0, 128], sizes = [8, 128], strides = [1, 1]} : vector<8x512xf32> to vector<8x128xf32>
    %1071 = vector.extract_strided_slice %1068 {offsets = [0, 256], sizes = [8, 128], strides = [1, 1]} : vector<8x512xf32> to vector<8x128xf32>
    %1072 = vector.extract_strided_slice %1068 {offsets = [0, 384], sizes = [8, 128], strides = [1, 1]} : vector<8x512xf32> to vector<8x128xf32>
    %1073 = arith.negf %1070 : vector<8x128xf32>
    %1074 = math.exp %1073 : vector<8x128xf32>
    %cst_310 = arith.constant 1.000000e+00 : f32
    %1075 = vector.broadcast %cst_310 : f32 to vector<8x128xf32>
    %1076 = arith.addf %1075, %1074 : vector<8x128xf32>
    %1077 = arith.divf %1075, %1076 : vector<8x128xf32>
    %1078 = arith.mulf %1077, %1018 : vector<8x128xf32>
    %1079 = arith.negf %1069 : vector<8x128xf32>
    %1080 = math.exp %1079 : vector<8x128xf32>
    %cst_311 = arith.constant 1.000000e+00 : f32
    %1081 = vector.broadcast %cst_311 : f32 to vector<8x128xf32>
    %1082 = arith.addf %1081, %1080 : vector<8x128xf32>
    %1083 = arith.divf %1081, %1082 : vector<8x128xf32>
    %1084 = math.tanh %1071 : vector<8x128xf32>
    %1085 = arith.mulf %1083, %1084 : vector<8x128xf32>
    %1086 = arith.addf %1078, %1085 : vector<8x128xf32>
    %1087 = arith.negf %1072 : vector<8x128xf32>
    %1088 = math.exp %1087 : vector<8x128xf32>
    %cst_312 = arith.constant 1.000000e+00 : f32
    %1089 = vector.broadcast %cst_312 : f32 to vector<8x128xf32>
    %1090 = arith.addf %1089, %1088 : vector<8x128xf32>
    %1091 = arith.divf %1089, %1090 : vector<8x128xf32>
    %1092 = math.tanh %1086 : vector<8x128xf32>
    %1093 = arith.mulf %1091, %1092 : vector<8x128xf32>
    %c0_313 = arith.constant 0 : index
    %c0_314 = arith.constant 0 : index
    %c0_315 = arith.constant 0 : index
    %1094 = vector.load %arg6[%c0_313, %c0_314, %c0_315] : memref<16x8x128xf32, #tpu.memory_space<vmem>>, vector<1x8x128xf32>
    %1095 = vector.shape_cast %1094 : vector<1x8x128xf32> to vector<8x128xf32>
    %1096 = vector.shape_cast %1093 : vector<8x128xf32> to vector<1x8x128xf32>
    tpu.vector_store %arg6[%c0_313, %c0_314, %c0_315], %1096 {strides = array<i32>} : memref<16x8x128xf32, #tpu.memory_space<vmem>>, vector<1x8x128xf32>,
    %c0_316 = arith.constant 0 : index
    %c0_317 = arith.constant 0 : index
    %1097 = vector.load %arg8[%c0_316, %c0_317] : memref<8x128xf32, #tpu.memory_space<vmem>>, vector<8x128xf32>
    tpu.vector_store %arg8[%c0_316, %c0_317], %1059 {strides = array<i32>} : memref<8x128xf32, #tpu.memory_space<vmem>>, vector<8x128xf32>,
    %c0_318 = arith.constant 0 : index
    %c0_319 = arith.constant 0 : index
    %1098 = vector.load %arg9[%c0_318, %c0_319] : memref<8x128xf32, #tpu.memory_space<vmem>>, vector<8x128xf32>
    tpu.vector_store %arg9[%c0_318, %c0_319], %1052 {strides = array<i32>} : memref<8x128xf32, #tpu.memory_space<vmem>>, vector<8x128xf32>,
    %c0_320 = arith.constant 0 : index
    %c0_321 = arith.constant 0 : index
    %1099 = vector.load %arg10[%c0_320, %c0_321] : memref<8x128xf32, #tpu.memory_space<vmem>>, vector<8x128xf32>
    tpu.vector_store %arg10[%c0_320, %c0_321], %1093 {strides = array<i32>} : memref<8x128xf32, #tpu.memory_space<vmem>>, vector<8x128xf32>,
    %c0_322 = arith.constant 0 : index
    %c0_323 = arith.constant 0 : index
    %1100 = vector.load %arg11[%c0_322, %c0_323] : memref<8x128xf32, #tpu.memory_space<vmem>>, vector<8x128xf32>
    tpu.vector_store %arg11[%c0_322, %c0_323], %1086 {strides = array<i32>} : memref<8x128xf32, #tpu.memory_space<vmem>>, vector<8x128xf32>,
    %c0_i32_324 = arith.constant 0 : i32
    %1101 = arith.cmpi eq, %arg0, %c0_i32_324 : i32
    %1102 = arith.extui %1101 : i1 to i32
    %c0_i32_325 = arith.constant 0 : i32
    %1103 = arith.cmpi ne, %1102, %c0_i32_325 : i32
    scf.if %1103 {
      %c0_328 = arith.constant 0 : index
      %c0_329 = arith.constant 0 : index
      %c0_330 = arith.constant 0 : index
      %1107 = vector.load %arg7[%c0_328, %c0_329, %c0_330] : memref<2x8x128xf32, #tpu.memory_space<vmem>>, vector<1x8x128xf32>
      %1108 = vector.shape_cast %1107 : vector<1x8x128xf32> to vector<8x128xf32>
      %1109 = vector.shape_cast %1052 : vector<8x128xf32> to vector<1x8x128xf32>
      tpu.vector_store %arg7[%c0_328, %c0_329, %c0_330], %1109 {strides = array<i32>} : memref<2x8x128xf32, #tpu.memory_space<vmem>>, vector<1x8x128xf32>,
    } else {
    }
    %c0_i32_326 = arith.constant 0 : i32
    %1104 = arith.cmpi eq, %arg0, %c0_i32_326 : i32
    %1105 = arith.extui %1104 : i1 to i32
    %c0_i32_327 = arith.constant 0 : i32
    %1106 = arith.cmpi ne, %1105, %c0_i32_327 : i32
    scf.if %1106 {
      %c1_328 = arith.constant 1 : index
      %c0_329 = arith.constant 0 : index
      %c0_330 = arith.constant 0 : index
      %1107 = vector.load %arg7[%c1_328, %c0_329, %c0_330] : memref<2x8x128xf32, #tpu.memory_space<vmem>>, vector<1x8x128xf32>
      %1108 = vector.shape_cast %1107 : vector<1x8x128xf32> to vector<8x128xf32>
      %1109 = vector.shape_cast %66 : vector<8x128xf32> to vector<1x8x128xf32>
      tpu.vector_store %arg7[%c1_328, %c0_329, %c0_330], %1109 {strides = array<i32>} : memref<2x8x128xf32, #tpu.memory_space<vmem>>, vector<1x8x128xf32>,
    } else {
    }
    return
  }
  func.func @transform_0(%arg0: i32) -> (i32, i32, i32) {
    %c0_i32 = arith.constant 0 : i32
    %c0_i32_0 = arith.constant 0 : i32
    %c0_i32_1 = arith.constant 0 : i32
    return %arg0, %c0_i32, %c0_i32_0 : i32, i32, i32
  }
  func.func @transform_1(%arg0: i32) -> (i32, i32, i32) {
    %c0_i32 = arith.constant 0 : i32
    %0 = arith.subi %c0_i32, %arg0 : i32
    %c0_i32_0 = arith.constant 0 : i32
    %c0_i32_1 = arith.constant 0 : i32
    %c0_i32_2 = arith.constant 0 : i32
    return %0, %c0_i32_0, %c0_i32_1 : i32, i32, i32
  }
  func.func @transform_2(%arg0: i32) -> (i32, i32) {
    %c0_i32 = arith.constant 0 : i32
    %c0_i32_0 = arith.constant 0 : i32
    %c0_i32_1 = arith.constant 0 : i32
    return %c0_i32, %c0_i32_0 : i32, i32
  }
  func.func @transform_3(%arg0: i32) -> (i32, i32) {
    %c0_i32 = arith.constant 0 : i32
    %c0_i32_0 = arith.constant 0 : i32
    %c0_i32_1 = arith.constant 0 : i32
    return %c0_i32, %c0_i32_0 : i32, i32
  }
  func.func @transform_4(%arg0: i32) -> (i32, i32, i32) {
    %c0_i32 = arith.constant 0 : i32
    %c0_i32_0 = arith.constant 0 : i32
    %c0_i32_1 = arith.constant 0 : i32
    return %arg0, %c0_i32, %c0_i32_0 : i32, i32, i32
  }
  func.func @transform_5(%arg0: i32) -> (i32, i32, i32) {
    %c0_i32 = arith.constant 0 : i32
    %0 = arith.subi %c0_i32, %arg0 : i32
    %c0_i32_0 = arith.constant 0 : i32
    %c0_i32_1 = arith.constant 0 : i32
    %c0_i32_2 = arith.constant 0 : i32
    return %0, %c0_i32_0, %c0_i32_1 : i32, i32, i32
  }
  func.func @transform_6(%arg0: i32) -> (i32, i32, i32) {
    %c0_i32 = arith.constant 0 : i32
    %c0_i32_0 = arith.constant 0 : i32
    %c0_i32_1 = arith.constant 0 : i32
    %c0_i32_2 = arith.constant 0 : i32
    return %c0_i32, %c0_i32_0, %c0_i32_1 : i32, i32, i32
  }
}

</mosaic_0001>

<llo_original>
// kernel: squeeze.9
$region0: #{squeeze.9}
  %s0 = inlined_call_operand.vmem [shape: f32[1,2,64], index: 0, kind: input, shape index: {}]
  %s1 = inlined_call_operand.hbm [shape: f32[2,2,32], index: 1, kind: output, shape index: {}]
  $region1: #{squeeze.9} parent=0
    #allocation0 [shape = 'u8[2048]{0}', space=vmem, size = 0x800, scoped, tag = 'operand span for operand 1']
    #allocation1 [shape = 's32[1]{0}', space=sflag, size = 0x4, scoped, tag = 'scoped memory for squeeze.9']
    #allocation2 [shape = 'u8[8192]{0}', space=vmem, size = 0x2000, scoped, tag = 'scoped mem for output reshape']
    #allocation3 [shape = 'u8[4096]{0}', space=vmem, size = 0x1000, scoped, tag = 'scoped mem for input reshape']
    %2 = vsyncpa [#allocation1], 0
    %s4 = sshllo.u32 0, 2
    %v5 = vld [vmem:[%s0] sm:%s4]
    %6 = vst [vmem:[#allocation3] sm:%s4] %v5
    %v7 = vld [vmem:[#allocation3] sm:$0x3]
    %vm8 = vcmask 261120
    %9 = vst.msk [vmem:[#allocation2] ss:$8 sm:$0x3] %vm8, %v7
    %v10 = vld [vmem:[#allocation3] sm:$0x3]
    %11 = vrot.lane.b32.xlu0 %v10, 96
    %v12 = vpop.permute.xlu0 %11
    %vm13 = vcmask 261120
    %s14 = scalar_lea.vmem [#allocation2], 1
    %15 = vst.msk [vmem:[%s14] ss:$8 sm:$0x3] %vm13, %v12
    %s17 = sshllo.u32 0, 2
    %v19 = vld [vmem:[#allocation2] sm:%s17]
    %s20 = sshllo.u32 0, 2
    %21 = vst [vmem:[#allocation0] sm:%s20] %v19
    %s22 = scalar_lea.vmem [#allocation2], 8
    %v23 = vld [vmem:[%s22] sm:%s17]
    %s24 = sshllo.u32 0, 2
    %s25 = scalar_lea.vmem [#allocation0], 2
    %26 = vst [vmem:[%s25] sm:%s24] %v23
    %s28 = ssub.s32 64, 64
    %29 = vsyncadd [#allocation1], %s28
    %s31 = sshll.u32 [#allocation0], 4
    %s32 = int_to_ptr.vmem [resolvable:$true] %s31
    %34 = dma.vmem_to_hbm [thread:$0]  %s32, 64, %s1, [#allocation1]
    %35 = dma.done [#allocation1], 64
    %36 = vsyncpa [#allocation1], 1

// kernel: lstm_layer_forward.1
$region0: #{lstm_layer_forward.1}
  #allocation0 [shape = 'u32[]', space=smem, size = 0x4, offset = 0x4, fixed_abs, tag = 'smem constant byte address 0x4 - core index']
  #allocation1 [shape = 'u32[144,128]{1,0:T(1,128)}', space=vmem, size = 0x12000, scoped, tag = 'internal scratch']
  #allocation2 [shape = 'f32[8,128]{1,0:T(8,128)}', space=vmem, size = 0x1000, scoped, tag = 'scratch operand']
  #allocation3 [shape = 'f32[8,128]{1,0:T(8,128)}', space=vmem, size = 0x1000, scoped, tag = 'scratch operand']
  #allocation4 [shape = 'f32[8,128]{1,0:T(8,128)}', space=vmem, size = 0x1000, scoped, tag = 'scratch operand']
  #allocation5 [shape = 'f32[8,128]{1,0:T(8,128)}', space=vmem, size = 0x1000, scoped, tag = 'scratch operand']
  %s0 = inlined_call_operand.vmem [shape: bf16[16,8,512], index: 0, kind: input, shape index: {}]
  %s1 = inlined_call_operand.vmem [shape: bf16[16,8,512], index: 1, kind: input, shape index: {}]
  %s2 = inlined_call_operand.vmem [shape: bf16[128,512], index: 2, kind: input, shape index: {}]
  %s3 = inlined_call_operand.vmem [shape: bf16[128,512], index: 3, kind: input, shape index: {}]
  %s4 = inlined_call_operand.vmem [shape: f32[16,8,128], index: 4, kind: output, shape index: {0}]
  %s5 = inlined_call_operand.vmem [shape: f32[16,8,128], index: 5, kind: output, shape index: {1}]
  %s6 = inlined_call_operand.vmem [shape: f32[2,8,128], index: 6, kind: output, shape index: {2}]
  %7 = xla_tuple %s4, %s5, %s6
  %s8 = sld [smem:[#allocation0]]
  $region50: #{lstm_layer_forward.1} parent=0
    _
  %s10 = ssub.s32 1, %s8
  %s11 = scalar_select 0, %s10, %s8
  // Predicated region
  $region2: #{lstm_layer_forward.1} parent=0 // pred_check
    _
  $region3: #{lstm_layer_forward.1} parent=0 // pred_check_branch
    %13 = sbr.rel (0) target = $region5
  $region4: #{lstm_layer_forward.1} parent=0 // pred_region
    _
  $region5: #{lstm_layer_forward.1} parent=0 // pred_fallthru
    _
  // Predicated region
  $region6: #{lstm_layer_forward.1} parent=0 // pred_check
    _
  $region7: #{lstm_layer_forward.1} parent=0 // pred_check_branch
    %15 = sbr.rel (0) target = $region9
  $region8: #{lstm_layer_forward.1} parent=0 // pred_region
    %s16 = ssub.s32 0, 0
    %s17 = smul.u32 16, %s16
    %p18 = scmp.lt.s32.totalorder %s17, 15
    %s19 = scalar_select %p18, %s17, 15
    %s20 = smul.addr %s19, 4
    %s21 = smul.addr %s20, 4
    %s22 = scalar_lea.vmem %s1, %s21
    %s23 = ssub.s32 0, 0
    %s24 = smul.u32 16, %s23
  $region9: #{lstm_layer_forward.1} parent=0 // pred_fallthru
    _
  // Predicated region
  $region10: #{lstm_layer_forward.1} parent=0 // pred_check
    _
  $region11: #{lstm_layer_forward.1} parent=0 // pred_check_branch
    %26 = sbr.rel (0) target = $region13
  $region12: #{lstm_layer_forward.1} parent=0 // pred_region
    _
  $region13: #{lstm_layer_forward.1} parent=0 // pred_fallthru
    _
  // Predicated region
  $region14: #{lstm_layer_forward.1} parent=0 // pred_check
    _
  $region15: #{lstm_layer_forward.1} parent=0 // pred_check_branch
    %28 = sbr.rel (0) target = $region17
  $region16: #{lstm_layer_forward.1} parent=0 // pred_region
    _
  $region17: #{lstm_layer_forward.1} parent=0 // pred_fallthru
    _
  %s29 = ssub.s32 0, 0
  %s30 = smul.u32 16, %s29
  %p31 = scmp.lt.s32.totalorder %s30, 15
  %s32 = scalar_select %p31, %s30, 15
  %s33 = smul.addr %s32, 4
  %s34 = smul.addr %s33, 4
  %s35 = scalar_lea.vmem %s1, %s34
  %s36 = ssub.s32 0, 0
  %s37 = smul.u32 16, %s36
  %p38 = scmp.lt.s32.totalorder %s37, 15
  %s39 = scalar_select %p38, %s37, 15
  %s40 = smul.addr %s39, 8
  %s41 = scalar_lea.vmem %s5, %s40
  %s42 = ssub.s32 0, 0
  %s43 = smul.u32 16, %s42
  %p44 = scmp.lt.s32.totalorder %s43, 15
  %s45 = scalar_select %p44, %s43, 15
  %s46 = smul.addr %s45, 4
  %s47 = smul.addr %s46, 4
  %s48 = scalar_lea.vmem %s1, %s47
  %s49 = ssub.s32 0, 0
  %s50 = smul.u32 16, %s49
  %s51 = ssub.s32 0, 0
  %s52 = smul.u32 16, %s51
  %p53 = scmp.lt.s32.totalorder %s52, 15
  %s54 = scalar_select %p53, %s52, 15
  %s55 = smul.addr %s54, 8
  %s56 = scalar_lea.vmem %s5, %s55
  %s57 = ssub.s32 0, 0
  %s58 = smul.u32 16, %s57
  %p60 = scmp.eq.s32.totalorder 0, 0
  // Predicated region
  $region18: #{lstm_layer_forward.1} parent=0 // pred_check
    %p61 = pneg %p60
  $region19: #{lstm_layer_forward.1} parent=0 // pred_check_branch
    %63 = sbr.rel (%p61) target = $region21
  $region20: #{lstm_layer_forward.1} parent=0 // pred_region
    %64 = vst [vmem:[#allocation2] sm:$0xff] 0.0
    %65 = vst [vmem:[#allocation3] sm:$0xff] 0.0
    %66 = vst [vmem:[#allocation4] sm:$0xff] 0.0
    %67 = vst [vmem:[#allocation5] sm:$0xff] 0.0
  $region21: #{lstm_layer_forward.1} parent=0 // pred_fallthru
    _
  %v68 = vld [vmem:[%s2] sm:$0xff]
  %v69 = vld [vmem:[%s2 + $0x8] sm:$0xff]
  %v70 = vld [vmem:[%s2 + $0x10] sm:$0xff]
  %v71 = vld [vmem:[%s2 + $0x18] sm:$0xff]
  %v72 = vld [vmem:[%s2 + $0x20] sm:$0xff]
  %v73 = vld [vmem:[%s2 + $0x28] sm:$0xff]
  %v74 = vld [vmem:[%s2 + $0x30] sm:$0xff]
  %v75 = vld [vmem:[%s2 + $0x38] sm:$0xff]
  %v76 = vld [vmem:[%s2 + $0x40] sm:$0xff]
  %v77 = vld [vmem:[%s2 + $0x48] sm:$0xff]
  %v78 = vld [vmem:[%s2 + $0x50] sm:$0xff]
  %v79 = vld [vmem:[%s2 + $0x58] sm:$0xff]
  %v80 = vld [vmem:[%s2 + $0x60] sm:$0xff]
  %v81 = vld [vmem:[%s2 + $0x68] sm:$0xff]
  %v82 = vld [vmem:[%s2 + $0x70] sm:$0xff]
  %v83 = vld [vmem:[%s2 + $0x78] sm:$0xff]
  %v84 = vld [vmem:[%s2 + $0x80] sm:$0xff]
  %v85 = vld [vmem:[%s2 + $0x88] sm:$0xff]
  %v86 = vld [vmem:[%s2 + $0x90] sm:$0xff]
  %v87 = vld [vmem:[%s2 + $0x98] sm:$0xff]
  %v88 = vld [vmem:[%s2 + $0xa0] sm:$0xff]
  %v89 = vld [vmem:[%s2 + $0xa8] sm:$0xff]
  %v90 = vld [vmem:[%s2 + $0xb0] sm:$0xff]
  %v91 = vld [vmem:[%s2 + $0xb8] sm:$0xff]
  %v92 = vld [vmem:[%s2 + $0xc0] sm:$0xff]
  %v93 = vld [vmem:[%s2 + $0xc8] sm:$0xff]
  %v94 = vld [vmem:[%s2 + $0xd0] sm:$0xff]
  %v95 = vld [vmem:[%s2 + $0xd8] sm:$0xff]
  %v96 = vld [vmem:[%s2 + $0xe0] sm:$0xff]
  %v97 = vld [vmem:[%s2 + $0xe8] sm:$0xff]
  %v98 = vld [vmem:[%s2 + $0xf0] sm:$0xff]
  %v99 = vld [vmem:[%s2 + $0xf8] sm:$0xff]
  %v100 = vld [vmem:[%s3] sm:$0xff]
  %v101 = vld [vmem:[%s3 + $0x8] sm:$0xff]
  %v102 = vld [vmem:[%s3 + $0x10] sm:$0xff]
  %v103 = vld [vmem:[%s3 + $0x18] sm:$0xff]
  %v104 = vld [vmem:[%s3 + $0x20] sm:$0xff]
  %v105 = vld [vmem:[%s3 + $0x28] sm:$0xff]
  %v106 = vld [vmem:[%s3 + $0x30] sm:$0xff]
  %v107 = vld [vmem:[%s3 + $0x38] sm:$0xff]
  %v108 = vld [vmem:[%s3 + $0x40] sm:$0xff]
  %v109 = vld [vmem:[%s3 + $0x48] sm:$0xff]
  %v110 = vld [vmem:[%s3 + $0x50] sm:$0xff]
  %v111 = vld [vmem:[%s3 + $0x58] sm:$0xff]
  %v112 = vld [vmem:[%s3 + $0x60] sm:$0xff]
  %v113 = vld [vmem:[%s3 + $0x68] sm:$0xff]
  %v114 = vld [vmem:[%s3 + $0x70] sm:$0xff]
  %v115 = vld [vmem:[%s3 + $0x78] sm:$0xff]
  %v116 = vld [vmem:[%s3 + $0x80] sm:$0xff]
  %v117 = vld [vmem:[%s3 + $0x88] sm:$0xff]
  %v118 = vld [vmem:[%s3 + $0x90] sm:$0xff]
  %v119 = vld [vmem:[%s3 + $0x98] sm:$0xff]
  %v120 = vld [vmem:[%s3 + $0xa0] sm:$0xff]
  %v121 = vld [vmem:[%s3 + $0xa8] sm:$0xff]
  %v122 = vld [vmem:[%s3 + $0xb0] sm:$0xff]
  %v123 = vld [vmem:[%s3 + $0xb8] sm:$0xff]
  %v124 = vld [vmem:[%s3 + $0xc0] sm:$0xff]
  %v125 = vld [vmem:[%s3 + $0xc8] sm:$0xff]
  %v126 = vld [vmem:[%s3 + $0xd0] sm:$0xff]
  %v127 = vld [vmem:[%s3 + $0xd8] sm:$0xff]
  %v128 = vld [vmem:[%s3 + $0xe0] sm:$0xff]
  %v129 = vld [vmem:[%s3 + $0xe8] sm:$0xff]
  %v130 = vld [vmem:[%s3 + $0xf0] sm:$0xff]
  %v131 = vld [vmem:[%s3 + $0xf8] sm:$0xff]
  %v132 = vld [vmem:[#allocation2] sm:$0xff]
  %v133 = vld [vmem:[#allocation3] sm:$0xff]
  %v134 = vld [vmem:[#allocation4] sm:$0xff]
  %v135 = vld [vmem:[#allocation5] sm:$0xff]
  %v136 = vld [vmem:[%s0] sm:$0xff]
  %v137 = vld [vmem:[%s0 + $0x8] sm:$0xff]
  %v138 = vunpack.c.l.bf16 %v136
  %v139 = vunpack.c.h.bf16 %v136
  %v140 = vunpack.c.l.bf16 %v137
  %v141 = vunpack.c.h.bf16 %v137
  %v142 = vpack.c.bf16 %v132, %v132
  %v175 = vunpack.c.l.b16 %v68
  %v176 = vunpack.c.h.b16 %v68
  %v177 = vunpack.c.l.b16 %v69
  %v178 = vunpack.c.h.b16 %v69
  %v179 = vunpack.c.l.b16 %v70
  %v180 = vunpack.c.h.b16 %v70
  %v181 = vunpack.c.l.b16 %v71
  %v182 = vunpack.c.h.b16 %v71
  %v183 = vunpack.c.l.b16 %v72
  %v184 = vunpack.c.h.b16 %v72
  %v185 = vunpack.c.l.b16 %v73
  %v186 = vunpack.c.h.b16 %v73
  %v187 = vunpack.c.l.b16 %v74
  %v188 = vunpack.c.h.b16 %v74
  %v189 = vunpack.c.l.b16 %v75
  %v190 = vunpack.c.h.b16 %v75
  %v191 = vunpack.c.l.b16 %v76
  %v192 = vunpack.c.h.b16 %v76
  %v193 = vunpack.c.l.b16 %v77
  %v194 = vunpack.c.h.b16 %v77
  %v195 = vunpack.c.l.b16 %v78
  %v196 = vunpack.c.h.b16 %v78
  %v197 = vunpack.c.l.b16 %v79
  %v198 = vunpack.c.h.b16 %v79
  %v199 = vunpack.c.l.b16 %v80
  %v200 = vunpack.c.h.b16 %v80
  %v201 = vunpack.c.l.b16 %v81
  %v202 = vunpack.c.h.b16 %v81
  %v203 = vunpack.c.l.b16 %v82
  %v204 = vunpack.c.h.b16 %v82
  %v205 = vunpack.c.l.b16 %v83
  %v206 = vunpack.c.h.b16 %v83
  %v207 = vunpack.c.l.b16 %v84
  %v208 = vunpack.c.h.b16 %v84
  %v209 = vunpack.c.l.b16 %v85
  %v210 = vunpack.c.h.b16 %v85
  %v211 = vunpack.c.l.b16 %v86
  %v212 = vunpack.c.h.b16 %v86
  %v213 = vunpack.c.l.b16 %v87
  %v214 = vunpack.c.h.b16 %v87
  %v215 = vunpack.c.l.b16 %v88
  %v216 = vunpack.c.h.b16 %v88
  %v217 = vunpack.c.l.b16 %v89
  %v218 = vunpack.c.h.b16 %v89
  %v219 = vunpack.c.l.b16 %v90
  %v220 = vunpack.c.h.b16 %v90
  %v221 = vunpack.c.l.b16 %v91
  %v222 = vunpack.c.h.b16 %v91
  %v223 = vunpack.c.l.b16 %v92
  %v224 = vunpack.c.h.b16 %v92
  %v225 = vunpack.c.l.b16 %v93
  %v226 = vunpack.c.h.b16 %v93
  %v227 = vunpack.c.l.b16 %v94
  %v228 = vunpack.c.h.b16 %v94
  %v229 = vunpack.c.l.b16 %v95
  %v230 = vunpack.c.h.b16 %v95
  %v231 = vunpack.c.l.b16 %v96
  %v232 = vunpack.c.h.b16 %v96
  %v233 = vunpack.c.l.b16 %v97
  %v234 = vunpack.c.h.b16 %v97
  %v235 = vunpack.c.l.b16 %v98
  %v236 = vunpack.c.h.b16 %v98
  %v237 = vunpack.c.l.b16 %v99
  %v238 = vunpack.c.h.b16 %v99
  %v239 = vpack.c.b16 %v179, %v175
  %v240 = vpack.c.b16 %v180, %v176
  %v241 = vpack.c.b16 %v181, %v177
  %v242 = vpack.c.b16 %v182, %v178
  %v243 = vpack.c.b16 %v187, %v183
  %v244 = vpack.c.b16 %v188, %v184
  %v245 = vpack.c.b16 %v189, %v185
  %v246 = vpack.c.b16 %v190, %v186
  %v247 = vpack.c.b16 %v195, %v191
  %v248 = vpack.c.b16 %v196, %v192
  %v249 = vpack.c.b16 %v197, %v193
  %v250 = vpack.c.b16 %v198, %v194
  %v251 = vpack.c.b16 %v203, %v199
  %v252 = vpack.c.b16 %v204, %v200
  %v253 = vpack.c.b16 %v205, %v201
  %v254 = vpack.c.b16 %v206, %v202
  %v255 = vpack.c.b16 %v211, %v207
  %v256 = vpack.c.b16 %v212, %v208
  %v257 = vpack.c.b16 %v213, %v209
  %v258 = vpack.c.b16 %v214, %v210
  %v259 = vpack.c.b16 %v219, %v215
  %v260 = vpack.c.b16 %v220, %v216
  %v261 = vpack.c.b16 %v221, %v217
  %v262 = vpack.c.b16 %v222, %v218
  %v263 = vpack.c.b16 %v227, %v223
  %v264 = vpack.c.b16 %v228, %v224
  %v265 = vpack.c.b16 %v229, %v225
  %v266 = vpack.c.b16 %v230, %v226
  %v267 = vpack.c.b16 %v235, %v231
  %v268 = vpack.c.b16 %v236, %v232
  %v269 = vpack.c.b16 %v237, %v233
  %v270 = vpack.c.b16 %v238, %v234
  %303 = vmatprep.subr.bf16.mxu0 %v240
  %304 = vmatpush1.bf16.msra.mxu0 %v239
  %305 = vmatprep.subr.bf16.mxu0 %v244
  %306 = vmatpush1.bf16.msra.mxu0 %v243
  %307 = vmatprep.subr.bf16.mxu0 %v248
  %308 = vmatpush1.bf16.msra.mxu0 %v247
  %309 = vmatprep.subr.bf16.mxu0 %v252
  %310 = vmatpush1.bf16.msra.mxu0 %v251
  %311 = vmatprep.subr.bf16.mxu0 %v256
  %312 = vmatpush1.bf16.msra.mxu0 %v255
  %313 = vmatprep.subr.bf16.mxu0 %v260
  %314 = vmatpush1.bf16.msra.mxu0 %v259
  %315 = vmatprep.subr.bf16.mxu0 %v264
  %316 = vmatpush1.bf16.msra.mxu0 %v263
  %317 = vmatprep.subr.bf16.mxu0 %v268
  %318 = vmatpush1.bf16.msra.mxu0 %v267
  %319 = vmatprep.subr.bf16.mxu0 0
  %320 = vmatpush1.bf16.msra.mxu0 0
  %321 = vmatprep.subr.bf16.mxu0 0
  %322 = vmatpush1.bf16.msra.mxu0 0
  %323 = vmatprep.subr.bf16.mxu0 0
  %324 = vmatpush1.bf16.msra.mxu0 0
  %325 = vmatprep.subr.bf16.mxu0 0
  %326 = vmatpush1.bf16.msra.mxu0 0
  %327 = vmatprep.subr.bf16.mxu0 0
  %328 = vmatpush1.bf16.msra.mxu0 0
  %329 = vmatprep.subr.bf16.mxu0 0
  %330 = vmatpush1.bf16.msra.mxu0 0
  %331 = vmatprep.subr.bf16.mxu0 0
  %332 = vmatpush1.bf16.msra.mxu0 0
  %333 = vmatprep.subr.bf16.mxu0 0
  %334 = vmatpush1.bf16.msra.mxu0 0
  %335 = vmatprep.mubr.bf16.mxu0 0
  %336 = vmatmul.mubr.bf16.gmra.mrb[0].mxu0 %v142
  %v337 = vpop.f32.mrb[0].mxu0
  %v338 = vadd.f32 0.0, %v337
  %v339 = vpop.f32.mrb[0].mxu0
  %v340 = vadd.f32 0.0, %v339
  %v341 = vpop.f32.mrb[0].mxu0
  %v342 = vpop.f32.mrb[0].mxu0
  %343 = vdwg.mxu0
  %344 = vmatprep.subr.bf16.mxu0 %v242
  %345 = vmatpush1.bf16.msra.mxu0 %v241
  %346 = vmatprep.subr.bf16.mxu0 %v246
  %347 = vmatpush1.bf16.msra.mxu0 %v245
  %348 = vmatprep.subr.bf16.mxu0 %v250
  %349 = vmatpush1.bf16.msra.mxu0 %v249
  %350 = vmatprep.subr.bf16.mxu0 %v254
  %351 = vmatpush1.bf16.msra.mxu0 %v253
  %352 = vmatprep.subr.bf16.mxu0 %v258
  %353 = vmatpush1.bf16.msra.mxu0 %v257
  %354 = vmatprep.subr.bf16.mxu0 %v262
  %355 = vmatpush1.bf16.msra.mxu0 %v261
  %356 = vmatprep.subr.bf16.mxu0 %v266
  %357 = vmatpush1.bf16.msra.mxu0 %v265
  %358 = vmatprep.subr.bf16.mxu0 %v270
  %359 = vmatpush1.bf16.msra.mxu0 %v269
  %360 = vmatprep.subr.bf16.mxu0 0
  %361 = vmatpush1.bf16.msra.mxu0 0
  %362 = vmatprep.subr.bf16.mxu0 0
  %363 = vmatpush1.bf16.msra.mxu0 0
  %364 = vmatprep.subr.bf16.mxu0 0
  %365 = vmatpush1.bf16.msra.mxu0 0
  %366 = vmatprep.subr.bf16.mxu0 0
  %367 = vmatpush1.bf16.msra.mxu0 0
  %368 = vmatprep.subr.bf16.mxu0 0
  %369 = vmatpush1.bf16.msra.mxu0 0
  %370 = vmatprep.subr.bf16.mxu0 0
  %371 = vmatpush1.bf16.msra.mxu0 0
  %372 = vmatprep.subr.bf16.mxu0 0
  %373 = vmatpush1.bf16.msra.mxu0 0
  %374 = vmatprep.subr.bf16.mxu0 0
  %375 = vmatpush1.bf16.msra.mxu0 0
  %376 = vmatprep.mubr.bf16.mxu0 0
  %377 = vmatmul.mubr.bf16.gmra.mrb[0].mxu0 %v142
  %v378 = vpop.f32.mrb[0].mxu0
  %v379 = vadd.f32 0.0, %v378
  %v380 = vpop.f32.mrb[0].mxu0
  %v381 = vadd.f32 0.0, %v380
  %v382 = vpop.f32.mrb[0].mxu0
  %v383 = vpop.f32.mrb[0].mxu0
  %384 = vdwg.mxu0
  %v385 = vadd.f32 %v138, %v338
  %v386 = vadd.f32 %v139, %v340
  %v387 = vadd.f32 %v140, %v379
  %v388 = vadd.f32 %v141, %v381
  %v389 = vxor.u32 %v386, 2147483648
  %v390 = vmul.f32 %v389, 1.442695
  %v391 = vpow.pop %v390
  %v392 = vadd.f32 %v391, 1.0
  %v393 = vrcp.pop %v392
  %v394 = vmul.f32 1.0, %v393
  %v395 = vmul.f32 %v394, %v133
  %v396 = vxor.u32 %v385, 2147483648
  %v397 = vmul.f32 %v396, 1.442695
  %v398 = vpow.pop %v397
  %v399 = vadd.f32 %v398, 1.0
  %v400 = vrcp.pop %v399
  %v401 = vmul.f32 1.0, %v400
  %v402 = vtanh.pop %v387
  %v403 = vmul.f32 %v401, %v402
  %v404 = vadd.f32 %v395, %v403
  %v405 = vxor.u32 %v388, 2147483648
  %v406 = vmul.f32 %v405, 1.442695
  %v407 = vpow.pop %v406
  %v408 = vadd.f32 %v407, 1.0
  %v409 = vrcp.pop %v408
  %v410 = vmul.f32 1.0, %v409
  %v411 = vtanh.pop %v404
  %v412 = vmul.f32 %v410, %v411
  %413 = vst [vmem:[%s4] sm:$0xff] %v412
  %s414 = scalar_lea.vmem %s48, 240
  %v415 = vld [vmem:[%s414] sm:$0xff]
  %v416 = vld [vmem:[%s414 + $0x8] sm:$0xff]
  %v417 = vunpack.c.l.bf16 %v415
  %v418 = vunpack.c.h.bf16 %v415
  %v419 = vunpack.c.l.bf16 %v416
  %v420 = vunpack.c.h.bf16 %v416
  %v421 = vpack.c.bf16 %v134, %v134
  %v454 = vunpack.c.l.b16 %v100
  %v455 = vunpack.c.h.b16 %v100
  %v456 = vunpack.c.l.b16 %v101
  %v457 = vunpack.c.h.b16 %v101
  %v458 = vunpack.c.l.b16 %v102
  %v459 = vunpack.c.h.b16 %v102
  %v460 = vunpack.c.l.b16 %v103
  %v461 = vunpack.c.h.b16 %v103
  %v462 = vunpack.c.l.b16 %v104
  %v463 = vunpack.c.h.b16 %v104
  %v464 = vunpack.c.l.b16 %v105
  %v465 = vunpack.c.h.b16 %v105
  %v466 = vunpack.c.l.b16 %v106
  %v467 = vunpack.c.h.b16 %v106
  %v468 = vunpack.c.l.b16 %v107
  %v469 = vunpack.c.h.b16 %v107
  %v470 = vunpack.c.l.b16 %v108
  %v471 = vunpack.c.h.b16 %v108
  %v472 = vunpack.c.l.b16 %v109
  %v473 = vunpack.c.h.b16 %v109
  %v474 = vunpack.c.l.b16 %v110
  %v475 = vunpack.c.h.b16 %v110
  %v476 = vunpack.c.l.b16 %v111
  %v477 = vunpack.c.h.b16 %v111
  %v478 = vunpack.c.l.b16 %v112
  %v479 = vunpack.c.h.b16 %v112
  %v480 = vunpack.c.l.b16 %v113
  %v481 = vunpack.c.h.b16 %v113
  %v482 = vunpack.c.l.b16 %v114
  %v483 = vunpack.c.h.b16 %v114
  %v484 = vunpack.c.l.b16 %v115
  %v485 = vunpack.c.h.b16 %v115
  %v486 = vunpack.c.l.b16 %v116
  %v487 = vunpack.c.h.b16 %v116
  %v488 = vunpack.c.l.b16 %v117
  %v489 = vunpack.c.h.b16 %v117
  %v490 = vunpack.c.l.b16 %v118
  %v491 = vunpack.c.h.b16 %v118
  %v492 = vunpack.c.l.b16 %v119
  %v493 = vunpack.c.h.b16 %v119
  %v494 = vunpack.c.l.b16 %v120
  %v495 = vunpack.c.h.b16 %v120
  %v496 = vunpack.c.l.b16 %v121
  %v497 = vunpack.c.h.b16 %v121
  %v498 = vunpack.c.l.b16 %v122
  %v499 = vunpack.c.h.b16 %v122
  %v500 = vunpack.c.l.b16 %v123
  %v501 = vunpack.c.h.b16 %v123
  %v502 = vunpack.c.l.b16 %v124
  %v503 = vunpack.c.h.b16 %v124
  %v504 = vunpack.c.l.b16 %v125
  %v505 = vunpack.c.h.b16 %v125
  %v506 = vunpack.c.l.b16 %v126
  %v507 = vunpack.c.h.b16 %v126
  %v508 = vunpack.c.l.b16 %v127
  %v509 = vunpack.c.h.b16 %v127
  %v510 = vunpack.c.l.b16 %v128
  %v511 = vunpack.c.h.b16 %v128
  %v512 = vunpack.c.l.b16 %v129
  %v513 = vunpack.c.h.b16 %v129
  %v514 = vunpack.c.l.b16 %v130
  %v515 = vunpack.c.h.b16 %v130
  %v516 = vunpack.c.l.b16 %v131
  %v517 = vunpack.c.h.b16 %v131
  %v518 = vpack.c.b16 %v458, %v454
  %v519 = vpack.c.b16 %v459, %v455
  %v520 = vpack.c.b16 %v460, %v456
  %v521 = vpack.c.b16 %v461, %v457
  %v522 = vpack.c.b16 %v466, %v462
  %v523 = vpack.c.b16 %v467, %v463
  %v524 = vpack.c.b16 %v468, %v464
  %v525 = vpack.c.b16 %v469, %v465
  %v526 = vpack.c.b16 %v474, %v470
  %v527 = vpack.c.b16 %v475, %v471
  %v528 = vpack.c.b16 %v476, %v472
  %v529 = vpack.c.b16 %v477, %v473
  %v530 = vpack.c.b16 %v482, %v478
  %v531 = vpack.c.b16 %v483, %v479
  %v532 = vpack.c.b16 %v484, %v480
  %v533 = vpack.c.b16 %v485, %v481
  %v534 = vpack.c.b16 %v490, %v486
  %v535 = vpack.c.b16 %v491, %v487
  %v536 = vpack.c.b16 %v492, %v488
  %v537 = vpack.c.b16 %v493, %v489
  %v538 = vpack.c.b16 %v498, %v494
  %v539 = vpack.c.b16 %v499, %v495
  %v540 = vpack.c.b16 %v500, %v496
  %v541 = vpack.c.b16 %v501, %v497
  %v542 = vpack.c.b16 %v506, %v502
  %v543 = vpack.c.b16 %v507, %v503
  %v544 = vpack.c.b16 %v508, %v504
  %v545 = vpack.c.b16 %v509, %v505
  %v546 = vpack.c.b16 %v514, %v510
  %v547 = vpack.c.b16 %v515, %v511
  %v548 = vpack.c.b16 %v516, %v512
  %v549 = vpack.c.b16 %v517, %v513
  %582 = vmatprep.subr.bf16.mxu0 %v519
  %583 = vmatpush1.bf16.msra.mxu0 %v518
  %584 = vmatprep.subr.bf16.mxu0 %v523
  %585 = vmatpush1.bf16.msra.mxu0 %v522
  %586 = vmatprep.subr.bf16.mxu0 %v527
  %587 = vmatpush1.bf16.msra.mxu0 %v526
  %588 = vmatprep.subr.bf16.mxu0 %v531
  %589 = vmatpush1.bf16.msra.mxu0 %v530
  %590 = vmatprep.subr.bf16.mxu0 %v535
  %591 = vmatpush1.bf16.msra.mxu0 %v534
  %592 = vmatprep.subr.bf16.mxu0 %v539
  %593 = vmatpush1.bf16.msra.mxu0 %v538
  %594 = vmatprep.subr.bf16.mxu0 %v543
  %595 = vmatpush1.bf16.msra.mxu0 %v542
  %596 = vmatprep.subr.bf16.mxu0 %v547
  %597 = vmatpush1.bf16.msra.mxu0 %v546
  %598 = vmatprep.subr.bf16.mxu0 0
  %599 = vmatpush1.bf16.msra.mxu0 0
  %600 = vmatprep.subr.bf16.mxu0 0
  %601 = vmatpush1.bf16.msra.mxu0 0
  %602 = vmatprep.subr.bf16.mxu0 0
  %603 = vmatpush1.bf16.msra.mxu0 0
  %604 = vmatprep.subr.bf16.mxu0 0
  %605 = vmatpush1.bf16.msra.mxu0 0
  %606 = vmatprep.subr.bf16.mxu0 0
  %607 = vmatpush1.bf16.msra.mxu0 0
  %608 = vmatprep.subr.bf16.mxu0 0
  %609 = vmatpush1.bf16.msra.mxu0 0
  %610 = vmatprep.subr.bf16.mxu0 0
  %611 = vmatpush1.bf16.msra.mxu0 0
  %612 = vmatprep.subr.bf16.mxu0 0
  %613 = vmatpush1.bf16.msra.mxu0 0
  %614 = vmatprep.mubr.bf16.mxu0 0
  %615 = vmatmul.mubr.bf16.gmra.mrb[0].mxu0 %v421
  %v616 = vpop.f32.mrb[0].mxu0
  %v617 = vadd.f32 0.0, %v616
  %v618 = vpop.f32.mrb[0].mxu0
  %v619 = vadd.f32 0.0, %v618
  %v620 = vpop.f32.mrb[0].mxu0
  %v621 = vpop.f32.mrb[0].mxu0
  %622 = vdwg.mxu0
  %623 = vmatprep.subr.bf16.mxu0 %v521
  %624 = vmatpush1.bf16.msra.mxu0 %v520
  %625 = vmatprep.subr.bf16.mxu0 %v525
  %626 = vmatpush1.bf16.msra.mxu0 %v524
  %627 = vmatprep.subr.bf16.mxu0 %v529
  %628 = vmatpush1.bf16.msra.mxu0 %v528
  %629 = vmatprep.subr.bf16.mxu0 %v533
  %630 = vmatpush1.bf16.msra.mxu0 %v532
  %631 = vmatprep.subr.bf16.mxu0 %v537
  %632 = vmatpush1.bf16.msra.mxu0 %v536
  %633 = vmatprep.subr.bf16.mxu0 %v541
  %634 = vmatpush1.bf16.msra.mxu0 %v540
  %635 = vmatprep.subr.bf16.mxu0 %v545
  %636 = vmatpush1.bf16.msra.mxu0 %v544
  %637 = vmatprep.subr.bf16.mxu0 %v549
  %638 = vmatpush1.bf16.msra.mxu0 %v548
  %639 = vmatprep.subr.bf16.mxu0 0
  %640 = vmatpush1.bf16.msra.mxu0 0
  %641 = vmatprep.subr.bf16.mxu0 0
  %642 = vmatpush1.bf16.msra.mxu0 0
  %643 = vmatprep.subr.bf16.mxu0 0
  %644 = vmatpush1.bf16.msra.mxu0 0
  %645 = vmatprep.subr.bf16.mxu0 0
  %646 = vmatpush1.bf16.msra.mxu0 0
  %647 = vmatprep.subr.bf16.mxu0 0
  %648 = vmatpush1.bf16.msra.mxu0 0
  %649 = vmatprep.subr.bf16.mxu0 0
  %650 = vmatpush1.bf16.msra.mxu0 0
  %651 = vmatprep.subr.bf16.mxu0 0
  %652 = vmatpush1.bf16.msra.mxu0 0
  %653 = vmatprep.subr.bf16.mxu0 0
  %654 = vmatpush1.bf16.msra.mxu0 0
  %655 = vmatprep.mubr.bf16.mxu0 0
  %656 = vmatmul.mubr.bf16.gmra.mrb[0].mxu0 %v421
  %v657 = vpop.f32.mrb[0].mxu0
  %v658 = vadd.f32 0.0, %v657
  %v659 = vpop.f32.mrb[0].mxu0
  %v660 = vadd.f32 0.0, %v659
  %v661 = vpop.f32.mrb[0].mxu0
  %v662 = vpop.f32.mrb[0].mxu0
  %663 = vdwg.mxu0
  %v664 = vadd.f32 %v417, %v617
  %v665 = vadd.f32 %v418, %v619
  %v666 = vadd.f32 %v419, %v658
  %v667 = vadd.f32 %v420, %v660
  %v668 = vxor.u32 %v665, 2147483648
  %v669 = vmul.f32 %v668, 1.442695
  %v670 = vpow.pop %v669
  %v671 = vadd.f32 %v670, 1.0
  %v672 = vrcp.pop %v671
  %v673 = vmul.f32 1.0, %v672
  %v674 = vmul.f32 %v673, %v135
  %v675 = vxor.u32 %v664, 2147483648
  %v676 = vmul.f32 %v675, 1.442695
  %v677 = vpow.pop %v676
  %v678 = vadd.f32 %v677, 1.0
  %v679 = vrcp.pop %v678
  %v680 = vmul.f32 1.0, %v679
  %v681 = vtanh.pop %v666
  %v682 = vmul.f32 %v680, %v681
  %v683 = vadd.f32 %v674, %v682
  %v684 = vxor.u32 %v667, 2147483648
  %v685 = vmul.f32 %v684, 1.442695
  %v686 = vpow.pop %v685
  %v687 = vadd.f32 %v686, 1.0
  %v688 = vrcp.pop %v687
  %v689 = vmul.f32 1.0, %v688
  %v690 = vtanh.pop %v683
  %v691 = vmul.f32 %v689, %v690
  %s692 = scalar_lea.vmem %s56, 120
  %693 = vst [vmem:[%s692] sm:$0xff] %v691
  %s694 = scalar_lea.vmem %s0, 16
  %v695 = vld [vmem:[%s694] sm:$0xff]
  %v696 = vld [vmem:[%s694 + $0x8] sm:$0xff]
  %v697 = vunpack.c.l.bf16 %v695
  %v698 = vunpack.c.h.bf16 %v695
  %v699 = vunpack.c.l.bf16 %v696
  %v700 = vunpack.c.h.bf16 %v696
  %v701 = vpack.c.bf16 %v412, %v412
  %702 = vmatprep.subr.bf16.mxu0 %v240
  %703 = vmatpush1.bf16.msra.mxu0 %v239
  %704 = vmatprep.subr.bf16.mxu0 %v244
  %705 = vmatpush1.bf16.msra.mxu0 %v243
  %706 = vmatprep.subr.bf16.mxu0 %v248
  %707 = vmatpush1.bf16.msra.mxu0 %v247
  %708 = vmatprep.subr.bf16.mxu0 %v252
  %709 = vmatpush1.bf16.msra.mxu0 %v251
  %710 = vmatprep.subr.bf16.mxu0 %v256
  %711 = vmatpush1.bf16.msra.mxu0 %v255
  %712 = vmatprep.subr.bf16.mxu0 %v260
  %713 = vmatpush1.bf16.msra.mxu0 %v259
  %714 = vmatprep.subr.bf16.mxu0 %v264
  %715 = vmatpush1.bf16.msra.mxu0 %v263
  %716 = vmatprep.subr.bf16.mxu0 %v268
  %717 = vmatpush1.bf16.msra.mxu0 %v267
  %718 = vmatprep.subr.bf16.mxu0 0
  %719 = vmatpush1.bf16.msra.mxu0 0
  %720 = vmatprep.subr.bf16.mxu0 0
  %721 = vmatpush1.bf16.msra.mxu0 0
  %722 = vmatprep.subr.bf16.mxu0 0
  %723 = vmatpush1.bf16.msra.mxu0 0
  %724 = vmatprep.subr.bf16.mxu0 0
  %725 = vmatpush1.bf16.msra.mxu0 0
  %726 = vmatprep.subr.bf16.mxu0 0
  %727 = vmatpush1.bf16.msra.mxu0 0
  %728 = vmatprep.subr.bf16.mxu0 0
  %729 = vmatpush1.bf16.msra.mxu0 0
  %730 = vmatprep.subr.bf16.mxu0 0
  %731 = vmatpush1.bf16.msra.mxu0 0
  %732 = vmatprep.subr.bf16.mxu0 0
  %733 = vmatpush1.bf16.msra.mxu0 0
  %734 = vmatprep.mubr.bf16.mxu0 0
  %735 = vmatmul.mubr.bf16.gmra.mrb[0].mxu0 %v701
  %v736 = vpop.f32.mrb[0].mxu0
  %v737 = vadd.f32 0.0, %v736
  %v738 = vpop.f32.mrb[0].mxu0
  %v739 = vadd.f32 0.0, %v738
  %v740 = vpop.f32.mrb[0].mxu0
  %v741 = vpop.f32.mrb[0].mxu0
  %742 = vdwg.mxu0
  %743 = vmatprep.subr.bf16.mxu0 %v242
  %744 = vmatpush1.bf16.msra.mxu0 %v241
  %745 = vmatprep.subr.bf16.mxu0 %v246
  %746 = vmatpush1.bf16.msra.mxu0 %v245
  %747 = vmatprep.subr.bf16.mxu0 %v250
  %748 = vmatpush1.bf16.msra.mxu0 %v249
  %749 = vmatprep.subr.bf16.mxu0 %v254
  %750 = vmatpush1.bf16.msra.mxu0 %v253
  %751 = vmatprep.subr.bf16.mxu0 %v258
  %752 = vmatpush1.bf16.msra.mxu0 %v257
  %753 = vmatprep.subr.bf16.mxu0 %v262
  %754 = vmatpush1.bf16.msra.mxu0 %v261
  %755 = vmatprep.subr.bf16.mxu0 %v266
  %756 = vmatpush1.bf16.msra.mxu0 %v265
  %757 = vmatprep.subr.bf16.mxu0 %v270
  %758 = vmatpush1.bf16.msra.mxu0 %v269
  %759 = vmatprep.subr.bf16.mxu0 0
  %760 = vmatpush1.bf16.msra.mxu0 0
  %761 = vmatprep.subr.bf16.mxu0 0
  %762 = vmatpush1.bf16.msra.mxu0 0
  %763 = vmatprep.subr.bf16.mxu0 0
  %764 = vmatpush1.bf16.msra.mxu0 0
  %765 = vmatprep.subr.bf16.mxu0 0
  %766 = vmatpush1.bf16.msra.mxu0 0
  %767 = vmatprep.subr.bf16.mxu0 0
  %768 = vmatpush1.bf16.msra.mxu0 0
  %769 = vmatprep.subr.bf16.mxu0 0
  %770 = vmatpush1.bf16.msra.mxu0 0
  %771 = vmatprep.subr.bf16.mxu0 0
  %772 = vmatpush1.bf16.msra.mxu0 0
  %773 = vmatprep.subr.bf16.mxu0 0
  %774 = vmatpush1.bf16.msra.mxu0 0
  %775 = vmatprep.mubr.bf16.mxu0 0
  %776 = vmatmul.mubr.bf16.gmra.mrb[0].mxu0 %v701
  %v777 = vpop.f32.mrb[0].mxu0
  %v778 = vadd.f32 0.0, %v777
  %v779 = vpop.f32.mrb[0].mxu0
  %v780 = vadd.f32 0.0, %v779
  %v781 = vpop.f32.mrb[0].mxu0
  %v782 = vpop.f32.mrb[0].mxu0
  %783 = vdwg.mxu0
  %v784 = vadd.f32 %v697, %v737
  %v785 = vadd.f32 %v698, %v739
  %v786 = vadd.f32 %v699, %v778
  %v787 = vadd.f32 %v700, %v780
  %v788 = vxor.u32 %v785, 2147483648
  %v789 = vmul.f32 %v788, 1.442695
  %v790 = vpow.pop %v789
  %v791 = vadd.f32 %v790, 1.0
  %v792 = vrcp.pop %v791
  %v793 = vmul.f32 1.0, %v792
  %v794 = vmul.f32 %v793, %v404
  %v795 = vxor.u32 %v784, 2147483648
  %v796 = vmul.f32 %v795, 1.442695
  %v797 = vpow.pop %v796
  %v798 = vadd.f32 %v797, 1.0
  %v799 = vrcp.pop %v798
  %v800 = vmul.f32 1.0, %v799
  %v801 = vtanh.pop %v786
  %v802 = vmul.f32 %v800, %v801
  %v803 = vadd.f32 %v794, %v802
  %v804 = vxor.u32 %v787, 2147483648
  %v805 = vmul.f32 %v804, 1.442695
  %v806 = vpow.pop %v805
  %v807 = vadd.f32 %v806, 1.0
  %v808 = vrcp.pop %v807
  %v809 = vmul.f32 1.0, %v808
  %v810 = vtanh.pop %v803
  %v811 = vmul.f32 %v809, %v810
  %s812 = scalar_lea.vmem %s4, 8
  %813 = vst [vmem:[%s812] sm:$0xff] %v811
  %s814 = scalar_lea.vmem %s48, 224
  %v815 = vld [vmem:[%s814] sm:$0xff]
  %v816 = vld [vmem:[%s814 + $0x8] sm:$0xff]
  %v817 = vunpack.c.l.bf16 %v815
  %v818 = vunpack.c.h.bf16 %v815
  %v819 = vunpack.c.l.bf16 %v816
  %v820 = vunpack.c.h.bf16 %v816
  %v821 = vpack.c.bf16 %v691, %v691
  %822 = vmatprep.subr.bf16.mxu0 %v519
  %823 = vmatpush1.bf16.msra.mxu0 %v518
  %824 = vmatprep.subr.bf16.mxu0 %v523
  %825 = vmatpush1.bf16.msra.mxu0 %v522
  %826 = vmatprep.subr.bf16.mxu0 %v527
  %827 = vmatpush1.bf16.msra.mxu0 %v526
  %828 = vmatprep.subr.bf16.mxu0 %v531
  %829 = vmatpush1.bf16.msra.mxu0 %v530
  %830 = vmatprep.subr.bf16.mxu0 %v535
  %831 = vmatpush1.bf16.msra.mxu0 %v534
  %832 = vmatprep.subr.bf16.mxu0 %v539
  %833 = vmatpush1.bf16.msra.mxu0 %v538
  %834 = vmatprep.subr.bf16.mxu0 %v543
  %835 = vmatpush1.bf16.msra.mxu0 %v542
  %836 = vmatprep.subr.bf16.mxu0 %v547
  %837 = vmatpush1.bf16.msra.mxu0 %v546
  %838 = vmatprep.subr.bf16.mxu0 0
  %839 = vmatpush1.bf16.msra.mxu0 0
  %840 = vmatprep.subr.bf16.mxu0 0
  %841 = vmatpush1.bf16.msra.mxu0 0
  %842 = vmatprep.subr.bf16.mxu0 0
  %843 = vmatpush1.bf16.msra.mxu0 0
  %844 = vmatprep.subr.bf16.mxu0 0
  %845 = vmatpush1.bf16.msra.mxu0 0
  %846 = vmatprep.subr.bf16.mxu0 0
  %847 = vmatpush1.bf16.msra.mxu0 0
  %848 = vmatprep.subr.bf16.mxu0 0
  %849 = vmatpush1.bf16.msra.mxu0 0
  %850 = vmatprep.subr.bf16.mxu0 0
  %851 = vmatpush1.bf16.msra.mxu0 0
  %852 = vmatprep.subr.bf16.mxu0 0
  %853 = vmatpush1.bf16.msra.mxu0 0
  %854 = vmatprep.mubr.bf16.mxu0 0
  %855 = vmatmul.mubr.bf16.gmra.mrb[0].mxu0 %v821
  %v856 = vpop.f32.mrb[0].mxu0
  %v857 = vadd.f32 0.0, %v856
  %v858 = vpop.f32.mrb[0].mxu0
  %v859 = vadd.f32 0.0, %v858
  %v860 = vpop.f32.mrb[0].mxu0
  %v861 = vpop.f32.mrb[0].mxu0
  %862 = vdwg.mxu0
  %863 = vmatprep.subr.bf16.mxu0 %v521
  %864 = vmatpush1.bf16.msra.mxu0 %v520
  %865 = vmatprep.subr.bf16.mxu0 %v525
  %866 = vmatpush1.bf16.msra.mxu0 %v524
  %867 = vmatprep.subr.bf16.mxu0 %v529
  %868 = vmatpush1.bf16.msra.mxu0 %v528
  %869 = vmatprep.subr.bf16.mxu0 %v533
  %870 = vmatpush1.bf16.msra.mxu0 %v532
  %871 = vmatprep.subr.bf16.mxu0 %v537
  %872 = vmatpush1.bf16.msra.mxu0 %v536
  %873 = vmatprep.subr.bf16.mxu0 %v541
  %874 = vmatpush1.bf16.msra.mxu0 %v540
  %875 = vmatprep.subr.bf16.mxu0 %v545
  %876 = vmatpush1.bf16.msra.mxu0 %v544
  %877 = vmatprep.subr.bf16.mxu0 %v549
  %878 = vmatpush1.bf16.msra.mxu0 %v548
  %879 = vmatprep.subr.bf16.mxu0 0
  %880 = vmatpush1.bf16.msra.mxu0 0
  %881 = vmatprep.subr.bf16.mxu0 0
  %882 = vmatpush1.bf16.msra.mxu0 0
  %883 = vmatprep.subr.bf16.mxu0 0
  %884 = vmatpush1.bf16.msra.mxu0 0
  %885 = vmatprep.subr.bf16.mxu0 0
  %886 = vmatpush1.bf16.msra.mxu0 0
  %887 = vmatprep.subr.bf16.mxu0 0
  %888 = vmatpush1.bf16.msra.mxu0 0
  %889 = vmatprep.subr.bf16.mxu0 0
  %890 = vmatpush1.bf16.msra.mxu0 0
  %891 = vmatprep.subr.bf16.mxu0 0
  %892 = vmatpush1.bf16.msra.mxu0 0
  %893 = vmatprep.subr.bf16.mxu0 0
  %894 = vmatpush1.bf16.msra.mxu0 0
  %895 = vmatprep.mubr.bf16.mxu0 0
  %896 = vmatmul.mubr.bf16.gmra.mrb[0].mxu0 %v821
  %v897 = vpop.f32.mrb[0].mxu0
  %v898 = vadd.f32 0.0, %v897
  %v899 = vpop.f32.mrb[0].mxu0
  %v900 = vadd.f32 0.0, %v899
  %v901 = vpop.f32.mrb[0].mxu0
  %v902 = vpop.f32.mrb[0].mxu0
  %903 = vdwg.mxu0
  %v904 = vadd.f32 %v817, %v857
  %v905 = vadd.f32 %v818, %v859
  %v906 = vadd.f32 %v819, %v898
  %v907 = vadd.f32 %v820, %v900
  %v908 = vxor.u32 %v905, 2147483648
  %v909 = vmul.f32 %v908, 1.442695
  %v910 = vpow.pop %v909
  %v911 = vadd.f32 %v910, 1.0
  %v912 = vrcp.pop %v911
  %v913 = vmul.f32 1.0, %v912
  %v914 = vmul.f32 %v913, %v683
  %v915 = vxor.u32 %v904, 2147483648
  %v916 = vmul.f32 %v915, 1.442695
  %v917 = vpow.pop %v916
  %v918 = vadd.f32 %v917, 1.0
  %v919 = vrcp.pop %v918
  %v920 = vmul.f32 1.0, %v919
  %v921 = vtanh.pop %v906
  %v922 = vmul.f32 %v920, %v921
  %v923 = vadd.f32 %v914, %v922
  %v924 = vxor.u32 %v907, 2147483648
  %v925 = vmul.f32 %v924, 1.442695
  %v926 = vpow.pop %v925
  %v927 = vadd.f32 %v926, 1.0
  %v928 = vrcp.pop %v927
  %v929 = vmul.f32 1.0, %v928
  %v930 = vtanh.pop %v923
  %v931 = vmul.f32 %v929, %v930
  %s932 = scalar_lea.vmem %s56, 112
  %933 = vst [vmem:[%s932] sm:$0xff] %v931
  %s934 = scalar_lea.vmem %s0, 32
  %v935 = vld [vmem:[%s934] sm:$0xff]
  %v936 = vld [vmem:[%s934 + $0x8] sm:$0xff]
  %v937 = vunpack.c.l.bf16 %v935
  %v938 = vunpack.c.h.bf16 %v935
  %v939 = vunpack.c.l.bf16 %v936
  %v940 = vunpack.c.h.bf16 %v936
  %v941 = vpack.c.bf16 %v811, %v811
  %942 = vmatprep.subr.bf16.mxu0 %v240
  %943 = vmatpush1.bf16.msra.mxu0 %v239
  %944 = vmatprep.subr.bf16.mxu0 %v244
  %945 = vmatpush1.bf16.msra.mxu0 %v243
  %946 = vmatprep.subr.bf16.mxu0 %v248
  %947 = vmatpush1.bf16.msra.mxu0 %v247
  %948 = vmatprep.subr.bf16.mxu0 %v252
  %949 = vmatpush1.bf16.msra.mxu0 %v251
  %950 = vmatprep.subr.bf16.mxu0 %v256
  %951 = vmatpush1.bf16.msra.mxu0 %v255
  %952 = vmatprep.subr.bf16.mxu0 %v260
  %953 = vmatpush1.bf16.msra.mxu0 %v259
  %954 = vmatprep.subr.bf16.mxu0 %v264
  %955 = vmatpush1.bf16.msra.mxu0 %v263
  %956 = vmatprep.subr.bf16.mxu0 %v268
  %957 = vmatpush1.bf16.msra.mxu0 %v267
  %958 = vmatprep.subr.bf16.mxu0 0
  %959 = vmatpush1.bf16.msra.mxu0 0
  %960 = vmatprep.subr.bf16.mxu0 0
  %961 = vmatpush1.bf16.msra.mxu0 0
  %962 = vmatprep.subr.bf16.mxu0 0
  %963 = vmatpush1.bf16.msra.mxu0 0
  %964 = vmatprep.subr.bf16.mxu0 0
  %965 = vmatpush1.bf16.msra.mxu0 0
  %966 = vmatprep.subr.bf16.mxu0 0
  %967 = vmatpush1.bf16.msra.mxu0 0
  %968 = vmatprep.subr.bf16.mxu0 0
  %969 = vmatpush1.bf16.msra.mxu0 0
  %970 = vmatprep.subr.bf16.mxu0 0
  %971 = vmatpush1.bf16.msra.mxu0 0
  %972 = vmatprep.subr.bf16.mxu0 0
  %973 = vmatpush1.bf16.msra.mxu0 0
  %974 = vmatprep.mubr.bf16.mxu0 0
  %975 = vmatmul.mubr.bf16.gmra.mrb[0].mxu0 %v941
  %v976 = vpop.f32.mrb[0].mxu0
  %v977 = vadd.f32 0.0, %v976
  %v978 = vpop.f32.mrb[0].mxu0
  %v979 = vadd.f32 0.0, %v978
  %v980 = vpop.f32.mrb[0].mxu0
  %v981 = vpop.f32.mrb[0].mxu0
  %982 = vdwg.mxu0
  %983 = vmatprep.subr.bf16.mxu0 %v242
  %984 = vmatpush1.bf16.msra.mxu0 %v241
  %985 = vmatprep.subr.bf16.mxu0 %v246
  %986 = vmatpush1.bf16.msra.mxu0 %v245
  %987 = vmatprep.subr.bf16.mxu0 %v250
  %988 = vmatpush1.bf16.msra.mxu0 %v249
  %989 = vmatprep.subr.bf16.mxu0 %v254
  %990 = vmatpush1.bf16.msra.mxu0 %v253
  %991 = vmatprep.subr.bf16.mxu0 %v258
  %992 = vmatpush1.bf16.msra.mxu0 %v257
  %993 = vmatprep.subr.bf16.mxu0 %v262
  %994 = vmatpush1.bf16.msra.mxu0 %v261
  %995 = vmatprep.subr.bf16.mxu0 %v266
  %996 = vmatpush1.bf16.msra.mxu0 %v265
  %997 = vmatprep.subr.bf16.mxu0 %v270
  %998 = vmatpush1.bf16.msra.mxu0 %v269
  %999 = vmatprep.subr.bf16.mxu0 0
  %1000 = vmatpush1.bf16.msra.mxu0 0
  %1001 = vmatprep.subr.bf16.mxu0 0
  %1002 = vmatpush1.bf16.msra.mxu0 0
  %1003 = vmatprep.subr.bf16.mxu0 0
  %1004 = vmatpush1.bf16.msra.mxu0 0
  %1005 = vmatprep.subr.bf16.mxu0 0
  %1006 = vmatpush1.bf16.msra.mxu0 0
  %1007 = vmatprep.subr.bf16.mxu0 0
  %1008 = vmatpush1.bf16.msra.mxu0 0
  %1009 = vmatprep.subr.bf16.mxu0 0
  %1010 = vmatpush1.bf16.msra.mxu0 0
  %1011 = vmatprep.subr.bf16.mxu0 0
  %1012 = vmatpush1.bf16.msra.mxu0 0
  %1013 = vmatprep.subr.bf16.mxu0 0
  %1014 = vmatpush1.bf16.msra.mxu0 0
  %1015 = vmatprep.mubr.bf16.mxu0 0
  %1016 = vmatmul.mubr.bf16.gmra.mrb[0].mxu0 %v941
  %v1017 = vpop.f32.mrb[0].mxu0
  %v1018 = vadd.f32 0.0, %v1017
  %v1019 = vpop.f32.mrb[0].mxu0
  %v1020 = vadd.f32 0.0, %v1019
  %v1021 = vpop.f32.mrb[0].mxu0
  %v1022 = vpop.f32.mrb[0].mxu0
  %1023 = vdwg.mxu0
  %v1024 = vadd.f32 %v937, %v977
  %v1025 = vadd.f32 %v938, %v979
  %v1026 = vadd.f32 %v939, %v1018
  %v1027 = vadd.f32 %v940, %v1020
  %v1028 = vxor.u32 %v1025, 2147483648
  %v1029 = vmul.f32 %v1028, 1.442695
  %v1030 = vpow.pop %v1029
  %v1031 = vadd.f32 %v1030, 1.0
  %v1032 = vrcp.pop %v1031
  %v1033 = vmul.f32 1.0, %v1032
  %v1034 = vmul.f32 %v1033, %v803
  %v1035 = vxor.u32 %v1024, 2147483648
  %v1036 = vmul.f32 %v1035, 1.442695
  %v1037 = vpow.pop %v1036
  %v1038 = vadd.f32 %v1037, 1.0
  %v1039 = vrcp.pop %v1038
  %v1040 = vmul.f32 1.0, %v1039
  %v1041 = vtanh.pop %v1026
  %v1042 = vmul.f32 %v1040, %v1041
  %v1043 = vadd.f32 %v1034, %v1042
  %v1044 = vxor.u32 %v1027, 2147483648
  %v1045 = vmul.f32 %v1044, 1.442695
  %v1046 = vpow.pop %v1045
  %v1047 = vadd.f32 %v1046, 1.0
  %v1048 = vrcp.pop %v1047
  %v1049 = vmul.f32 1.0, %v1048
  %v1050 = vtanh.pop %v1043
  %v1051 = vmul.f32 %v1049, %v1050
  %s1052 = scalar_lea.vmem %s4, 16
  %1053 = vst [vmem:[%s1052] sm:$0xff] %v1051
  %s1054 = scalar_lea.vmem %s48, 208
  %v1055 = vld [vmem:[%s1054] sm:$0xff]
  %v1056 = vld [vmem:[%s1054 + $0x8] sm:$0xff]
  %v1057 = vunpack.c.l.bf16 %v1055
  %v1058 = vunpack.c.h.bf16 %v1055
  %v1059 = vunpack.c.l.bf16 %v1056
  %v1060 = vunpack.c.h.bf16 %v1056
  %v1061 = vpack.c.bf16 %v931, %v931
  %1062 = vmatprep.subr.bf16.mxu0 %v519
  %1063 = vmatpush1.bf16.msra.mxu0 %v518
  %1064 = vmatprep.subr.bf16.mxu0 %v523
  %1065 = vmatpush1.bf16.msra.mxu0 %v522
  %1066 = vmatprep.subr.bf16.mxu0 %v527
  %1067 = vmatpush1.bf16.msra.mxu0 %v526
  %1068 = vmatprep.subr.bf16.mxu0 %v531
  %1069 = vmatpush1.bf16.msra.mxu0 %v530
  %1070 = vmatprep.subr.bf16.mxu0 %v535
  %1071 = vmatpush1.bf16.msra.mxu0 %v534
  %1072 = vmatprep.subr.bf16.mxu0 %v539
  %1073 = vmatpush1.bf16.msra.mxu0 %v538
  %1074 = vmatprep.subr.bf16.mxu0 %v543
  %1075 = vmatpush1.bf16.msra.mxu0 %v542
  %1076 = vmatprep.subr.bf16.mxu0 %v547
  %1077 = vmatpush1.bf16.msra.mxu0 %v546
  %1078 = vmatprep.subr.bf16.mxu0 0
  %1079 = vmatpush1.bf16.msra.mxu0 0
  %1080 = vmatprep.subr.bf16.mxu0 0
  %1081 = vmatpush1.bf16.msra.mxu0 0
  %1082 = vmatprep.subr.bf16.mxu0 0
  %1083 = vmatpush1.bf16.msra.mxu0 0
  %1084 = vmatprep.subr.bf16.mxu0 0
  %1085 = vmatpush1.bf16.msra.mxu0 0
  %1086 = vmatprep.subr.bf16.mxu0 0
  %1087 = vmatpush1.bf16.msra.mxu0 0
  %1088 = vmatprep.subr.bf16.mxu0 0
  %1089 = vmatpush1.bf16.msra.mxu0 0
  %1090 = vmatprep.subr.bf16.mxu0 0
  %1091 = vmatpush1.bf16.msra.mxu0 0
  %1092 = vmatprep.subr.bf16.mxu0 0
  %1093 = vmatpush1.bf16.msra.mxu0 0
  %1094 = vmatprep.mubr.bf16.mxu0 0
  %1095 = vmatmul.mubr.bf16.gmra.mrb[0].mxu0 %v1061
  %v1096 = vpop.f32.mrb[0].mxu0
  %v1097 = vadd.f32 0.0, %v1096
  %v1098 = vpop.f32.mrb[0].mxu0
  %v1099 = vadd.f32 0.0, %v1098
  %v1100 = vpop.f32.mrb[0].mxu0
  %v1101 = vpop.f32.mrb[0].mxu0
  %1102 = vdwg.mxu0
  %1103 = vmatprep.subr.bf16.mxu0 %v521
  %1104 = vmatpush1.bf16.msra.mxu0 %v520
  %1105 = vmatprep.subr.bf16.mxu0 %v525
  %1106 = vmatpush1.bf16.msra.mxu0 %v524
  %1107 = vmatprep.subr.bf16.mxu0 %v529
  %1108 = vmatpush1.bf16.msra.mxu0 %v528
  %1109 = vmatprep.subr.bf16.mxu0 %v533
  %1110 = vmatpush1.bf16.msra.mxu0 %v532
  %1111 = vmatprep.subr.bf16.mxu0 %v537
  %1112 = vmatpush1.bf16.msra.mxu0 %v536
  %1113 = vmatprep.subr.bf16.mxu0 %v541
  %1114 = vmatpush1.bf16.msra.mxu0 %v540
  %1115 = vmatprep.subr.bf16.mxu0 %v545
  %1116 = vmatpush1.bf16.msra.mxu0 %v544
  %1117 = vmatprep.subr.bf16.mxu0 %v549
  %1118 = vmatpush1.bf16.msra.mxu0 %v548
  %1119 = vmatprep.subr.bf16.mxu0 0
  %1120 = vmatpush1.bf16.msra.mxu0 0
  %1121 = vmatprep.subr.bf16.mxu0 0
  %1122 = vmatpush1.bf16.msra.mxu0 0
  %1123 = vmatprep.subr.bf16.mxu0 0
  %1124 = vmatpush1.bf16.msra.mxu0 0
  %1125 = vmatprep.subr.bf16.mxu0 0
  %1126 = vmatpush1.bf16.msra.mxu0 0
  %1127 = vmatprep.subr.bf16.mxu0 0
  %1128 = vmatpush1.bf16.msra.mxu0 0
  %1129 = vmatprep.subr.bf16.mxu0 0
  %1130 = vmatpush1.bf16.msra.mxu0 0
  %1131 = vmatprep.subr.bf16.mxu0 0
  %1132 = vmatpush1.bf16.msra.mxu0 0
  %1133 = vmatprep.subr.bf16.mxu0 0
  %1134 = vmatpush1.bf16.msra.mxu0 0
  %1135 = vmatprep.mubr.bf16.mxu0 0
  %1136 = vmatmul.mubr.bf16.gmra.mrb[0].mxu0 %v1061
  %v1137 = vpop.f32.mrb[0].mxu0
  %v1138 = vadd.f32 0.0, %v1137
  %v1139 = vpop.f32.mrb[0].mxu0
  %v1140 = vadd.f32 0.0, %v1139
  %v1141 = vpop.f32.mrb[0].mxu0
  %v1142 = vpop.f32.mrb[0].mxu0
  %1143 = vdwg.mxu0
  %v1144 = vadd.f32 %v1057, %v1097
  %v1145 = vadd.f32 %v1058, %v1099
  %v1146 = vadd.f32 %v1059, %v1138
  %v1147 = vadd.f32 %v1060, %v1140
  %v1148 = vxor.u32 %v1145, 2147483648
  %v1149 = vmul.f32 %v1148, 1.442695
  %v1150 = vpow.pop %v1149
  %v1151 = vadd.f32 %v1150, 1.0
  %v1152 = vrcp.pop %v1151
  %v1153 = vmul.f32 1.0, %v1152
  %v1154 = vmul.f32 %v1153, %v923
  %v1155 = vxor.u32 %v1144, 2147483648
  %v1156 = vmul.f32 %v1155, 1.442695
  %v1157 = vpow.pop %v1156
  %v1158 = vadd.f32 %v1157, 1.0
  %v1159 = vrcp.pop %v1158
  %v1160 = vmul.f32 1.0, %v1159
  %v1161 = vtanh.pop %v1146
  %v1162 = vmul.f32 %v1160, %v1161
  %v1163 = vadd.f32 %v1154, %v1162
  %v1164 = vxor.u32 %v1147, 2147483648
  %v1165 = vmul.f32 %v1164, 1.442695
  %v1166 = vpow.pop %v1165
  %v1167 = vadd.f32 %v1166, 1.0
  %v1168 = vrcp.pop %v1167
  %v1169 = vmul.f32 1.0, %v1168
  %v1170 = vtanh.pop %v1163
  %v1171 = vmul.f32 %v1169, %v1170
  %s1172 = scalar_lea.vmem %s56, 104
  %1173 = vst [vmem:[%s1172] sm:$0xff] %v1171
  %s1174 = scalar_lea.vmem %s0, 48
  %v1175 = vld [vmem:[%s1174] sm:$0xff]
  %v1176 = vld [vmem:[%s1174 + $0x8] sm:$0xff]
  %v1177 = vunpack.c.l.bf16 %v1175
  %v1178 = vunpack.c.h.bf16 %v1175
  %v1179 = vunpack.c.l.bf16 %v1176
  %v1180 = vunpack.c.h.bf16 %v1176
  %v1181 = vpack.c.bf16 %v1051, %v1051
  %1182 = vmatprep.subr.bf16.mxu0 %v240
  %1183 = vmatpush1.bf16.msra.mxu0 %v239
  %1184 = vmatprep.subr.bf16.mxu0 %v244
  %1185 = vmatpush1.bf16.msra.mxu0 %v243
  %1186 = vmatprep.subr.bf16.mxu0 %v248
  %1187 = vmatpush1.bf16.msra.mxu0 %v247
  %1188 = vmatprep.subr.bf16.mxu0 %v252
  %1189 = vmatpush1.bf16.msra.mxu0 %v251
  %1190 = vmatprep.subr.bf16.mxu0 %v256
  %1191 = vmatpush1.bf16.msra.mxu0 %v255
  %1192 = vmatprep.subr.bf16.mxu0 %v260
  %1193 = vmatpush1.bf16.msra.mxu0 %v259
  %1194 = vmatprep.subr.bf16.mxu0 %v264
  %1195 = vmatpush1.bf16.msra.mxu0 %v263
  %1196 = vmatprep.subr.bf16.mxu0 %v268
  %1197 = vmatpush1.bf16.msra.mxu0 %v267
  %1198 = vmatprep.subr.bf16.mxu0 0
  %1199 = vmatpush1.bf16.msra.mxu0 0
  %1200 = vmatprep.subr.bf16.mxu0 0
  %1201 = vmatpush1.bf16.msra.mxu0 0
  %1202 = vmatprep.subr.bf16.mxu0 0
  %1203 = vmatpush1.bf16.msra.mxu0 0
  %1204 = vmatprep.subr.bf16.mxu0 0
  %1205 = vmatpush1.bf16.msra.mxu0 0
  %1206 = vmatprep.subr.bf16.mxu0 0
  %1207 = vmatpush1.bf16.msra.mxu0 0
  %1208 = vmatprep.subr.bf16.mxu0 0
  %1209 = vmatpush1.bf16.msra.mxu0 0
  %1210 = vmatprep.subr.bf16.mxu0 0
  %1211 = vmatpush1.bf16.msra.mxu0 0
  %1212 = vmatprep.subr.bf16.mxu0 0
  %1213 = vmatpush1.bf16.msra.mxu0 0
  %1214 = vmatprep.mubr.bf16.mxu0 0
  %1215 = vmatmul.mubr.bf16.gmra.mrb[0].mxu0 %v1181
  %v1216 = vpop.f32.mrb[0].mxu0
  %v1217 = vadd.f32 0.0, %v1216
  %v1218 = vpop.f32.mrb[0].mxu0
  %v1219 = vadd.f32 0.0, %v1218
  %v1220 = vpop.f32.mrb[0].mxu0
  %v1221 = vpop.f32.mrb[0].mxu0
  %1222 = vdwg.mxu0
  %1223 = vmatprep.subr.bf16.mxu0 %v242
  %1224 = vmatpush1.bf16.msra.mxu0 %v241
  %1225 = vmatprep.subr.bf16.mxu0 %v246
  %1226 = vmatpush1.bf16.msra.mxu0 %v245
  %1227 = vmatprep.subr.bf16.mxu0 %v250
  %1228 = vmatpush1.bf16.msra.mxu0 %v249
  %1229 = vmatprep.subr.bf16.mxu0 %v254
  %1230 = vmatpush1.bf16.msra.mxu0 %v253
  %1231 = vmatprep.subr.bf16.mxu0 %v258
  %1232 = vmatpush1.bf16.msra.mxu0 %v257
  %1233 = vmatprep.subr.bf16.mxu0 %v262
  %1234 = vmatpush1.bf16.msra.mxu0 %v261
  %1235 = vmatprep.subr.bf16.mxu0 %v266
  %1236 = vmatpush1.bf16.msra.mxu0 %v265
  %1237 = vmatprep.subr.bf16.mxu0 %v270
  %1238 = vmatpush1.bf16.msra.mxu0 %v269
  %1239 = vmatprep.subr.bf16.mxu0 0
  %1240 = vmatpush1.bf16.msra.mxu0 0
  %1241 = vmatprep.subr.bf16.mxu0 0
  %1242 = vmatpush1.bf16.msra.mxu0 0
  %1243 = vmatprep.subr.bf16.mxu0 0
  %1244 = vmatpush1.bf16.msra.mxu0 0
  %1245 = vmatprep.subr.bf16.mxu0 0
  %1246 = vmatpush1.bf16.msra.mxu0 0
  %1247 = vmatprep.subr.bf16.mxu0 0
  %1248 = vmatpush1.bf16.msra.mxu0 0
  %1249 = vmatprep.subr.bf16.mxu0 0
  %1250 = vmatpush1.bf16.msra.mxu0 0
  %1251 = vmatprep.subr.bf16.mxu0 0
  %1252 = vmatpush1.bf16.msra.mxu0 0
  %1253 = vmatprep.subr.bf16.mxu0 0
  %1254 = vmatpush1.bf16.msra.mxu0 0
  %1255 = vmatprep.mubr.bf16.mxu0 0
  %1256 = vmatmul.mubr.bf16.gmra.mrb[0].mxu0 %v1181
  %v1257 = vpop.f32.mrb[0].mxu0
  %v1258 = vadd.f32 0.0, %v1257
  %v1259 = vpop.f32.mrb[0].mxu0
  %v1260 = vadd.f32 0.0, %v1259
  %v1261 = vpop.f32.mrb[0].mxu0
  %v1262 = vpop.f32.mrb[0].mxu0
  %1263 = vdwg.mxu0
  %v1264 = vadd.f32 %v1177, %v1217
  %v1265 = vadd.f32 %v1178, %v1219
  %v1266 = vadd.f32 %v1179, %v1258
  %v1267 = vadd.f32 %v1180, %v1260
  %v1268 = vxor.u32 %v1265, 2147483648
  %v1269 = vmul.f32 %v1268, 1.442695
  %v1270 = vpow.pop %v1269
  %v1271 = vadd.f32 %v1270, 1.0
  %v1272 = vrcp.pop %v1271
  %v1273 = vmul.f32 1.0, %v1272
  %v1274 = vmul.f32 %v1273, %v1043
  %v1275 = vxor.u32 %v1264, 2147483648
  %v1276 = vmul.f32 %v1275, 1.442695
  %v1277 = vpow.pop %v1276
  %v1278 = vadd.f32 %v1277, 1.0
  %v1279 = vrcp.pop %v1278
  %v1280 = vmul.f32 1.0, %v1279
  %v1281 = vtanh.pop %v1266
  %v1282 = vmul.f32 %v1280, %v1281
  %v1283 = vadd.f32 %v1274, %v1282
  %v1284 = vxor.u32 %v1267, 2147483648
  %v1285 = vmul.f32 %v1284, 1.442695
  %v1286 = vpow.pop %v1285
  %v1287 = vadd.f32 %v1286, 1.0
  %v1288 = vrcp.pop %v1287
  %v1289 = vmul.f32 1.0, %v1288
  %v1290 = vtanh.pop %v1283
  %v1291 = vmul.f32 %v1289, %v1290
  %s1292 = scalar_lea.vmem %s4, 24
  %1293 = vst [vmem:[%s1292] sm:$0xff] %v1291
  %s1294 = scalar_lea.vmem %s48, 192
  %v1295 = vld [vmem:[%s1294] sm:$0xff]
  %v1296 = vld [vmem:[%s1294 + $0x8] sm:$0xff]
  %v1297 = vunpack.c.l.bf16 %v1295
  %v1298 = vunpack.c.h.bf16 %v1295
  %v1299 = vunpack.c.l.bf16 %v1296
  %v1300 = vunpack.c.h.bf16 %v1296
  %v1301 = vpack.c.bf16 %v1171, %v1171
  %1302 = vmatprep.subr.bf16.mxu0 %v519
  %1303 = vmatpush1.bf16.msra.mxu0 %v518
  %1304 = vmatprep.subr.bf16.mxu0 %v523
  %1305 = vmatpush1.bf16.msra.mxu0 %v522
  %1306 = vmatprep.subr.bf16.mxu0 %v527
  %1307 = vmatpush1.bf16.msra.mxu0 %v526
  %1308 = vmatprep.subr.bf16.mxu0 %v531
  %1309 = vmatpush1.bf16.msra.mxu0 %v530
  %1310 = vmatprep.subr.bf16.mxu0 %v535
  %1311 = vmatpush1.bf16.msra.mxu0 %v534
  %1312 = vmatprep.subr.bf16.mxu0 %v539
  %1313 = vmatpush1.bf16.msra.mxu0 %v538
  %1314 = vmatprep.subr.bf16.mxu0 %v543
  %1315 = vmatpush1.bf16.msra.mxu0 %v542
  %1316 = vmatprep.subr.bf16.mxu0 %v547
  %1317 = vmatpush1.bf16.msra.mxu0 %v546
  %1318 = vmatprep.subr.bf16.mxu0 0
  %1319 = vmatpush1.bf16.msra.mxu0 0
  %1320 = vmatprep.subr.bf16.mxu0 0
  %1321 = vmatpush1.bf16.msra.mxu0 0
  %1322 = vmatprep.subr.bf16.mxu0 0
  %1323 = vmatpush1.bf16.msra.mxu0 0
  %1324 = vmatprep.subr.bf16.mxu0 0
  %1325 = vmatpush1.bf16.msra.mxu0 0
  %1326 = vmatprep.subr.bf16.mxu0 0
  %1327 = vmatpush1.bf16.msra.mxu0 0
  %1328 = vmatprep.subr.bf16.mxu0 0
  %1329 = vmatpush1.bf16.msra.mxu0 0
  %1330 = vmatprep.subr.bf16.mxu0 0
  %1331 = vmatpush1.bf16.msra.mxu0 0
  %1332 = vmatprep.subr.bf16.mxu0 0
  %1333 = vmatpush1.bf16.msra.mxu0 0
  %1334 = vmatprep.mubr.bf16.mxu0 0
  %1335 = vmatmul.mubr.bf16.gmra.mrb[0].mxu0 %v1301
  %v1336 = vpop.f32.mrb[0].mxu0
  %v1337 = vadd.f32 0.0, %v1336
  %v1338 = vpop.f32.mrb[0].mxu0
  %v1339 = vadd.f32 0.0, %v1338
  %v1340 = vpop.f32.mrb[0].mxu0
  %v1341 = vpop.f32.mrb[0].mxu0
  %1342 = vdwg.mxu0
  %1343 = vmatprep.subr.bf16.mxu0 %v521
  %1344 = vmatpush1.bf16.msra.mxu0 %v520
  %1345 = vmatprep.subr.bf16.mxu0 %v525
  %1346 = vmatpush1.bf16.msra.mxu0 %v524
  %1347 = vmatprep.subr.bf16.mxu0 %v529
  %1348 = vmatpush1.bf16.msra.mxu0 %v528
  %1349 = vmatprep.subr.bf16.mxu0 %v533
  %1350 = vmatpush1.bf16.msra.mxu0 %v532
  %1351 = vmatprep.subr.bf16.mxu0 %v537
  %1352 = vmatpush1.bf16.msra.mxu0 %v536
  %1353 = vmatprep.subr.bf16.mxu0 %v541
  %1354 = vmatpush1.bf16.msra.mxu0 %v540
  %1355 = vmatprep.subr.bf16.mxu0 %v545
  %1356 = vmatpush1.bf16.msra.mxu0 %v544
  %1357 = vmatprep.subr.bf16.mxu0 %v549
  %1358 = vmatpush1.bf16.msra.mxu0 %v548
  %1359 = vmatprep.subr.bf16.mxu0 0
  %1360 = vmatpush1.bf16.msra.mxu0 0
  %1361 = vmatprep.subr.bf16.mxu0 0
  %1362 = vmatpush1.bf16.msra.mxu0 0
  %1363 = vmatprep.subr.bf16.mxu0 0
  %1364 = vmatpush1.bf16.msra.mxu0 0
  %1365 = vmatprep.subr.bf16.mxu0 0
  %1366 = vmatpush1.bf16.msra.mxu0 0
  %1367 = vmatprep.subr.bf16.mxu0 0
  %1368 = vmatpush1.bf16.msra.mxu0 0
  %1369 = vmatprep.subr.bf16.mxu0 0
  %1370 = vmatpush1.bf16.msra.mxu0 0
  %1371 = vmatprep.subr.bf16.mxu0 0
  %1372 = vmatpush1.bf16.msra.mxu0 0
  %1373 = vmatprep.subr.bf16.mxu0 0
  %1374 = vmatpush1.bf16.msra.mxu0 0
  %1375 = vmatprep.mubr.bf16.mxu0 0
  %1376 = vmatmul.mubr.bf16.gmra.mrb[0].mxu0 %v1301
  %v1377 = vpop.f32.mrb[0].mxu0
  %v1378 = vadd.f32 0.0, %v1377
  %v1379 = vpop.f32.mrb[0].mxu0
  %v1380 = vadd.f32 0.0, %v1379
  %v1381 = vpop.f32.mrb[0].mxu0
  %v1382 = vpop.f32.mrb[0].mxu0
  %1383 = vdwg.mxu0
  %v1384 = vadd.f32 %v1297, %v1337
  %v1385 = vadd.f32 %v1298, %v1339
  %v1386 = vadd.f32 %v1299, %v1378
  %v1387 = vadd.f32 %v1300, %v1380
  %v1388 = vxor.u32 %v1385, 2147483648
  %v1389 = vmul.f32 %v1388, 1.442695
  %v1390 = vpow.pop %v1389
  %v1391 = vadd.f32 %v1390, 1.0
  %v1392 = vrcp.pop %v1391
  %v1393 = vmul.f32 1.0, %v1392
  %v1394 = vmul.f32 %v1393, %v1163
  %v1395 = vxor.u32 %v1384, 2147483648
  %v1396 = vmul.f32 %v1395, 1.442695
  %v1397 = vpow.pop %v1396
  %v1398 = vadd.f32 %v1397, 1.0
  %v1399 = vrcp.pop %v1398
  %v1400 = vmul.f32 1.0, %v1399
  %v1401 = vtanh.pop %v1386
  %v1402 = vmul.f32 %v1400, %v1401
  %v1403 = vadd.f32 %v1394, %v1402
  %v1404 = vxor.u32 %v1387, 2147483648
  %v1405 = vmul.f32 %v1404, 1.442695
  %v1406 = vpow.pop %v1405
  %v1407 = vadd.f32 %v1406, 1.0
  %v1408 = vrcp.pop %v1407
  %v1409 = vmul.f32 1.0, %v1408
  %v1410 = vtanh.pop %v1403
  %v1411 = vmul.f32 %v1409, %v1410
  %s1412 = scalar_lea.vmem %s56, 96
  %1413 = vst [vmem:[%s1412] sm:$0xff] %v1411
  %s1414 = scalar_lea.vmem %s0, 64
  %v1415 = vld [vmem:[%s1414] sm:$0xff]
  %v1416 = vld [vmem:[%s1414 + $0x8] sm:$0xff]
  %v1417 = vunpack.c.l.bf16 %v1415
  %v1418 = vunpack.c.h.bf16 %v1415
  %v1419 = vunpack.c.l.bf16 %v1416
  %v1420 = vunpack.c.h.bf16 %v1416
  %v1421 = vpack.c.bf16 %v1291, %v1291
  %1422 = vmatprep.subr.bf16.mxu0 %v240
  %1423 = vmatpush1.bf16.msra.mxu0 %v239
  %1424 = vmatprep.subr.bf16.mxu0 %v244
  %1425 = vmatpush1.bf16.msra.mxu0 %v243
  %1426 = vmatprep.subr.bf16.mxu0 %v248
  %1427 = vmatpush1.bf16.msra.mxu0 %v247
  %1428 = vmatprep.subr.bf16.mxu0 %v252
  %1429 = vmatpush1.bf16.msra.mxu0 %v251
  %1430 = vmatprep.subr.bf16.mxu0 %v256
  %1431 = vmatpush1.bf16.msra.mxu0 %v255
  %1432 = vmatprep.subr.bf16.mxu0 %v260
  %1433 = vmatpush1.bf16.msra.mxu0 %v259
  %1434 = vmatprep.subr.bf16.mxu0 %v264
  %1435 = vmatpush1.bf16.msra.mxu0 %v263
  %1436 = vmatprep.subr.bf16.mxu0 %v268
  %1437 = vmatpush1.bf16.msra.mxu0 %v267
  %1438 = vmatprep.subr.bf16.mxu0 0
  %1439 = vmatpush1.bf16.msra.mxu0 0
  %1440 = vmatprep.subr.bf16.mxu0 0
  %1441 = vmatpush1.bf16.msra.mxu0 0
  %1442 = vmatprep.subr.bf16.mxu0 0
  %1443 = vmatpush1.bf16.msra.mxu0 0
  %1444 = vmatprep.subr.bf16.mxu0 0
  %1445 = vmatpush1.bf16.msra.mxu0 0
  %1446 = vmatprep.subr.bf16.mxu0 0
  %1447 = vmatpush1.bf16.msra.mxu0 0
  %1448 = vmatprep.subr.bf16.mxu0 0
  %1449 = vmatpush1.bf16.msra.mxu0 0
  %1450 = vmatprep.subr.bf16.mxu0 0
  %1451 = vmatpush1.bf16.msra.mxu0 0
  %1452 = vmatprep.subr.bf16.mxu0 0
  %1453 = vmatpush1.bf16.msra.mxu0 0
  %1454 = vmatprep.mubr.bf16.mxu0 0
  %1455 = vmatmul.mubr.bf16.gmra.mrb[0].mxu0 %v1421
  %v1456 = vpop.f32.mrb[0].mxu0
  %v1457 = vadd.f32 0.0, %v1456
  %v1458 = vpop.f32.mrb[0].mxu0
  %v1459 = vadd.f32 0.0, %v1458
  %v1460 = vpop.f32.mrb[0].mxu0
  %v1461 = vpop.f32.mrb[0].mxu0
  %1462 = vdwg.mxu0
  %1463 = vmatprep.subr.bf16.mxu0 %v242
  %1464 = vmatpush1.bf16.msra.mxu0 %v241
  %1465 = vmatprep.subr.bf16.mxu0 %v246
  %1466 = vmatpush1.bf16.msra.mxu0 %v245
  %1467 = vmatprep.subr.bf16.mxu0 %v250
  %1468 = vmatpush1.bf16.msra.mxu0 %v249
  %1469 = vmatprep.subr.bf16.mxu0 %v254
  %1470 = vmatpush1.bf16.msra.mxu0 %v253
  %1471 = vmatprep.subr.bf16.mxu0 %v258
  %1472 = vmatpush1.bf16.msra.mxu0 %v257
  %1473 = vmatprep.subr.bf16.mxu0 %v262
  %1474 = vmatpush1.bf16.msra.mxu0 %v261
  %1475 = vmatprep.subr.bf16.mxu0 %v266
  %1476 = vmatpush1.bf16.msra.mxu0 %v265
  %1477 = vmatprep.subr.bf16.mxu0 %v270
  %1478 = vmatpush1.bf16.msra.mxu0 %v269
  %1479 = vmatprep.subr.bf16.mxu0 0
  %1480 = vmatpush1.bf16.msra.mxu0 0
  %1481 = vmatprep.subr.bf16.mxu0 0
  %1482 = vmatpush1.bf16.msra.mxu0 0
  %1483 = vmatprep.subr.bf16.mxu0 0
  %1484 = vmatpush1.bf16.msra.mxu0 0
  %1485 = vmatprep.subr.bf16.mxu0 0
  %1486 = vmatpush1.bf16.msra.mxu0 0
  %1487 = vmatprep.subr.bf16.mxu0 0
  %1488 = vmatpush1.bf16.msra.mxu0 0
  %1489 = vmatprep.subr.bf16.mxu0 0
  %1490 = vmatpush1.bf16.msra.mxu0 0
  %1491 = vmatprep.subr.bf16.mxu0 0
  %1492 = vmatpush1.bf16.msra.mxu0 0
  %1493 = vmatprep.subr.bf16.mxu0 0
  %1494 = vmatpush1.bf16.msra.mxu0 0
  %1495 = vmatprep.mubr.bf16.mxu0 0
  %1496 = vmatmul.mubr.bf16.gmra.mrb[0].mxu0 %v1421
  %v1497 = vpop.f32.mrb[0].mxu0
  %v1498 = vadd.f32 0.0, %v1497
  %v1499 = vpop.f32.mrb[0].mxu0
  %v1500 = vadd.f32 0.0, %v1499
  %v1501 = vpop.f32.mrb[0].mxu0
  %v1502 = vpop.f32.mrb[0].mxu0
  %1503 = vdwg.mxu0
  %v1504 = vadd.f32 %v1417, %v1457
  %v1505 = vadd.f32 %v1418, %v1459
  %v1506 = vadd.f32 %v1419, %v1498
  %v1507 = vadd.f32 %v1420, %v1500
  %v1508 = vxor.u32 %v1505, 2147483648
  %v1509 = vmul.f32 %v1508, 1.442695
  %v1510 = vpow.pop %v1509
  %v1511 = vadd.f32 %v1510, 1.0
  %v1512 = vrcp.pop %v1511
  %v1513 = vmul.f32 1.0, %v1512
  %v1514 = vmul.f32 %v1513, %v1283
  %v1515 = vxor.u32 %v1504, 2147483648
  %v1516 = vmul.f32 %v1515, 1.442695
  %v1517 = vpow.pop %v1516
  %v1518 = vadd.f32 %v1517, 1.0
  %v1519 = vrcp.pop %v1518
  %v1520 = vmul.f32 1.0, %v1519
  %v1521 = vtanh.pop %v1506
  %v1522 = vmul.f32 %v1520, %v1521
  %v1523 = vadd.f32 %v1514, %v1522
  %v1524 = vxor.u32 %v1507, 2147483648
  %v1525 = vmul.f32 %v1524, 1.442695
  %v1526 = vpow.pop %v1525
  %v1527 = vadd.f32 %v1526, 1.0
  %v1528 = vrcp.pop %v1527
  %v1529 = vmul.f32 1.0, %v1528
  %v1530 = vtanh.pop %v1523
  %v1531 = vmul.f32 %v1529, %v1530
  %s1532 = scalar_lea.vmem %s4, 32
  %1533 = vst [vmem:[%s1532] sm:$0xff] %v1531
  %s1534 = scalar_lea.vmem %s48, 176
  %v1535 = vld [vmem:[%s1534] sm:$0xff]
  %v1536 = vld [vmem:[%s1534 + $0x8] sm:$0xff]
  %v1537 = vunpack.c.l.bf16 %v1535
  %v1538 = vunpack.c.h.bf16 %v1535
  %v1539 = vunpack.c.l.bf16 %v1536
  %v1540 = vunpack.c.h.bf16 %v1536
  %v1541 = vpack.c.bf16 %v1411, %v1411
  %1542 = vmatprep.subr.bf16.mxu0 %v519
  %1543 = vmatpush1.bf16.msra.mxu0 %v518
  %1544 = vmatprep.subr.bf16.mxu0 %v523
  %1545 = vmatpush1.bf16.msra.mxu0 %v522
  %1546 = vmatprep.subr.bf16.mxu0 %v527
  %1547 = vmatpush1.bf16.msra.mxu0 %v526
  %1548 = vmatprep.subr.bf16.mxu0 %v531
  %1549 = vmatpush1.bf16.msra.mxu0 %v530
  %1550 = vmatprep.subr.bf16.mxu0 %v535
  %1551 = vmatpush1.bf16.msra.mxu0 %v534
  %1552 = vmatprep.subr.bf16.mxu0 %v539
  %1553 = vmatpush1.bf16.msra.mxu0 %v538
  %1554 = vmatprep.subr.bf16.mxu0 %v543
  %1555 = vmatpush1.bf16.msra.mxu0 %v542
  %1556 = vmatprep.subr.bf16.mxu0 %v547
  %1557 = vmatpush1.bf16.msra.mxu0 %v546
  %1558 = vmatprep.subr.bf16.mxu0 0
  %1559 = vmatpush1.bf16.msra.mxu0 0
  %1560 = vmatprep.subr.bf16.mxu0 0
  %1561 = vmatpush1.bf16.msra.mxu0 0
  %1562 = vmatprep.subr.bf16.mxu0 0
  %1563 = vmatpush1.bf16.msra.mxu0 0
  %1564 = vmatprep.subr.bf16.mxu0 0
  %1565 = vmatpush1.bf16.msra.mxu0 0
  %1566 = vmatprep.subr.bf16.mxu0 0
  %1567 = vmatpush1.bf16.msra.mxu0 0
  %1568 = vmatprep.subr.bf16.mxu0 0
  %1569 = vmatpush1.bf16.msra.mxu0 0
  %1570 = vmatprep.subr.bf16.mxu0 0
  %1571 = vmatpush1.bf16.msra.mxu0 0
  %1572 = vmatprep.subr.bf16.mxu0 0
  %1573 = vmatpush1.bf16.msra.mxu0 0
  %1574 = vmatprep.mubr.bf16.mxu0 0
  %1575 = vmatmul.mubr.bf16.gmra.mrb[0].mxu0 %v1541
  %v1576 = vpop.f32.mrb[0].mxu0
  %v1577 = vadd.f32 0.0, %v1576
  %v1578 = vpop.f32.mrb[0].mxu0
  %v1579 = vadd.f32 0.0, %v1578
  %v1580 = vpop.f32.mrb[0].mxu0
  %v1581 = vpop.f32.mrb[0].mxu0
  %1582 = vdwg.mxu0
  %1583 = vmatprep.subr.bf16.mxu0 %v521
  %1584 = vmatpush1.bf16.msra.mxu0 %v520
  %1585 = vmatprep.subr.bf16.mxu0 %v525
  %1586 = vmatpush1.bf16.msra.mxu0 %v524
  %1587 = vmatprep.subr.bf16.mxu0 %v529
  %1588 = vmatpush1.bf16.msra.mxu0 %v528
  %1589 = vmatprep.subr.bf16.mxu0 %v533
  %1590 = vmatpush1.bf16.msra.mxu0 %v532
  %1591 = vmatprep.subr.bf16.mxu0 %v537
  %1592 = vmatpush1.bf16.msra.mxu0 %v536
  %1593 = vmatprep.subr.bf16.mxu0 %v541
  %1594 = vmatpush1.bf16.msra.mxu0 %v540
  %1595 = vmatprep.subr.bf16.mxu0 %v545
  %1596 = vmatpush1.bf16.msra.mxu0 %v544
  %1597 = vmatprep.subr.bf16.mxu0 %v549
  %1598 = vmatpush1.bf16.msra.mxu0 %v548
  %1599 = vmatprep.subr.bf16.mxu0 0
  %1600 = vmatpush1.bf16.msra.mxu0 0
  %1601 = vmatprep.subr.bf16.mxu0 0
  %1602 = vmatpush1.bf16.msra.mxu0 0
  %1603 = vmatprep.subr.bf16.mxu0 0
  %1604 = vmatpush1.bf16.msra.mxu0 0
  %1605 = vmatprep.subr.bf16.mxu0 0
  %1606 = vmatpush1.bf16.msra.mxu0 0
  %1607 = vmatprep.subr.bf16.mxu0 0
  %1608 = vmatpush1.bf16.msra.mxu0 0
  %1609 = vmatprep.subr.bf16.mxu0 0
  %1610 = vmatpush1.bf16.msra.mxu0 0
  %1611 = vmatprep.subr.bf16.mxu0 0
  %1612 = vmatpush1.bf16.msra.mxu0 0
  %1613 = vmatprep.subr.bf16.mxu0 0
  %1614 = vmatpush1.bf16.msra.mxu0 0
  %1615 = vmatprep.mubr.bf16.mxu0 0
  %1616 = vmatmul.mubr.bf16.gmra.mrb[0].mxu0 %v1541
  %v1617 = vpop.f32.mrb[0].mxu0
  %v1618 = vadd.f32 0.0, %v1617
  %v1619 = vpop.f32.mrb[0].mxu0
  %v1620 = vadd.f32 0.0, %v1619
  %v1621 = vpop.f32.mrb[0].mxu0
  %v1622 = vpop.f32.mrb[0].mxu0
  %1623 = vdwg.mxu0
  %v1624 = vadd.f32 %v1537, %v1577
  %v1625 = vadd.f32 %v1538, %v1579
  %v1626 = vadd.f32 %v1539, %v1618
  %v1627 = vadd.f32 %v1540, %v1620
  %v1628 = vxor.u32 %v1625, 2147483648
  %v1629 = vmul.f32 %v1628, 1.442695
  %v1630 = vpow.pop %v1629
  %v1631 = vadd.f32 %v1630, 1.0
  %v1632 = vrcp.pop %v1631
  %v1633 = vmul.f32 1.0, %v1632
  %v1634 = vmul.f32 %v1633, %v1403
  %v1635 = vxor.u32 %v1624, 2147483648
  %v1636 = vmul.f32 %v1635, 1.442695
  %v1637 = vpow.pop %v1636
  %v1638 = vadd.f32 %v1637, 1.0
  %v1639 = vrcp.pop %v1638
  %v1640 = vmul.f32 1.0, %v1639
  %v1641 = vtanh.pop %v1626
  %v1642 = vmul.f32 %v1640, %v1641
  %v1643 = vadd.f32 %v1634, %v1642
  %v1644 = vxor.u32 %v1627, 2147483648
  %v1645 = vmul.f32 %v1644, 1.442695
  %v1646 = vpow.pop %v1645
  %v1647 = vadd.f32 %v1646, 1.0
  %v1648 = vrcp.pop %v1647
  %v1649 = vmul.f32 1.0, %v1648
  %v1650 = vtanh.pop %v1643
  %v1651 = vmul.f32 %v1649, %v1650
  %s1652 = scalar_lea.vmem %s56, 88
  %1653 = vst [vmem:[%s1652] sm:$0xff] %v1651
  %s1654 = scalar_lea.vmem %s0, 80
  %v1655 = vld [vmem:[%s1654] sm:$0xff]
  %v1656 = vld [vmem:[%s1654 + $0x8] sm:$0xff]
  %v1657 = vunpack.c.l.bf16 %v1655
  %v1658 = vunpack.c.h.bf16 %v1655
  %v1659 = vunpack.c.l.bf16 %v1656
  %v1660 = vunpack.c.h.bf16 %v1656
  %v1661 = vpack.c.bf16 %v1531, %v1531
  %1662 = vmatprep.subr.bf16.mxu0 %v240
  %1663 = vmatpush1.bf16.msra.mxu0 %v239
  %1664 = vmatprep.subr.bf16.mxu0 %v244
  %1665 = vmatpush1.bf16.msra.mxu0 %v243
  %1666 = vmatprep.subr.bf16.mxu0 %v248
  %1667 = vmatpush1.bf16.msra.mxu0 %v247
  %1668 = vmatprep.subr.bf16.mxu0 %v252
  %1669 = vmatpush1.bf16.msra.mxu0 %v251
  %1670 = vmatprep.subr.bf16.mxu0 %v256
  %1671 = vmatpush1.bf16.msra.mxu0 %v255
  %1672 = vmatprep.subr.bf16.mxu0 %v260
  %1673 = vmatpush1.bf16.msra.mxu0 %v259
  %1674 = vmatprep.subr.bf16.mxu0 %v264
  %1675 = vmatpush1.bf16.msra.mxu0 %v263
  %1676 = vmatprep.subr.bf16.mxu0 %v268
  %1677 = vmatpush1.bf16.msra.mxu0 %v267
  %1678 = vmatprep.subr.bf16.mxu0 0
  %1679 = vmatpush1.bf16.msra.mxu0 0
  %1680 = vmatprep.subr.bf16.mxu0 0
  %1681 = vmatpush1.bf16.msra.mxu0 0
  %1682 = vmatprep.subr.bf16.mxu0 0
  %1683 = vmatpush1.bf16.msra.mxu0 0
  %1684 = vmatprep.subr.bf16.mxu0 0
  %1685 = vmatpush1.bf16.msra.mxu0 0
  %1686 = vmatprep.subr.bf16.mxu0 0
  %1687 = vmatpush1.bf16.msra.mxu0 0
  %1688 = vmatprep.subr.bf16.mxu0 0
  %1689 = vmatpush1.bf16.msra.mxu0 0
  %1690 = vmatprep.subr.bf16.mxu0 0
  %1691 = vmatpush1.bf16.msra.mxu0 0
  %1692 = vmatprep.subr.bf16.mxu0 0
  %1693 = vmatpush1.bf16.msra.mxu0 0
  %1694 = vmatprep.mubr.bf16.mxu0 0
  %1695 = vmatmul.mubr.bf16.gmra.mrb[0].mxu0 %v1661
  %v1696 = vpop.f32.mrb[0].mxu0
  %v1697 = vadd.f32 0.0, %v1696
  %v1698 = vpop.f32.mrb[0].mxu0
  %v1699 = vadd.f32 0.0, %v1698
  %v1700 = vpop.f32.mrb[0].mxu0
  %v1701 = vpop.f32.mrb[0].mxu0
  %1702 = vdwg.mxu0
  %1703 = vmatprep.subr.bf16.mxu0 %v242
  %1704 = vmatpush1.bf16.msra.mxu0 %v241
  %1705 = vmatprep.subr.bf16.mxu0 %v246
  %1706 = vmatpush1.bf16.msra.mxu0 %v245
  %1707 = vmatprep.subr.bf16.mxu0 %v250
  %1708 = vmatpush1.bf16.msra.mxu0 %v249
  %1709 = vmatprep.subr.bf16.mxu0 %v254
  %1710 = vmatpush1.bf16.msra.mxu0 %v253
  %1711 = vmatprep.subr.bf16.mxu0 %v258
  %1712 = vmatpush1.bf16.msra.mxu0 %v257
  %1713 = vmatprep.subr.bf16.mxu0 %v262
  %1714 = vmatpush1.bf16.msra.mxu0 %v261
  %1715 = vmatprep.subr.bf16.mxu0 %v266
  %1716 = vmatpush1.bf16.msra.mxu0 %v265
  %1717 = vmatprep.subr.bf16.mxu0 %v270
  %1718 = vmatpush1.bf16.msra.mxu0 %v269
  %1719 = vmatprep.subr.bf16.mxu0 0
  %1720 = vmatpush1.bf16.msra.mxu0 0
  %1721 = vmatprep.subr.bf16.mxu0 0
  %1722 = vmatpush1.bf16.msra.mxu0 0
  %1723 = vmatprep.subr.bf16.mxu0 0
  %1724 = vmatpush1.bf16.msra.mxu0 0
  %1725 = vmatprep.subr.bf16.mxu0 0
  %1726 = vmatpush1.bf16.msra.mxu0 0
  %1727 = vmatprep.subr.bf16.mxu0 0
  %1728 = vmatpush1.bf16.msra.mxu0 0
  %1729 = vmatprep.subr.bf16.mxu0 0
  %1730 = vmatpush1.bf16.msra.mxu0 0
  %1731 = vmatprep.subr.bf16.mxu0 0
  %1732 = vmatpush1.bf16.msra.mxu0 0
  %1733 = vmatprep.subr.bf16.mxu0 0
  %1734 = vmatpush1.bf16.msra.mxu0 0
  %1735 = vmatprep.mubr.bf16.mxu0 0
  %1736 = vmatmul.mubr.bf16.gmra.mrb[0].mxu0 %v1661
  %v1737 = vpop.f32.mrb[0].mxu0
  %v1738 = vadd.f32 0.0, %v1737
  %v1739 = vpop.f32.mrb[0].mxu0
  %v1740 = vadd.f32 0.0, %v1739
  %v1741 = vpop.f32.mrb[0].mxu0
  %v1742 = vpop.f32.mrb[0].mxu0
  %1743 = vdwg.mxu0
  %v1744 = vadd.f32 %v1657, %v1697
  %v1745 = vadd.f32 %v1658, %v1699
  %v1746 = vadd.f32 %v1659, %v1738
  %v1747 = vadd.f32 %v1660, %v1740
  %v1748 = vxor.u32 %v1745, 2147483648
  %v1749 = vmul.f32 %v1748, 1.442695
  %v1750 = vpow.pop %v1749
  %v1751 = vadd.f32 %v1750, 1.0
  %v1752 = vrcp.pop %v1751
  %v1753 = vmul.f32 1.0, %v1752
  %v1754 = vmul.f32 %v1753, %v1523
  %v1755 = vxor.u32 %v1744, 2147483648
  %v1756 = vmul.f32 %v1755, 1.442695
  %v1757 = vpow.pop %v1756
  %v1758 = vadd.f32 %v1757, 1.0
  %v1759 = vrcp.pop %v1758
  %v1760 = vmul.f32 1.0, %v1759
  %v1761 = vtanh.pop %v1746
  %v1762 = vmul.f32 %v1760, %v1761
  %v1763 = vadd.f32 %v1754, %v1762
  %v1764 = vxor.u32 %v1747, 2147483648
  %v1765 = vmul.f32 %v1764, 1.442695
  %v1766 = vpow.pop %v1765
  %v1767 = vadd.f32 %v1766, 1.0
  %v1768 = vrcp.pop %v1767
  %v1769 = vmul.f32 1.0, %v1768
  %v1770 = vtanh.pop %v1763
  %v1771 = vmul.f32 %v1769, %v1770
  %s1772 = scalar_lea.vmem %s4, 40
  %1773 = vst [vmem:[%s1772] sm:$0xff] %v1771
  %s1774 = scalar_lea.vmem %s48, 160
  %v1775 = vld [vmem:[%s1774] sm:$0xff]
  %v1776 = vld [vmem:[%s1774 + $0x8] sm:$0xff]
  %v1777 = vunpack.c.l.bf16 %v1775
  %v1778 = vunpack.c.h.bf16 %v1775
  %v1779 = vunpack.c.l.bf16 %v1776
  %v1780 = vunpack.c.h.bf16 %v1776
  %v1781 = vpack.c.bf16 %v1651, %v1651
  %1782 = vmatprep.subr.bf16.mxu0 %v519
  %1783 = vmatpush1.bf16.msra.mxu0 %v518
  %1784 = vmatprep.subr.bf16.mxu0 %v523
  %1785 = vmatpush1.bf16.msra.mxu0 %v522
  %1786 = vmatprep.subr.bf16.mxu0 %v527
  %1787 = vmatpush1.bf16.msra.mxu0 %v526
  %1788 = vmatprep.subr.bf16.mxu0 %v531
  %1789 = vmatpush1.bf16.msra.mxu0 %v530
  %1790 = vmatprep.subr.bf16.mxu0 %v535
  %1791 = vmatpush1.bf16.msra.mxu0 %v534
  %1792 = vmatprep.subr.bf16.mxu0 %v539
  %1793 = vmatpush1.bf16.msra.mxu0 %v538
  %1794 = vmatprep.subr.bf16.mxu0 %v543
  %1795 = vmatpush1.bf16.msra.mxu0 %v542
  %1796 = vmatprep.subr.bf16.mxu0 %v547
  %1797 = vmatpush1.bf16.msra.mxu0 %v546
  %1798 = vmatprep.subr.bf16.mxu0 0
  %1799 = vmatpush1.bf16.msra.mxu0 0
  %1800 = vmatprep.subr.bf16.mxu0 0
  %1801 = vmatpush1.bf16.msra.mxu0 0
  %1802 = vmatprep.subr.bf16.mxu0 0
  %1803 = vmatpush1.bf16.msra.mxu0 0
  %1804 = vmatprep.subr.bf16.mxu0 0
  %1805 = vmatpush1.bf16.msra.mxu0 0
  %1806 = vmatprep.subr.bf16.mxu0 0
  %1807 = vmatpush1.bf16.msra.mxu0 0
  %1808 = vmatprep.subr.bf16.mxu0 0
  %1809 = vmatpush1.bf16.msra.mxu0 0
  %1810 = vmatprep.subr.bf16.mxu0 0
  %1811 = vmatpush1.bf16.msra.mxu0 0
  %1812 = vmatprep.subr.bf16.mxu0 0
  %1813 = vmatpush1.bf16.msra.mxu0 0
  %1814 = vmatprep.mubr.bf16.mxu0 0
  %1815 = vmatmul.mubr.bf16.gmra.mrb[0].mxu0 %v1781
  %v1816 = vpop.f32.mrb[0].mxu0
  %v1817 = vadd.f32 0.0, %v1816
  %v1818 = vpop.f32.mrb[0].mxu0
  %v1819 = vadd.f32 0.0, %v1818
  %v1820 = vpop.f32.mrb[0].mxu0
  %v1821 = vpop.f32.mrb[0].mxu0
  %1822 = vdwg.mxu0
  %1823 = vmatprep.subr.bf16.mxu0 %v521
  %1824 = vmatpush1.bf16.msra.mxu0 %v520
  %1825 = vmatprep.subr.bf16.mxu0 %v525
  %1826 = vmatpush1.bf16.msra.mxu0 %v524
  %1827 = vmatprep.subr.bf16.mxu0 %v529
  %1828 = vmatpush1.bf16.msra.mxu0 %v528
  %1829 = vmatprep.subr.bf16.mxu0 %v533
  %1830 = vmatpush1.bf16.msra.mxu0 %v532
  %1831 = vmatprep.subr.bf16.mxu0 %v537
  %1832 = vmatpush1.bf16.msra.mxu0 %v536
  %1833 = vmatprep.subr.bf16.mxu0 %v541
  %1834 = vmatpush1.bf16.msra.mxu0 %v540
  %1835 = vmatprep.subr.bf16.mxu0 %v545
  %1836 = vmatpush1.bf16.msra.mxu0 %v544
  %1837 = vmatprep.subr.bf16.mxu0 %v549
  %1838 = vmatpush1.bf16.msra.mxu0 %v548
  %1839 = vmatprep.subr.bf16.mxu0 0
  %1840 = vmatpush1.bf16.msra.mxu0 0
  %1841 = vmatprep.subr.bf16.mxu0 0
  %1842 = vmatpush1.bf16.msra.mxu0 0
  %1843 = vmatprep.subr.bf16.mxu0 0
  %1844 = vmatpush1.bf16.msra.mxu0 0
  %1845 = vmatprep.subr.bf16.mxu0 0
  %1846 = vmatpush1.bf16.msra.mxu0 0
  %1847 = vmatprep.subr.bf16.mxu0 0
  %1848 = vmatpush1.bf16.msra.mxu0 0
  %1849 = vmatprep.subr.bf16.mxu0 0
  %1850 = vmatpush1.bf16.msra.mxu0 0
  %1851 = vmatprep.subr.bf16.mxu0 0
  %1852 = vmatpush1.bf16.msra.mxu0 0
  %1853 = vmatprep.subr.bf16.mxu0 0
  %1854 = vmatpush1.bf16.msra.mxu0 0
  %1855 = vmatprep.mubr.bf16.mxu0 0
  %1856 = vmatmul.mubr.bf16.gmra.mrb[0].mxu0 %v1781
  %v1857 = vpop.f32.mrb[0].mxu0
  %v1858 = vadd.f32 0.0, %v1857
  %v1859 = vpop.f32.mrb[0].mxu0
  %v1860 = vadd.f32 0.0, %v1859
  %v1861 = vpop.f32.mrb[0].mxu0
  %v1862 = vpop.f32.mrb[0].mxu0
  %1863 = vdwg.mxu0
  %v1864 = vadd.f32 %v1777, %v1817
  %v1865 = vadd.f32 %v1778, %v1819
  %v1866 = vadd.f32 %v1779, %v1858
  %v1867 = vadd.f32 %v1780, %v1860
  %v1868 = vxor.u32 %v1865, 2147483648
  %v1869 = vmul.f32 %v1868, 1.442695
  %v1870 = vpow.pop %v1869
  %v1871 = vadd.f32 %v1870, 1.0
  %v1872 = vrcp.pop %v1871
  %v1873 = vmul.f32 1.0, %v1872
  %v1874 = vmul.f32 %v1873, %v1643
  %v1875 = vxor.u32 %v1864, 2147483648
  %v1876 = vmul.f32 %v1875, 1.442695
  %v1877 = vpow.pop %v1876
  %v1878 = vadd.f32 %v1877, 1.0
  %v1879 = vrcp.pop %v1878
  %v1880 = vmul.f32 1.0, %v1879
  %v1881 = vtanh.pop %v1866
  %v1882 = vmul.f32 %v1880, %v1881
  %v1883 = vadd.f32 %v1874, %v1882
  %v1884 = vxor.u32 %v1867, 2147483648
  %v1885 = vmul.f32 %v1884, 1.442695
  %v1886 = vpow.pop %v1885
  %v1887 = vadd.f32 %v1886, 1.0
  %v1888 = vrcp.pop %v1887
  %v1889 = vmul.f32 1.0, %v1888
  %v1890 = vtanh.pop %v1883
  %v1891 = vmul.f32 %v1889, %v1890
  %s1892 = scalar_lea.vmem %s56, 80
  %1893 = vst [vmem:[%s1892] sm:$0xff] %v1891
  %s1894 = scalar_lea.vmem %s0, 96
  %v1895 = vld [vmem:[%s1894] sm:$0xff]
  %v1896 = vld [vmem:[%s1894 + $0x8] sm:$0xff]
  %v1897 = vunpack.c.l.bf16 %v1895
  %v1898 = vunpack.c.h.bf16 %v1895
  %v1899 = vunpack.c.l.bf16 %v1896
  %v1900 = vunpack.c.h.bf16 %v1896
  %v1901 = vpack.c.bf16 %v1771, %v1771
  %1902 = vmatprep.subr.bf16.mxu0 %v240
  %1903 = vmatpush1.bf16.msra.mxu0 %v239
  %1904 = vmatprep.subr.bf16.mxu0 %v244
  %1905 = vmatpush1.bf16.msra.mxu0 %v243
  %1906 = vmatprep.subr.bf16.mxu0 %v248
  %1907 = vmatpush1.bf16.msra.mxu0 %v247
  %1908 = vmatprep.subr.bf16.mxu0 %v252
  %1909 = vmatpush1.bf16.msra.mxu0 %v251
  %1910 = vmatprep.subr.bf16.mxu0 %v256
  %1911 = vmatpush1.bf16.msra.mxu0 %v255
  %1912 = vmatprep.subr.bf16.mxu0 %v260
  %1913 = vmatpush1.bf16.msra.mxu0 %v259
  %1914 = vmatprep.subr.bf16.mxu0 %v264
  %1915 = vmatpush1.bf16.msra.mxu0 %v263
  %1916 = vmatprep.subr.bf16.mxu0 %v268
  %1917 = vmatpush1.bf16.msra.mxu0 %v267
  %1918 = vmatprep.subr.bf16.mxu0 0
  %1919 = vmatpush1.bf16.msra.mxu0 0
  %1920 = vmatprep.subr.bf16.mxu0 0
  %1921 = vmatpush1.bf16.msra.mxu0 0
  %1922 = vmatprep.subr.bf16.mxu0 0
  %1923 = vmatpush1.bf16.msra.mxu0 0
  %1924 = vmatprep.subr.bf16.mxu0 0
  %1925 = vmatpush1.bf16.msra.mxu0 0
  %1926 = vmatprep.subr.bf16.mxu0 0
  %1927 = vmatpush1.bf16.msra.mxu0 0
  %1928 = vmatprep.subr.bf16.mxu0 0
  %1929 = vmatpush1.bf16.msra.mxu0 0
  %1930 = vmatprep.subr.bf16.mxu0 0
  %1931 = vmatpush1.bf16.msra.mxu0 0
  %1932 = vmatprep.subr.bf16.mxu0 0
  %1933 = vmatpush1.bf16.msra.mxu0 0
  %1934 = vmatprep.mubr.bf16.mxu0 0
  %1935 = vmatmul.mubr.bf16.gmra.mrb[0].mxu0 %v1901
  %v1936 = vpop.f32.mrb[0].mxu0
  %v1937 = vadd.f32 0.0, %v1936
  %v1938 = vpop.f32.mrb[0].mxu0
  %v1939 = vadd.f32 0.0, %v1938
  %v1940 = vpop.f32.mrb[0].mxu0
  %v1941 = vpop.f32.mrb[0].mxu0
  %1942 = vdwg.mxu0
  %1943 = vmatprep.subr.bf16.mxu0 %v242
  %1944 = vmatpush1.bf16.msra.mxu0 %v241
  %1945 = vmatprep.subr.bf16.mxu0 %v246
  %1946 = vmatpush1.bf16.msra.mxu0 %v245
  %1947 = vmatprep.subr.bf16.mxu0 %v250
  %1948 = vmatpush1.bf16.msra.mxu0 %v249
  %1949 = vmatprep.subr.bf16.mxu0 %v254
  %1950 = vmatpush1.bf16.msra.mxu0 %v253
  %1951 = vmatprep.subr.bf16.mxu0 %v258
  %1952 = vmatpush1.bf16.msra.mxu0 %v257
  %1953 = vmatprep.subr.bf16.mxu0 %v262
  %1954 = vmatpush1.bf16.msra.mxu0 %v261
  %1955 = vmatprep.subr.bf16.mxu0 %v266
  %1956 = vmatpush1.bf16.msra.mxu0 %v265
  %1957 = vmatprep.subr.bf16.mxu0 %v270
  %1958 = vmatpush1.bf16.msra.mxu0 %v269
  %1959 = vmatprep.subr.bf16.mxu0 0
  %1960 = vmatpush1.bf16.msra.mxu0 0
  %1961 = vmatprep.subr.bf16.mxu0 0
  %1962 = vmatpush1.bf16.msra.mxu0 0
  %1963 = vmatprep.subr.bf16.mxu0 0
  %1964 = vmatpush1.bf16.msra.mxu0 0
  %1965 = vmatprep.subr.bf16.mxu0 0
  %1966 = vmatpush1.bf16.msra.mxu0 0
  %1967 = vmatprep.subr.bf16.mxu0 0
  %1968 = vmatpush1.bf16.msra.mxu0 0
  %1969 = vmatprep.subr.bf16.mxu0 0
  %1970 = vmatpush1.bf16.msra.mxu0 0
  %1971 = vmatprep.subr.bf16.mxu0 0
  %1972 = vmatpush1.bf16.msra.mxu0 0
  %1973 = vmatprep.subr.bf16.mxu0 0
  %1974 = vmatpush1.bf16.msra.mxu0 0
  %1975 = vmatprep.mubr.bf16.mxu0 0
  %1976 = vmatmul.mubr.bf16.gmra.mrb[0].mxu0 %v1901
  %v1977 = vpop.f32.mrb[0].mxu0
  %v1978 = vadd.f32 0.0, %v1977
  %v1979 = vpop.f32.mrb[0].mxu0
  %v1980 = vadd.f32 0.0, %v1979
  %v1981 = vpop.f32.mrb[0].mxu0
  %v1982 = vpop.f32.mrb[0].mxu0
  %1983 = vdwg.mxu0
  %v1984 = vadd.f32 %v1897, %v1937
  %v1985 = vadd.f32 %v1898, %v1939
  %v1986 = vadd.f32 %v1899, %v1978
  %v1987 = vadd.f32 %v1900, %v1980
  %v1988 = vxor.u32 %v1985, 2147483648
  %v1989 = vmul.f32 %v1988, 1.442695
  %v1990 = vpow.pop %v1989
  %v1991 = vadd.f32 %v1990, 1.0
  %v1992 = vrcp.pop %v1991
  %v1993 = vmul.f32 1.0, %v1992
  %v1994 = vmul.f32 %v1993, %v1763
  %v1995 = vxor.u32 %v1984, 2147483648
  %v1996 = vmul.f32 %v1995, 1.442695
  %v1997 = vpow.pop %v1996
  %v1998 = vadd.f32 %v1997, 1.0
  %v1999 = vrcp.pop %v1998
  %v2000 = vmul.f32 1.0, %v1999
  %v2001 = vtanh.pop %v1986
  %v2002 = vmul.f32 %v2000, %v2001
  %v2003 = vadd.f32 %v1994, %v2002
  %v2004 = vxor.u32 %v1987, 2147483648
  %v2005 = vmul.f32 %v2004, 1.442695
  %v2006 = vpow.pop %v2005
  %v2007 = vadd.f32 %v2006, 1.0
  %v2008 = vrcp.pop %v2007
  %v2009 = vmul.f32 1.0, %v2008
  %v2010 = vtanh.pop %v2003
  %v2011 = vmul.f32 %v2009, %v2010
  %s2012 = scalar_lea.vmem %s4, 48
  %2013 = vst [vmem:[%s2012] sm:$0xff] %v2011
  %s2014 = scalar_lea.vmem %s48, 144
  %v2015 = vld [vmem:[%s2014] sm:$0xff]
  %v2016 = vld [vmem:[%s2014 + $0x8] sm:$0xff]
  %v2017 = vunpack.c.l.bf16 %v2015
  %v2018 = vunpack.c.h.bf16 %v2015
  %v2019 = vunpack.c.l.bf16 %v2016
  %v2020 = vunpack.c.h.bf16 %v2016
  %v2021 = vpack.c.bf16 %v1891, %v1891
  %2022 = vmatprep.subr.bf16.mxu0 %v519
  %2023 = vmatpush1.bf16.msra.mxu0 %v518
  %2024 = vmatprep.subr.bf16.mxu0 %v523
  %2025 = vmatpush1.bf16.msra.mxu0 %v522
  %2026 = vmatprep.subr.bf16.mxu0 %v527
  %2027 = vmatpush1.bf16.msra.mxu0 %v526
  %2028 = vmatprep.subr.bf16.mxu0 %v531
  %2029 = vmatpush1.bf16.msra.mxu0 %v530
  %2030 = vmatprep.subr.bf16.mxu0 %v535
  %2031 = vmatpush1.bf16.msra.mxu0 %v534
  %2032 = vmatprep.subr.bf16.mxu0 %v539
  %2033 = vmatpush1.bf16.msra.mxu0 %v538
  %2034 = vmatprep.subr.bf16.mxu0 %v543
  %2035 = vmatpush1.bf16.msra.mxu0 %v542
  %2036 = vmatprep.subr.bf16.mxu0 %v547
  %2037 = vmatpush1.bf16.msra.mxu0 %v546
  %2038 = vmatprep.subr.bf16.mxu0 0
  %2039 = vmatpush1.bf16.msra.mxu0 0
  %2040 = vmatprep.subr.bf16.mxu0 0
  %2041 = vmatpush1.bf16.msra.mxu0 0
  %2042 = vmatprep.subr.bf16.mxu0 0
  %2043 = vmatpush1.bf16.msra.mxu0 0
  %2044 = vmatprep.subr.bf16.mxu0 0
  %2045 = vmatpush1.bf16.msra.mxu0 0
  %2046 = vmatprep.subr.bf16.mxu0 0
  %2047 = vmatpush1.bf16.msra.mxu0 0
  %2048 = vmatprep.subr.bf16.mxu0 0
  %2049 = vmatpush1.bf16.msra.mxu0 0
  %2050 = vmatprep.subr.bf16.mxu0 0
  %2051 = vmatpush1.bf16.msra.mxu0 0
  %2052 = vmatprep.subr.bf16.mxu0 0
  %2053 = vmatpush1.bf16.msra.mxu0 0
  %2054 = vmatprep.mubr.bf16.mxu0 0
  %2055 = vmatmul.mubr.bf16.gmra.mrb[0].mxu0 %v2021
  %v2056 = vpop.f32.mrb[0].mxu0
  %v2057 = vadd.f32 0.0, %v2056
  %v2058 = vpop.f32.mrb[0].mxu0
  %v2059 = vadd.f32 0.0, %v2058
  %v2060 = vpop.f32.mrb[0].mxu0
  %v2061 = vpop.f32.mrb[0].mxu0
  %2062 = vdwg.mxu0
  %2063 = vmatprep.subr.bf16.mxu0 %v521
  %2064 = vmatpush1.bf16.msra.mxu0 %v520
  %2065 = vmatprep.subr.bf16.mxu0 %v525
  %2066 = vmatpush1.bf16.msra.mxu0 %v524
  %2067 = vmatprep.subr.bf16.mxu0 %v529
  %2068 = vmatpush1.bf16.msra.mxu0 %v528
  %2069 = vmatprep.subr.bf16.mxu0 %v533
  %2070 = vmatpush1.bf16.msra.mxu0 %v532
  %2071 = vmatprep.subr.bf16.mxu0 %v537
  %2072 = vmatpush1.bf16.msra.mxu0 %v536
  %2073 = vmatprep.subr.bf16.mxu0 %v541
  %2074 = vmatpush1.bf16.msra.mxu0 %v540
  %2075 = vmatprep.subr.bf16.mxu0 %v545
  %2076 = vmatpush1.bf16.msra.mxu0 %v544
  %2077 = vmatprep.subr.bf16.mxu0 %v549
  %2078 = vmatpush1.bf16.msra.mxu0 %v548
  %2079 = vmatprep.subr.bf16.mxu0 0
  %2080 = vmatpush1.bf16.msra.mxu0 0
  %2081 = vmatprep.subr.bf16.mxu0 0
  %2082 = vmatpush1.bf16.msra.mxu0 0
  %2083 = vmatprep.subr.bf16.mxu0 0
  %2084 = vmatpush1.bf16.msra.mxu0 0
  %2085 = vmatprep.subr.bf16.mxu0 0
  %2086 = vmatpush1.bf16.msra.mxu0 0
  %2087 = vmatprep.subr.bf16.mxu0 0
  %2088 = vmatpush1.bf16.msra.mxu0 0
  %2089 = vmatprep.subr.bf16.mxu0 0
  %2090 = vmatpush1.bf16.msra.mxu0 0
  %2091 = vmatprep.subr.bf16.mxu0 0
  %2092 = vmatpush1.bf16.msra.mxu0 0
  %2093 = vmatprep.subr.bf16.mxu0 0
  %2094 = vmatpush1.bf16.msra.mxu0 0
  %2095 = vmatprep.mubr.bf16.mxu0 0
  %2096 = vmatmul.mubr.bf16.gmra.mrb[0].mxu0 %v2021
  %v2097 = vpop.f32.mrb[0].mxu0
  %v2098 = vadd.f32 0.0, %v2097
  %v2099 = vpop.f32.mrb[0].mxu0
  %v2100 = vadd.f32 0.0, %v2099
  %v2101 = vpop.f32.mrb[0].mxu0
  %v2102 = vpop.f32.mrb[0].mxu0
  %2103 = vdwg.mxu0
  %v2104 = vadd.f32 %v2017, %v2057
  %v2105 = vadd.f32 %v2018, %v2059
  %v2106 = vadd.f32 %v2019, %v2098
  %v2107 = vadd.f32 %v2020, %v2100
  %v2108 = vxor.u32 %v2105, 2147483648
  %v2109 = vmul.f32 %v2108, 1.442695
  %v2110 = vpow.pop %v2109
  %v2111 = vadd.f32 %v2110, 1.0
  %v2112 = vrcp.pop %v2111
  %v2113 = vmul.f32 1.0, %v2112
  %v2114 = vmul.f32 %v2113, %v1883
  %v2115 = vxor.u32 %v2104, 2147483648
  %v2116 = vmul.f32 %v2115, 1.442695
  %v2117 = vpow.pop %v2116
  %v2118 = vadd.f32 %v2117, 1.0
  %v2119 = vrcp.pop %v2118
  %v2120 = vmul.f32 1.0, %v2119
  %v2121 = vtanh.pop %v2106
  %v2122 = vmul.f32 %v2120, %v2121
  %v2123 = vadd.f32 %v2114, %v2122
  %v2124 = vxor.u32 %v2107, 2147483648
  %v2125 = vmul.f32 %v2124, 1.442695
  %v2126 = vpow.pop %v2125
  %v2127 = vadd.f32 %v2126, 1.0
  %v2128 = vrcp.pop %v2127
  %v2129 = vmul.f32 1.0, %v2128
  %v2130 = vtanh.pop %v2123
  %v2131 = vmul.f32 %v2129, %v2130
  %s2132 = scalar_lea.vmem %s56, 72
  %2133 = vst [vmem:[%s2132] sm:$0xff] %v2131
  %s2134 = scalar_lea.vmem %s0, 112
  %v2135 = vld [vmem:[%s2134] sm:$0xff]
  %v2136 = vld [vmem:[%s2134 + $0x8] sm:$0xff]
  %v2137 = vunpack.c.l.bf16 %v2135
  %v2138 = vunpack.c.h.bf16 %v2135
  %v2139 = vunpack.c.l.bf16 %v2136
  %v2140 = vunpack.c.h.bf16 %v2136
  %v2141 = vpack.c.bf16 %v2011, %v2011
  %2142 = vmatprep.subr.bf16.mxu0 %v240
  %2143 = vmatpush1.bf16.msra.mxu0 %v239
  %2144 = vmatprep.subr.bf16.mxu0 %v244
  %2145 = vmatpush1.bf16.msra.mxu0 %v243
  %2146 = vmatprep.subr.bf16.mxu0 %v248
  %2147 = vmatpush1.bf16.msra.mxu0 %v247
  %2148 = vmatprep.subr.bf16.mxu0 %v252
  %2149 = vmatpush1.bf16.msra.mxu0 %v251
  %2150 = vmatprep.subr.bf16.mxu0 %v256
  %2151 = vmatpush1.bf16.msra.mxu0 %v255
  %2152 = vmatprep.subr.bf16.mxu0 %v260
  %2153 = vmatpush1.bf16.msra.mxu0 %v259
  %2154 = vmatprep.subr.bf16.mxu0 %v264
  %2155 = vmatpush1.bf16.msra.mxu0 %v263
  %2156 = vmatprep.subr.bf16.mxu0 %v268
  %2157 = vmatpush1.bf16.msra.mxu0 %v267
  %2158 = vmatprep.subr.bf16.mxu0 0
  %2159 = vmatpush1.bf16.msra.mxu0 0
  %2160 = vmatprep.subr.bf16.mxu0 0
  %2161 = vmatpush1.bf16.msra.mxu0 0
  %2162 = vmatprep.subr.bf16.mxu0 0
  %2163 = vmatpush1.bf16.msra.mxu0 0
  %2164 = vmatprep.subr.bf16.mxu0 0
  %2165 = vmatpush1.bf16.msra.mxu0 0
  %2166 = vmatprep.subr.bf16.mxu0 0
  %2167 = vmatpush1.bf16.msra.mxu0 0
  %2168 = vmatprep.subr.bf16.mxu0 0
  %2169 = vmatpush1.bf16.msra.mxu0 0
  %2170 = vmatprep.subr.bf16.mxu0 0
  %2171 = vmatpush1.bf16.msra.mxu0 0
  %2172 = vmatprep.subr.bf16.mxu0 0
  %2173 = vmatpush1.bf16.msra.mxu0 0
  %2174 = vmatprep.mubr.bf16.mxu0 0
  %2175 = vmatmul.mubr.bf16.gmra.mrb[0].mxu0 %v2141
  %v2176 = vpop.f32.mrb[0].mxu0
  %v2177 = vadd.f32 0.0, %v2176
  %v2178 = vpop.f32.mrb[0].mxu0
  %v2179 = vadd.f32 0.0, %v2178
  %v2180 = vpop.f32.mrb[0].mxu0
  %v2181 = vpop.f32.mrb[0].mxu0
  %2182 = vdwg.mxu0
  %2183 = vmatprep.subr.bf16.mxu0 %v242
  %2184 = vmatpush1.bf16.msra.mxu0 %v241
  %2185 = vmatprep.subr.bf16.mxu0 %v246
  %2186 = vmatpush1.bf16.msra.mxu0 %v245
  %2187 = vmatprep.subr.bf16.mxu0 %v250
  %2188 = vmatpush1.bf16.msra.mxu0 %v249
  %2189 = vmatprep.subr.bf16.mxu0 %v254
  %2190 = vmatpush1.bf16.msra.mxu0 %v253
  %2191 = vmatprep.subr.bf16.mxu0 %v258
  %2192 = vmatpush1.bf16.msra.mxu0 %v257
  %2193 = vmatprep.subr.bf16.mxu0 %v262
  %2194 = vmatpush1.bf16.msra.mxu0 %v261
  %2195 = vmatprep.subr.bf16.mxu0 %v266
  %2196 = vmatpush1.bf16.msra.mxu0 %v265
  %2197 = vmatprep.subr.bf16.mxu0 %v270
  %2198 = vmatpush1.bf16.msra.mxu0 %v269
  %2199 = vmatprep.subr.bf16.mxu0 0
  %2200 = vmatpush1.bf16.msra.mxu0 0
  %2201 = vmatprep.subr.bf16.mxu0 0
  %2202 = vmatpush1.bf16.msra.mxu0 0
  %2203 = vmatprep.subr.bf16.mxu0 0
  %2204 = vmatpush1.bf16.msra.mxu0 0
  %2205 = vmatprep.subr.bf16.mxu0 0
  %2206 = vmatpush1.bf16.msra.mxu0 0
  %2207 = vmatprep.subr.bf16.mxu0 0
  %2208 = vmatpush1.bf16.msra.mxu0 0
  %2209 = vmatprep.subr.bf16.mxu0 0
  %2210 = vmatpush1.bf16.msra.mxu0 0
  %2211 = vmatprep.subr.bf16.mxu0 0
  %2212 = vmatpush1.bf16.msra.mxu0 0
  %2213 = vmatprep.subr.bf16.mxu0 0
  %2214 = vmatpush1.bf16.msra.mxu0 0
  %2215 = vmatprep.mubr.bf16.mxu0 0
  %2216 = vmatmul.mubr.bf16.gmra.mrb[0].mxu0 %v2141
  %v2217 = vpop.f32.mrb[0].mxu0
  %v2218 = vadd.f32 0.0, %v2217
  %v2219 = vpop.f32.mrb[0].mxu0
  %v2220 = vadd.f32 0.0, %v2219
  %v2221 = vpop.f32.mrb[0].mxu0
  %v2222 = vpop.f32.mrb[0].mxu0
  %2223 = vdwg.mxu0
  %v2224 = vadd.f32 %v2137, %v2177
  %v2225 = vadd.f32 %v2138, %v2179
  %v2226 = vadd.f32 %v2139, %v2218
  %v2227 = vadd.f32 %v2140, %v2220
  %v2228 = vxor.u32 %v2225, 2147483648
  %v2229 = vmul.f32 %v2228, 1.442695
  %v2230 = vpow.pop %v2229
  %v2231 = vadd.f32 %v2230, 1.0
  %v2232 = vrcp.pop %v2231
  %v2233 = vmul.f32 1.0, %v2232
  %v2234 = vmul.f32 %v2233, %v2003
  %v2235 = vxor.u32 %v2224, 2147483648
  %v2236 = vmul.f32 %v2235, 1.442695
  %v2237 = vpow.pop %v2236
  %v2238 = vadd.f32 %v2237, 1.0
  %v2239 = vrcp.pop %v2238
  %v2240 = vmul.f32 1.0, %v2239
  %v2241 = vtanh.pop %v2226
  %v2242 = vmul.f32 %v2240, %v2241
  %v2243 = vadd.f32 %v2234, %v2242
  %v2244 = vxor.u32 %v2227, 2147483648
  %v2245 = vmul.f32 %v2244, 1.442695
  %v2246 = vpow.pop %v2245
  %v2247 = vadd.f32 %v2246, 1.0
  %v2248 = vrcp.pop %v2247
  %v2249 = vmul.f32 1.0, %v2248
  %v2250 = vtanh.pop %v2243
  %v2251 = vmul.f32 %v2249, %v2250
  %s2252 = scalar_lea.vmem %s4, 56
  %2253 = vst [vmem:[%s2252] sm:$0xff] %v2251
  %s2254 = scalar_lea.vmem %s48, 128
  %v2255 = vld [vmem:[%s2254] sm:$0xff]
  %v2256 = vld [vmem:[%s2254 + $0x8] sm:$0xff]
  %v2257 = vunpack.c.l.bf16 %v2255
  %v2258 = vunpack.c.h.bf16 %v2255
  %v2259 = vunpack.c.l.bf16 %v2256
  %v2260 = vunpack.c.h.bf16 %v2256
  %v2261 = vpack.c.bf16 %v2131, %v2131
  %2262 = vmatprep.subr.bf16.mxu0 %v519
  %2263 = vmatpush1.bf16.msra.mxu0 %v518
  %2264 = vmatprep.subr.bf16.mxu0 %v523
  %2265 = vmatpush1.bf16.msra.mxu0 %v522
  %2266 = vmatprep.subr.bf16.mxu0 %v527
  %2267 = vmatpush1.bf16.msra.mxu0 %v526
  %2268 = vmatprep.subr.bf16.mxu0 %v531
  %2269 = vmatpush1.bf16.msra.mxu0 %v530
  %2270 = vmatprep.subr.bf16.mxu0 %v535
  %2271 = vmatpush1.bf16.msra.mxu0 %v534
  %2272 = vmatprep.subr.bf16.mxu0 %v539
  %2273 = vmatpush1.bf16.msra.mxu0 %v538
  %2274 = vmatprep.subr.bf16.mxu0 %v543
  %2275 = vmatpush1.bf16.msra.mxu0 %v542
  %2276 = vmatprep.subr.bf16.mxu0 %v547
  %2277 = vmatpush1.bf16.msra.mxu0 %v546
  %2278 = vmatprep.subr.bf16.mxu0 0
  %2279 = vmatpush1.bf16.msra.mxu0 0
  %2280 = vmatprep.subr.bf16.mxu0 0
  %2281 = vmatpush1.bf16.msra.mxu0 0
  %2282 = vmatprep.subr.bf16.mxu0 0
  %2283 = vmatpush1.bf16.msra.mxu0 0
  %2284 = vmatprep.subr.bf16.mxu0 0
  %2285 = vmatpush1.bf16.msra.mxu0 0
  %2286 = vmatprep.subr.bf16.mxu0 0
  %2287 = vmatpush1.bf16.msra.mxu0 0
  %2288 = vmatprep.subr.bf16.mxu0 0
  %2289 = vmatpush1.bf16.msra.mxu0 0
  %2290 = vmatprep.subr.bf16.mxu0 0
  %2291 = vmatpush1.bf16.msra.mxu0 0
  %2292 = vmatprep.subr.bf16.mxu0 0
  %2293 = vmatpush1.bf16.msra.mxu0 0
  %2294 = vmatprep.mubr.bf16.mxu0 0
  %2295 = vmatmul.mubr.bf16.gmra.mrb[0].mxu0 %v2261
  %v2296 = vpop.f32.mrb[0].mxu0
  %v2297 = vadd.f32 0.0, %v2296
  %v2298 = vpop.f32.mrb[0].mxu0
  %v2299 = vadd.f32 0.0, %v2298
  %v2300 = vpop.f32.mrb[0].mxu0
  %v2301 = vpop.f32.mrb[0].mxu0
  %2302 = vdwg.mxu0
  %2303 = vmatprep.subr.bf16.mxu0 %v521
  %2304 = vmatpush1.bf16.msra.mxu0 %v520
  %2305 = vmatprep.subr.bf16.mxu0 %v525
  %2306 = vmatpush1.bf16.msra.mxu0 %v524
  %2307 = vmatprep.subr.bf16.mxu0 %v529
  %2308 = vmatpush1.bf16.msra.mxu0 %v528
  %2309 = vmatprep.subr.bf16.mxu0 %v533
  %2310 = vmatpush1.bf16.msra.mxu0 %v532
  %2311 = vmatprep.subr.bf16.mxu0 %v537
  %2312 = vmatpush1.bf16.msra.mxu0 %v536
  %2313 = vmatprep.subr.bf16.mxu0 %v541
  %2314 = vmatpush1.bf16.msra.mxu0 %v540
  %2315 = vmatprep.subr.bf16.mxu0 %v545
  %2316 = vmatpush1.bf16.msra.mxu0 %v544
  %2317 = vmatprep.subr.bf16.mxu0 %v549
  %2318 = vmatpush1.bf16.msra.mxu0 %v548
  %2319 = vmatprep.subr.bf16.mxu0 0
  %2320 = vmatpush1.bf16.msra.mxu0 0
  %2321 = vmatprep.subr.bf16.mxu0 0
  %2322 = vmatpush1.bf16.msra.mxu0 0
  %2323 = vmatprep.subr.bf16.mxu0 0
  %2324 = vmatpush1.bf16.msra.mxu0 0
  %2325 = vmatprep.subr.bf16.mxu0 0
  %2326 = vmatpush1.bf16.msra.mxu0 0
  %2327 = vmatprep.subr.bf16.mxu0 0
  %2328 = vmatpush1.bf16.msra.mxu0 0
  %2329 = vmatprep.subr.bf16.mxu0 0
  %2330 = vmatpush1.bf16.msra.mxu0 0
  %2331 = vmatprep.subr.bf16.mxu0 0
  %2332 = vmatpush1.bf16.msra.mxu0 0
  %2333 = vmatprep.subr.bf16.mxu0 0
  %2334 = vmatpush1.bf16.msra.mxu0 0
  %2335 = vmatprep.mubr.bf16.mxu0 0
  %2336 = vmatmul.mubr.bf16.gmra.mrb[0].mxu0 %v2261
  %v2337 = vpop.f32.mrb[0].mxu0
  %v2338 = vadd.f32 0.0, %v2337
  %v2339 = vpop.f32.mrb[0].mxu0
  %v2340 = vadd.f32 0.0, %v2339
  %v2341 = vpop.f32.mrb[0].mxu0
  %v2342 = vpop.f32.mrb[0].mxu0
  %2343 = vdwg.mxu0
  %v2344 = vadd.f32 %v2257, %v2297
  %v2345 = vadd.f32 %v2258, %v2299
  %v2346 = vadd.f32 %v2259, %v2338
  %v2347 = vadd.f32 %v2260, %v2340
  %v2348 = vxor.u32 %v2345, 2147483648
  %v2349 = vmul.f32 %v2348, 1.442695
  %v2350 = vpow.pop %v2349
  %v2351 = vadd.f32 %v2350, 1.0
  %v2352 = vrcp.pop %v2351
  %v2353 = vmul.f32 1.0, %v2352
  %v2354 = vmul.f32 %v2353, %v2123
  %v2355 = vxor.u32 %v2344, 2147483648
  %v2356 = vmul.f32 %v2355, 1.442695
  %v2357 = vpow.pop %v2356
  %v2358 = vadd.f32 %v2357, 1.0
  %v2359 = vrcp.pop %v2358
  %v2360 = vmul.f32 1.0, %v2359
  %v2361 = vtanh.pop %v2346
  %v2362 = vmul.f32 %v2360, %v2361
  %v2363 = vadd.f32 %v2354, %v2362
  %v2364 = vxor.u32 %v2347, 2147483648
  %v2365 = vmul.f32 %v2364, 1.442695
  %v2366 = vpow.pop %v2365
  %v2367 = vadd.f32 %v2366, 1.0
  %v2368 = vrcp.pop %v2367
  %v2369 = vmul.f32 1.0, %v2368
  %v2370 = vtanh.pop %v2363
  %v2371 = vmul.f32 %v2369, %v2370
  %s2372 = scalar_lea.vmem %s56, 64
  %2373 = vst [vmem:[%s2372] sm:$0xff] %v2371
  %s2374 = scalar_lea.vmem %s0, 128
  %v2375 = vld [vmem:[%s2374] sm:$0xff]
  %v2376 = vld [vmem:[%s2374 + $0x8] sm:$0xff]
  %v2377 = vunpack.c.l.bf16 %v2375
  %v2378 = vunpack.c.h.bf16 %v2375
  %v2379 = vunpack.c.l.bf16 %v2376
  %v2380 = vunpack.c.h.bf16 %v2376
  %v2381 = vpack.c.bf16 %v2251, %v2251
  %2382 = vmatprep.subr.bf16.mxu0 %v240
  %2383 = vmatpush1.bf16.msra.mxu0 %v239
  %2384 = vmatprep.subr.bf16.mxu0 %v244
  %2385 = vmatpush1.bf16.msra.mxu0 %v243
  %2386 = vmatprep.subr.bf16.mxu0 %v248
  %2387 = vmatpush1.bf16.msra.mxu0 %v247
  %2388 = vmatprep.subr.bf16.mxu0 %v252
  %2389 = vmatpush1.bf16.msra.mxu0 %v251
  %2390 = vmatprep.subr.bf16.mxu0 %v256
  %2391 = vmatpush1.bf16.msra.mxu0 %v255
  %2392 = vmatprep.subr.bf16.mxu0 %v260
  %2393 = vmatpush1.bf16.msra.mxu0 %v259
  %2394 = vmatprep.subr.bf16.mxu0 %v264
  %2395 = vmatpush1.bf16.msra.mxu0 %v263
  %2396 = vmatprep.subr.bf16.mxu0 %v268
  %2397 = vmatpush1.bf16.msra.mxu0 %v267
  %2398 = vmatprep.subr.bf16.mxu0 0
  %2399 = vmatpush1.bf16.msra.mxu0 0
  %2400 = vmatprep.subr.bf16.mxu0 0
  %2401 = vmatpush1.bf16.msra.mxu0 0
  %2402 = vmatprep.subr.bf16.mxu0 0
  %2403 = vmatpush1.bf16.msra.mxu0 0
  %2404 = vmatprep.subr.bf16.mxu0 0
  %2405 = vmatpush1.bf16.msra.mxu0 0
  %2406 = vmatprep.subr.bf16.mxu0 0
  %2407 = vmatpush1.bf16.msra.mxu0 0
  %2408 = vmatprep.subr.bf16.mxu0 0
  %2409 = vmatpush1.bf16.msra.mxu0 0
  %2410 = vmatprep.subr.bf16.mxu0 0
  %2411 = vmatpush1.bf16.msra.mxu0 0
  %2412 = vmatprep.subr.bf16.mxu0 0
  %2413 = vmatpush1.bf16.msra.mxu0 0
  %2414 = vmatprep.mubr.bf16.mxu0 0
  %2415 = vmatmul.mubr.bf16.gmra.mrb[0].mxu0 %v2381
  %v2416 = vpop.f32.mrb[0].mxu0
  %v2417 = vadd.f32 0.0, %v2416
  %v2418 = vpop.f32.mrb[0].mxu0
  %v2419 = vadd.f32 0.0, %v2418
  %v2420 = vpop.f32.mrb[0].mxu0
  %v2421 = vpop.f32.mrb[0].mxu0
  %2422 = vdwg.mxu0
  %2423 = vmatprep.subr.bf16.mxu0 %v242
  %2424 = vmatpush1.bf16.msra.mxu0 %v241
  %2425 = vmatprep.subr.bf16.mxu0 %v246
  %2426 = vmatpush1.bf16.msra.mxu0 %v245
  %2427 = vmatprep.subr.bf16.mxu0 %v250
  %2428 = vmatpush1.bf16.msra.mxu0 %v249
  %2429 = vmatprep.subr.bf16.mxu0 %v254
  %2430 = vmatpush1.bf16.msra.mxu0 %v253
  %2431 = vmatprep.subr.bf16.mxu0 %v258
  %2432 = vmatpush1.bf16.msra.mxu0 %v257
  %2433 = vmatprep.subr.bf16.mxu0 %v262
  %2434 = vmatpush1.bf16.msra.mxu0 %v261
  %2435 = vmatprep.subr.bf16.mxu0 %v266
  %2436 = vmatpush1.bf16.msra.mxu0 %v265
  %2437 = vmatprep.subr.bf16.mxu0 %v270
  %2438 = vmatpush1.bf16.msra.mxu0 %v269
  %2439 = vmatprep.subr.bf16.mxu0 0
  %2440 = vmatpush1.bf16.msra.mxu0 0
  %2441 = vmatprep.subr.bf16.mxu0 0
  %2442 = vmatpush1.bf16.msra.mxu0 0
  %2443 = vmatprep.subr.bf16.mxu0 0
  %2444 = vmatpush1.bf16.msra.mxu0 0
  %2445 = vmatprep.subr.bf16.mxu0 0
  %2446 = vmatpush1.bf16.msra.mxu0 0
  %2447 = vmatprep.subr.bf16.mxu0 0
  %2448 = vmatpush1.bf16.msra.mxu0 0
  %2449 = vmatprep.subr.bf16.mxu0 0
  %2450 = vmatpush1.bf16.msra.mxu0 0
  %2451 = vmatprep.subr.bf16.mxu0 0
  %2452 = vmatpush1.bf16.msra.mxu0 0
  %2453 = vmatprep.subr.bf16.mxu0 0
  %2454 = vmatpush1.bf16.msra.mxu0 0
  %2455 = vmatprep.mubr.bf16.mxu0 0
  %2456 = vmatmul.mubr.bf16.gmra.mrb[0].mxu0 %v2381
  %v2457 = vpop.f32.mrb[0].mxu0
  %v2458 = vadd.f32 0.0, %v2457
  %v2459 = vpop.f32.mrb[0].mxu0
  %v2460 = vadd.f32 0.0, %v2459
  %v2461 = vpop.f32.mrb[0].mxu0
  %v2462 = vpop.f32.mrb[0].mxu0
  %2463 = vdwg.mxu0
  %v2464 = vadd.f32 %v2377, %v2417
  %v2465 = vadd.f32 %v2378, %v2419
  %v2466 = vadd.f32 %v2379, %v2458
  %v2467 = vadd.f32 %v2380, %v2460
  %v2468 = vxor.u32 %v2465, 2147483648
  %v2469 = vmul.f32 %v2468, 1.442695
  %v2470 = vpow.pop %v2469
  %v2471 = vadd.f32 %v2470, 1.0
  %v2472 = vrcp.pop %v2471
  %v2473 = vmul.f32 1.0, %v2472
  %v2474 = vmul.f32 %v2473, %v2243
  %v2475 = vxor.u32 %v2464, 2147483648
  %v2476 = vmul.f32 %v2475, 1.442695
  %v2477 = vpow.pop %v2476
  %v2478 = vadd.f32 %v2477, 1.0
  %v2479 = vrcp.pop %v2478
  %v2480 = vmul.f32 1.0, %v2479
  %v2481 = vtanh.pop %v2466
  %v2482 = vmul.f32 %v2480, %v2481
  %v2483 = vadd.f32 %v2474, %v2482
  %v2484 = vxor.u32 %v2467, 2147483648
  %v2485 = vmul.f32 %v2484, 1.442695
  %v2486 = vpow.pop %v2485
  %v2487 = vadd.f32 %v2486, 1.0
  %v2488 = vrcp.pop %v2487
  %v2489 = vmul.f32 1.0, %v2488
  %v2490 = vtanh.pop %v2483
  %v2491 = vmul.f32 %v2489, %v2490
  %s2492 = scalar_lea.vmem %s4, 64
  %2493 = vst [vmem:[%s2492] sm:$0xff] %v2491
  %s2494 = scalar_lea.vmem %s48, 112
  %v2495 = vld [vmem:[%s2494] sm:$0xff]
  %v2496 = vld [vmem:[%s2494 + $0x8] sm:$0xff]
  %v2497 = vunpack.c.l.bf16 %v2495
  %v2498 = vunpack.c.h.bf16 %v2495
  %v2499 = vunpack.c.l.bf16 %v2496
  %v2500 = vunpack.c.h.bf16 %v2496
  %v2501 = vpack.c.bf16 %v2371, %v2371
  %2502 = vmatprep.subr.bf16.mxu0 %v519
  %2503 = vmatpush1.bf16.msra.mxu0 %v518
  %2504 = vmatprep.subr.bf16.mxu0 %v523
  %2505 = vmatpush1.bf16.msra.mxu0 %v522
  %2506 = vmatprep.subr.bf16.mxu0 %v527
  %2507 = vmatpush1.bf16.msra.mxu0 %v526
  %2508 = vmatprep.subr.bf16.mxu0 %v531
  %2509 = vmatpush1.bf16.msra.mxu0 %v530
  %2510 = vmatprep.subr.bf16.mxu0 %v535
  %2511 = vmatpush1.bf16.msra.mxu0 %v534
  %2512 = vmatprep.subr.bf16.mxu0 %v539
  %2513 = vmatpush1.bf16.msra.mxu0 %v538
  %2514 = vmatprep.subr.bf16.mxu0 %v543
  %2515 = vmatpush1.bf16.msra.mxu0 %v542
  %2516 = vmatprep.subr.bf16.mxu0 %v547
  %2517 = vmatpush1.bf16.msra.mxu0 %v546
  %2518 = vmatprep.subr.bf16.mxu0 0
  %2519 = vmatpush1.bf16.msra.mxu0 0
  %2520 = vmatprep.subr.bf16.mxu0 0
  %2521 = vmatpush1.bf16.msra.mxu0 0
  %2522 = vmatprep.subr.bf16.mxu0 0
  %2523 = vmatpush1.bf16.msra.mxu0 0
  %2524 = vmatprep.subr.bf16.mxu0 0
  %2525 = vmatpush1.bf16.msra.mxu0 0
  %2526 = vmatprep.subr.bf16.mxu0 0
  %2527 = vmatpush1.bf16.msra.mxu0 0
  %2528 = vmatprep.subr.bf16.mxu0 0
  %2529 = vmatpush1.bf16.msra.mxu0 0
  %2530 = vmatprep.subr.bf16.mxu0 0
  %2531 = vmatpush1.bf16.msra.mxu0 0
  %2532 = vmatprep.subr.bf16.mxu0 0
  %2533 = vmatpush1.bf16.msra.mxu0 0
  %2534 = vmatprep.mubr.bf16.mxu0 0
  %2535 = vmatmul.mubr.bf16.gmra.mrb[0].mxu0 %v2501
  %v2536 = vpop.f32.mrb[0].mxu0
  %v2537 = vadd.f32 0.0, %v2536
  %v2538 = vpop.f32.mrb[0].mxu0
  %v2539 = vadd.f32 0.0, %v2538
  %v2540 = vpop.f32.mrb[0].mxu0
  %v2541 = vpop.f32.mrb[0].mxu0
  %2542 = vdwg.mxu0
  %2543 = vmatprep.subr.bf16.mxu0 %v521
  %2544 = vmatpush1.bf16.msra.mxu0 %v520
  %2545 = vmatprep.subr.bf16.mxu0 %v525
  %2546 = vmatpush1.bf16.msra.mxu0 %v524
  %2547 = vmatprep.subr.bf16.mxu0 %v529
  %2548 = vmatpush1.bf16.msra.mxu0 %v528
  %2549 = vmatprep.subr.bf16.mxu0 %v533
  %2550 = vmatpush1.bf16.msra.mxu0 %v532
  %2551 = vmatprep.subr.bf16.mxu0 %v537
  %2552 = vmatpush1.bf16.msra.mxu0 %v536
  %2553 = vmatprep.subr.bf16.mxu0 %v541
  %2554 = vmatpush1.bf16.msra.mxu0 %v540
  %2555 = vmatprep.subr.bf16.mxu0 %v545
  %2556 = vmatpush1.bf16.msra.mxu0 %v544
  %2557 = vmatprep.subr.bf16.mxu0 %v549
  %2558 = vmatpush1.bf16.msra.mxu0 %v548
  %2559 = vmatprep.subr.bf16.mxu0 0
  %2560 = vmatpush1.bf16.msra.mxu0 0
  %2561 = vmatprep.subr.bf16.mxu0 0
  %2562 = vmatpush1.bf16.msra.mxu0 0
  %2563 = vmatprep.subr.bf16.mxu0 0
  %2564 = vmatpush1.bf16.msra.mxu0 0
  %2565 = vmatprep.subr.bf16.mxu0 0
  %2566 = vmatpush1.bf16.msra.mxu0 0
  %2567 = vmatprep.subr.bf16.mxu0 0
  %2568 = vmatpush1.bf16.msra.mxu0 0
  %2569 = vmatprep.subr.bf16.mxu0 0
  %2570 = vmatpush1.bf16.msra.mxu0 0
  %2571 = vmatprep.subr.bf16.mxu0 0
  %2572 = vmatpush1.bf16.msra.mxu0 0
  %2573 = vmatprep.subr.bf16.mxu0 0
  %2574 = vmatpush1.bf16.msra.mxu0 0
  %2575 = vmatprep.mubr.bf16.mxu0 0
  %2576 = vmatmul.mubr.bf16.gmra.mrb[0].mxu0 %v2501
  %v2577 = vpop.f32.mrb[0].mxu0
  %v2578 = vadd.f32 0.0, %v2577
  %v2579 = vpop.f32.mrb[0].mxu0
  %v2580 = vadd.f32 0.0, %v2579
  %v2581 = vpop.f32.mrb[0].mxu0
  %v2582 = vpop.f32.mrb[0].mxu0
  %2583 = vdwg.mxu0
  %v2584 = vadd.f32 %v2497, %v2537
  %v2585 = vadd.f32 %v2498, %v2539
  %v2586 = vadd.f32 %v2499, %v2578
  %v2587 = vadd.f32 %v2500, %v2580
  %v2588 = vxor.u32 %v2585, 2147483648
  %v2589 = vmul.f32 %v2588, 1.442695
  %v2590 = vpow.pop %v2589
  %v2591 = vadd.f32 %v2590, 1.0
  %v2592 = vrcp.pop %v2591
  %v2593 = vmul.f32 1.0, %v2592
  %v2594 = vmul.f32 %v2593, %v2363
  %v2595 = vxor.u32 %v2584, 2147483648
  %v2596 = vmul.f32 %v2595, 1.442695
  %v2597 = vpow.pop %v2596
  %v2598 = vadd.f32 %v2597, 1.0
  %v2599 = vrcp.pop %v2598
  %v2600 = vmul.f32 1.0, %v2599
  %v2601 = vtanh.pop %v2586
  %v2602 = vmul.f32 %v2600, %v2601
  %v2603 = vadd.f32 %v2594, %v2602
  %v2604 = vxor.u32 %v2587, 2147483648
  %v2605 = vmul.f32 %v2604, 1.442695
  %v2606 = vpow.pop %v2605
  %v2607 = vadd.f32 %v2606, 1.0
  %v2608 = vrcp.pop %v2607
  %v2609 = vmul.f32 1.0, %v2608
  %v2610 = vtanh.pop %v2603
  %v2611 = vmul.f32 %v2609, %v2610
  %s2612 = scalar_lea.vmem %s56, 56
  %2613 = vst [vmem:[%s2612] sm:$0xff] %v2611
  %s2614 = scalar_lea.vmem %s0, 144
  %v2615 = vld [vmem:[%s2614] sm:$0xff]
  %v2616 = vld [vmem:[%s2614 + $0x8] sm:$0xff]
  %v2617 = vunpack.c.l.bf16 %v2615
  %v2618 = vunpack.c.h.bf16 %v2615
  %v2619 = vunpack.c.l.bf16 %v2616
  %v2620 = vunpack.c.h.bf16 %v2616
  %v2621 = vpack.c.bf16 %v2491, %v2491
  %2622 = vmatprep.subr.bf16.mxu0 %v240
  %2623 = vmatpush1.bf16.msra.mxu0 %v239
  %2624 = vmatprep.subr.bf16.mxu0 %v244
  %2625 = vmatpush1.bf16.msra.mxu0 %v243
  %2626 = vmatprep.subr.bf16.mxu0 %v248
  %2627 = vmatpush1.bf16.msra.mxu0 %v247
  %2628 = vmatprep.subr.bf16.mxu0 %v252
  %2629 = vmatpush1.bf16.msra.mxu0 %v251
  %2630 = vmatprep.subr.bf16.mxu0 %v256
  %2631 = vmatpush1.bf16.msra.mxu0 %v255
  %2632 = vmatprep.subr.bf16.mxu0 %v260
  %2633 = vmatpush1.bf16.msra.mxu0 %v259
  %2634 = vmatprep.subr.bf16.mxu0 %v264
  %2635 = vmatpush1.bf16.msra.mxu0 %v263
  %2636 = vmatprep.subr.bf16.mxu0 %v268
  %2637 = vmatpush1.bf16.msra.mxu0 %v267
  %2638 = vmatprep.subr.bf16.mxu0 0
  %2639 = vmatpush1.bf16.msra.mxu0 0
  %2640 = vmatprep.subr.bf16.mxu0 0
  %2641 = vmatpush1.bf16.msra.mxu0 0
  %2642 = vmatprep.subr.bf16.mxu0 0
  %2643 = vmatpush1.bf16.msra.mxu0 0
  %2644 = vmatprep.subr.bf16.mxu0 0
  %2645 = vmatpush1.bf16.msra.mxu0 0
  %2646 = vmatprep.subr.bf16.mxu0 0
  %2647 = vmatpush1.bf16.msra.mxu0 0
  %2648 = vmatprep.subr.bf16.mxu0 0
  %2649 = vmatpush1.bf16.msra.mxu0 0
  %2650 = vmatprep.subr.bf16.mxu0 0
  %2651 = vmatpush1.bf16.msra.mxu0 0
  %2652 = vmatprep.subr.bf16.mxu0 0
  %2653 = vmatpush1.bf16.msra.mxu0 0
  %2654 = vmatprep.mubr.bf16.mxu0 0
  %2655 = vmatmul.mubr.bf16.gmra.mrb[0].mxu0 %v2621
  %v2656 = vpop.f32.mrb[0].mxu0
  %v2657 = vadd.f32 0.0, %v2656
  %v2658 = vpop.f32.mrb[0].mxu0
  %v2659 = vadd.f32 0.0, %v2658
  %v2660 = vpop.f32.mrb[0].mxu0
  %v2661 = vpop.f32.mrb[0].mxu0
  %2662 = vdwg.mxu0
  %2663 = vmatprep.subr.bf16.mxu0 %v242
  %2664 = vmatpush1.bf16.msra.mxu0 %v241
  %2665 = vmatprep.subr.bf16.mxu0 %v246
  %2666 = vmatpush1.bf16.msra.mxu0 %v245
  %2667 = vmatprep.subr.bf16.mxu0 %v250
  %2668 = vmatpush1.bf16.msra.mxu0 %v249
  %2669 = vmatprep.subr.bf16.mxu0 %v254
  %2670 = vmatpush1.bf16.msra.mxu0 %v253
  %2671 = vmatprep.subr.bf16.mxu0 %v258
  %2672 = vmatpush1.bf16.msra.mxu0 %v257
  %2673 = vmatprep.subr.bf16.mxu0 %v262
  %2674 = vmatpush1.bf16.msra.mxu0 %v261
  %2675 = vmatprep.subr.bf16.mxu0 %v266
  %2676 = vmatpush1.bf16.msra.mxu0 %v265
  %2677 = vmatprep.subr.bf16.mxu0 %v270
  %2678 = vmatpush1.bf16.msra.mxu0 %v269
  %2679 = vmatprep.subr.bf16.mxu0 0
  %2680 = vmatpush1.bf16.msra.mxu0 0
  %2681 = vmatprep.subr.bf16.mxu0 0
  %2682 = vmatpush1.bf16.msra.mxu0 0
  %2683 = vmatprep.subr.bf16.mxu0 0
  %2684 = vmatpush1.bf16.msra.mxu0 0
  %2685 = vmatprep.subr.bf16.mxu0 0
  %2686 = vmatpush1.bf16.msra.mxu0 0
  %2687 = vmatprep.subr.bf16.mxu0 0
  %2688 = vmatpush1.bf16.msra.mxu0 0
  %2689 = vmatprep.subr.bf16.mxu0 0
  %2690 = vmatpush1.bf16.msra.mxu0 0
  %2691 = vmatprep.subr.bf16.mxu0 0
  %2692 = vmatpush1.bf16.msra.mxu0 0
  %2693 = vmatprep.subr.bf16.mxu0 0
  %2694 = vmatpush1.bf16.msra.mxu0 0
  %2695 = vmatprep.mubr.bf16.mxu0 0
  %2696 = vmatmul.mubr.bf16.gmra.mrb[0].mxu0 %v2621
  %v2697 = vpop.f32.mrb[0].mxu0
  %v2698 = vadd.f32 0.0, %v2697
  %v2699 = vpop.f32.mrb[0].mxu0
  %v2700 = vadd.f32 0.0, %v2699
  %v2701 = vpop.f32.mrb[0].mxu0
  %v2702 = vpop.f32.mrb[0].mxu0
  %2703 = vdwg.mxu0
  %v2704 = vadd.f32 %v2617, %v2657
  %v2705 = vadd.f32 %v2618, %v2659
  %v2706 = vadd.f32 %v2619, %v2698
  %v2707 = vadd.f32 %v2620, %v2700
  %v2708 = vxor.u32 %v2705, 2147483648
  %v2709 = vmul.f32 %v2708, 1.442695
  %v2710 = vpow.pop %v2709
  %v2711 = vadd.f32 %v2710, 1.0
  %v2712 = vrcp.pop %v2711
  %v2713 = vmul.f32 1.0, %v2712
  %v2714 = vmul.f32 %v2713, %v2483
  %v2715 = vxor.u32 %v2704, 2147483648
  %v2716 = vmul.f32 %v2715, 1.442695
  %v2717 = vpow.pop %v2716
  %v2718 = vadd.f32 %v2717, 1.0
  %v2719 = vrcp.pop %v2718
  %v2720 = vmul.f32 1.0, %v2719
  %v2721 = vtanh.pop %v2706
  %v2722 = vmul.f32 %v2720, %v2721
  %v2723 = vadd.f32 %v2714, %v2722
  %v2724 = vxor.u32 %v2707, 2147483648
  %v2725 = vmul.f32 %v2724, 1.442695
  %v2726 = vpow.pop %v2725
  %v2727 = vadd.f32 %v2726, 1.0
  %v2728 = vrcp.pop %v2727
  %v2729 = vmul.f32 1.0, %v2728
  %v2730 = vtanh.pop %v2723
  %v2731 = vmul.f32 %v2729, %v2730
  %s2732 = scalar_lea.vmem %s4, 72
  %2733 = vst [vmem:[%s2732] sm:$0xff] %v2731
  %s2734 = scalar_lea.vmem %s48, 96
  %v2735 = vld [vmem:[%s2734] sm:$0xff]
  %v2736 = vld [vmem:[%s2734 + $0x8] sm:$0xff]
  %v2737 = vunpack.c.l.bf16 %v2735
  %v2738 = vunpack.c.h.bf16 %v2735
  %v2739 = vunpack.c.l.bf16 %v2736
  %v2740 = vunpack.c.h.bf16 %v2736
  %v2741 = vpack.c.bf16 %v2611, %v2611
  %2742 = vmatprep.subr.bf16.mxu0 %v519
  %2743 = vmatpush1.bf16.msra.mxu0 %v518
  %2744 = vmatprep.subr.bf16.mxu0 %v523
  %2745 = vmatpush1.bf16.msra.mxu0 %v522
  %2746 = vmatprep.subr.bf16.mxu0 %v527
  %2747 = vmatpush1.bf16.msra.mxu0 %v526
  %2748 = vmatprep.subr.bf16.mxu0 %v531
  %2749 = vmatpush1.bf16.msra.mxu0 %v530
  %2750 = vmatprep.subr.bf16.mxu0 %v535
  %2751 = vmatpush1.bf16.msra.mxu0 %v534
  %2752 = vmatprep.subr.bf16.mxu0 %v539
  %2753 = vmatpush1.bf16.msra.mxu0 %v538
  %2754 = vmatprep.subr.bf16.mxu0 %v543
  %2755 = vmatpush1.bf16.msra.mxu0 %v542
  %2756 = vmatprep.subr.bf16.mxu0 %v547
  %2757 = vmatpush1.bf16.msra.mxu0 %v546
  %2758 = vmatprep.subr.bf16.mxu0 0
  %2759 = vmatpush1.bf16.msra.mxu0 0
  %2760 = vmatprep.subr.bf16.mxu0 0
  %2761 = vmatpush1.bf16.msra.mxu0 0
  %2762 = vmatprep.subr.bf16.mxu0 0
  %2763 = vmatpush1.bf16.msra.mxu0 0
  %2764 = vmatprep.subr.bf16.mxu0 0
  %2765 = vmatpush1.bf16.msra.mxu0 0
  %2766 = vmatprep.subr.bf16.mxu0 0
  %2767 = vmatpush1.bf16.msra.mxu0 0
  %2768 = vmatprep.subr.bf16.mxu0 0
  %2769 = vmatpush1.bf16.msra.mxu0 0
  %2770 = vmatprep.subr.bf16.mxu0 0
  %2771 = vmatpush1.bf16.msra.mxu0 0
  %2772 = vmatprep.subr.bf16.mxu0 0
  %2773 = vmatpush1.bf16.msra.mxu0 0
  %2774 = vmatprep.mubr.bf16.mxu0 0
  %2775 = vmatmul.mubr.bf16.gmra.mrb[0].mxu0 %v2741
  %v2776 = vpop.f32.mrb[0].mxu0
  %v2777 = vadd.f32 0.0, %v2776
  %v2778 = vpop.f32.mrb[0].mxu0
  %v2779 = vadd.f32 0.0, %v2778
  %v2780 = vpop.f32.mrb[0].mxu0
  %v2781 = vpop.f32.mrb[0].mxu0
  %2782 = vdwg.mxu0
  %2783 = vmatprep.subr.bf16.mxu0 %v521
  %2784 = vmatpush1.bf16.msra.mxu0 %v520
  %2785 = vmatprep.subr.bf16.mxu0 %v525
  %2786 = vmatpush1.bf16.msra.mxu0 %v524
  %2787 = vmatprep.subr.bf16.mxu0 %v529
  %2788 = vmatpush1.bf16.msra.mxu0 %v528
  %2789 = vmatprep.subr.bf16.mxu0 %v533
  %2790 = vmatpush1.bf16.msra.mxu0 %v532
  %2791 = vmatprep.subr.bf16.mxu0 %v537
  %2792 = vmatpush1.bf16.msra.mxu0 %v536
  %2793 = vmatprep.subr.bf16.mxu0 %v541
  %2794 = vmatpush1.bf16.msra.mxu0 %v540
  %2795 = vmatprep.subr.bf16.mxu0 %v545
  %2796 = vmatpush1.bf16.msra.mxu0 %v544
  %2797 = vmatprep.subr.bf16.mxu0 %v549
  %2798 = vmatpush1.bf16.msra.mxu0 %v548
  %2799 = vmatprep.subr.bf16.mxu0 0
  %2800 = vmatpush1.bf16.msra.mxu0 0
  %2801 = vmatprep.subr.bf16.mxu0 0
  %2802 = vmatpush1.bf16.msra.mxu0 0
  %2803 = vmatprep.subr.bf16.mxu0 0
  %2804 = vmatpush1.bf16.msra.mxu0 0
  %2805 = vmatprep.subr.bf16.mxu0 0
  %2806 = vmatpush1.bf16.msra.mxu0 0
  %2807 = vmatprep.subr.bf16.mxu0 0
  %2808 = vmatpush1.bf16.msra.mxu0 0
  %2809 = vmatprep.subr.bf16.mxu0 0
  %2810 = vmatpush1.bf16.msra.mxu0 0
  %2811 = vmatprep.subr.bf16.mxu0 0
  %2812 = vmatpush1.bf16.msra.mxu0 0
  %2813 = vmatprep.subr.bf16.mxu0 0
  %2814 = vmatpush1.bf16.msra.mxu0 0
  %2815 = vmatprep.mubr.bf16.mxu0 0
  %2816 = vmatmul.mubr.bf16.gmra.mrb[0].mxu0 %v2741
  %v2817 = vpop.f32.mrb[0].mxu0
  %v2818 = vadd.f32 0.0, %v2817
  %v2819 = vpop.f32.mrb[0].mxu0
  %v2820 = vadd.f32 0.0, %v2819
  %v2821 = vpop.f32.mrb[0].mxu0
  %v2822 = vpop.f32.mrb[0].mxu0
  %2823 = vdwg.mxu0
  %v2824 = vadd.f32 %v2737, %v2777
  %v2825 = vadd.f32 %v2738, %v2779
  %v2826 = vadd.f32 %v2739, %v2818
  %v2827 = vadd.f32 %v2740, %v2820
  %v2828 = vxor.u32 %v2825, 2147483648
  %v2829 = vmul.f32 %v2828, 1.442695
  %v2830 = vpow.pop %v2829
  %v2831 = vadd.f32 %v2830, 1.0
  %v2832 = vrcp.pop %v2831
  %v2833 = vmul.f32 1.0, %v2832
  %v2834 = vmul.f32 %v2833, %v2603
  %v2835 = vxor.u32 %v2824, 2147483648
  %v2836 = vmul.f32 %v2835, 1.442695
  %v2837 = vpow.pop %v2836
  %v2838 = vadd.f32 %v2837, 1.0
  %v2839 = vrcp.pop %v2838
  %v2840 = vmul.f32 1.0, %v2839
  %v2841 = vtanh.pop %v2826
  %v2842 = vmul.f32 %v2840, %v2841
  %v2843 = vadd.f32 %v2834, %v2842
  %v2844 = vxor.u32 %v2827, 2147483648
  %v2845 = vmul.f32 %v2844, 1.442695
  %v2846 = vpow.pop %v2845
  %v2847 = vadd.f32 %v2846, 1.0
  %v2848 = vrcp.pop %v2847
  %v2849 = vmul.f32 1.0, %v2848
  %v2850 = vtanh.pop %v2843
  %v2851 = vmul.f32 %v2849, %v2850
  %s2852 = scalar_lea.vmem %s56, 48
  %2853 = vst [vmem:[%s2852] sm:$0xff] %v2851
  %s2854 = scalar_lea.vmem %s0, 160
  %v2855 = vld [vmem:[%s2854] sm:$0xff]
  %v2856 = vld [vmem:[%s2854 + $0x8] sm:$0xff]
  %v2857 = vunpack.c.l.bf16 %v2855
  %v2858 = vunpack.c.h.bf16 %v2855
  %v2859 = vunpack.c.l.bf16 %v2856
  %v2860 = vunpack.c.h.bf16 %v2856
  %v2861 = vpack.c.bf16 %v2731, %v2731
  %2862 = vmatprep.subr.bf16.mxu0 %v240
  %2863 = vmatpush1.bf16.msra.mxu0 %v239
  %2864 = vmatprep.subr.bf16.mxu0 %v244
  %2865 = vmatpush1.bf16.msra.mxu0 %v243
  %2866 = vmatprep.subr.bf16.mxu0 %v248
  %2867 = vmatpush1.bf16.msra.mxu0 %v247
  %2868 = vmatprep.subr.bf16.mxu0 %v252
  %2869 = vmatpush1.bf16.msra.mxu0 %v251
  %2870 = vmatprep.subr.bf16.mxu0 %v256
  %2871 = vmatpush1.bf16.msra.mxu0 %v255
  %2872 = vmatprep.subr.bf16.mxu0 %v260
  %2873 = vmatpush1.bf16.msra.mxu0 %v259
  %2874 = vmatprep.subr.bf16.mxu0 %v264
  %2875 = vmatpush1.bf16.msra.mxu0 %v263
  %2876 = vmatprep.subr.bf16.mxu0 %v268
  %2877 = vmatpush1.bf16.msra.mxu0 %v267
  %2878 = vmatprep.subr.bf16.mxu0 0
  %2879 = vmatpush1.bf16.msra.mxu0 0
  %2880 = vmatprep.subr.bf16.mxu0 0
  %2881 = vmatpush1.bf16.msra.mxu0 0
  %2882 = vmatprep.subr.bf16.mxu0 0
  %2883 = vmatpush1.bf16.msra.mxu0 0
  %2884 = vmatprep.subr.bf16.mxu0 0
  %2885 = vmatpush1.bf16.msra.mxu0 0
  %2886 = vmatprep.subr.bf16.mxu0 0
  %2887 = vmatpush1.bf16.msra.mxu0 0
  %2888 = vmatprep.subr.bf16.mxu0 0
  %2889 = vmatpush1.bf16.msra.mxu0 0
  %2890 = vmatprep.subr.bf16.mxu0 0
  %2891 = vmatpush1.bf16.msra.mxu0 0
  %2892 = vmatprep.subr.bf16.mxu0 0
  %2893 = vmatpush1.bf16.msra.mxu0 0
  %2894 = vmatprep.mubr.bf16.mxu0 0
  %2895 = vmatmul.mubr.bf16.gmra.mrb[0].mxu0 %v2861
  %v2896 = vpop.f32.mrb[0].mxu0
  %v2897 = vadd.f32 0.0, %v2896
  %v2898 = vpop.f32.mrb[0].mxu0
  %v2899 = vadd.f32 0.0, %v2898
  %v2900 = vpop.f32.mrb[0].mxu0
  %v2901 = vpop.f32.mrb[0].mxu0
  %2902 = vdwg.mxu0
  %2903 = vmatprep.subr.bf16.mxu0 %v242
  %2904 = vmatpush1.bf16.msra.mxu0 %v241
  %2905 = vmatprep.subr.bf16.mxu0 %v246
  %2906 = vmatpush1.bf16.msra.mxu0 %v245
  %2907 = vmatprep.subr.bf16.mxu0 %v250
  %2908 = vmatpush1.bf16.msra.mxu0 %v249
  %2909 = vmatprep.subr.bf16.mxu0 %v254
  %2910 = vmatpush1.bf16.msra.mxu0 %v253
  %2911 = vmatprep.subr.bf16.mxu0 %v258
  %2912 = vmatpush1.bf16.msra.mxu0 %v257
  %2913 = vmatprep.subr.bf16.mxu0 %v262
  %2914 = vmatpush1.bf16.msra.mxu0 %v261
  %2915 = vmatprep.subr.bf16.mxu0 %v266
  %2916 = vmatpush1.bf16.msra.mxu0 %v265
  %2917 = vmatprep.subr.bf16.mxu0 %v270
  %2918 = vmatpush1.bf16.msra.mxu0 %v269
  %2919 = vmatprep.subr.bf16.mxu0 0
  %2920 = vmatpush1.bf16.msra.mxu0 0
  %2921 = vmatprep.subr.bf16.mxu0 0
  %2922 = vmatpush1.bf16.msra.mxu0 0
  %2923 = vmatprep.subr.bf16.mxu0 0
  %2924 = vmatpush1.bf16.msra.mxu0 0
  %2925 = vmatprep.subr.bf16.mxu0 0
  %2926 = vmatpush1.bf16.msra.mxu0 0
  %2927 = vmatprep.subr.bf16.mxu0 0
  %2928 = vmatpush1.bf16.msra.mxu0 0
  %2929 = vmatprep.subr.bf16.mxu0 0
  %2930 = vmatpush1.bf16.msra.mxu0 0
  %2931 = vmatprep.subr.bf16.mxu0 0
  %2932 = vmatpush1.bf16.msra.mxu0 0
  %2933 = vmatprep.subr.bf16.mxu0 0
  %2934 = vmatpush1.bf16.msra.mxu0 0
  %2935 = vmatprep.mubr.bf16.mxu0 0
  %2936 = vmatmul.mubr.bf16.gmra.mrb[0].mxu0 %v2861
  %v2937 = vpop.f32.mrb[0].mxu0
  %v2938 = vadd.f32 0.0, %v2937
  %v2939 = vpop.f32.mrb[0].mxu0
  %v2940 = vadd.f32 0.0, %v2939
  %v2941 = vpop.f32.mrb[0].mxu0
  %v2942 = vpop.f32.mrb[0].mxu0
  %2943 = vdwg.mxu0
  %v2944 = vadd.f32 %v2857, %v2897
  %v2945 = vadd.f32 %v2858, %v2899
  %v2946 = vadd.f32 %v2859, %v2938
  %v2947 = vadd.f32 %v2860, %v2940
  %v2948 = vxor.u32 %v2945, 2147483648
  %v2949 = vmul.f32 %v2948, 1.442695
  %v2950 = vpow.pop %v2949
  %v2951 = vadd.f32 %v2950, 1.0
  %v2952 = vrcp.pop %v2951
  %v2953 = vmul.f32 1.0, %v2952
  %v2954 = vmul.f32 %v2953, %v2723
  %v2955 = vxor.u32 %v2944, 2147483648
  %v2956 = vmul.f32 %v2955, 1.442695
  %v2957 = vpow.pop %v2956
  %v2958 = vadd.f32 %v2957, 1.0
  %v2959 = vrcp.pop %v2958
  %v2960 = vmul.f32 1.0, %v2959
  %v2961 = vtanh.pop %v2946
  %v2962 = vmul.f32 %v2960, %v2961
  %v2963 = vadd.f32 %v2954, %v2962
  %v2964 = vxor.u32 %v2947, 2147483648
  %v2965 = vmul.f32 %v2964, 1.442695
  %v2966 = vpow.pop %v2965
  %v2967 = vadd.f32 %v2966, 1.0
  %v2968 = vrcp.pop %v2967
  %v2969 = vmul.f32 1.0, %v2968
  %v2970 = vtanh.pop %v2963
  %v2971 = vmul.f32 %v2969, %v2970
  %s2972 = scalar_lea.vmem %s4, 80
  %2973 = vst [vmem:[%s2972] sm:$0xff] %v2971
  %s2974 = scalar_lea.vmem %s48, 80
  %v2975 = vld [vmem:[%s2974] sm:$0xff]
  %v2976 = vld [vmem:[%s2974 + $0x8] sm:$0xff]
  %v2977 = vunpack.c.l.bf16 %v2975
  %v2978 = vunpack.c.h.bf16 %v2975
  %v2979 = vunpack.c.l.bf16 %v2976
  %v2980 = vunpack.c.h.bf16 %v2976
  %v2981 = vpack.c.bf16 %v2851, %v2851
  %2982 = vmatprep.subr.bf16.mxu0 %v519
  %2983 = vmatpush1.bf16.msra.mxu0 %v518
  %2984 = vmatprep.subr.bf16.mxu0 %v523
  %2985 = vmatpush1.bf16.msra.mxu0 %v522
  %2986 = vmatprep.subr.bf16.mxu0 %v527
  %2987 = vmatpush1.bf16.msra.mxu0 %v526
  %2988 = vmatprep.subr.bf16.mxu0 %v531
  %2989 = vmatpush1.bf16.msra.mxu0 %v530
  %2990 = vmatprep.subr.bf16.mxu0 %v535
  %2991 = vmatpush1.bf16.msra.mxu0 %v534
  %2992 = vmatprep.subr.bf16.mxu0 %v539
  %2993 = vmatpush1.bf16.msra.mxu0 %v538
  %2994 = vmatprep.subr.bf16.mxu0 %v543
  %2995 = vmatpush1.bf16.msra.mxu0 %v542
  %2996 = vmatprep.subr.bf16.mxu0 %v547
  %2997 = vmatpush1.bf16.msra.mxu0 %v546
  %2998 = vmatprep.subr.bf16.mxu0 0
  %2999 = vmatpush1.bf16.msra.mxu0 0
  %3000 = vmatprep.subr.bf16.mxu0 0
  %3001 = vmatpush1.bf16.msra.mxu0 0
  %3002 = vmatprep.subr.bf16.mxu0 0
  %3003 = vmatpush1.bf16.msra.mxu0 0
  %3004 = vmatprep.subr.bf16.mxu0 0
  %3005 = vmatpush1.bf16.msra.mxu0 0
  %3006 = vmatprep.subr.bf16.mxu0 0
  %3007 = vmatpush1.bf16.msra.mxu0 0
  %3008 = vmatprep.subr.bf16.mxu0 0
  %3009 = vmatpush1.bf16.msra.mxu0 0
  %3010 = vmatprep.subr.bf16.mxu0 0
  %3011 = vmatpush1.bf16.msra.mxu0 0
  %3012 = vmatprep.subr.bf16.mxu0 0
  %3013 = vmatpush1.bf16.msra.mxu0 0
  %3014 = vmatprep.mubr.bf16.mxu0 0
  %3015 = vmatmul.mubr.bf16.gmra.mrb[0].mxu0 %v2981
  %v3016 = vpop.f32.mrb[0].mxu0
  %v3017 = vadd.f32 0.0, %v3016
  %v3018 = vpop.f32.mrb[0].mxu0
  %v3019 = vadd.f32 0.0, %v3018
  %v3020 = vpop.f32.mrb[0].mxu0
  %v3021 = vpop.f32.mrb[0].mxu0
  %3022 = vdwg.mxu0
  %3023 = vmatprep.subr.bf16.mxu0 %v521
  %3024 = vmatpush1.bf16.msra.mxu0 %v520
  %3025 = vmatprep.subr.bf16.mxu0 %v525
  %3026 = vmatpush1.bf16.msra.mxu0 %v524
  %3027 = vmatprep.subr.bf16.mxu0 %v529
  %3028 = vmatpush1.bf16.msra.mxu0 %v528
  %3029 = vmatprep.subr.bf16.mxu0 %v533
  %3030 = vmatpush1.bf16.msra.mxu0 %v532
  %3031 = vmatprep.subr.bf16.mxu0 %v537
  %3032 = vmatpush1.bf16.msra.mxu0 %v536
  %3033 = vmatprep.subr.bf16.mxu0 %v541
  %3034 = vmatpush1.bf16.msra.mxu0 %v540
  %3035 = vmatprep.subr.bf16.mxu0 %v545
  %3036 = vmatpush1.bf16.msra.mxu0 %v544
  %3037 = vmatprep.subr.bf16.mxu0 %v549
  %3038 = vmatpush1.bf16.msra.mxu0 %v548
  %3039 = vmatprep.subr.bf16.mxu0 0
  %3040 = vmatpush1.bf16.msra.mxu0 0
  %3041 = vmatprep.subr.bf16.mxu0 0
  %3042 = vmatpush1.bf16.msra.mxu0 0
  %3043 = vmatprep.subr.bf16.mxu0 0
  %3044 = vmatpush1.bf16.msra.mxu0 0
  %3045 = vmatprep.subr.bf16.mxu0 0
  %3046 = vmatpush1.bf16.msra.mxu0 0
  %3047 = vmatprep.subr.bf16.mxu0 0
  %3048 = vmatpush1.bf16.msra.mxu0 0
  %3049 = vmatprep.subr.bf16.mxu0 0
  %3050 = vmatpush1.bf16.msra.mxu0 0
  %3051 = vmatprep.subr.bf16.mxu0 0
  %3052 = vmatpush1.bf16.msra.mxu0 0
  %3053 = vmatprep.subr.bf16.mxu0 0
  %3054 = vmatpush1.bf16.msra.mxu0 0
  %3055 = vmatprep.mubr.bf16.mxu0 0
  %3056 = vmatmul.mubr.bf16.gmra.mrb[0].mxu0 %v2981
  %v3057 = vpop.f32.mrb[0].mxu0
  %v3058 = vadd.f32 0.0, %v3057
  %v3059 = vpop.f32.mrb[0].mxu0
  %v3060 = vadd.f32 0.0, %v3059
  %v3061 = vpop.f32.mrb[0].mxu0
  %v3062 = vpop.f32.mrb[0].mxu0
  %3063 = vdwg.mxu0
  %v3064 = vadd.f32 %v2977, %v3017
  %v3065 = vadd.f32 %v2978, %v3019
  %v3066 = vadd.f32 %v2979, %v3058
  %v3067 = vadd.f32 %v2980, %v3060
  %v3068 = vxor.u32 %v3065, 2147483648
  %v3069 = vmul.f32 %v3068, 1.442695
  %v3070 = vpow.pop %v3069
  %v3071 = vadd.f32 %v3070, 1.0
  %v3072 = vrcp.pop %v3071
  %v3073 = vmul.f32 1.0, %v3072
  %v3074 = vmul.f32 %v3073, %v2843
  %v3075 = vxor.u32 %v3064, 2147483648
  %v3076 = vmul.f32 %v3075, 1.442695
  %v3077 = vpow.pop %v3076
  %v3078 = vadd.f32 %v3077, 1.0
  %v3079 = vrcp.pop %v3078
  %v3080 = vmul.f32 1.0, %v3079
  %v3081 = vtanh.pop %v3066
  %v3082 = vmul.f32 %v3080, %v3081
  %v3083 = vadd.f32 %v3074, %v3082
  %v3084 = vxor.u32 %v3067, 2147483648
  %v3085 = vmul.f32 %v3084, 1.442695
  %v3086 = vpow.pop %v3085
  %v3087 = vadd.f32 %v3086, 1.0
  %v3088 = vrcp.pop %v3087
  %v3089 = vmul.f32 1.0, %v3088
  %v3090 = vtanh.pop %v3083
  %v3091 = vmul.f32 %v3089, %v3090
  %s3092 = scalar_lea.vmem %s56, 40
  %3093 = vst [vmem:[%s3092] sm:$0xff] %v3091
  %s3094 = scalar_lea.vmem %s0, 176
  %v3095 = vld [vmem:[%s3094] sm:$0xff]
  %v3096 = vld [vmem:[%s3094 + $0x8] sm:$0xff]
  %v3097 = vunpack.c.l.bf16 %v3095
  %v3098 = vunpack.c.h.bf16 %v3095
  %v3099 = vunpack.c.l.bf16 %v3096
  %v3100 = vunpack.c.h.bf16 %v3096
  %v3101 = vpack.c.bf16 %v2971, %v2971
  %3102 = vmatprep.subr.bf16.mxu0 %v240
  %3103 = vmatpush1.bf16.msra.mxu0 %v239
  %3104 = vmatprep.subr.bf16.mxu0 %v244
  %3105 = vmatpush1.bf16.msra.mxu0 %v243
  %3106 = vmatprep.subr.bf16.mxu0 %v248
  %3107 = vmatpush1.bf16.msra.mxu0 %v247
  %3108 = vmatprep.subr.bf16.mxu0 %v252
  %3109 = vmatpush1.bf16.msra.mxu0 %v251
  %3110 = vmatprep.subr.bf16.mxu0 %v256
  %3111 = vmatpush1.bf16.msra.mxu0 %v255
  %3112 = vmatprep.subr.bf16.mxu0 %v260
  %3113 = vmatpush1.bf16.msra.mxu0 %v259
  %3114 = vmatprep.subr.bf16.mxu0 %v264
  %3115 = vmatpush1.bf16.msra.mxu0 %v263
  %3116 = vmatprep.subr.bf16.mxu0 %v268
  %3117 = vmatpush1.bf16.msra.mxu0 %v267
  %3118 = vmatprep.subr.bf16.mxu0 0
  %3119 = vmatpush1.bf16.msra.mxu0 0
  %3120 = vmatprep.subr.bf16.mxu0 0
  %3121 = vmatpush1.bf16.msra.mxu0 0
  %3122 = vmatprep.subr.bf16.mxu0 0
  %3123 = vmatpush1.bf16.msra.mxu0 0
  %3124 = vmatprep.subr.bf16.mxu0 0
  %3125 = vmatpush1.bf16.msra.mxu0 0
  %3126 = vmatprep.subr.bf16.mxu0 0
  %3127 = vmatpush1.bf16.msra.mxu0 0
  %3128 = vmatprep.subr.bf16.mxu0 0
  %3129 = vmatpush1.bf16.msra.mxu0 0
  %3130 = vmatprep.subr.bf16.mxu0 0
  %3131 = vmatpush1.bf16.msra.mxu0 0
  %3132 = vmatprep.subr.bf16.mxu0 0
  %3133 = vmatpush1.bf16.msra.mxu0 0
  %3134 = vmatprep.mubr.bf16.mxu0 0
  %3135 = vmatmul.mubr.bf16.gmra.mrb[0].mxu0 %v3101
  %v3136 = vpop.f32.mrb[0].mxu0
  %v3137 = vadd.f32 0.0, %v3136
  %v3138 = vpop.f32.mrb[0].mxu0
  %v3139 = vadd.f32 0.0, %v3138
  %v3140 = vpop.f32.mrb[0].mxu0
  %v3141 = vpop.f32.mrb[0].mxu0
  %3142 = vdwg.mxu0
  %3143 = vmatprep.subr.bf16.mxu0 %v242
  %3144 = vmatpush1.bf16.msra.mxu0 %v241
  %3145 = vmatprep.subr.bf16.mxu0 %v246
  %3146 = vmatpush1.bf16.msra.mxu0 %v245
  %3147 = vmatprep.subr.bf16.mxu0 %v250
  %3148 = vmatpush1.bf16.msra.mxu0 %v249
  %3149 = vmatprep.subr.bf16.mxu0 %v254
  %3150 = vmatpush1.bf16.msra.mxu0 %v253
  %3151 = vmatprep.subr.bf16.mxu0 %v258
  %3152 = vmatpush1.bf16.msra.mxu0 %v257
  %3153 = vmatprep.subr.bf16.mxu0 %v262
  %3154 = vmatpush1.bf16.msra.mxu0 %v261
  %3155 = vmatprep.subr.bf16.mxu0 %v266
  %3156 = vmatpush1.bf16.msra.mxu0 %v265
  %3157 = vmatprep.subr.bf16.mxu0 %v270
  %3158 = vmatpush1.bf16.msra.mxu0 %v269
  %3159 = vmatprep.subr.bf16.mxu0 0
  %3160 = vmatpush1.bf16.msra.mxu0 0
  %3161 = vmatprep.subr.bf16.mxu0 0
  %3162 = vmatpush1.bf16.msra.mxu0 0
  %3163 = vmatprep.subr.bf16.mxu0 0
  %3164 = vmatpush1.bf16.msra.mxu0 0
  %3165 = vmatprep.subr.bf16.mxu0 0
  %3166 = vmatpush1.bf16.msra.mxu0 0
  %3167 = vmatprep.subr.bf16.mxu0 0
  %3168 = vmatpush1.bf16.msra.mxu0 0
  %3169 = vmatprep.subr.bf16.mxu0 0
  %3170 = vmatpush1.bf16.msra.mxu0 0
  %3171 = vmatprep.subr.bf16.mxu0 0
  %3172 = vmatpush1.bf16.msra.mxu0 0
  %3173 = vmatprep.subr.bf16.mxu0 0
  %3174 = vmatpush1.bf16.msra.mxu0 0
  %3175 = vmatprep.mubr.bf16.mxu0 0
  %3176 = vmatmul.mubr.bf16.gmra.mrb[0].mxu0 %v3101
  %v3177 = vpop.f32.mrb[0].mxu0
  %v3178 = vadd.f32 0.0, %v3177
  %v3179 = vpop.f32.mrb[0].mxu0
  %v3180 = vadd.f32 0.0, %v3179
  %v3181 = vpop.f32.mrb[0].mxu0
  %v3182 = vpop.f32.mrb[0].mxu0
  %3183 = vdwg.mxu0
  %v3184 = vadd.f32 %v3097, %v3137
  %v3185 = vadd.f32 %v3098, %v3139
  %v3186 = vadd.f32 %v3099, %v3178
  %v3187 = vadd.f32 %v3100, %v3180
  %v3188 = vxor.u32 %v3185, 2147483648
  %v3189 = vmul.f32 %v3188, 1.442695
  %v3190 = vpow.pop %v3189
  %v3191 = vadd.f32 %v3190, 1.0
  %v3192 = vrcp.pop %v3191
  %v3193 = vmul.f32 1.0, %v3192
  %v3194 = vmul.f32 %v3193, %v2963
  %v3195 = vxor.u32 %v3184, 2147483648
  %v3196 = vmul.f32 %v3195, 1.442695
  %v3197 = vpow.pop %v3196
  %v3198 = vadd.f32 %v3197, 1.0
  %v3199 = vrcp.pop %v3198
  %v3200 = vmul.f32 1.0, %v3199
  %v3201 = vtanh.pop %v3186
  %v3202 = vmul.f32 %v3200, %v3201
  %v3203 = vadd.f32 %v3194, %v3202
  %v3204 = vxor.u32 %v3187, 2147483648
  %v3205 = vmul.f32 %v3204, 1.442695
  %v3206 = vpow.pop %v3205
  %v3207 = vadd.f32 %v3206, 1.0
  %v3208 = vrcp.pop %v3207
  %v3209 = vmul.f32 1.0, %v3208
  %v3210 = vtanh.pop %v3203
  %v3211 = vmul.f32 %v3209, %v3210
  %s3212 = scalar_lea.vmem %s4, 88
  %3213 = vst [vmem:[%s3212] sm:$0xff] %v3211
  %s3214 = scalar_lea.vmem %s48, 64
  %v3215 = vld [vmem:[%s3214] sm:$0xff]
  %v3216 = vld [vmem:[%s3214 + $0x8] sm:$0xff]
  %v3217 = vunpack.c.l.bf16 %v3215
  %v3218 = vunpack.c.h.bf16 %v3215
  %v3219 = vunpack.c.l.bf16 %v3216
  %v3220 = vunpack.c.h.bf16 %v3216
  %v3221 = vpack.c.bf16 %v3091, %v3091
  %3222 = vmatprep.subr.bf16.mxu0 %v519
  %3223 = vmatpush1.bf16.msra.mxu0 %v518
  %3224 = vmatprep.subr.bf16.mxu0 %v523
  %3225 = vmatpush1.bf16.msra.mxu0 %v522
  %3226 = vmatprep.subr.bf16.mxu0 %v527
  %3227 = vmatpush1.bf16.msra.mxu0 %v526
  %3228 = vmatprep.subr.bf16.mxu0 %v531
  %3229 = vmatpush1.bf16.msra.mxu0 %v530
  %3230 = vmatprep.subr.bf16.mxu0 %v535
  %3231 = vmatpush1.bf16.msra.mxu0 %v534
  %3232 = vmatprep.subr.bf16.mxu0 %v539
  %3233 = vmatpush1.bf16.msra.mxu0 %v538
  %3234 = vmatprep.subr.bf16.mxu0 %v543
  %3235 = vmatpush1.bf16.msra.mxu0 %v542
  %3236 = vmatprep.subr.bf16.mxu0 %v547
  %3237 = vmatpush1.bf16.msra.mxu0 %v546
  %3238 = vmatprep.subr.bf16.mxu0 0
  %3239 = vmatpush1.bf16.msra.mxu0 0
  %3240 = vmatprep.subr.bf16.mxu0 0
  %3241 = vmatpush1.bf16.msra.mxu0 0
  %3242 = vmatprep.subr.bf16.mxu0 0
  %3243 = vmatpush1.bf16.msra.mxu0 0
  %3244 = vmatprep.subr.bf16.mxu0 0
  %3245 = vmatpush1.bf16.msra.mxu0 0
  %3246 = vmatprep.subr.bf16.mxu0 0
  %3247 = vmatpush1.bf16.msra.mxu0 0
  %3248 = vmatprep.subr.bf16.mxu0 0
  %3249 = vmatpush1.bf16.msra.mxu0 0
  %3250 = vmatprep.subr.bf16.mxu0 0
  %3251 = vmatpush1.bf16.msra.mxu0 0
  %3252 = vmatprep.subr.bf16.mxu0 0
  %3253 = vmatpush1.bf16.msra.mxu0 0
  %3254 = vmatprep.mubr.bf16.mxu0 0
  %3255 = vmatmul.mubr.bf16.gmra.mrb[0].mxu0 %v3221
  %v3256 = vpop.f32.mrb[0].mxu0
  %v3257 = vadd.f32 0.0, %v3256
  %v3258 = vpop.f32.mrb[0].mxu0
  %v3259 = vadd.f32 0.0, %v3258
  %v3260 = vpop.f32.mrb[0].mxu0
  %v3261 = vpop.f32.mrb[0].mxu0
  %3262 = vdwg.mxu0
  %3263 = vmatprep.subr.bf16.mxu0 %v521
  %3264 = vmatpush1.bf16.msra.mxu0 %v520
  %3265 = vmatprep.subr.bf16.mxu0 %v525
  %3266 = vmatpush1.bf16.msra.mxu0 %v524
  %3267 = vmatprep.subr.bf16.mxu0 %v529
  %3268 = vmatpush1.bf16.msra.mxu0 %v528
  %3269 = vmatprep.subr.bf16.mxu0 %v533
  %3270 = vmatpush1.bf16.msra.mxu0 %v532
  %3271 = vmatprep.subr.bf16.mxu0 %v537
  %3272 = vmatpush1.bf16.msra.mxu0 %v536
  %3273 = vmatprep.subr.bf16.mxu0 %v541
  %3274 = vmatpush1.bf16.msra.mxu0 %v540
  %3275 = vmatprep.subr.bf16.mxu0 %v545
  %3276 = vmatpush1.bf16.msra.mxu0 %v544
  %3277 = vmatprep.subr.bf16.mxu0 %v549
  %3278 = vmatpush1.bf16.msra.mxu0 %v548
  %3279 = vmatprep.subr.bf16.mxu0 0
  %3280 = vmatpush1.bf16.msra.mxu0 0
  %3281 = vmatprep.subr.bf16.mxu0 0
  %3282 = vmatpush1.bf16.msra.mxu0 0
  %3283 = vmatprep.subr.bf16.mxu0 0
  %3284 = vmatpush1.bf16.msra.mxu0 0
  %3285 = vmatprep.subr.bf16.mxu0 0
  %3286 = vmatpush1.bf16.msra.mxu0 0
  %3287 = vmatprep.subr.bf16.mxu0 0
  %3288 = vmatpush1.bf16.msra.mxu0 0
  %3289 = vmatprep.subr.bf16.mxu0 0
  %3290 = vmatpush1.bf16.msra.mxu0 0
  %3291 = vmatprep.subr.bf16.mxu0 0
  %3292 = vmatpush1.bf16.msra.mxu0 0
  %3293 = vmatprep.subr.bf16.mxu0 0
  %3294 = vmatpush1.bf16.msra.mxu0 0
  %3295 = vmatprep.mubr.bf16.mxu0 0
  %3296 = vmatmul.mubr.bf16.gmra.mrb[0].mxu0 %v3221
  %v3297 = vpop.f32.mrb[0].mxu0
  %v3298 = vadd.f32 0.0, %v3297
  %v3299 = vpop.f32.mrb[0].mxu0
  %v3300 = vadd.f32 0.0, %v3299
  %v3301 = vpop.f32.mrb[0].mxu0
  %v3302 = vpop.f32.mrb[0].mxu0
  %3303 = vdwg.mxu0
  %v3304 = vadd.f32 %v3217, %v3257
  %v3305 = vadd.f32 %v3218, %v3259
  %v3306 = vadd.f32 %v3219, %v3298
  %v3307 = vadd.f32 %v3220, %v3300
  %v3308 = vxor.u32 %v3305, 2147483648
  %v3309 = vmul.f32 %v3308, 1.442695
  %v3310 = vpow.pop %v3309
  %v3311 = vadd.f32 %v3310, 1.0
  %v3312 = vrcp.pop %v3311
  %v3313 = vmul.f32 1.0, %v3312
  %v3314 = vmul.f32 %v3313, %v3083
  %v3315 = vxor.u32 %v3304, 2147483648
  %v3316 = vmul.f32 %v3315, 1.442695
  %v3317 = vpow.pop %v3316
  %v3318 = vadd.f32 %v3317, 1.0
  %v3319 = vrcp.pop %v3318
  %v3320 = vmul.f32 1.0, %v3319
  %v3321 = vtanh.pop %v3306
  %v3322 = vmul.f32 %v3320, %v3321
  %v3323 = vadd.f32 %v3314, %v3322
  %v3324 = vxor.u32 %v3307, 2147483648
  %v3325 = vmul.f32 %v3324, 1.442695
  %v3326 = vpow.pop %v3325
  %v3327 = vadd.f32 %v3326, 1.0
  %v3328 = vrcp.pop %v3327
  %v3329 = vmul.f32 1.0, %v3328
  %v3330 = vtanh.pop %v3323
  %v3331 = vmul.f32 %v3329, %v3330
  %s3332 = scalar_lea.vmem %s56, 32
  %3333 = vst [vmem:[%s3332] sm:$0xff] %v3331
  %s3334 = scalar_lea.vmem %s0, 192
  %v3335 = vld [vmem:[%s3334] sm:$0xff]
  %v3336 = vld [vmem:[%s3334 + $0x8] sm:$0xff]
  %v3337 = vunpack.c.l.bf16 %v3335
  %v3338 = vunpack.c.h.bf16 %v3335
  %v3339 = vunpack.c.l.bf16 %v3336
  %v3340 = vunpack.c.h.bf16 %v3336
  %v3341 = vpack.c.bf16 %v3211, %v3211
  %3342 = vmatprep.subr.bf16.mxu0 %v240
  %3343 = vmatpush1.bf16.msra.mxu0 %v239
  %3344 = vmatprep.subr.bf16.mxu0 %v244
  %3345 = vmatpush1.bf16.msra.mxu0 %v243
  %3346 = vmatprep.subr.bf16.mxu0 %v248
  %3347 = vmatpush1.bf16.msra.mxu0 %v247
  %3348 = vmatprep.subr.bf16.mxu0 %v252
  %3349 = vmatpush1.bf16.msra.mxu0 %v251
  %3350 = vmatprep.subr.bf16.mxu0 %v256
  %3351 = vmatpush1.bf16.msra.mxu0 %v255
  %3352 = vmatprep.subr.bf16.mxu0 %v260
  %3353 = vmatpush1.bf16.msra.mxu0 %v259
  %3354 = vmatprep.subr.bf16.mxu0 %v264
  %3355 = vmatpush1.bf16.msra.mxu0 %v263
  %3356 = vmatprep.subr.bf16.mxu0 %v268
  %3357 = vmatpush1.bf16.msra.mxu0 %v267
  %3358 = vmatprep.subr.bf16.mxu0 0
  %3359 = vmatpush1.bf16.msra.mxu0 0
  %3360 = vmatprep.subr.bf16.mxu0 0
  %3361 = vmatpush1.bf16.msra.mxu0 0
  %3362 = vmatprep.subr.bf16.mxu0 0
  %3363 = vmatpush1.bf16.msra.mxu0 0
  %3364 = vmatprep.subr.bf16.mxu0 0
  %3365 = vmatpush1.bf16.msra.mxu0 0
  %3366 = vmatprep.subr.bf16.mxu0 0
  %3367 = vmatpush1.bf16.msra.mxu0 0
  %3368 = vmatprep.subr.bf16.mxu0 0
  %3369 = vmatpush1.bf16.msra.mxu0 0
  %3370 = vmatprep.subr.bf16.mxu0 0
  %3371 = vmatpush1.bf16.msra.mxu0 0
  %3372 = vmatprep.subr.bf16.mxu0 0
  %3373 = vmatpush1.bf16.msra.mxu0 0
  %3374 = vmatprep.mubr.bf16.mxu0 0
  %3375 = vmatmul.mubr.bf16.gmra.mrb[0].mxu0 %v3341
  %v3376 = vpop.f32.mrb[0].mxu0
  %v3377 = vadd.f32 0.0, %v3376
  %v3378 = vpop.f32.mrb[0].mxu0
  %v3379 = vadd.f32 0.0, %v3378
  %v3380 = vpop.f32.mrb[0].mxu0
  %v3381 = vpop.f32.mrb[0].mxu0
  %3382 = vdwg.mxu0
  %3383 = vmatprep.subr.bf16.mxu0 %v242
  %3384 = vmatpush1.bf16.msra.mxu0 %v241
  %3385 = vmatprep.subr.bf16.mxu0 %v246
  %3386 = vmatpush1.bf16.msra.mxu0 %v245
  %3387 = vmatprep.subr.bf16.mxu0 %v250
  %3388 = vmatpush1.bf16.msra.mxu0 %v249
  %3389 = vmatprep.subr.bf16.mxu0 %v254
  %3390 = vmatpush1.bf16.msra.mxu0 %v253
  %3391 = vmatprep.subr.bf16.mxu0 %v258
  %3392 = vmatpush1.bf16.msra.mxu0 %v257
  %3393 = vmatprep.subr.bf16.mxu0 %v262
  %3394 = vmatpush1.bf16.msra.mxu0 %v261
  %3395 = vmatprep.subr.bf16.mxu0 %v266
  %3396 = vmatpush1.bf16.msra.mxu0 %v265
  %3397 = vmatprep.subr.bf16.mxu0 %v270
  %3398 = vmatpush1.bf16.msra.mxu0 %v269
  %3399 = vmatprep.subr.bf16.mxu0 0
  %3400 = vmatpush1.bf16.msra.mxu0 0
  %3401 = vmatprep.subr.bf16.mxu0 0
  %3402 = vmatpush1.bf16.msra.mxu0 0
  %3403 = vmatprep.subr.bf16.mxu0 0
  %3404 = vmatpush1.bf16.msra.mxu0 0
  %3405 = vmatprep.subr.bf16.mxu0 0
  %3406 = vmatpush1.bf16.msra.mxu0 0
  %3407 = vmatprep.subr.bf16.mxu0 0
  %3408 = vmatpush1.bf16.msra.mxu0 0
  %3409 = vmatprep.subr.bf16.mxu0 0
  %3410 = vmatpush1.bf16.msra.mxu0 0
  %3411 = vmatprep.subr.bf16.mxu0 0
  %3412 = vmatpush1.bf16.msra.mxu0 0
  %3413 = vmatprep.subr.bf16.mxu0 0
  %3414 = vmatpush1.bf16.msra.mxu0 0
  %3415 = vmatprep.mubr.bf16.mxu0 0
  %3416 = vmatmul.mubr.bf16.gmra.mrb[0].mxu0 %v3341
  %v3417 = vpop.f32.mrb[0].mxu0
  %v3418 = vadd.f32 0.0, %v3417
  %v3419 = vpop.f32.mrb[0].mxu0
  %v3420 = vadd.f32 0.0, %v3419
  %v3421 = vpop.f32.mrb[0].mxu0
  %v3422 = vpop.f32.mrb[0].mxu0
  %3423 = vdwg.mxu0
  %v3424 = vadd.f32 %v3337, %v3377
  %v3425 = vadd.f32 %v3338, %v3379
  %v3426 = vadd.f32 %v3339, %v3418
  %v3427 = vadd.f32 %v3340, %v3420
  %v3428 = vxor.u32 %v3425, 2147483648
  %v3429 = vmul.f32 %v3428, 1.442695
  %v3430 = vpow.pop %v3429
  %v3431 = vadd.f32 %v3430, 1.0
  %v3432 = vrcp.pop %v3431
  %v3433 = vmul.f32 1.0, %v3432
  %v3434 = vmul.f32 %v3433, %v3203
  %v3435 = vxor.u32 %v3424, 2147483648
  %v3436 = vmul.f32 %v3435, 1.442695
  %v3437 = vpow.pop %v3436
  %v3438 = vadd.f32 %v3437, 1.0
  %v3439 = vrcp.pop %v3438
  %v3440 = vmul.f32 1.0, %v3439
  %v3441 = vtanh.pop %v3426
  %v3442 = vmul.f32 %v3440, %v3441
  %v3443 = vadd.f32 %v3434, %v3442
  %v3444 = vxor.u32 %v3427, 2147483648
  %v3445 = vmul.f32 %v3444, 1.442695
  %v3446 = vpow.pop %v3445
  %v3447 = vadd.f32 %v3446, 1.0
  %v3448 = vrcp.pop %v3447
  %v3449 = vmul.f32 1.0, %v3448
  %v3450 = vtanh.pop %v3443
  %v3451 = vmul.f32 %v3449, %v3450
  %s3452 = scalar_lea.vmem %s4, 96
  %3453 = vst [vmem:[%s3452] sm:$0xff] %v3451
  %s3454 = scalar_lea.vmem %s48, 48
  %v3455 = vld [vmem:[%s3454] sm:$0xff]
  %v3456 = vld [vmem:[%s3454 + $0x8] sm:$0xff]
  %v3457 = vunpack.c.l.bf16 %v3455
  %v3458 = vunpack.c.h.bf16 %v3455
  %v3459 = vunpack.c.l.bf16 %v3456
  %v3460 = vunpack.c.h.bf16 %v3456
  %v3461 = vpack.c.bf16 %v3331, %v3331
  %3462 = vmatprep.subr.bf16.mxu0 %v519
  %3463 = vmatpush1.bf16.msra.mxu0 %v518
  %3464 = vmatprep.subr.bf16.mxu0 %v523
  %3465 = vmatpush1.bf16.msra.mxu0 %v522
  %3466 = vmatprep.subr.bf16.mxu0 %v527
  %3467 = vmatpush1.bf16.msra.mxu0 %v526
  %3468 = vmatprep.subr.bf16.mxu0 %v531
  %3469 = vmatpush1.bf16.msra.mxu0 %v530
  %3470 = vmatprep.subr.bf16.mxu0 %v535
  %3471 = vmatpush1.bf16.msra.mxu0 %v534
  %3472 = vmatprep.subr.bf16.mxu0 %v539
  %3473 = vmatpush1.bf16.msra.mxu0 %v538
  %3474 = vmatprep.subr.bf16.mxu0 %v543
  %3475 = vmatpush1.bf16.msra.mxu0 %v542
  %3476 = vmatprep.subr.bf16.mxu0 %v547
  %3477 = vmatpush1.bf16.msra.mxu0 %v546
  %3478 = vmatprep.subr.bf16.mxu0 0
  %3479 = vmatpush1.bf16.msra.mxu0 0
  %3480 = vmatprep.subr.bf16.mxu0 0
  %3481 = vmatpush1.bf16.msra.mxu0 0
  %3482 = vmatprep.subr.bf16.mxu0 0
  %3483 = vmatpush1.bf16.msra.mxu0 0
  %3484 = vmatprep.subr.bf16.mxu0 0
  %3485 = vmatpush1.bf16.msra.mxu0 0
  %3486 = vmatprep.subr.bf16.mxu0 0
  %3487 = vmatpush1.bf16.msra.mxu0 0
  %3488 = vmatprep.subr.bf16.mxu0 0
  %3489 = vmatpush1.bf16.msra.mxu0 0
  %3490 = vmatprep.subr.bf16.mxu0 0
  %3491 = vmatpush1.bf16.msra.mxu0 0
  %3492 = vmatprep.subr.bf16.mxu0 0
  %3493 = vmatpush1.bf16.msra.mxu0 0
  %3494 = vmatprep.mubr.bf16.mxu0 0
  %3495 = vmatmul.mubr.bf16.gmra.mrb[0].mxu0 %v3461
  %v3496 = vpop.f32.mrb[0].mxu0
  %v3497 = vadd.f32 0.0, %v3496
  %v3498 = vpop.f32.mrb[0].mxu0
  %v3499 = vadd.f32 0.0, %v3498
  %v3500 = vpop.f32.mrb[0].mxu0
  %v3501 = vpop.f32.mrb[0].mxu0
  %3502 = vdwg.mxu0
  %3503 = vmatprep.subr.bf16.mxu0 %v521
  %3504 = vmatpush1.bf16.msra.mxu0 %v520
  %3505 = vmatprep.subr.bf16.mxu0 %v525
  %3506 = vmatpush1.bf16.msra.mxu0 %v524
  %3507 = vmatprep.subr.bf16.mxu0 %v529
  %3508 = vmatpush1.bf16.msra.mxu0 %v528
  %3509 = vmatprep.subr.bf16.mxu0 %v533
  %3510 = vmatpush1.bf16.msra.mxu0 %v532
  %3511 = vmatprep.subr.bf16.mxu0 %v537
  %3512 = vmatpush1.bf16.msra.mxu0 %v536
  %3513 = vmatprep.subr.bf16.mxu0 %v541
  %3514 = vmatpush1.bf16.msra.mxu0 %v540
  %3515 = vmatprep.subr.bf16.mxu0 %v545
  %3516 = vmatpush1.bf16.msra.mxu0 %v544
  %3517 = vmatprep.subr.bf16.mxu0 %v549
  %3518 = vmatpush1.bf16.msra.mxu0 %v548
  %3519 = vmatprep.subr.bf16.mxu0 0
  %3520 = vmatpush1.bf16.msra.mxu0 0
  %3521 = vmatprep.subr.bf16.mxu0 0
  %3522 = vmatpush1.bf16.msra.mxu0 0
  %3523 = vmatprep.subr.bf16.mxu0 0
  %3524 = vmatpush1.bf16.msra.mxu0 0
  %3525 = vmatprep.subr.bf16.mxu0 0
  %3526 = vmatpush1.bf16.msra.mxu0 0
  %3527 = vmatprep.subr.bf16.mxu0 0
  %3528 = vmatpush1.bf16.msra.mxu0 0
  %3529 = vmatprep.subr.bf16.mxu0 0
  %3530 = vmatpush1.bf16.msra.mxu0 0
  %3531 = vmatprep.subr.bf16.mxu0 0
  %3532 = vmatpush1.bf16.msra.mxu0 0
  %3533 = vmatprep.subr.bf16.mxu0 0
  %3534 = vmatpush1.bf16.msra.mxu0 0
  %3535 = vmatprep.mubr.bf16.mxu0 0
  %3536 = vmatmul.mubr.bf16.gmra.mrb[0].mxu0 %v3461
  %v3537 = vpop.f32.mrb[0].mxu0
  %v3538 = vadd.f32 0.0, %v3537
  %v3539 = vpop.f32.mrb[0].mxu0
  %v3540 = vadd.f32 0.0, %v3539
  %v3541 = vpop.f32.mrb[0].mxu0
  %v3542 = vpop.f32.mrb[0].mxu0
  %3543 = vdwg.mxu0
  %v3544 = vadd.f32 %v3457, %v3497
  %v3545 = vadd.f32 %v3458, %v3499
  %v3546 = vadd.f32 %v3459, %v3538
  %v3547 = vadd.f32 %v3460, %v3540
  %v3548 = vxor.u32 %v3545, 2147483648
  %v3549 = vmul.f32 %v3548, 1.442695
  %v3550 = vpow.pop %v3549
  %v3551 = vadd.f32 %v3550, 1.0
  %v3552 = vrcp.pop %v3551
  %v3553 = vmul.f32 1.0, %v3552
  %v3554 = vmul.f32 %v3553, %v3323
  %v3555 = vxor.u32 %v3544, 2147483648
  %v3556 = vmul.f32 %v3555, 1.442695
  %v3557 = vpow.pop %v3556
  %v3558 = vadd.f32 %v3557, 1.0
  %v3559 = vrcp.pop %v3558
  %v3560 = vmul.f32 1.0, %v3559
  %v3561 = vtanh.pop %v3546
  %v3562 = vmul.f32 %v3560, %v3561
  %v3563 = vadd.f32 %v3554, %v3562
  %v3564 = vxor.u32 %v3547, 2147483648
  %v3565 = vmul.f32 %v3564, 1.442695
  %v3566 = vpow.pop %v3565
  %v3567 = vadd.f32 %v3566, 1.0
  %v3568 = vrcp.pop %v3567
  %v3569 = vmul.f32 1.0, %v3568
  %v3570 = vtanh.pop %v3563
  %v3571 = vmul.f32 %v3569, %v3570
  %s3572 = scalar_lea.vmem %s56, 24
  %3573 = vst [vmem:[%s3572] sm:$0xff] %v3571
  %s3574 = scalar_lea.vmem %s0, 208
  %v3575 = vld [vmem:[%s3574] sm:$0xff]
  %v3576 = vld [vmem:[%s3574 + $0x8] sm:$0xff]
  %v3577 = vunpack.c.l.bf16 %v3575
  %v3578 = vunpack.c.h.bf16 %v3575
  %v3579 = vunpack.c.l.bf16 %v3576
  %v3580 = vunpack.c.h.bf16 %v3576
  %v3581 = vpack.c.bf16 %v3451, %v3451
  %3582 = vmatprep.subr.bf16.mxu0 %v240
  %3583 = vmatpush1.bf16.msra.mxu0 %v239
  %3584 = vmatprep.subr.bf16.mxu0 %v244
  %3585 = vmatpush1.bf16.msra.mxu0 %v243
  %3586 = vmatprep.subr.bf16.mxu0 %v248
  %3587 = vmatpush1.bf16.msra.mxu0 %v247
  %3588 = vmatprep.subr.bf16.mxu0 %v252
  %3589 = vmatpush1.bf16.msra.mxu0 %v251
  %3590 = vmatprep.subr.bf16.mxu0 %v256
  %3591 = vmatpush1.bf16.msra.mxu0 %v255
  %3592 = vmatprep.subr.bf16.mxu0 %v260
  %3593 = vmatpush1.bf16.msra.mxu0 %v259
  %3594 = vmatprep.subr.bf16.mxu0 %v264
  %3595 = vmatpush1.bf16.msra.mxu0 %v263
  %3596 = vmatprep.subr.bf16.mxu0 %v268
  %3597 = vmatpush1.bf16.msra.mxu0 %v267
  %3598 = vmatprep.subr.bf16.mxu0 0
  %3599 = vmatpush1.bf16.msra.mxu0 0
  %3600 = vmatprep.subr.bf16.mxu0 0
  %3601 = vmatpush1.bf16.msra.mxu0 0
  %3602 = vmatprep.subr.bf16.mxu0 0
  %3603 = vmatpush1.bf16.msra.mxu0 0
  %3604 = vmatprep.subr.bf16.mxu0 0
  %3605 = vmatpush1.bf16.msra.mxu0 0
  %3606 = vmatprep.subr.bf16.mxu0 0
  %3607 = vmatpush1.bf16.msra.mxu0 0
  %3608 = vmatprep.subr.bf16.mxu0 0
  %3609 = vmatpush1.bf16.msra.mxu0 0
  %3610 = vmatprep.subr.bf16.mxu0 0
  %3611 = vmatpush1.bf16.msra.mxu0 0
  %3612 = vmatprep.subr.bf16.mxu0 0
  %3613 = vmatpush1.bf16.msra.mxu0 0
  %3614 = vmatprep.mubr.bf16.mxu0 0
  %3615 = vmatmul.mubr.bf16.gmra.mrb[0].mxu0 %v3581
  %v3616 = vpop.f32.mrb[0].mxu0
  %v3617 = vadd.f32 0.0, %v3616
  %v3618 = vpop.f32.mrb[0].mxu0
  %v3619 = vadd.f32 0.0, %v3618
  %v3620 = vpop.f32.mrb[0].mxu0
  %v3621 = vpop.f32.mrb[0].mxu0
  %3622 = vdwg.mxu0
  %3623 = vmatprep.subr.bf16.mxu0 %v242
  %3624 = vmatpush1.bf16.msra.mxu0 %v241
  %3625 = vmatprep.subr.bf16.mxu0 %v246
  %3626 = vmatpush1.bf16.msra.mxu0 %v245
  %3627 = vmatprep.subr.bf16.mxu0 %v250
  %3628 = vmatpush1.bf16.msra.mxu0 %v249
  %3629 = vmatprep.subr.bf16.mxu0 %v254
  %3630 = vmatpush1.bf16.msra.mxu0 %v253
  %3631 = vmatprep.subr.bf16.mxu0 %v258
  %3632 = vmatpush1.bf16.msra.mxu0 %v257
  %3633 = vmatprep.subr.bf16.mxu0 %v262
  %3634 = vmatpush1.bf16.msra.mxu0 %v261
  %3635 = vmatprep.subr.bf16.mxu0 %v266
  %3636 = vmatpush1.bf16.msra.mxu0 %v265
  %3637 = vmatprep.subr.bf16.mxu0 %v270
  %3638 = vmatpush1.bf16.msra.mxu0 %v269
  %3639 = vmatprep.subr.bf16.mxu0 0
  %3640 = vmatpush1.bf16.msra.mxu0 0
  %3641 = vmatprep.subr.bf16.mxu0 0
  %3642 = vmatpush1.bf16.msra.mxu0 0
  %3643 = vmatprep.subr.bf16.mxu0 0
  %3644 = vmatpush1.bf16.msra.mxu0 0
  %3645 = vmatprep.subr.bf16.mxu0 0
  %3646 = vmatpush1.bf16.msra.mxu0 0
  %3647 = vmatprep.subr.bf16.mxu0 0
  %3648 = vmatpush1.bf16.msra.mxu0 0
  %3649 = vmatprep.subr.bf16.mxu0 0
  %3650 = vmatpush1.bf16.msra.mxu0 0
  %3651 = vmatprep.subr.bf16.mxu0 0
  %3652 = vmatpush1.bf16.msra.mxu0 0
  %3653 = vmatprep.subr.bf16.mxu0 0
  %3654 = vmatpush1.bf16.msra.mxu0 0
  %3655 = vmatprep.mubr.bf16.mxu0 0
  %3656 = vmatmul.mubr.bf16.gmra.mrb[0].mxu0 %v3581
  %v3657 = vpop.f32.mrb[0].mxu0
  %v3658 = vadd.f32 0.0, %v3657
  %v3659 = vpop.f32.mrb[0].mxu0
  %v3660 = vadd.f32 0.0, %v3659
  %v3661 = vpop.f32.mrb[0].mxu0
  %v3662 = vpop.f32.mrb[0].mxu0
  %3663 = vdwg.mxu0
  %v3664 = vadd.f32 %v3577, %v3617
  %v3665 = vadd.f32 %v3578, %v3619
  %v3666 = vadd.f32 %v3579, %v3658
  %v3667 = vadd.f32 %v3580, %v3660
  %v3668 = vxor.u32 %v3665, 2147483648
  %v3669 = vmul.f32 %v3668, 1.442695
  %v3670 = vpow.pop %v3669
  %v3671 = vadd.f32 %v3670, 1.0
  %v3672 = vrcp.pop %v3671
  %v3673 = vmul.f32 1.0, %v3672
  %v3674 = vmul.f32 %v3673, %v3443
  %v3675 = vxor.u32 %v3664, 2147483648
  %v3676 = vmul.f32 %v3675, 1.442695
  %v3677 = vpow.pop %v3676
  %v3678 = vadd.f32 %v3677, 1.0
  %v3679 = vrcp.pop %v3678
  %v3680 = vmul.f32 1.0, %v3679
  %v3681 = vtanh.pop %v3666
  %v3682 = vmul.f32 %v3680, %v3681
  %v3683 = vadd.f32 %v3674, %v3682
  %v3684 = vxor.u32 %v3667, 2147483648
  %v3685 = vmul.f32 %v3684, 1.442695
  %v3686 = vpow.pop %v3685
  %v3687 = vadd.f32 %v3686, 1.0
  %v3688 = vrcp.pop %v3687
  %v3689 = vmul.f32 1.0, %v3688
  %v3690 = vtanh.pop %v3683
  %v3691 = vmul.f32 %v3689, %v3690
  %s3692 = scalar_lea.vmem %s4, 104
  %3693 = vst [vmem:[%s3692] sm:$0xff] %v3691
  %s3694 = scalar_lea.vmem %s48, 32
  %v3695 = vld [vmem:[%s3694] sm:$0xff]
  %v3696 = vld [vmem:[%s3694 + $0x8] sm:$0xff]
  %v3697 = vunpack.c.l.bf16 %v3695
  %v3698 = vunpack.c.h.bf16 %v3695
  %v3699 = vunpack.c.l.bf16 %v3696
  %v3700 = vunpack.c.h.bf16 %v3696
  %v3701 = vpack.c.bf16 %v3571, %v3571
  %3702 = vmatprep.subr.bf16.mxu0 %v519
  %3703 = vmatpush1.bf16.msra.mxu0 %v518
  %3704 = vmatprep.subr.bf16.mxu0 %v523
  %3705 = vmatpush1.bf16.msra.mxu0 %v522
  %3706 = vmatprep.subr.bf16.mxu0 %v527
  %3707 = vmatpush1.bf16.msra.mxu0 %v526
  %3708 = vmatprep.subr.bf16.mxu0 %v531
  %3709 = vmatpush1.bf16.msra.mxu0 %v530
  %3710 = vmatprep.subr.bf16.mxu0 %v535
  %3711 = vmatpush1.bf16.msra.mxu0 %v534
  %3712 = vmatprep.subr.bf16.mxu0 %v539
  %3713 = vmatpush1.bf16.msra.mxu0 %v538
  %3714 = vmatprep.subr.bf16.mxu0 %v543
  %3715 = vmatpush1.bf16.msra.mxu0 %v542
  %3716 = vmatprep.subr.bf16.mxu0 %v547
  %3717 = vmatpush1.bf16.msra.mxu0 %v546
  %3718 = vmatprep.subr.bf16.mxu0 0
  %3719 = vmatpush1.bf16.msra.mxu0 0
  %3720 = vmatprep.subr.bf16.mxu0 0
  %3721 = vmatpush1.bf16.msra.mxu0 0
  %3722 = vmatprep.subr.bf16.mxu0 0
  %3723 = vmatpush1.bf16.msra.mxu0 0
  %3724 = vmatprep.subr.bf16.mxu0 0
  %3725 = vmatpush1.bf16.msra.mxu0 0
  %3726 = vmatprep.subr.bf16.mxu0 0
  %3727 = vmatpush1.bf16.msra.mxu0 0
  %3728 = vmatprep.subr.bf16.mxu0 0
  %3729 = vmatpush1.bf16.msra.mxu0 0
  %3730 = vmatprep.subr.bf16.mxu0 0
  %3731 = vmatpush1.bf16.msra.mxu0 0
  %3732 = vmatprep.subr.bf16.mxu0 0
  %3733 = vmatpush1.bf16.msra.mxu0 0
  %3734 = vmatprep.mubr.bf16.mxu0 0
  %3735 = vmatmul.mubr.bf16.gmra.mrb[0].mxu0 %v3701
  %v3736 = vpop.f32.mrb[0].mxu0
  %v3737 = vadd.f32 0.0, %v3736
  %v3738 = vpop.f32.mrb[0].mxu0
  %v3739 = vadd.f32 0.0, %v3738
  %v3740 = vpop.f32.mrb[0].mxu0
  %v3741 = vpop.f32.mrb[0].mxu0
  %3742 = vdwg.mxu0
  %3743 = vmatprep.subr.bf16.mxu0 %v521
  %3744 = vmatpush1.bf16.msra.mxu0 %v520
  %3745 = vmatprep.subr.bf16.mxu0 %v525
  %3746 = vmatpush1.bf16.msra.mxu0 %v524
  %3747 = vmatprep.subr.bf16.mxu0 %v529
  %3748 = vmatpush1.bf16.msra.mxu0 %v528
  %3749 = vmatprep.subr.bf16.mxu0 %v533
  %3750 = vmatpush1.bf16.msra.mxu0 %v532
  %3751 = vmatprep.subr.bf16.mxu0 %v537
  %3752 = vmatpush1.bf16.msra.mxu0 %v536
  %3753 = vmatprep.subr.bf16.mxu0 %v541
  %3754 = vmatpush1.bf16.msra.mxu0 %v540
  %3755 = vmatprep.subr.bf16.mxu0 %v545
  %3756 = vmatpush1.bf16.msra.mxu0 %v544
  %3757 = vmatprep.subr.bf16.mxu0 %v549
  %3758 = vmatpush1.bf16.msra.mxu0 %v548
  %3759 = vmatprep.subr.bf16.mxu0 0
  %3760 = vmatpush1.bf16.msra.mxu0 0
  %3761 = vmatprep.subr.bf16.mxu0 0
  %3762 = vmatpush1.bf16.msra.mxu0 0
  %3763 = vmatprep.subr.bf16.mxu0 0
  %3764 = vmatpush1.bf16.msra.mxu0 0
  %3765 = vmatprep.subr.bf16.mxu0 0
  %3766 = vmatpush1.bf16.msra.mxu0 0
  %3767 = vmatprep.subr.bf16.mxu0 0
  %3768 = vmatpush1.bf16.msra.mxu0 0
  %3769 = vmatprep.subr.bf16.mxu0 0
  %3770 = vmatpush1.bf16.msra.mxu0 0
  %3771 = vmatprep.subr.bf16.mxu0 0
  %3772 = vmatpush1.bf16.msra.mxu0 0
  %3773 = vmatprep.subr.bf16.mxu0 0
  %3774 = vmatpush1.bf16.msra.mxu0 0
  %3775 = vmatprep.mubr.bf16.mxu0 0
  %3776 = vmatmul.mubr.bf16.gmra.mrb[0].mxu0 %v3701
  %v3777 = vpop.f32.mrb[0].mxu0
  %v3778 = vadd.f32 0.0, %v3777
  %v3779 = vpop.f32.mrb[0].mxu0
  %v3780 = vadd.f32 0.0, %v3779
  %v3781 = vpop.f32.mrb[0].mxu0
  %v3782 = vpop.f32.mrb[0].mxu0
  %3783 = vdwg.mxu0
  %v3784 = vadd.f32 %v3697, %v3737
  %v3785 = vadd.f32 %v3698, %v3739
  %v3786 = vadd.f32 %v3699, %v3778
  %v3787 = vadd.f32 %v3700, %v3780
  %v3788 = vxor.u32 %v3785, 2147483648
  %v3789 = vmul.f32 %v3788, 1.442695
  %v3790 = vpow.pop %v3789
  %v3791 = vadd.f32 %v3790, 1.0
  %v3792 = vrcp.pop %v3791
  %v3793 = vmul.f32 1.0, %v3792
  %v3794 = vmul.f32 %v3793, %v3563
  %v3795 = vxor.u32 %v3784, 2147483648
  %v3796 = vmul.f32 %v3795, 1.442695
  %v3797 = vpow.pop %v3796
  %v3798 = vadd.f32 %v3797, 1.0
  %v3799 = vrcp.pop %v3798
  %v3800 = vmul.f32 1.0, %v3799
  %v3801 = vtanh.pop %v3786
  %v3802 = vmul.f32 %v3800, %v3801
  %v3803 = vadd.f32 %v3794, %v3802
  %v3804 = vxor.u32 %v3787, 2147483648
  %v3805 = vmul.f32 %v3804, 1.442695
  %v3806 = vpow.pop %v3805
  %v3807 = vadd.f32 %v3806, 1.0
  %v3808 = vrcp.pop %v3807
  %v3809 = vmul.f32 1.0, %v3808
  %v3810 = vtanh.pop %v3803
  %v3811 = vmul.f32 %v3809, %v3810
  %s3812 = scalar_lea.vmem %s56, 16
  %3813 = vst [vmem:[%s3812] sm:$0xff] %v3811
  %s3814 = scalar_lea.vmem %s0, 224
  %v3815 = vld [vmem:[%s3814] sm:$0xff]
  %v3816 = vld [vmem:[%s3814 + $0x8] sm:$0xff]
  %v3817 = vunpack.c.l.bf16 %v3815
  %v3818 = vunpack.c.h.bf16 %v3815
  %v3819 = vunpack.c.l.bf16 %v3816
  %v3820 = vunpack.c.h.bf16 %v3816
  %v3821 = vpack.c.bf16 %v3691, %v3691
  %3822 = vmatprep.subr.bf16.mxu0 %v240
  %3823 = vmatpush1.bf16.msra.mxu0 %v239
  %3824 = vmatprep.subr.bf16.mxu0 %v244
  %3825 = vmatpush1.bf16.msra.mxu0 %v243
  %3826 = vmatprep.subr.bf16.mxu0 %v248
  %3827 = vmatpush1.bf16.msra.mxu0 %v247
  %3828 = vmatprep.subr.bf16.mxu0 %v252
  %3829 = vmatpush1.bf16.msra.mxu0 %v251
  %3830 = vmatprep.subr.bf16.mxu0 %v256
  %3831 = vmatpush1.bf16.msra.mxu0 %v255
  %3832 = vmatprep.subr.bf16.mxu0 %v260
  %3833 = vmatpush1.bf16.msra.mxu0 %v259
  %3834 = vmatprep.subr.bf16.mxu0 %v264
  %3835 = vmatpush1.bf16.msra.mxu0 %v263
  %3836 = vmatprep.subr.bf16.mxu0 %v268
  %3837 = vmatpush1.bf16.msra.mxu0 %v267
  %3838 = vmatprep.subr.bf16.mxu0 0
  %3839 = vmatpush1.bf16.msra.mxu0 0
  %3840 = vmatprep.subr.bf16.mxu0 0
  %3841 = vmatpush1.bf16.msra.mxu0 0
  %3842 = vmatprep.subr.bf16.mxu0 0
  %3843 = vmatpush1.bf16.msra.mxu0 0
  %3844 = vmatprep.subr.bf16.mxu0 0
  %3845 = vmatpush1.bf16.msra.mxu0 0
  %3846 = vmatprep.subr.bf16.mxu0 0
  %3847 = vmatpush1.bf16.msra.mxu0 0
  %3848 = vmatprep.subr.bf16.mxu0 0
  %3849 = vmatpush1.bf16.msra.mxu0 0
  %3850 = vmatprep.subr.bf16.mxu0 0
  %3851 = vmatpush1.bf16.msra.mxu0 0
  %3852 = vmatprep.subr.bf16.mxu0 0
  %3853 = vmatpush1.bf16.msra.mxu0 0
  %3854 = vmatprep.mubr.bf16.mxu0 0
  %3855 = vmatmul.mubr.bf16.gmra.mrb[0].mxu0 %v3821
  %v3856 = vpop.f32.mrb[0].mxu0
  %v3857 = vadd.f32 0.0, %v3856
  %v3858 = vpop.f32.mrb[0].mxu0
  %v3859 = vadd.f32 0.0, %v3858
  %v3860 = vpop.f32.mrb[0].mxu0
  %v3861 = vpop.f32.mrb[0].mxu0
  %3862 = vdwg.mxu0
  %3863 = vmatprep.subr.bf16.mxu0 %v242
  %3864 = vmatpush1.bf16.msra.mxu0 %v241
  %3865 = vmatprep.subr.bf16.mxu0 %v246
  %3866 = vmatpush1.bf16.msra.mxu0 %v245
  %3867 = vmatprep.subr.bf16.mxu0 %v250
  %3868 = vmatpush1.bf16.msra.mxu0 %v249
  %3869 = vmatprep.subr.bf16.mxu0 %v254
  %3870 = vmatpush1.bf16.msra.mxu0 %v253
  %3871 = vmatprep.subr.bf16.mxu0 %v258
  %3872 = vmatpush1.bf16.msra.mxu0 %v257
  %3873 = vmatprep.subr.bf16.mxu0 %v262
  %3874 = vmatpush1.bf16.msra.mxu0 %v261
  %3875 = vmatprep.subr.bf16.mxu0 %v266
  %3876 = vmatpush1.bf16.msra.mxu0 %v265
  %3877 = vmatprep.subr.bf16.mxu0 %v270
  %3878 = vmatpush1.bf16.msra.mxu0 %v269
  %3879 = vmatprep.subr.bf16.mxu0 0
  %3880 = vmatpush1.bf16.msra.mxu0 0
  %3881 = vmatprep.subr.bf16.mxu0 0
  %3882 = vmatpush1.bf16.msra.mxu0 0
  %3883 = vmatprep.subr.bf16.mxu0 0
  %3884 = vmatpush1.bf16.msra.mxu0 0
  %3885 = vmatprep.subr.bf16.mxu0 0
  %3886 = vmatpush1.bf16.msra.mxu0 0
  %3887 = vmatprep.subr.bf16.mxu0 0
  %3888 = vmatpush1.bf16.msra.mxu0 0
  %3889 = vmatprep.subr.bf16.mxu0 0
  %3890 = vmatpush1.bf16.msra.mxu0 0
  %3891 = vmatprep.subr.bf16.mxu0 0
  %3892 = vmatpush1.bf16.msra.mxu0 0
  %3893 = vmatprep.subr.bf16.mxu0 0
  %3894 = vmatpush1.bf16.msra.mxu0 0
  %3895 = vmatprep.mubr.bf16.mxu0 0
  %3896 = vmatmul.mubr.bf16.gmra.mrb[0].mxu0 %v3821
  %v3897 = vpop.f32.mrb[0].mxu0
  %v3898 = vadd.f32 0.0, %v3897
  %v3899 = vpop.f32.mrb[0].mxu0
  %v3900 = vadd.f32 0.0, %v3899
  %v3901 = vpop.f32.mrb[0].mxu0
  %v3902 = vpop.f32.mrb[0].mxu0
  %3903 = vdwg.mxu0
  %v3904 = vadd.f32 %v3817, %v3857
  %v3905 = vadd.f32 %v3818, %v3859
  %v3906 = vadd.f32 %v3819, %v3898
  %v3907 = vadd.f32 %v3820, %v3900
  %v3908 = vxor.u32 %v3905, 2147483648
  %v3909 = vmul.f32 %v3908, 1.442695
  %v3910 = vpow.pop %v3909
  %v3911 = vadd.f32 %v3910, 1.0
  %v3912 = vrcp.pop %v3911
  %v3913 = vmul.f32 1.0, %v3912
  %v3914 = vmul.f32 %v3913, %v3683
  %v3915 = vxor.u32 %v3904, 2147483648
  %v3916 = vmul.f32 %v3915, 1.442695
  %v3917 = vpow.pop %v3916
  %v3918 = vadd.f32 %v3917, 1.0
  %v3919 = vrcp.pop %v3918
  %v3920 = vmul.f32 1.0, %v3919
  %v3921 = vtanh.pop %v3906
  %v3922 = vmul.f32 %v3920, %v3921
  %v3923 = vadd.f32 %v3914, %v3922
  %v3924 = vxor.u32 %v3907, 2147483648
  %v3925 = vmul.f32 %v3924, 1.442695
  %v3926 = vpow.pop %v3925
  %v3927 = vadd.f32 %v3926, 1.0
  %v3928 = vrcp.pop %v3927
  %v3929 = vmul.f32 1.0, %v3928
  %v3930 = vtanh.pop %v3923
  %v3931 = vmul.f32 %v3929, %v3930
  %s3932 = scalar_lea.vmem %s4, 112
  %3933 = vst [vmem:[%s3932] sm:$0xff] %v3931
  %s3934 = scalar_lea.vmem %s48, 16
  %v3935 = vld [vmem:[%s3934] sm:$0xff]
  %v3936 = vld [vmem:[%s3934 + $0x8] sm:$0xff]
  %v3937 = vunpack.c.l.bf16 %v3935
  %v3938 = vunpack.c.h.bf16 %v3935
  %v3939 = vunpack.c.l.bf16 %v3936
  %v3940 = vunpack.c.h.bf16 %v3936
  %v3941 = vpack.c.bf16 %v3811, %v3811
  %3942 = vmatprep.subr.bf16.mxu0 %v519
  %3943 = vmatpush1.bf16.msra.mxu0 %v518
  %3944 = vmatprep.subr.bf16.mxu0 %v523
  %3945 = vmatpush1.bf16.msra.mxu0 %v522
  %3946 = vmatprep.subr.bf16.mxu0 %v527
  %3947 = vmatpush1.bf16.msra.mxu0 %v526
  %3948 = vmatprep.subr.bf16.mxu0 %v531
  %3949 = vmatpush1.bf16.msra.mxu0 %v530
  %3950 = vmatprep.subr.bf16.mxu0 %v535
  %3951 = vmatpush1.bf16.msra.mxu0 %v534
  %3952 = vmatprep.subr.bf16.mxu0 %v539
  %3953 = vmatpush1.bf16.msra.mxu0 %v538
  %3954 = vmatprep.subr.bf16.mxu0 %v543
  %3955 = vmatpush1.bf16.msra.mxu0 %v542
  %3956 = vmatprep.subr.bf16.mxu0 %v547
  %3957 = vmatpush1.bf16.msra.mxu0 %v546
  %3958 = vmatprep.subr.bf16.mxu0 0
  %3959 = vmatpush1.bf16.msra.mxu0 0
  %3960 = vmatprep.subr.bf16.mxu0 0
  %3961 = vmatpush1.bf16.msra.mxu0 0
  %3962 = vmatprep.subr.bf16.mxu0 0
  %3963 = vmatpush1.bf16.msra.mxu0 0
  %3964 = vmatprep.subr.bf16.mxu0 0
  %3965 = vmatpush1.bf16.msra.mxu0 0
  %3966 = vmatprep.subr.bf16.mxu0 0
  %3967 = vmatpush1.bf16.msra.mxu0 0
  %3968 = vmatprep.subr.bf16.mxu0 0
  %3969 = vmatpush1.bf16.msra.mxu0 0
  %3970 = vmatprep.subr.bf16.mxu0 0
  %3971 = vmatpush1.bf16.msra.mxu0 0
  %3972 = vmatprep.subr.bf16.mxu0 0
  %3973 = vmatpush1.bf16.msra.mxu0 0
  %3974 = vmatprep.mubr.bf16.mxu0 0
  %3975 = vmatmul.mubr.bf16.gmra.mrb[0].mxu0 %v3941
  %v3976 = vpop.f32.mrb[0].mxu0
  %v3977 = vadd.f32 0.0, %v3976
  %v3978 = vpop.f32.mrb[0].mxu0
  %v3979 = vadd.f32 0.0, %v3978
  %v3980 = vpop.f32.mrb[0].mxu0
  %v3981 = vpop.f32.mrb[0].mxu0
  %3982 = vdwg.mxu0
  %3983 = vmatprep.subr.bf16.mxu0 %v521
  %3984 = vmatpush1.bf16.msra.mxu0 %v520
  %3985 = vmatprep.subr.bf16.mxu0 %v525
  %3986 = vmatpush1.bf16.msra.mxu0 %v524
  %3987 = vmatprep.subr.bf16.mxu0 %v529
  %3988 = vmatpush1.bf16.msra.mxu0 %v528
  %3989 = vmatprep.subr.bf16.mxu0 %v533
  %3990 = vmatpush1.bf16.msra.mxu0 %v532
  %3991 = vmatprep.subr.bf16.mxu0 %v537
  %3992 = vmatpush1.bf16.msra.mxu0 %v536
  %3993 = vmatprep.subr.bf16.mxu0 %v541
  %3994 = vmatpush1.bf16.msra.mxu0 %v540
  %3995 = vmatprep.subr.bf16.mxu0 %v545
  %3996 = vmatpush1.bf16.msra.mxu0 %v544
  %3997 = vmatprep.subr.bf16.mxu0 %v549
  %3998 = vmatpush1.bf16.msra.mxu0 %v548
  %3999 = vmatprep.subr.bf16.mxu0 0
  %4000 = vmatpush1.bf16.msra.mxu0 0
  %4001 = vmatprep.subr.bf16.mxu0 0
  %4002 = vmatpush1.bf16.msra.mxu0 0
  %4003 = vmatprep.subr.bf16.mxu0 0
  %4004 = vmatpush1.bf16.msra.mxu0 0
  %4005 = vmatprep.subr.bf16.mxu0 0
  %4006 = vmatpush1.bf16.msra.mxu0 0
  %4007 = vmatprep.subr.bf16.mxu0 0
  %4008 = vmatpush1.bf16.msra.mxu0 0
  %4009 = vmatprep.subr.bf16.mxu0 0
  %4010 = vmatpush1.bf16.msra.mxu0 0
  %4011 = vmatprep.subr.bf16.mxu0 0
  %4012 = vmatpush1.bf16.msra.mxu0 0
  %4013 = vmatprep.subr.bf16.mxu0 0
  %4014 = vmatpush1.bf16.msra.mxu0 0
  %4015 = vmatprep.mubr.bf16.mxu0 0
  %4016 = vmatmul.mubr.bf16.gmra.mrb[0].mxu0 %v3941
  %v4017 = vpop.f32.mrb[0].mxu0
  %v4018 = vadd.f32 0.0, %v4017
  %v4019 = vpop.f32.mrb[0].mxu0
  %v4020 = vadd.f32 0.0, %v4019
  %v4021 = vpop.f32.mrb[0].mxu0
  %v4022 = vpop.f32.mrb[0].mxu0
  %4023 = vdwg.mxu0
  %v4024 = vadd.f32 %v3937, %v3977
  %v4025 = vadd.f32 %v3938, %v3979
  %v4026 = vadd.f32 %v3939, %v4018
  %v4027 = vadd.f32 %v3940, %v4020
  %v4028 = vxor.u32 %v4025, 2147483648
  %v4029 = vmul.f32 %v4028, 1.442695
  %v4030 = vpow.pop %v4029
  %v4031 = vadd.f32 %v4030, 1.0
  %v4032 = vrcp.pop %v4031
  %v4033 = vmul.f32 1.0, %v4032
  %v4034 = vmul.f32 %v4033, %v3803
  %v4035 = vxor.u32 %v4024, 2147483648
  %v4036 = vmul.f32 %v4035, 1.442695
  %v4037 = vpow.pop %v4036
  %v4038 = vadd.f32 %v4037, 1.0
  %v4039 = vrcp.pop %v4038
  %v4040 = vmul.f32 1.0, %v4039
  %v4041 = vtanh.pop %v4026
  %v4042 = vmul.f32 %v4040, %v4041
  %v4043 = vadd.f32 %v4034, %v4042
  %v4044 = vxor.u32 %v4027, 2147483648
  %v4045 = vmul.f32 %v4044, 1.442695
  %v4046 = vpow.pop %v4045
  %v4047 = vadd.f32 %v4046, 1.0
  %v4048 = vrcp.pop %v4047
  %v4049 = vmul.f32 1.0, %v4048
  %v4050 = vtanh.pop %v4043
  %v4051 = vmul.f32 %v4049, %v4050
  %s4052 = scalar_lea.vmem %s56, 8
  %4053 = vst [vmem:[%s4052] sm:$0xff] %v4051
  %s4054 = scalar_lea.vmem %s0, 240
  %v4055 = vld [vmem:[%s4054] sm:$0xff]
  %v4056 = vld [vmem:[%s4054 + $0x8] sm:$0xff]
  %v4057 = vunpack.c.l.bf16 %v4055
  %v4058 = vunpack.c.h.bf16 %v4055
  %v4059 = vunpack.c.l.bf16 %v4056
  %v4060 = vunpack.c.h.bf16 %v4056
  %v4061 = vpack.c.bf16 %v3931, %v3931
  %4062 = vmatprep.subr.bf16.mxu0 %v240
  %4063 = vmatpush1.bf16.msra.mxu0 %v239
  %4064 = vmatprep.subr.bf16.mxu0 %v244
  %4065 = vmatpush1.bf16.msra.mxu0 %v243
  %4066 = vmatprep.subr.bf16.mxu0 %v248
  %4067 = vmatpush1.bf16.msra.mxu0 %v247
  %4068 = vmatprep.subr.bf16.mxu0 %v252
  %4069 = vmatpush1.bf16.msra.mxu0 %v251
  %4070 = vmatprep.subr.bf16.mxu0 %v256
  %4071 = vmatpush1.bf16.msra.mxu0 %v255
  %4072 = vmatprep.subr.bf16.mxu0 %v260
  %4073 = vmatpush1.bf16.msra.mxu0 %v259
  %4074 = vmatprep.subr.bf16.mxu0 %v264
  %4075 = vmatpush1.bf16.msra.mxu0 %v263
  %4076 = vmatprep.subr.bf16.mxu0 %v268
  %4077 = vmatpush1.bf16.msra.mxu0 %v267
  %4078 = vmatprep.subr.bf16.mxu0 0
  %4079 = vmatpush1.bf16.msra.mxu0 0
  %4080 = vmatprep.subr.bf16.mxu0 0
  %4081 = vmatpush1.bf16.msra.mxu0 0
  %4082 = vmatprep.subr.bf16.mxu0 0
  %4083 = vmatpush1.bf16.msra.mxu0 0
  %4084 = vmatprep.subr.bf16.mxu0 0
  %4085 = vmatpush1.bf16.msra.mxu0 0
  %4086 = vmatprep.subr.bf16.mxu0 0
  %4087 = vmatpush1.bf16.msra.mxu0 0
  %4088 = vmatprep.subr.bf16.mxu0 0
  %4089 = vmatpush1.bf16.msra.mxu0 0
  %4090 = vmatprep.subr.bf16.mxu0 0
  %4091 = vmatpush1.bf16.msra.mxu0 0
  %4092 = vmatprep.subr.bf16.mxu0 0
  %4093 = vmatpush1.bf16.msra.mxu0 0
  %4094 = vmatprep.mubr.bf16.mxu0 0
  %4095 = vmatmul.mubr.bf16.gmra.mrb[0].mxu0 %v4061
  %v4096 = vpop.f32.mrb[0].mxu0
  %v4097 = vadd.f32 0.0, %v4096
  %v4098 = vpop.f32.mrb[0].mxu0
  %v4099 = vadd.f32 0.0, %v4098
  %v4100 = vpop.f32.mrb[0].mxu0
  %v4101 = vpop.f32.mrb[0].mxu0
  %4102 = vdwg.mxu0
  %4103 = vmatprep.subr.bf16.mxu0 %v242
  %4104 = vmatpush1.bf16.msra.mxu0 %v241
  %4105 = vmatprep.subr.bf16.mxu0 %v246
  %4106 = vmatpush1.bf16.msra.mxu0 %v245
  %4107 = vmatprep.subr.bf16.mxu0 %v250
  %4108 = vmatpush1.bf16.msra.mxu0 %v249
  %4109 = vmatprep.subr.bf16.mxu0 %v254
  %4110 = vmatpush1.bf16.msra.mxu0 %v253
  %4111 = vmatprep.subr.bf16.mxu0 %v258
  %4112 = vmatpush1.bf16.msra.mxu0 %v257
  %4113 = vmatprep.subr.bf16.mxu0 %v262
  %4114 = vmatpush1.bf16.msra.mxu0 %v261
  %4115 = vmatprep.subr.bf16.mxu0 %v266
  %4116 = vmatpush1.bf16.msra.mxu0 %v265
  %4117 = vmatprep.subr.bf16.mxu0 %v270
  %4118 = vmatpush1.bf16.msra.mxu0 %v269
  %4119 = vmatprep.subr.bf16.mxu0 0
  %4120 = vmatpush1.bf16.msra.mxu0 0
  %4121 = vmatprep.subr.bf16.mxu0 0
  %4122 = vmatpush1.bf16.msra.mxu0 0
  %4123 = vmatprep.subr.bf16.mxu0 0
  %4124 = vmatpush1.bf16.msra.mxu0 0
  %4125 = vmatprep.subr.bf16.mxu0 0
  %4126 = vmatpush1.bf16.msra.mxu0 0
  %4127 = vmatprep.subr.bf16.mxu0 0
  %4128 = vmatpush1.bf16.msra.mxu0 0
  %4129 = vmatprep.subr.bf16.mxu0 0
  %4130 = vmatpush1.bf16.msra.mxu0 0
  %4131 = vmatprep.subr.bf16.mxu0 0
  %4132 = vmatpush1.bf16.msra.mxu0 0
  %4133 = vmatprep.subr.bf16.mxu0 0
  %4134 = vmatpush1.bf16.msra.mxu0 0
  %4135 = vmatprep.mubr.bf16.mxu0 0
  %4136 = vmatmul.mubr.bf16.gmra.mrb[0].mxu0 %v4061
  %v4137 = vpop.f32.mrb[0].mxu0
  %v4138 = vadd.f32 0.0, %v4137
  %v4139 = vpop.f32.mrb[0].mxu0
  %v4140 = vadd.f32 0.0, %v4139
  %v4141 = vpop.f32.mrb[0].mxu0
  %v4142 = vpop.f32.mrb[0].mxu0
  %4143 = vdwg.mxu0
  %v4144 = vadd.f32 %v4057, %v4097
  %v4145 = vadd.f32 %v4058, %v4099
  %v4146 = vadd.f32 %v4059, %v4138
  %v4147 = vadd.f32 %v4060, %v4140
  %v4148 = vxor.u32 %v4145, 2147483648
  %v4149 = vmul.f32 %v4148, 1.442695
  %v4150 = vpow.pop %v4149
  %v4151 = vadd.f32 %v4150, 1.0
  %v4152 = vrcp.pop %v4151
  %v4153 = vmul.f32 1.0, %v4152
  %v4154 = vmul.f32 %v4153, %v3923
  %v4155 = vxor.u32 %v4144, 2147483648
  %v4156 = vmul.f32 %v4155, 1.442695
  %v4157 = vpow.pop %v4156
  %v4158 = vadd.f32 %v4157, 1.0
  %v4159 = vrcp.pop %v4158
  %v4160 = vmul.f32 1.0, %v4159
  %v4161 = vtanh.pop %v4146
  %v4162 = vmul.f32 %v4160, %v4161
  %v4163 = vadd.f32 %v4154, %v4162
  %v4164 = vxor.u32 %v4147, 2147483648
  %v4165 = vmul.f32 %v4164, 1.442695
  %v4166 = vpow.pop %v4165
  %v4167 = vadd.f32 %v4166, 1.0
  %v4168 = vrcp.pop %v4167
  %v4169 = vmul.f32 1.0, %v4168
  %v4170 = vtanh.pop %v4163
  %v4171 = vmul.f32 %v4169, %v4170
  %s4172 = scalar_lea.vmem %s4, 120
  %4173 = vst [vmem:[%s4172] sm:$0xff] %v4171
  %v4174 = vld [vmem:[%s48] sm:$0xff]
  %v4175 = vld [vmem:[%s48 + $0x8] sm:$0xff]
  %v4176 = vunpack.c.l.bf16 %v4174
  %v4177 = vunpack.c.h.bf16 %v4174
  %v4178 = vunpack.c.l.bf16 %v4175
  %v4179 = vunpack.c.h.bf16 %v4175
  %v4180 = vpack.c.bf16 %v4051, %v4051
  %4181 = vmatprep.subr.bf16.mxu0 %v519
  %4182 = vmatpush1.bf16.msra.mxu0 %v518
  %4183 = vmatprep.subr.bf16.mxu0 %v523
  %4184 = vmatpush1.bf16.msra.mxu0 %v522
  %4185 = vmatprep.subr.bf16.mxu0 %v527
  %4186 = vmatpush1.bf16.msra.mxu0 %v526
  %4187 = vmatprep.subr.bf16.mxu0 %v531
  %4188 = vmatpush1.bf16.msra.mxu0 %v530
  %4189 = vmatprep.subr.bf16.mxu0 %v535
  %4190 = vmatpush1.bf16.msra.mxu0 %v534
  %4191 = vmatprep.subr.bf16.mxu0 %v539
  %4192 = vmatpush1.bf16.msra.mxu0 %v538
  %4193 = vmatprep.subr.bf16.mxu0 %v543
  %4194 = vmatpush1.bf16.msra.mxu0 %v542
  %4195 = vmatprep.subr.bf16.mxu0 %v547
  %4196 = vmatpush1.bf16.msra.mxu0 %v546
  %4197 = vmatprep.subr.bf16.mxu0 0
  %4198 = vmatpush1.bf16.msra.mxu0 0
  %4199 = vmatprep.subr.bf16.mxu0 0
  %4200 = vmatpush1.bf16.msra.mxu0 0
  %4201 = vmatprep.subr.bf16.mxu0 0
  %4202 = vmatpush1.bf16.msra.mxu0 0
  %4203 = vmatprep.subr.bf16.mxu0 0
  %4204 = vmatpush1.bf16.msra.mxu0 0
  %4205 = vmatprep.subr.bf16.mxu0 0
  %4206 = vmatpush1.bf16.msra.mxu0 0
  %4207 = vmatprep.subr.bf16.mxu0 0
  %4208 = vmatpush1.bf16.msra.mxu0 0
  %4209 = vmatprep.subr.bf16.mxu0 0
  %4210 = vmatpush1.bf16.msra.mxu0 0
  %4211 = vmatprep.subr.bf16.mxu0 0
  %4212 = vmatpush1.bf16.msra.mxu0 0
  %4213 = vmatprep.mubr.bf16.mxu0 0
  %4214 = vmatmul.mubr.bf16.gmra.mrb[0].mxu0 %v4180
  %v4215 = vpop.f32.mrb[0].mxu0
  %v4216 = vadd.f32 0.0, %v4215
  %v4217 = vpop.f32.mrb[0].mxu0
  %v4218 = vadd.f32 0.0, %v4217
  %v4219 = vpop.f32.mrb[0].mxu0
  %v4220 = vpop.f32.mrb[0].mxu0
  %4221 = vdwg.mxu0
  %4222 = vmatprep.subr.bf16.mxu0 %v521
  %4223 = vmatpush1.bf16.msra.mxu0 %v520
  %4224 = vmatprep.subr.bf16.mxu0 %v525
  %4225 = vmatpush1.bf16.msra.mxu0 %v524
  %4226 = vmatprep.subr.bf16.mxu0 %v529
  %4227 = vmatpush1.bf16.msra.mxu0 %v528
  %4228 = vmatprep.subr.bf16.mxu0 %v533
  %4229 = vmatpush1.bf16.msra.mxu0 %v532
  %4230 = vmatprep.subr.bf16.mxu0 %v537
  %4231 = vmatpush1.bf16.msra.mxu0 %v536
  %4232 = vmatprep.subr.bf16.mxu0 %v541
  %4233 = vmatpush1.bf16.msra.mxu0 %v540
  %4234 = vmatprep.subr.bf16.mxu0 %v545
  %4235 = vmatpush1.bf16.msra.mxu0 %v544
  %4236 = vmatprep.subr.bf16.mxu0 %v549
  %4237 = vmatpush1.bf16.msra.mxu0 %v548
  %4238 = vmatprep.subr.bf16.mxu0 0
  %4239 = vmatpush1.bf16.msra.mxu0 0
  %4240 = vmatprep.subr.bf16.mxu0 0
  %4241 = vmatpush1.bf16.msra.mxu0 0
  %4242 = vmatprep.subr.bf16.mxu0 0
  %4243 = vmatpush1.bf16.msra.mxu0 0
  %4244 = vmatprep.subr.bf16.mxu0 0
  %4245 = vmatpush1.bf16.msra.mxu0 0
  %4246 = vmatprep.subr.bf16.mxu0 0
  %4247 = vmatpush1.bf16.msra.mxu0 0
  %4248 = vmatprep.subr.bf16.mxu0 0
  %4249 = vmatpush1.bf16.msra.mxu0 0
  %4250 = vmatprep.subr.bf16.mxu0 0
  %4251 = vmatpush1.bf16.msra.mxu0 0
  %4252 = vmatprep.subr.bf16.mxu0 0
  %4253 = vmatpush1.bf16.msra.mxu0 0
  %4254 = vmatprep.mubr.bf16.mxu0 0
  %4255 = vmatmul.mubr.bf16.gmra.mrb[0].mxu0 %v4180
  %v4256 = vpop.f32.mrb[0].mxu0
  %v4257 = vadd.f32 0.0, %v4256
  %v4258 = vpop.f32.mrb[0].mxu0
  %v4259 = vadd.f32 0.0, %v4258
  %v4260 = vpop.f32.mrb[0].mxu0
  %v4261 = vpop.f32.mrb[0].mxu0
  %4262 = vdwg.mxu0
  %v4263 = vadd.f32 %v4176, %v4216
  %v4264 = vadd.f32 %v4177, %v4218
  %v4265 = vadd.f32 %v4178, %v4257
  %v4266 = vadd.f32 %v4179, %v4259
  %v4267 = vxor.u32 %v4264, 2147483648
  %v4268 = vmul.f32 %v4267, 1.442695
  %v4269 = vpow.pop %v4268
  %v4270 = vadd.f32 %v4269, 1.0
  %v4271 = vrcp.pop %v4270
  %v4272 = vmul.f32 1.0, %v4271
  %v4273 = vmul.f32 %v4272, %v4043
  %v4274 = vxor.u32 %v4263, 2147483648
  %v4275 = vmul.f32 %v4274, 1.442695
  %v4276 = vpow.pop %v4275
  %v4277 = vadd.f32 %v4276, 1.0
  %v4278 = vrcp.pop %v4277
  %v4279 = vmul.f32 1.0, %v4278
  %v4280 = vtanh.pop %v4265
  %v4281 = vmul.f32 %v4279, %v4280
  %v4282 = vadd.f32 %v4273, %v4281
  %v4283 = vxor.u32 %v4266, 2147483648
  %v4284 = vmul.f32 %v4283, 1.442695
  %v4285 = vpow.pop %v4284
  %v4286 = vadd.f32 %v4285, 1.0
  %v4287 = vrcp.pop %v4286
  %v4288 = vmul.f32 1.0, %v4287
  %v4289 = vtanh.pop %v4282
  %v4290 = vmul.f32 %v4288, %v4289
  %4291 = vst [vmem:[%s56] sm:$0xff] %v4290
  %4292 = vst [vmem:[#allocation2] sm:$0xff] %v4171
  %4293 = vst [vmem:[#allocation3] sm:$0xff] %v4163
  %4294 = vst [vmem:[#allocation4] sm:$0xff] %v4290
  %4295 = vst [vmem:[#allocation5] sm:$0xff] %v4282
  // Predicated region
  $region22: #{lstm_layer_forward.1} parent=0 // pred_check
    %p4296 = pneg %p60
  $region23: #{lstm_layer_forward.1} parent=0 // pred_check_branch
    %4298 = sbr.rel (%p4296) target = $region25
  $region24: #{lstm_layer_forward.1} parent=0 // pred_region
    %4299 = vst [vmem:[%s6] sm:$0xff] %v4163
    %s4300 = scalar_lea.vmem %s6, 8
    %4301 = vst [vmem:[%s4300] sm:$0xff] %v683
  $region25: #{lstm_layer_forward.1} parent=0 // pred_fallthru
    _
  %s4302 = ssub.s32 0, 0
  %s4303 = smul.u32 16, %s4302
  %p4304 = scmp.lt.s32.totalorder %s4303, 15
  %s4305 = scalar_select %p4304, %s4303, 15
  %s4306 = smul.addr %s4305, 8
  %s4307 = scalar_lea.vmem %s5, %s4306
  // Predicated region
  $region26: #{lstm_layer_forward.1} parent=0 // pred_check
    _
  $region27: #{lstm_layer_forward.1} parent=0 // pred_check_branch
    %4309 = sbr.rel (0) target = $region29
  $region28: #{lstm_layer_forward.1} parent=0 // pred_region
    _
  $region29: #{lstm_layer_forward.1} parent=0 // pred_fallthru
    _
  // Predicated region
  $region30: #{lstm_layer_forward.1} parent=0 // pred_check
    _
  $region31: #{lstm_layer_forward.1} parent=0 // pred_check_branch
    %4311 = sbr.rel (0) target = $region33
  $region32: #{lstm_layer_forward.1} parent=0 // pred_region
    %s4312 = ssub.s32 0, 0
    %s4313 = smul.u32 16, %s4312
  $region33: #{lstm_layer_forward.1} parent=0 // pred_fallthru
    _
  // Predicated region
  $region34: #{lstm_layer_forward.1} parent=0 // pred_check
    _
  $region35: #{lstm_layer_forward.1} parent=0 // pred_check_branch
    %4315 = sbr.rel (0) target = $region37
  $region36: #{lstm_layer_forward.1} parent=0 // pred_region
    _
  $region37: #{lstm_layer_forward.1} parent=0 // pred_fallthru
    _
  // Predicated region
  $region38: #{lstm_layer_forward.1} parent=0 // pred_check
    _
  $region39: #{lstm_layer_forward.1} parent=0 // pred_check_branch
    %4317 = sbr.rel (0) target = $region41
  $region40: #{lstm_layer_forward.1} parent=0 // pred_region
    _
  $region41: #{lstm_layer_forward.1} parent=0 // pred_fallthru
    _
  // Predicated region
  $region42: #{lstm_layer_forward.1} parent=0 // pred_check
    _
  $region43: #{lstm_layer_forward.1} parent=0 // pred_check_branch
    %4319 = sbr.rel (0) target = $region45
  $region44: #{lstm_layer_forward.1} parent=0 // pred_region
    %s4320 = ssub.s32 0, 0
    %s4321 = smul.u32 16, %s4320
    %p4322 = scmp.lt.s32.totalorder %s4321, 15
    %s4323 = scalar_select %p4322, %s4321, 15
    %s4324 = smul.addr %s4323, 8
    %s4325 = scalar_lea.vmem %s5, %s4324
  $region45: #{lstm_layer_forward.1} parent=0 // pred_fallthru
    _
  // Predicated region
  $region46: #{lstm_layer_forward.1} parent=0 // pred_check
    _
  $region47: #{lstm_layer_forward.1} parent=0 // pred_check_branch
    %4327 = sbr.rel (0) target = $region49
  $region48: #{lstm_layer_forward.1} parent=0 // pred_region
    _
  $region49: #{lstm_layer_forward.1} parent=0 // pred_fallthru
    _

</llo_original>
